<compile_context>
chip_gen: v6e
topology: v6e:2x2x1
jax: 0.10.0
libtpu: 0.0.40
codegen_flags: <defaults>
</compile_context>

<pallas_src>
import jax
import jax.numpy as jnp
from jax.experimental import pallas as pl

EPS = 1e-5


def _fused_kernel(x_ref, w_ref, g1_ref, b1_ref, g2_ref, b2_ref, o_ref):
    # x_ref : (Cin, R)   R = N*H*W          (channels-first, lane axis = rows)
    # w_ref : (Cout, Cin)
    # g1/b1 : (Cin, 1),  g2/b2 : (Cout, 1)
    x = x_ref[...]
    r = x.shape[1]
    inv_r = 1.0 / r

    # --- BN1 (training-mode batch stats), single-pass, folded to affine ---
    s1 = jnp.sum(x, axis=1, keepdims=True)            # (Cin, 1)
    ss1 = jnp.sum(x * x, axis=1, keepdims=True)       # (Cin, 1)
    mean1 = s1 * inv_r
    var1 = jnp.maximum(ss1 * inv_r - mean1 * mean1, 0.0)
    a1 = g1_ref[...] * jax.lax.rsqrt(var1 + EPS)      # (Cin, 1)
    c1 = b1_ref[...] - mean1 * a1                     # (Cin, 1)
    y = jnp.maximum(x * a1 + c1, 0.0)                 # fma + relu per element

    # --- Conv2d 1x1 (no bias): (Cout, Cin) @ (Cin, R) on the MXU ---
    z = jnp.dot(w_ref[...], y, preferred_element_type=jnp.float32)   # (Cout, R)

    # --- BN2 (training-mode batch stats), single-pass, folded to affine ---
    s2 = jnp.sum(z, axis=1, keepdims=True)            # (Cout, 1)
    ss2 = jnp.sum(z * z, axis=1, keepdims=True)
    mean2 = s2 * inv_r
    var2 = jnp.maximum(ss2 * inv_r - mean2 * mean2, 0.0)
    a2 = g2_ref[...] * jax.lax.rsqrt(var2 + EPS)      # (Cout, 1)
    c2 = b2_ref[...] - mean2 * a2
    o_ref[...] = jnp.maximum(z * a2 + c2, 0.0)


def bn_relu_conv_bn_relu(x_nchw, conv_w, gamma1, beta1, gamma2, beta2):
    """x_nchw: (N, Cin, H, W) f32; conv_w: (Cout, Cin, 1, 1) f32."""
    N, Cin, H, W = x_nchw.shape
    Cout = conv_w.shape[0]
    R = N * H * W

    # NCHW -> (Cin, R): view-only reshape when N == 1 (the module's case).
    if N == 1:
        x2d = x_nchw.reshape(Cin, R)
    else:
        x2d = jnp.transpose(x_nchw, (1, 0, 2, 3)).reshape(Cin, R)

    w2d = conv_w.reshape(Cout, Cin)          # view-only, no transpose
    g1 = gamma1.reshape(Cin, 1)
    b1 = beta1.reshape(Cin, 1)
    g2 = gamma2.reshape(Cout, 1)
    b2 = beta2.reshape(Cout, 1)

    out2d = pl.pallas_call(
        _fused_kernel,
        out_shape=jax.ShapeDtypeStruct((Cout, R), jnp.float32),
        in_specs=[
            pl.BlockSpec((Cin, R), lambda: (0, 0)),
            pl.BlockSpec((Cout, Cin), lambda: (0, 0)),
            pl.BlockSpec((Cin, 1), lambda: (0, 0)),
            pl.BlockSpec((Cin, 1), lambda: (0, 0)),
            pl.BlockSpec((Cout, 1), lambda: (0, 0)),
            pl.BlockSpec((Cout, 1), lambda: (0, 0)),
        ],
        out_specs=pl.BlockSpec((Cout, R), lambda: (0, 0)),
    )(x2d, w2d, g1, b1, g2, b2)

    # (Cout, R) -> NCHW: view-only reshape when N == 1.
    if N == 1:
        return out2d.reshape(1, Cout, H, W)
    return jnp.transpose(out2d.reshape(Cout, N, H, W), (1, 0, 2, 3))


def _reference(x_nchw, conv_w, gamma1, beta1, gamma2, beta2):
    """Pure-JAX reference mirroring PyTorch training-mode BN semantics."""
    def bn(x, g, b):  # x: NCHW, stats over (N, H, W)
        mean = jnp.mean(x, axis=(0, 2, 3), keepdims=True)
        var = jnp.mean(jnp.square(x - mean), axis=(0, 2, 3), keepdims=True)
        return (x - mean) * jax.lax.rsqrt(var + EPS) * g[None, :, None, None] \
               + b[None, :, None, None]

    y = jax.nn.relu(bn(x_nchw, gamma1, beta1))
    z = jax.lax.conv_general_dilated(
        y, conv_w, window_strides=(1, 1), padding="VALID",
        dimension_numbers=("NCHW", "OIHW", "NCHW"))
    return jax.nn.relu(bn(z, gamma2, beta2))


if __name__ == "__main__":
    # Shapes implied by the module: x (1, 1280, 14, 14), conv weight (128, 1280, 1, 1).
    N, Cin, H, W, Cout = 1, 1280, 14, 14, 128

    key = jax.random.PRNGKey(0)
    kx, kw, kg1, kb1, kg2, kb2 = jax.random.split(key, 6)

    x = jax.random.normal(kx, (N, Cin, H, W), dtype=jnp.float32)
    conv_w = jax.random.normal(kw, (Cout, Cin, 1, 1), dtype=jnp.float32) * 0.02
    gamma1 = 1.0 + 0.1 * jax.random.normal(kg1, (Cin,), dtype=jnp.float32)
    beta1 = 0.1 * jax.random.normal(kb1, (Cin,), dtype=jnp.float32)
    gamma2 = 1.0 + 0.1 * jax.random.normal(kg2, (Cout,), dtype=jnp.float32)
    beta2 = 0.1 * jax.random.normal(kb2, (Cout,), dtype=jnp.float32)

    out = bn_relu_conv_bn_relu(x, conv_w, gamma1, beta1, gamma2, beta2)
    out = jax.block_until_ready(out)

    ref = jax.block_until_ready(_reference(x, conv_w, gamma1, beta1, gamma2, beta2))
    assert out.shape == (N, Cout, H, W)
    assert jnp.allclose(out, ref, atol=1e-3, rtol=1e-3), \
        f"max abs err {jnp.max(jnp.abs(out - ref))}"

    print("KERNEL_OK")
</pallas_src>

<mosaic_0001>
module attributes {stable_mosaic.version = 11 : i64} {
  func.func @_fused_kernel(%arg0: memref<1280x196xf32, #tpu.memory_space<vmem>>, %arg1: memref<128x1280xf32, #tpu.memory_space<vmem>>, %arg2: memref<1280x1xf32, #tpu.memory_space<vmem>>, %arg3: memref<1280x1xf32, #tpu.memory_space<vmem>>, %arg4: memref<128x1xf32, #tpu.memory_space<vmem>>, %arg5: memref<128x1xf32, #tpu.memory_space<vmem>>, %arg6: memref<128x196xf32, #tpu.memory_space<vmem>>) attributes {dimension_semantics = [], scalar_prefetch = 0 : i64, scratch_operands = 0 : i64, tpu.core_type = #tpu.core_type<tc>} {
    %c0 = arith.constant 0 : index
    %c0_0 = arith.constant 0 : index
    %0 = vector.load %arg0[%c0, %c0_0] : memref<1280x196xf32, #tpu.memory_space<vmem>>, vector<1280x196xf32>
    %cst = arith.constant dense<0.000000e+00> : vector<1280xf32>
    %1 = vector.multi_reduction <add>, %0, %cst [1] : vector<1280x196xf32> to vector<1280xf32>
    %2 = vector.shape_cast %1 : vector<1280xf32> to vector<1280x1xf32>
    %3 = arith.mulf %0, %0 : vector<1280x196xf32>
    %cst_1 = arith.constant dense<0.000000e+00> : vector<1280xf32>
    %4 = vector.multi_reduction <add>, %3, %cst_1 [1] : vector<1280x196xf32> to vector<1280xf32>
    %5 = vector.shape_cast %4 : vector<1280xf32> to vector<1280x1xf32>
    %cst_2 = arith.constant 0.00510204071 : f32
    %6 = vector.broadcast %cst_2 : f32 to vector<1280x1xf32>
    %7 = arith.mulf %2, %6 : vector<1280x1xf32>
    %cst_3 = arith.constant 0.00510204071 : f32
    %8 = vector.broadcast %cst_3 : f32 to vector<1280x1xf32>
    %9 = arith.mulf %5, %8 : vector<1280x1xf32>
    %10 = arith.mulf %7, %7 : vector<1280x1xf32>
    %11 = arith.subf %9, %10 : vector<1280x1xf32>
    %cst_4 = arith.constant 0.000000e+00 : f32
    %12 = vector.broadcast %cst_4 : f32 to vector<1280x1xf32>
    %13 = arith.maximumf %11, %12 : vector<1280x1xf32>
    %c0_5 = arith.constant 0 : index
    %c0_6 = arith.constant 0 : index
    %14 = vector.load %arg2[%c0_5, %c0_6] : memref<1280x1xf32, #tpu.memory_space<vmem>>, vector<1280x1xf32>
    %cst_7 = arith.constant 9.99999974E-6 : f32
    %15 = vector.broadcast %cst_7 : f32 to vector<1280x1xf32>
    %16 = arith.addf %13, %15 : vector<1280x1xf32>
    %17 = math.rsqrt %16 : vector<1280x1xf32>
    %18 = arith.mulf %14, %17 : vector<1280x1xf32>
    %c0_8 = arith.constant 0 : index
    %c0_9 = arith.constant 0 : index
    %19 = vector.load %arg3[%c0_8, %c0_9] : memref<1280x1xf32, #tpu.memory_space<vmem>>, vector<1280x1xf32>
    %20 = arith.mulf %7, %18 : vector<1280x1xf32>
    %21 = arith.subf %19, %20 : vector<1280x1xf32>
    %22 = vector.broadcast %18 : vector<1280x1xf32> to vector<1280x196xf32>
    %23 = arith.mulf %0, %22 : vector<1280x196xf32>
    %24 = vector.broadcast %21 : vector<1280x1xf32> to vector<1280x196xf32>
    %25 = arith.addf %23, %24 : vector<1280x196xf32>
    %cst_10 = arith.constant 0.000000e+00 : f32
    %26 = vector.broadcast %cst_10 : f32 to vector<1280x196xf32>
    %27 = arith.maximumf %25, %26 : vector<1280x196xf32>
    %c0_11 = arith.constant 0 : index
    %c0_12 = arith.constant 0 : index
    %28 = vector.load %arg1[%c0_11, %c0_12] : memref<128x1280xf32, #tpu.memory_space<vmem>>, vector<128x1280xf32>
    %cst_13 = arith.constant dense<0.000000e+00> : vector<128x196xf32>
    %29 = tpu.matmul %28, %27, %cst_13 {dimension_numbers = #tpu.dot_dimension_numbers<[1], [0], [0], [1], [0, 0, 1, 1], [], []>} : vector<128x1280xf32>, vector<1280x196xf32>, vector<128x196xf32> -> vector<128x196xf32>
    %cst_14 = arith.constant dense<0.000000e+00> : vector<128xf32>
    %30 = vector.multi_reduction <add>, %29, %cst_14 [1] : vector<128x196xf32> to vector<128xf32>
    %31 = vector.shape_cast %30 : vector<128xf32> to vector<128x1xf32>
    %32 = arith.mulf %29, %29 : vector<128x196xf32>
    %cst_15 = arith.constant dense<0.000000e+00> : vector<128xf32>
    %33 = vector.multi_reduction <add>, %32, %cst_15 [1] : vector<128x196xf32> to vector<128xf32>
    %34 = vector.shape_cast %33 : vector<128xf32> to vector<128x1xf32>
    %cst_16 = arith.constant 0.00510204071 : f32
    %35 = vector.broadcast %cst_16 : f32 to vector<128x1xf32>
    %36 = arith.mulf %31, %35 : vector<128x1xf32>
    %cst_17 = arith.constant 0.00510204071 : f32
    %37 = vector.broadcast %cst_17 : f32 to vector<128x1xf32>
    %38 = arith.mulf %34, %37 : vector<128x1xf32>
    %39 = arith.mulf %36, %36 : vector<128x1xf32>
    %40 = arith.subf %38, %39 : vector<128x1xf32>
    %cst_18 = arith.constant 0.000000e+00 : f32
    %41 = vector.broadcast %cst_18 : f32 to vector<128x1xf32>
    %42 = arith.maximumf %40, %41 : vector<128x1xf32>
    %c0_19 = arith.constant 0 : index
    %c0_20 = arith.constant 0 : index
    %43 = vector.load %arg4[%c0_19, %c0_20] : memref<128x1xf32, #tpu.memory_space<vmem>>, vector<128x1xf32>
    %cst_21 = arith.constant 9.99999974E-6 : f32
    %44 = vector.broadcast %cst_21 : f32 to vector<128x1xf32>
    %45 = arith.addf %42, %44 : vector<128x1xf32>
    %46 = math.rsqrt %45 : vector<128x1xf32>
    %47 = arith.mulf %43, %46 : vector<128x1xf32>
    %c0_22 = arith.constant 0 : index
    %c0_23 = arith.constant 0 : index
    %48 = vector.load %arg5[%c0_22, %c0_23] : memref<128x1xf32, #tpu.memory_space<vmem>>, vector<128x1xf32>
    %49 = arith.mulf %36, %47 : vector<128x1xf32>
    %50 = arith.subf %48, %49 : vector<128x1xf32>
    %51 = vector.broadcast %47 : vector<128x1xf32> to vector<128x196xf32>
    %52 = arith.mulf %29, %51 : vector<128x196xf32>
    %53 = vector.broadcast %50 : vector<128x1xf32> to vector<128x196xf32>
    %54 = arith.addf %52, %53 : vector<128x196xf32>
    %cst_24 = arith.constant 0.000000e+00 : f32
    %55 = vector.broadcast %cst_24 : f32 to vector<128x196xf32>
    %56 = arith.maximumf %54, %55 : vector<128x196xf32>
    %c0_25 = arith.constant 0 : index
    %c0_26 = arith.constant 0 : index
    %57 = vector.load %arg6[%c0_25, %c0_26] : memref<128x196xf32, #tpu.memory_space<vmem>>, vector<128x196xf32>
    tpu.vector_store %arg6[%c0_25, %c0_26], %56 {strides = array<i32>} : memref<128x196xf32, #tpu.memory_space<vmem>>, vector<128x196xf32>,
    return
  }
}

</mosaic_0001>

<llo_original>
// kernel: tpu_custom_call.1
$region0: #{tpu_custom_call.1}
  #allocation0 [shape = 'u32[]', space=smem, size = 0x4, offset = 0x4, fixed_abs, tag = 'smem constant byte address 0x4 - core index']
  #allocation1 [shape = 'u32[144,128]{1,0:T(1,128)}', space=vmem, size = 0x12000, scoped, tag = 'internal scratch']
  %s0 = inlined_call_operand.vmem [shape: f32[1280,196], index: 0, kind: input, shape index: {}]
  %s1 = inlined_call_operand.vmem [shape: f32[128,1280], index: 1, kind: input, shape index: {}]
  %s2 = inlined_call_operand.vmem [shape: f32[1280,1], index: 2, kind: input, shape index: {}]
  %s3 = inlined_call_operand.vmem [shape: f32[1280,1], index: 3, kind: input, shape index: {}]
  %s4 = inlined_call_operand.vmem [shape: f32[128,1], index: 4, kind: input, shape index: {}]
  %s5 = inlined_call_operand.vmem [shape: f32[128,1], index: 5, kind: input, shape index: {}]
  %s6 = inlined_call_operand.vmem [shape: f32[128,196], index: 6, kind: output, shape index: {}]
  %s7 = sld [smem:[#allocation0]]
  $region34: #{tpu_custom_call.1} parent=0
    _
  %s9 = ssub.s32 1, %s7
  %s10 = scalar_select 0, %s9, %s7
  // Predicated region
  $region2: #{tpu_custom_call.1} parent=0 // pred_check
    _
  $region3: #{tpu_custom_call.1} parent=0 // pred_check_branch
    %12 = sbr.rel (0) target = $region5
  $region4: #{tpu_custom_call.1} parent=0 // pred_region
    _
  $region5: #{tpu_custom_call.1} parent=0 // pred_fallthru
    _
  // Predicated region
  $region6: #{tpu_custom_call.1} parent=0 // pred_check
    _
  $region7: #{tpu_custom_call.1} parent=0 // pred_check_branch
    %14 = sbr.rel (0) target = $region9
  $region8: #{tpu_custom_call.1} parent=0 // pred_region
    _
  $region9: #{tpu_custom_call.1} parent=0 // pred_fallthru
    _
  // Predicated region
  $region10: #{tpu_custom_call.1} parent=0 // pred_check
    _
  $region11: #{tpu_custom_call.1} parent=0 // pred_check_branch
    %16 = sbr.rel (0) target = $region13
  $region12: #{tpu_custom_call.1} parent=0 // pred_region
    _
  $region13: #{tpu_custom_call.1} parent=0 // pred_fallthru
    _
  // Predicated region
  $region14: #{tpu_custom_call.1} parent=0 // pred_check
    _
  $region15: #{tpu_custom_call.1} parent=0 // pred_check_branch
    %18 = sbr.rel (0) target = $region17
  $region16: #{tpu_custom_call.1} parent=0 // pred_region
    _
  $region17: #{tpu_custom_call.1} parent=0 // pred_fallthru
    _
  // Predicated region
  $region18: #{tpu_custom_call.1} parent=0 // pred_check
    _
  $region19: #{tpu_custom_call.1} parent=0 // pred_check_branch
    %20 = sbr.rel (0) target = $region21
  $region20: #{tpu_custom_call.1} parent=0 // pred_region
    _
  $region21: #{tpu_custom_call.1} parent=0 // pred_fallthru
    _
  // Predicated region
  $region22: #{tpu_custom_call.1} parent=0 // pred_check
    _
  $region23: #{tpu_custom_call.1} parent=0 // pred_check_branch
    %22 = sbr.rel (0) target = $region25
  $region24: #{tpu_custom_call.1} parent=0 // pred_region
    _
  $region25: #{tpu_custom_call.1} parent=0 // pred_fallthru
    _
  %v23 = vld [vmem:[%s0] sm:$0xff]
  %v24 = vld [vmem:[%s0 + $0x8] sm:$0xff]
  %v25 = vld [vmem:[%s0 + $0x10] sm:$0xff]
  %v26 = vld [vmem:[%s0 + $0x18] sm:$0xff]
  %v27 = vld [vmem:[%s0 + $0x20] sm:$0xff]
  %v28 = vld [vmem:[%s0 + $0x28] sm:$0xff]
  %v29 = vld [vmem:[%s0 + $0x30] sm:$0xff]
  %v30 = vld [vmem:[%s0 + $0x38] sm:$0xff]
  %v31 = vld [vmem:[%s0 + $0x40] sm:$0xff]
  %v32 = vld [vmem:[%s0 + $0x48] sm:$0xff]
  %v33 = vld [vmem:[%s0 + $0x50] sm:$0xff]
  %v34 = vld [vmem:[%s0 + $0x58] sm:$0xff]
  %v35 = vld [vmem:[%s0 + $0x60] sm:$0xff]
  %v36 = vld [vmem:[%s0 + $0x68] sm:$0xff]
  %v37 = vld [vmem:[%s0 + $0x70] sm:$0xff]
  %v38 = vld [vmem:[%s0 + $0x78] sm:$0xff]
  %v39 = vld [vmem:[%s0 + $0x80] sm:$0xff]
  %v40 = vld [vmem:[%s0 + $0x88] sm:$0xff]
  %v41 = vld [vmem:[%s0 + $0x90] sm:$0xff]
  %v42 = vld [vmem:[%s0 + $0x98] sm:$0xff]
  %v43 = vld [vmem:[%s0 + $0xa0] sm:$0xff]
  %v44 = vld [vmem:[%s0 + $0xa8] sm:$0xff]
  %v45 = vld [vmem:[%s0 + $0xb0] sm:$0xff]
  %v46 = vld [vmem:[%s0 + $0xb8] sm:$0xff]
  %v47 = vld [vmem:[%s0 + $0xc0] sm:$0xff]
  %v48 = vld [vmem:[%s0 + $0xc8] sm:$0xff]
  %v49 = vld [vmem:[%s0 + $0xd0] sm:$0xff]
  %v50 = vld [vmem:[%s0 + $0xd8] sm:$0xff]
  %v51 = vld [vmem:[%s0 + $0xe0] sm:$0xff]
  %v52 = vld [vmem:[%s0 + $0xe8] sm:$0xff]
  %v53 = vld [vmem:[%s0 + $0xf0] sm:$0xff]
  %v54 = vld [vmem:[%s0 + $0xf8] sm:$0xff]
  %v55 = vld [vmem:[%s0 + $0x100] sm:$0xff]
  %v56 = vld [vmem:[%s0 + $0x108] sm:$0xff]
  %v57 = vld [vmem:[%s0 + $0x110] sm:$0xff]
  %v58 = vld [vmem:[%s0 + $0x118] sm:$0xff]
  %v59 = vld [vmem:[%s0 + $0x120] sm:$0xff]
  %v60 = vld [vmem:[%s0 + $0x128] sm:$0xff]
  %v61 = vld [vmem:[%s0 + $0x130] sm:$0xff]
  %v62 = vld [vmem:[%s0 + $0x138] sm:$0xff]
  %v63 = vld [vmem:[%s0 + $0x140] sm:$0xff]
  %v64 = vld [vmem:[%s0 + $0x148] sm:$0xff]
  %v65 = vld [vmem:[%s0 + $0x150] sm:$0xff]
  %v66 = vld [vmem:[%s0 + $0x158] sm:$0xff]
  %v67 = vld [vmem:[%s0 + $0x160] sm:$0xff]
  %v68 = vld [vmem:[%s0 + $0x168] sm:$0xff]
  %v69 = vld [vmem:[%s0 + $0x170] sm:$0xff]
  %v70 = vld [vmem:[%s0 + $0x178] sm:$0xff]
  %v71 = vld [vmem:[%s0 + $0x180] sm:$0xff]
  %v72 = vld [vmem:[%s0 + $0x188] sm:$0xff]
  %v73 = vld [vmem:[%s0 + $0x190] sm:$0xff]
  %v74 = vld [vmem:[%s0 + $0x198] sm:$0xff]
  %v75 = vld [vmem:[%s0 + $0x1a0] sm:$0xff]
  %v76 = vld [vmem:[%s0 + $0x1a8] sm:$0xff]
  %v77 = vld [vmem:[%s0 + $0x1b0] sm:$0xff]
  %v78 = vld [vmem:[%s0 + $0x1b8] sm:$0xff]
  %v79 = vld [vmem:[%s0 + $0x1c0] sm:$0xff]
  %v80 = vld [vmem:[%s0 + $0x1c8] sm:$0xff]
  %v81 = vld [vmem:[%s0 + $0x1d0] sm:$0xff]
  %v82 = vld [vmem:[%s0 + $0x1d8] sm:$0xff]
  %v83 = vld [vmem:[%s0 + $0x1e0] sm:$0xff]
  %v84 = vld [vmem:[%s0 + $0x1e8] sm:$0xff]
  %v85 = vld [vmem:[%s0 + $0x1f0] sm:$0xff]
  %v86 = vld [vmem:[%s0 + $0x1f8] sm:$0xff]
  %v87 = vld [vmem:[%s0 + $0x200] sm:$0xff]
  %v88 = vld [vmem:[%s0 + $0x208] sm:$0xff]
  %v89 = vld [vmem:[%s0 + $0x210] sm:$0xff]
  %v90 = vld [vmem:[%s0 + $0x218] sm:$0xff]
  %v91 = vld [vmem:[%s0 + $0x220] sm:$0xff]
  %v92 = vld [vmem:[%s0 + $0x228] sm:$0xff]
  %v93 = vld [vmem:[%s0 + $0x230] sm:$0xff]
  %v94 = vld [vmem:[%s0 + $0x238] sm:$0xff]
  %v95 = vld [vmem:[%s0 + $0x240] sm:$0xff]
  %v96 = vld [vmem:[%s0 + $0x248] sm:$0xff]
  %v97 = vld [vmem:[%s0 + $0x250] sm:$0xff]
  %v98 = vld [vmem:[%s0 + $0x258] sm:$0xff]
  %v99 = vld [vmem:[%s0 + $0x260] sm:$0xff]
  %v100 = vld [vmem:[%s0 + $0x268] sm:$0xff]
  %v101 = vld [vmem:[%s0 + $0x270] sm:$0xff]
  %v102 = vld [vmem:[%s0 + $0x278] sm:$0xff]
  %v103 = vld [vmem:[%s0 + $0x280] sm:$0xff]
  %v104 = vld [vmem:[%s0 + $0x288] sm:$0xff]
  %v105 = vld [vmem:[%s0 + $0x290] sm:$0xff]
  %v106 = vld [vmem:[%s0 + $0x298] sm:$0xff]
  %v107 = vld [vmem:[%s0 + $0x2a0] sm:$0xff]
  %v108 = vld [vmem:[%s0 + $0x2a8] sm:$0xff]
  %v109 = vld [vmem:[%s0 + $0x2b0] sm:$0xff]
  %v110 = vld [vmem:[%s0 + $0x2b8] sm:$0xff]
  %v111 = vld [vmem:[%s0 + $0x2c0] sm:$0xff]
  %v112 = vld [vmem:[%s0 + $0x2c8] sm:$0xff]
  %v113 = vld [vmem:[%s0 + $0x2d0] sm:$0xff]
  %v114 = vld [vmem:[%s0 + $0x2d8] sm:$0xff]
  %v115 = vld [vmem:[%s0 + $0x2e0] sm:$0xff]
  %v116 = vld [vmem:[%s0 + $0x2e8] sm:$0xff]
  %v117 = vld [vmem:[%s0 + $0x2f0] sm:$0xff]
  %v118 = vld [vmem:[%s0 + $0x2f8] sm:$0xff]
  %v119 = vld [vmem:[%s0 + $0x300] sm:$0xff]
  %v120 = vld [vmem:[%s0 + $0x308] sm:$0xff]
  %v121 = vld [vmem:[%s0 + $0x310] sm:$0xff]
  %v122 = vld [vmem:[%s0 + $0x318] sm:$0xff]
  %v123 = vld [vmem:[%s0 + $0x320] sm:$0xff]
  %v124 = vld [vmem:[%s0 + $0x328] sm:$0xff]
  %v125 = vld [vmem:[%s0 + $0x330] sm:$0xff]
  %v126 = vld [vmem:[%s0 + $0x338] sm:$0xff]
  %v127 = vld [vmem:[%s0 + $0x340] sm:$0xff]
  %v128 = vld [vmem:[%s0 + $0x348] sm:$0xff]
  %v129 = vld [vmem:[%s0 + $0x350] sm:$0xff]
  %v130 = vld [vmem:[%s0 + $0x358] sm:$0xff]
  %v131 = vld [vmem:[%s0 + $0x360] sm:$0xff]
  %v132 = vld [vmem:[%s0 + $0x368] sm:$0xff]
  %v133 = vld [vmem:[%s0 + $0x370] sm:$0xff]
  %v134 = vld [vmem:[%s0 + $0x378] sm:$0xff]
  %v135 = vld [vmem:[%s0 + $0x380] sm:$0xff]
  %v136 = vld [vmem:[%s0 + $0x388] sm:$0xff]
  %v137 = vld [vmem:[%s0 + $0x390] sm:$0xff]
  %v138 = vld [vmem:[%s0 + $0x398] sm:$0xff]
  %v139 = vld [vmem:[%s0 + $0x3a0] sm:$0xff]
  %v140 = vld [vmem:[%s0 + $0x3a8] sm:$0xff]
  %v141 = vld [vmem:[%s0 + $0x3b0] sm:$0xff]
  %v142 = vld [vmem:[%s0 + $0x3b8] sm:$0xff]
  %v143 = vld [vmem:[%s0 + $0x3c0] sm:$0xff]
  %v144 = vld [vmem:[%s0 + $0x3c8] sm:$0xff]
  %v145 = vld [vmem:[%s0 + $0x3d0] sm:$0xff]
  %v146 = vld [vmem:[%s0 + $0x3d8] sm:$0xff]
  %v147 = vld [vmem:[%s0 + $0x3e0] sm:$0xff]
  %v148 = vld [vmem:[%s0 + $0x3e8] sm:$0xff]
  %v149 = vld [vmem:[%s0 + $0x3f0] sm:$0xff]
  %v150 = vld [vmem:[%s0 + $0x3f8] sm:$0xff]
  %v151 = vld [vmem:[%s0 + $0x400] sm:$0xff]
  %v152 = vld [vmem:[%s0 + $0x408] sm:$0xff]
  %v153 = vld [vmem:[%s0 + $0x410] sm:$0xff]
  %v154 = vld [vmem:[%s0 + $0x418] sm:$0xff]
  %v155 = vld [vmem:[%s0 + $0x420] sm:$0xff]
  %v156 = vld [vmem:[%s0 + $0x428] sm:$0xff]
  %v157 = vld [vmem:[%s0 + $0x430] sm:$0xff]
  %v158 = vld [vmem:[%s0 + $0x438] sm:$0xff]
  %v159 = vld [vmem:[%s0 + $0x440] sm:$0xff]
  %v160 = vld [vmem:[%s0 + $0x448] sm:$0xff]
  %v161 = vld [vmem:[%s0 + $0x450] sm:$0xff]
  %v162 = vld [vmem:[%s0 + $0x458] sm:$0xff]
  %v163 = vld [vmem:[%s0 + $0x460] sm:$0xff]
  %v164 = vld [vmem:[%s0 + $0x468] sm:$0xff]
  %v165 = vld [vmem:[%s0 + $0x470] sm:$0xff]
  %v166 = vld [vmem:[%s0 + $0x478] sm:$0xff]
  %v167 = vld [vmem:[%s0 + $0x480] sm:$0xff]
  %v168 = vld [vmem:[%s0 + $0x488] sm:$0xff]
  %v169 = vld [vmem:[%s0 + $0x490] sm:$0xff]
  %v170 = vld [vmem:[%s0 + $0x498] sm:$0xff]
  %v171 = vld [vmem:[%s0 + $0x4a0] sm:$0xff]
  %v172 = vld [vmem:[%s0 + $0x4a8] sm:$0xff]
  %v173 = vld [vmem:[%s0 + $0x4b0] sm:$0xff]
  %v174 = vld [vmem:[%s0 + $0x4b8] sm:$0xff]
  %v175 = vld [vmem:[%s0 + $0x4c0] sm:$0xff]
  %v176 = vld [vmem:[%s0 + $0x4c8] sm:$0xff]
  %v177 = vld [vmem:[%s0 + $0x4d0] sm:$0xff]
  %v178 = vld [vmem:[%s0 + $0x4d8] sm:$0xff]
  %v179 = vld [vmem:[%s0 + $0x4e0] sm:$0xff]
  %v180 = vld [vmem:[%s0 + $0x4e8] sm:$0xff]
  %v181 = vld [vmem:[%s0 + $0x4f0] sm:$0xff]
  %v182 = vld [vmem:[%s0 + $0x4f8] sm:$0xff]
  %v183 = vld [vmem:[%s0 + $0x500] sm:$0xff]
  %v184 = vld [vmem:[%s0 + $0x508] sm:$0xff]
  %v185 = vld [vmem:[%s0 + $0x510] sm:$0xff]
  %v186 = vld [vmem:[%s0 + $0x518] sm:$0xff]
  %v187 = vld [vmem:[%s0 + $0x520] sm:$0xff]
  %v188 = vld [vmem:[%s0 + $0x528] sm:$0xff]
  %v189 = vld [vmem:[%s0 + $0x530] sm:$0xff]
  %v190 = vld [vmem:[%s0 + $0x538] sm:$0xff]
  %v191 = vld [vmem:[%s0 + $0x540] sm:$0xff]
  %v192 = vld [vmem:[%s0 + $0x548] sm:$0xff]
  %v193 = vld [vmem:[%s0 + $0x550] sm:$0xff]
  %v194 = vld [vmem:[%s0 + $0x558] sm:$0xff]
  %v195 = vld [vmem:[%s0 + $0x560] sm:$0xff]
  %v196 = vld [vmem:[%s0 + $0x568] sm:$0xff]
  %v197 = vld [vmem:[%s0 + $0x570] sm:$0xff]
  %v198 = vld [vmem:[%s0 + $0x578] sm:$0xff]
  %v199 = vld [vmem:[%s0 + $0x580] sm:$0xff]
  %v200 = vld [vmem:[%s0 + $0x588] sm:$0xff]
  %v201 = vld [vmem:[%s0 + $0x590] sm:$0xff]
  %v202 = vld [vmem:[%s0 + $0x598] sm:$0xff]
  %v203 = vld [vmem:[%s0 + $0x5a0] sm:$0xff]
  %v204 = vld [vmem:[%s0 + $0x5a8] sm:$0xff]
  %v205 = vld [vmem:[%s0 + $0x5b0] sm:$0xff]
  %v206 = vld [vmem:[%s0 + $0x5b8] sm:$0xff]
  %v207 = vld [vmem:[%s0 + $0x5c0] sm:$0xff]
  %v208 = vld [vmem:[%s0 + $0x5c8] sm:$0xff]
  %v209 = vld [vmem:[%s0 + $0x5d0] sm:$0xff]
  %v210 = vld [vmem:[%s0 + $0x5d8] sm:$0xff]
  %v211 = vld [vmem:[%s0 + $0x5e0] sm:$0xff]
  %v212 = vld [vmem:[%s0 + $0x5e8] sm:$0xff]
  %v213 = vld [vmem:[%s0 + $0x5f0] sm:$0xff]
  %v214 = vld [vmem:[%s0 + $0x5f8] sm:$0xff]
  %v215 = vld [vmem:[%s0 + $0x600] sm:$0xff]
  %v216 = vld [vmem:[%s0 + $0x608] sm:$0xff]
  %v217 = vld [vmem:[%s0 + $0x610] sm:$0xff]
  %v218 = vld [vmem:[%s0 + $0x618] sm:$0xff]
  %v219 = vld [vmem:[%s0 + $0x620] sm:$0xff]
  %v220 = vld [vmem:[%s0 + $0x628] sm:$0xff]
  %v221 = vld [vmem:[%s0 + $0x630] sm:$0xff]
  %v222 = vld [vmem:[%s0 + $0x638] sm:$0xff]
  %v223 = vld [vmem:[%s0 + $0x640] sm:$0xff]
  %v224 = vld [vmem:[%s0 + $0x648] sm:$0xff]
  %v225 = vld [vmem:[%s0 + $0x650] sm:$0xff]
  %v226 = vld [vmem:[%s0 + $0x658] sm:$0xff]
  %v227 = vld [vmem:[%s0 + $0x660] sm:$0xff]
  %v228 = vld [vmem:[%s0 + $0x668] sm:$0xff]
  %v229 = vld [vmem:[%s0 + $0x670] sm:$0xff]
  %v230 = vld [vmem:[%s0 + $0x678] sm:$0xff]
  %v231 = vld [vmem:[%s0 + $0x680] sm:$0xff]
  %v232 = vld [vmem:[%s0 + $0x688] sm:$0xff]
  %v233 = vld [vmem:[%s0 + $0x690] sm:$0xff]
  %v234 = vld [vmem:[%s0 + $0x698] sm:$0xff]
  %v235 = vld [vmem:[%s0 + $0x6a0] sm:$0xff]
  %v236 = vld [vmem:[%s0 + $0x6a8] sm:$0xff]
  %v237 = vld [vmem:[%s0 + $0x6b0] sm:$0xff]
  %v238 = vld [vmem:[%s0 + $0x6b8] sm:$0xff]
  %v239 = vld [vmem:[%s0 + $0x6c0] sm:$0xff]
  %v240 = vld [vmem:[%s0 + $0x6c8] sm:$0xff]
  %v241 = vld [vmem:[%s0 + $0x6d0] sm:$0xff]
  %v242 = vld [vmem:[%s0 + $0x6d8] sm:$0xff]
  %v243 = vld [vmem:[%s0 + $0x6e0] sm:$0xff]
  %v244 = vld [vmem:[%s0 + $0x6e8] sm:$0xff]
  %v245 = vld [vmem:[%s0 + $0x6f0] sm:$0xff]
  %v246 = vld [vmem:[%s0 + $0x6f8] sm:$0xff]
  %v247 = vld [vmem:[%s0 + $0x700] sm:$0xff]
  %v248 = vld [vmem:[%s0 + $0x708] sm:$0xff]
  %v249 = vld [vmem:[%s0 + $0x710] sm:$0xff]
  %v250 = vld [vmem:[%s0 + $0x718] sm:$0xff]
  %v251 = vld [vmem:[%s0 + $0x720] sm:$0xff]
  %v252 = vld [vmem:[%s0 + $0x728] sm:$0xff]
  %v253 = vld [vmem:[%s0 + $0x730] sm:$0xff]
  %v254 = vld [vmem:[%s0 + $0x738] sm:$0xff]
  %v255 = vld [vmem:[%s0 + $0x740] sm:$0xff]
  %v256 = vld [vmem:[%s0 + $0x748] sm:$0xff]
  %v257 = vld [vmem:[%s0 + $0x750] sm:$0xff]
  %v258 = vld [vmem:[%s0 + $0x758] sm:$0xff]
  %v259 = vld [vmem:[%s0 + $0x760] sm:$0xff]
  %v260 = vld [vmem:[%s0 + $0x768] sm:$0xff]
  %v261 = vld [vmem:[%s0 + $0x770] sm:$0xff]
  %v262 = vld [vmem:[%s0 + $0x778] sm:$0xff]
  %v263 = vld [vmem:[%s0 + $0x780] sm:$0xff]
  %v264 = vld [vmem:[%s0 + $0x788] sm:$0xff]
  %v265 = vld [vmem:[%s0 + $0x790] sm:$0xff]
  %v266 = vld [vmem:[%s0 + $0x798] sm:$0xff]
  %v267 = vld [vmem:[%s0 + $0x7a0] sm:$0xff]
  %v268 = vld [vmem:[%s0 + $0x7a8] sm:$0xff]
  %v269 = vld [vmem:[%s0 + $0x7b0] sm:$0xff]
  %v270 = vld [vmem:[%s0 + $0x7b8] sm:$0xff]
  %v271 = vld [vmem:[%s0 + $0x7c0] sm:$0xff]
  %v272 = vld [vmem:[%s0 + $0x7c8] sm:$0xff]
  %v273 = vld [vmem:[%s0 + $0x7d0] sm:$0xff]
  %v274 = vld [vmem:[%s0 + $0x7d8] sm:$0xff]
  %v275 = vld [vmem:[%s0 + $0x7e0] sm:$0xff]
  %v276 = vld [vmem:[%s0 + $0x7e8] sm:$0xff]
  %v277 = vld [vmem:[%s0 + $0x7f0] sm:$0xff]
  %v278 = vld [vmem:[%s0 + $0x7f8] sm:$0xff]
  %v279 = vld [vmem:[%s0 + $0x800] sm:$0xff]
  %v280 = vld [vmem:[%s0 + $0x808] sm:$0xff]
  %v281 = vld [vmem:[%s0 + $0x810] sm:$0xff]
  %v282 = vld [vmem:[%s0 + $0x818] sm:$0xff]
  %v283 = vld [vmem:[%s0 + $0x820] sm:$0xff]
  %v284 = vld [vmem:[%s0 + $0x828] sm:$0xff]
  %v285 = vld [vmem:[%s0 + $0x830] sm:$0xff]
  %v286 = vld [vmem:[%s0 + $0x838] sm:$0xff]
  %v287 = vld [vmem:[%s0 + $0x840] sm:$0xff]
  %v288 = vld [vmem:[%s0 + $0x848] sm:$0xff]
  %v289 = vld [vmem:[%s0 + $0x850] sm:$0xff]
  %v290 = vld [vmem:[%s0 + $0x858] sm:$0xff]
  %v291 = vld [vmem:[%s0 + $0x860] sm:$0xff]
  %v292 = vld [vmem:[%s0 + $0x868] sm:$0xff]
  %v293 = vld [vmem:[%s0 + $0x870] sm:$0xff]
  %v294 = vld [vmem:[%s0 + $0x878] sm:$0xff]
  %v295 = vld [vmem:[%s0 + $0x880] sm:$0xff]
  %v296 = vld [vmem:[%s0 + $0x888] sm:$0xff]
  %v297 = vld [vmem:[%s0 + $0x890] sm:$0xff]
  %v298 = vld [vmem:[%s0 + $0x898] sm:$0xff]
  %v299 = vld [vmem:[%s0 + $0x8a0] sm:$0xff]
  %v300 = vld [vmem:[%s0 + $0x8a8] sm:$0xff]
  %v301 = vld [vmem:[%s0 + $0x8b0] sm:$0xff]
  %v302 = vld [vmem:[%s0 + $0x8b8] sm:$0xff]
  %v303 = vld [vmem:[%s0 + $0x8c0] sm:$0xff]
  %v304 = vld [vmem:[%s0 + $0x8c8] sm:$0xff]
  %v305 = vld [vmem:[%s0 + $0x8d0] sm:$0xff]
  %v306 = vld [vmem:[%s0 + $0x8d8] sm:$0xff]
  %v307 = vld [vmem:[%s0 + $0x8e0] sm:$0xff]
  %v308 = vld [vmem:[%s0 + $0x8e8] sm:$0xff]
  %v309 = vld [vmem:[%s0 + $0x8f0] sm:$0xff]
  %v310 = vld [vmem:[%s0 + $0x8f8] sm:$0xff]
  %v311 = vld [vmem:[%s0 + $0x900] sm:$0xff]
  %v312 = vld [vmem:[%s0 + $0x908] sm:$0xff]
  %v313 = vld [vmem:[%s0 + $0x910] sm:$0xff]
  %v314 = vld [vmem:[%s0 + $0x918] sm:$0xff]
  %v315 = vld [vmem:[%s0 + $0x920] sm:$0xff]
  %v316 = vld [vmem:[%s0 + $0x928] sm:$0xff]
  %v317 = vld [vmem:[%s0 + $0x930] sm:$0xff]
  %v318 = vld [vmem:[%s0 + $0x938] sm:$0xff]
  %v319 = vld [vmem:[%s0 + $0x940] sm:$0xff]
  %v320 = vld [vmem:[%s0 + $0x948] sm:$0xff]
  %v321 = vld [vmem:[%s0 + $0x950] sm:$0xff]
  %v322 = vld [vmem:[%s0 + $0x958] sm:$0xff]
  %v323 = vld [vmem:[%s0 + $0x960] sm:$0xff]
  %v324 = vld [vmem:[%s0 + $0x968] sm:$0xff]
  %v325 = vld [vmem:[%s0 + $0x970] sm:$0xff]
  %v326 = vld [vmem:[%s0 + $0x978] sm:$0xff]
  %v327 = vld [vmem:[%s0 + $0x980] sm:$0xff]
  %v328 = vld [vmem:[%s0 + $0x988] sm:$0xff]
  %v329 = vld [vmem:[%s0 + $0x990] sm:$0xff]
  %v330 = vld [vmem:[%s0 + $0x998] sm:$0xff]
  %v331 = vld [vmem:[%s0 + $0x9a0] sm:$0xff]
  %v332 = vld [vmem:[%s0 + $0x9a8] sm:$0xff]
  %v333 = vld [vmem:[%s0 + $0x9b0] sm:$0xff]
  %v334 = vld [vmem:[%s0 + $0x9b8] sm:$0xff]
  %v335 = vld [vmem:[%s0 + $0x9c0] sm:$0xff]
  %v336 = vld [vmem:[%s0 + $0x9c8] sm:$0xff]
  %v337 = vld [vmem:[%s0 + $0x9d0] sm:$0xff]
  %v338 = vld [vmem:[%s0 + $0x9d8] sm:$0xff]
  %v339 = vld [vmem:[%s0 + $0x9e0] sm:$0xff]
  %v340 = vld [vmem:[%s0 + $0x9e8] sm:$0xff]
  %v341 = vld [vmem:[%s0 + $0x9f0] sm:$0xff]
  %v342 = vld [vmem:[%s0 + $0x9f8] sm:$0xff]
  %vm343 = vcmask 556032
  %v344 = vsel %vm343, %v24, 0.0
  %v345 = vadd.f32 %v23, %v344
  %346 = vadd.xlane.f32.xlu0 %v345
  %v347 = vpop.xlane.xlu0 %346
  %v348 = vsel %vm343, %v26, 0.0
  %v349 = vadd.f32 %v25, %v348
  %350 = vadd.xlane.f32.xlu0 %v349
  %v351 = vpop.xlane.xlu0 %350
  %v352 = vsel %vm343, %v28, 0.0
  %v353 = vadd.f32 %v27, %v352
  %354 = vadd.xlane.f32.xlu0 %v353
  %v355 = vpop.xlane.xlu0 %354
  %v356 = vsel %vm343, %v30, 0.0
  %v357 = vadd.f32 %v29, %v356
  %358 = vadd.xlane.f32.xlu0 %v357
  %v359 = vpop.xlane.xlu0 %358
  %v360 = vsel %vm343, %v32, 0.0
  %v361 = vadd.f32 %v31, %v360
  %362 = vadd.xlane.f32.xlu0 %v361
  %v363 = vpop.xlane.xlu0 %362
  %v364 = vsel %vm343, %v34, 0.0
  %v365 = vadd.f32 %v33, %v364
  %366 = vadd.xlane.f32.xlu0 %v365
  %v367 = vpop.xlane.xlu0 %366
  %v368 = vsel %vm343, %v36, 0.0
  %v369 = vadd.f32 %v35, %v368
  %370 = vadd.xlane.f32.xlu0 %v369
  %v371 = vpop.xlane.xlu0 %370
  %v372 = vsel %vm343, %v38, 0.0
  %v373 = vadd.f32 %v37, %v372
  %374 = vadd.xlane.f32.xlu0 %v373
  %v375 = vpop.xlane.xlu0 %374
  %v376 = vsel %vm343, %v40, 0.0
  %v377 = vadd.f32 %v39, %v376
  %378 = vadd.xlane.f32.xlu0 %v377
  %v379 = vpop.xlane.xlu0 %378
  %v380 = vsel %vm343, %v42, 0.0
  %v381 = vadd.f32 %v41, %v380
  %382 = vadd.xlane.f32.xlu0 %v381
  %v383 = vpop.xlane.xlu0 %382
  %v384 = vsel %vm343, %v44, 0.0
  %v385 = vadd.f32 %v43, %v384
  %386 = vadd.xlane.f32.xlu0 %v385
  %v387 = vpop.xlane.xlu0 %386
  %v388 = vsel %vm343, %v46, 0.0
  %v389 = vadd.f32 %v45, %v388
  %390 = vadd.xlane.f32.xlu0 %v389
  %v391 = vpop.xlane.xlu0 %390
  %v392 = vsel %vm343, %v48, 0.0
  %v393 = vadd.f32 %v47, %v392
  %394 = vadd.xlane.f32.xlu0 %v393
  %v395 = vpop.xlane.xlu0 %394
  %v396 = vsel %vm343, %v50, 0.0
  %v397 = vadd.f32 %v49, %v396
  %398 = vadd.xlane.f32.xlu0 %v397
  %v399 = vpop.xlane.xlu0 %398
  %v400 = vsel %vm343, %v52, 0.0
  %v401 = vadd.f32 %v51, %v400
  %402 = vadd.xlane.f32.xlu0 %v401
  %v403 = vpop.xlane.xlu0 %402
  %v404 = vsel %vm343, %v54, 0.0
  %v405 = vadd.f32 %v53, %v404
  %406 = vadd.xlane.f32.xlu0 %v405
  %v407 = vpop.xlane.xlu0 %406
  %v408 = vsel %vm343, %v56, 0.0
  %v409 = vadd.f32 %v55, %v408
  %410 = vadd.xlane.f32.xlu0 %v409
  %v411 = vpop.xlane.xlu0 %410
  %v412 = vsel %vm343, %v58, 0.0
  %v413 = vadd.f32 %v57, %v412
  %414 = vadd.xlane.f32.xlu0 %v413
  %v415 = vpop.xlane.xlu0 %414
  %v416 = vsel %vm343, %v60, 0.0
  %v417 = vadd.f32 %v59, %v416
  %418 = vadd.xlane.f32.xlu0 %v417
  %v419 = vpop.xlane.xlu0 %418
  %v420 = vsel %vm343, %v62, 0.0
  %v421 = vadd.f32 %v61, %v420
  %422 = vadd.xlane.f32.xlu0 %v421
  %v423 = vpop.xlane.xlu0 %422
  %v424 = vsel %vm343, %v64, 0.0
  %v425 = vadd.f32 %v63, %v424
  %426 = vadd.xlane.f32.xlu0 %v425
  %v427 = vpop.xlane.xlu0 %426
  %v428 = vsel %vm343, %v66, 0.0
  %v429 = vadd.f32 %v65, %v428
  %430 = vadd.xlane.f32.xlu0 %v429
  %v431 = vpop.xlane.xlu0 %430
  %v432 = vsel %vm343, %v68, 0.0
  %v433 = vadd.f32 %v67, %v432
  %434 = vadd.xlane.f32.xlu0 %v433
  %v435 = vpop.xlane.xlu0 %434
  %v436 = vsel %vm343, %v70, 0.0
  %v437 = vadd.f32 %v69, %v436
  %438 = vadd.xlane.f32.xlu0 %v437
  %v439 = vpop.xlane.xlu0 %438
  %v440 = vsel %vm343, %v72, 0.0
  %v441 = vadd.f32 %v71, %v440
  %442 = vadd.xlane.f32.xlu0 %v441
  %v443 = vpop.xlane.xlu0 %442
  %v444 = vsel %vm343, %v74, 0.0
  %v445 = vadd.f32 %v73, %v444
  %446 = vadd.xlane.f32.xlu0 %v445
  %v447 = vpop.xlane.xlu0 %446
  %v448 = vsel %vm343, %v76, 0.0
  %v449 = vadd.f32 %v75, %v448
  %450 = vadd.xlane.f32.xlu0 %v449
  %v451 = vpop.xlane.xlu0 %450
  %v452 = vsel %vm343, %v78, 0.0
  %v453 = vadd.f32 %v77, %v452
  %454 = vadd.xlane.f32.xlu0 %v453
  %v455 = vpop.xlane.xlu0 %454
  %v456 = vsel %vm343, %v80, 0.0
  %v457 = vadd.f32 %v79, %v456
  %458 = vadd.xlane.f32.xlu0 %v457
  %v459 = vpop.xlane.xlu0 %458
  %v460 = vsel %vm343, %v82, 0.0
  %v461 = vadd.f32 %v81, %v460
  %462 = vadd.xlane.f32.xlu0 %v461
  %v463 = vpop.xlane.xlu0 %462
  %v464 = vsel %vm343, %v84, 0.0
  %v465 = vadd.f32 %v83, %v464
  %466 = vadd.xlane.f32.xlu0 %v465
  %v467 = vpop.xlane.xlu0 %466
  %v468 = vsel %vm343, %v86, 0.0
  %v469 = vadd.f32 %v85, %v468
  %470 = vadd.xlane.f32.xlu0 %v469
  %v471 = vpop.xlane.xlu0 %470
  %v472 = vsel %vm343, %v88, 0.0
  %v473 = vadd.f32 %v87, %v472
  %474 = vadd.xlane.f32.xlu0 %v473
  %v475 = vpop.xlane.xlu0 %474
  %v476 = vsel %vm343, %v90, 0.0
  %v477 = vadd.f32 %v89, %v476
  %478 = vadd.xlane.f32.xlu0 %v477
  %v479 = vpop.xlane.xlu0 %478
  %v480 = vsel %vm343, %v92, 0.0
  %v481 = vadd.f32 %v91, %v480
  %482 = vadd.xlane.f32.xlu0 %v481
  %v483 = vpop.xlane.xlu0 %482
  %v484 = vsel %vm343, %v94, 0.0
  %v485 = vadd.f32 %v93, %v484
  %486 = vadd.xlane.f32.xlu0 %v485
  %v487 = vpop.xlane.xlu0 %486
  %v488 = vsel %vm343, %v96, 0.0
  %v489 = vadd.f32 %v95, %v488
  %490 = vadd.xlane.f32.xlu0 %v489
  %v491 = vpop.xlane.xlu0 %490
  %v492 = vsel %vm343, %v98, 0.0
  %v493 = vadd.f32 %v97, %v492
  %494 = vadd.xlane.f32.xlu0 %v493
  %v495 = vpop.xlane.xlu0 %494
  %v496 = vsel %vm343, %v100, 0.0
  %v497 = vadd.f32 %v99, %v496
  %498 = vadd.xlane.f32.xlu0 %v497
  %v499 = vpop.xlane.xlu0 %498
  %v500 = vsel %vm343, %v102, 0.0
  %v501 = vadd.f32 %v101, %v500
  %502 = vadd.xlane.f32.xlu0 %v501
  %v503 = vpop.xlane.xlu0 %502
  %v504 = vsel %vm343, %v104, 0.0
  %v505 = vadd.f32 %v103, %v504
  %506 = vadd.xlane.f32.xlu0 %v505
  %v507 = vpop.xlane.xlu0 %506
  %v508 = vsel %vm343, %v106, 0.0
  %v509 = vadd.f32 %v105, %v508
  %510 = vadd.xlane.f32.xlu0 %v509
  %v511 = vpop.xlane.xlu0 %510
  %v512 = vsel %vm343, %v108, 0.0
  %v513 = vadd.f32 %v107, %v512
  %514 = vadd.xlane.f32.xlu0 %v513
  %v515 = vpop.xlane.xlu0 %514
  %v516 = vsel %vm343, %v110, 0.0
  %v517 = vadd.f32 %v109, %v516
  %518 = vadd.xlane.f32.xlu0 %v517
  %v519 = vpop.xlane.xlu0 %518
  %v520 = vsel %vm343, %v112, 0.0
  %v521 = vadd.f32 %v111, %v520
  %522 = vadd.xlane.f32.xlu0 %v521
  %v523 = vpop.xlane.xlu0 %522
  %v524 = vsel %vm343, %v114, 0.0
  %v525 = vadd.f32 %v113, %v524
  %526 = vadd.xlane.f32.xlu0 %v525
  %v527 = vpop.xlane.xlu0 %526
  %v528 = vsel %vm343, %v116, 0.0
  %v529 = vadd.f32 %v115, %v528
  %530 = vadd.xlane.f32.xlu0 %v529
  %v531 = vpop.xlane.xlu0 %530
  %v532 = vsel %vm343, %v118, 0.0
  %v533 = vadd.f32 %v117, %v532
  %534 = vadd.xlane.f32.xlu0 %v533
  %v535 = vpop.xlane.xlu0 %534
  %v536 = vsel %vm343, %v120, 0.0
  %v537 = vadd.f32 %v119, %v536
  %538 = vadd.xlane.f32.xlu0 %v537
  %v539 = vpop.xlane.xlu0 %538
  %v540 = vsel %vm343, %v122, 0.0
  %v541 = vadd.f32 %v121, %v540
  %542 = vadd.xlane.f32.xlu0 %v541
  %v543 = vpop.xlane.xlu0 %542
  %v544 = vsel %vm343, %v124, 0.0
  %v545 = vadd.f32 %v123, %v544
  %546 = vadd.xlane.f32.xlu0 %v545
  %v547 = vpop.xlane.xlu0 %546
  %v548 = vsel %vm343, %v126, 0.0
  %v549 = vadd.f32 %v125, %v548
  %550 = vadd.xlane.f32.xlu0 %v549
  %v551 = vpop.xlane.xlu0 %550
  %v552 = vsel %vm343, %v128, 0.0
  %v553 = vadd.f32 %v127, %v552
  %554 = vadd.xlane.f32.xlu0 %v553
  %v555 = vpop.xlane.xlu0 %554
  %v556 = vsel %vm343, %v130, 0.0
  %v557 = vadd.f32 %v129, %v556
  %558 = vadd.xlane.f32.xlu0 %v557
  %v559 = vpop.xlane.xlu0 %558
  %v560 = vsel %vm343, %v132, 0.0
  %v561 = vadd.f32 %v131, %v560
  %562 = vadd.xlane.f32.xlu0 %v561
  %v563 = vpop.xlane.xlu0 %562
  %v564 = vsel %vm343, %v134, 0.0
  %v565 = vadd.f32 %v133, %v564
  %566 = vadd.xlane.f32.xlu0 %v565
  %v567 = vpop.xlane.xlu0 %566
  %v568 = vsel %vm343, %v136, 0.0
  %v569 = vadd.f32 %v135, %v568
  %570 = vadd.xlane.f32.xlu0 %v569
  %v571 = vpop.xlane.xlu0 %570
  %v572 = vsel %vm343, %v138, 0.0
  %v573 = vadd.f32 %v137, %v572
  %574 = vadd.xlane.f32.xlu0 %v573
  %v575 = vpop.xlane.xlu0 %574
  %v576 = vsel %vm343, %v140, 0.0
  %v577 = vadd.f32 %v139, %v576
  %578 = vadd.xlane.f32.xlu0 %v577
  %v579 = vpop.xlane.xlu0 %578
  %v580 = vsel %vm343, %v142, 0.0
  %v581 = vadd.f32 %v141, %v580
  %582 = vadd.xlane.f32.xlu0 %v581
  %v583 = vpop.xlane.xlu0 %582
  %v584 = vsel %vm343, %v144, 0.0
  %v585 = vadd.f32 %v143, %v584
  %586 = vadd.xlane.f32.xlu0 %v585
  %v587 = vpop.xlane.xlu0 %586
  %v588 = vsel %vm343, %v146, 0.0
  %v589 = vadd.f32 %v145, %v588
  %590 = vadd.xlane.f32.xlu0 %v589
  %v591 = vpop.xlane.xlu0 %590
  %v592 = vsel %vm343, %v148, 0.0
  %v593 = vadd.f32 %v147, %v592
  %594 = vadd.xlane.f32.xlu0 %v593
  %v595 = vpop.xlane.xlu0 %594
  %v596 = vsel %vm343, %v150, 0.0
  %v597 = vadd.f32 %v149, %v596
  %598 = vadd.xlane.f32.xlu0 %v597
  %v599 = vpop.xlane.xlu0 %598
  %v600 = vsel %vm343, %v152, 0.0
  %v601 = vadd.f32 %v151, %v600
  %602 = vadd.xlane.f32.xlu0 %v601
  %v603 = vpop.xlane.xlu0 %602
  %v604 = vsel %vm343, %v154, 0.0
  %v605 = vadd.f32 %v153, %v604
  %606 = vadd.xlane.f32.xlu0 %v605
  %v607 = vpop.xlane.xlu0 %606
  %v608 = vsel %vm343, %v156, 0.0
  %v609 = vadd.f32 %v155, %v608
  %610 = vadd.xlane.f32.xlu0 %v609
  %v611 = vpop.xlane.xlu0 %610
  %v612 = vsel %vm343, %v158, 0.0
  %v613 = vadd.f32 %v157, %v612
  %614 = vadd.xlane.f32.xlu0 %v613
  %v615 = vpop.xlane.xlu0 %614
  %v616 = vsel %vm343, %v160, 0.0
  %v617 = vadd.f32 %v159, %v616
  %618 = vadd.xlane.f32.xlu0 %v617
  %v619 = vpop.xlane.xlu0 %618
  %v620 = vsel %vm343, %v162, 0.0
  %v621 = vadd.f32 %v161, %v620
  %622 = vadd.xlane.f32.xlu0 %v621
  %v623 = vpop.xlane.xlu0 %622
  %v624 = vsel %vm343, %v164, 0.0
  %v625 = vadd.f32 %v163, %v624
  %626 = vadd.xlane.f32.xlu0 %v625
  %v627 = vpop.xlane.xlu0 %626
  %v628 = vsel %vm343, %v166, 0.0
  %v629 = vadd.f32 %v165, %v628
  %630 = vadd.xlane.f32.xlu0 %v629
  %v631 = vpop.xlane.xlu0 %630
  %v632 = vsel %vm343, %v168, 0.0
  %v633 = vadd.f32 %v167, %v632
  %634 = vadd.xlane.f32.xlu0 %v633
  %v635 = vpop.xlane.xlu0 %634
  %v636 = vsel %vm343, %v170, 0.0
  %v637 = vadd.f32 %v169, %v636
  %638 = vadd.xlane.f32.xlu0 %v637
  %v639 = vpop.xlane.xlu0 %638
  %v640 = vsel %vm343, %v172, 0.0
  %v641 = vadd.f32 %v171, %v640
  %642 = vadd.xlane.f32.xlu0 %v641
  %v643 = vpop.xlane.xlu0 %642
  %v644 = vsel %vm343, %v174, 0.0
  %v645 = vadd.f32 %v173, %v644
  %646 = vadd.xlane.f32.xlu0 %v645
  %v647 = vpop.xlane.xlu0 %646
  %v648 = vsel %vm343, %v176, 0.0
  %v649 = vadd.f32 %v175, %v648
  %650 = vadd.xlane.f32.xlu0 %v649
  %v651 = vpop.xlane.xlu0 %650
  %v652 = vsel %vm343, %v178, 0.0
  %v653 = vadd.f32 %v177, %v652
  %654 = vadd.xlane.f32.xlu0 %v653
  %v655 = vpop.xlane.xlu0 %654
  %v656 = vsel %vm343, %v180, 0.0
  %v657 = vadd.f32 %v179, %v656
  %658 = vadd.xlane.f32.xlu0 %v657
  %v659 = vpop.xlane.xlu0 %658
  %v660 = vsel %vm343, %v182, 0.0
  %v661 = vadd.f32 %v181, %v660
  %662 = vadd.xlane.f32.xlu0 %v661
  %v663 = vpop.xlane.xlu0 %662
  %v664 = vsel %vm343, %v184, 0.0
  %v665 = vadd.f32 %v183, %v664
  %666 = vadd.xlane.f32.xlu0 %v665
  %v667 = vpop.xlane.xlu0 %666
  %v668 = vsel %vm343, %v186, 0.0
  %v669 = vadd.f32 %v185, %v668
  %670 = vadd.xlane.f32.xlu0 %v669
  %v671 = vpop.xlane.xlu0 %670
  %v672 = vsel %vm343, %v188, 0.0
  %v673 = vadd.f32 %v187, %v672
  %674 = vadd.xlane.f32.xlu0 %v673
  %v675 = vpop.xlane.xlu0 %674
  %v676 = vsel %vm343, %v190, 0.0
  %v677 = vadd.f32 %v189, %v676
  %678 = vadd.xlane.f32.xlu0 %v677
  %v679 = vpop.xlane.xlu0 %678
  %v680 = vsel %vm343, %v192, 0.0
  %v681 = vadd.f32 %v191, %v680
  %682 = vadd.xlane.f32.xlu0 %v681
  %v683 = vpop.xlane.xlu0 %682
  %v684 = vsel %vm343, %v194, 0.0
  %v685 = vadd.f32 %v193, %v684
  %686 = vadd.xlane.f32.xlu0 %v685
  %v687 = vpop.xlane.xlu0 %686
  %v688 = vsel %vm343, %v196, 0.0
  %v689 = vadd.f32 %v195, %v688
  %690 = vadd.xlane.f32.xlu0 %v689
  %v691 = vpop.xlane.xlu0 %690
  %v692 = vsel %vm343, %v198, 0.0
  %v693 = vadd.f32 %v197, %v692
  %694 = vadd.xlane.f32.xlu0 %v693
  %v695 = vpop.xlane.xlu0 %694
  %v696 = vsel %vm343, %v200, 0.0
  %v697 = vadd.f32 %v199, %v696
  %698 = vadd.xlane.f32.xlu0 %v697
  %v699 = vpop.xlane.xlu0 %698
  %v700 = vsel %vm343, %v202, 0.0
  %v701 = vadd.f32 %v201, %v700
  %702 = vadd.xlane.f32.xlu0 %v701
  %v703 = vpop.xlane.xlu0 %702
  %v704 = vsel %vm343, %v204, 0.0
  %v705 = vadd.f32 %v203, %v704
  %706 = vadd.xlane.f32.xlu0 %v705
  %v707 = vpop.xlane.xlu0 %706
  %v708 = vsel %vm343, %v206, 0.0
  %v709 = vadd.f32 %v205, %v708
  %710 = vadd.xlane.f32.xlu0 %v709
  %v711 = vpop.xlane.xlu0 %710
  %v712 = vsel %vm343, %v208, 0.0
  %v713 = vadd.f32 %v207, %v712
  %714 = vadd.xlane.f32.xlu0 %v713
  %v715 = vpop.xlane.xlu0 %714
  %v716 = vsel %vm343, %v210, 0.0
  %v717 = vadd.f32 %v209, %v716
  %718 = vadd.xlane.f32.xlu0 %v717
  %v719 = vpop.xlane.xlu0 %718
  %v720 = vsel %vm343, %v212, 0.0
  %v721 = vadd.f32 %v211, %v720
  %722 = vadd.xlane.f32.xlu0 %v721
  %v723 = vpop.xlane.xlu0 %722
  %v724 = vsel %vm343, %v214, 0.0
  %v725 = vadd.f32 %v213, %v724
  %726 = vadd.xlane.f32.xlu0 %v725
  %v727 = vpop.xlane.xlu0 %726
  %v728 = vsel %vm343, %v216, 0.0
  %v729 = vadd.f32 %v215, %v728
  %730 = vadd.xlane.f32.xlu0 %v729
  %v731 = vpop.xlane.xlu0 %730
  %v732 = vsel %vm343, %v218, 0.0
  %v733 = vadd.f32 %v217, %v732
  %734 = vadd.xlane.f32.xlu0 %v733
  %v735 = vpop.xlane.xlu0 %734
  %v736 = vsel %vm343, %v220, 0.0
  %v737 = vadd.f32 %v219, %v736
  %738 = vadd.xlane.f32.xlu0 %v737
  %v739 = vpop.xlane.xlu0 %738
  %v740 = vsel %vm343, %v222, 0.0
  %v741 = vadd.f32 %v221, %v740
  %742 = vadd.xlane.f32.xlu0 %v741
  %v743 = vpop.xlane.xlu0 %742
  %v744 = vsel %vm343, %v224, 0.0
  %v745 = vadd.f32 %v223, %v744
  %746 = vadd.xlane.f32.xlu0 %v745
  %v747 = vpop.xlane.xlu0 %746
  %v748 = vsel %vm343, %v226, 0.0
  %v749 = vadd.f32 %v225, %v748
  %750 = vadd.xlane.f32.xlu0 %v749
  %v751 = vpop.xlane.xlu0 %750
  %v752 = vsel %vm343, %v228, 0.0
  %v753 = vadd.f32 %v227, %v752
  %754 = vadd.xlane.f32.xlu0 %v753
  %v755 = vpop.xlane.xlu0 %754
  %v756 = vsel %vm343, %v230, 0.0
  %v757 = vadd.f32 %v229, %v756
  %758 = vadd.xlane.f32.xlu0 %v757
  %v759 = vpop.xlane.xlu0 %758
  %v760 = vsel %vm343, %v232, 0.0
  %v761 = vadd.f32 %v231, %v760
  %762 = vadd.xlane.f32.xlu0 %v761
  %v763 = vpop.xlane.xlu0 %762
  %v764 = vsel %vm343, %v234, 0.0
  %v765 = vadd.f32 %v233, %v764
  %766 = vadd.xlane.f32.xlu0 %v765
  %v767 = vpop.xlane.xlu0 %766
  %v768 = vsel %vm343, %v236, 0.0
  %v769 = vadd.f32 %v235, %v768
  %770 = vadd.xlane.f32.xlu0 %v769
  %v771 = vpop.xlane.xlu0 %770
  %v772 = vsel %vm343, %v238, 0.0
  %v773 = vadd.f32 %v237, %v772
  %774 = vadd.xlane.f32.xlu0 %v773
  %v775 = vpop.xlane.xlu0 %774
  %v776 = vsel %vm343, %v240, 0.0
  %v777 = vadd.f32 %v239, %v776
  %778 = vadd.xlane.f32.xlu0 %v777
  %v779 = vpop.xlane.xlu0 %778
  %v780 = vsel %vm343, %v242, 0.0
  %v781 = vadd.f32 %v241, %v780
  %782 = vadd.xlane.f32.xlu0 %v781
  %v783 = vpop.xlane.xlu0 %782
  %v784 = vsel %vm343, %v244, 0.0
  %v785 = vadd.f32 %v243, %v784
  %786 = vadd.xlane.f32.xlu0 %v785
  %v787 = vpop.xlane.xlu0 %786
  %v788 = vsel %vm343, %v246, 0.0
  %v789 = vadd.f32 %v245, %v788
  %790 = vadd.xlane.f32.xlu0 %v789
  %v791 = vpop.xlane.xlu0 %790
  %v792 = vsel %vm343, %v248, 0.0
  %v793 = vadd.f32 %v247, %v792
  %794 = vadd.xlane.f32.xlu0 %v793
  %v795 = vpop.xlane.xlu0 %794
  %v796 = vsel %vm343, %v250, 0.0
  %v797 = vadd.f32 %v249, %v796
  %798 = vadd.xlane.f32.xlu0 %v797
  %v799 = vpop.xlane.xlu0 %798
  %v800 = vsel %vm343, %v252, 0.0
  %v801 = vadd.f32 %v251, %v800
  %802 = vadd.xlane.f32.xlu0 %v801
  %v803 = vpop.xlane.xlu0 %802
  %v804 = vsel %vm343, %v254, 0.0
  %v805 = vadd.f32 %v253, %v804
  %806 = vadd.xlane.f32.xlu0 %v805
  %v807 = vpop.xlane.xlu0 %806
  %v808 = vsel %vm343, %v256, 0.0
  %v809 = vadd.f32 %v255, %v808
  %810 = vadd.xlane.f32.xlu0 %v809
  %v811 = vpop.xlane.xlu0 %810
  %v812 = vsel %vm343, %v258, 0.0
  %v813 = vadd.f32 %v257, %v812
  %814 = vadd.xlane.f32.xlu0 %v813
  %v815 = vpop.xlane.xlu0 %814
  %v816 = vsel %vm343, %v260, 0.0
  %v817 = vadd.f32 %v259, %v816
  %818 = vadd.xlane.f32.xlu0 %v817
  %v819 = vpop.xlane.xlu0 %818
  %v820 = vsel %vm343, %v262, 0.0
  %v821 = vadd.f32 %v261, %v820
  %822 = vadd.xlane.f32.xlu0 %v821
  %v823 = vpop.xlane.xlu0 %822
  %v824 = vsel %vm343, %v264, 0.0
  %v825 = vadd.f32 %v263, %v824
  %826 = vadd.xlane.f32.xlu0 %v825
  %v827 = vpop.xlane.xlu0 %826
  %v828 = vsel %vm343, %v266, 0.0
  %v829 = vadd.f32 %v265, %v828
  %830 = vadd.xlane.f32.xlu0 %v829
  %v831 = vpop.xlane.xlu0 %830
  %v832 = vsel %vm343, %v268, 0.0
  %v833 = vadd.f32 %v267, %v832
  %834 = vadd.xlane.f32.xlu0 %v833
  %v835 = vpop.xlane.xlu0 %834
  %v836 = vsel %vm343, %v270, 0.0
  %v837 = vadd.f32 %v269, %v836
  %838 = vadd.xlane.f32.xlu0 %v837
  %v839 = vpop.xlane.xlu0 %838
  %v840 = vsel %vm343, %v272, 0.0
  %v841 = vadd.f32 %v271, %v840
  %842 = vadd.xlane.f32.xlu0 %v841
  %v843 = vpop.xlane.xlu0 %842
  %v844 = vsel %vm343, %v274, 0.0
  %v845 = vadd.f32 %v273, %v844
  %846 = vadd.xlane.f32.xlu0 %v845
  %v847 = vpop.xlane.xlu0 %846
  %v848 = vsel %vm343, %v276, 0.0
  %v849 = vadd.f32 %v275, %v848
  %850 = vadd.xlane.f32.xlu0 %v849
  %v851 = vpop.xlane.xlu0 %850
  %v852 = vsel %vm343, %v278, 0.0
  %v853 = vadd.f32 %v277, %v852
  %854 = vadd.xlane.f32.xlu0 %v853
  %v855 = vpop.xlane.xlu0 %854
  %v856 = vsel %vm343, %v280, 0.0
  %v857 = vadd.f32 %v279, %v856
  %858 = vadd.xlane.f32.xlu0 %v857
  %v859 = vpop.xlane.xlu0 %858
  %v860 = vsel %vm343, %v282, 0.0
  %v861 = vadd.f32 %v281, %v860
  %862 = vadd.xlane.f32.xlu0 %v861
  %v863 = vpop.xlane.xlu0 %862
  %v864 = vsel %vm343, %v284, 0.0
  %v865 = vadd.f32 %v283, %v864
  %866 = vadd.xlane.f32.xlu0 %v865
  %v867 = vpop.xlane.xlu0 %866
  %v868 = vsel %vm343, %v286, 0.0
  %v869 = vadd.f32 %v285, %v868
  %870 = vadd.xlane.f32.xlu0 %v869
  %v871 = vpop.xlane.xlu0 %870
  %v872 = vsel %vm343, %v288, 0.0
  %v873 = vadd.f32 %v287, %v872
  %874 = vadd.xlane.f32.xlu0 %v873
  %v875 = vpop.xlane.xlu0 %874
  %v876 = vsel %vm343, %v290, 0.0
  %v877 = vadd.f32 %v289, %v876
  %878 = vadd.xlane.f32.xlu0 %v877
  %v879 = vpop.xlane.xlu0 %878
  %v880 = vsel %vm343, %v292, 0.0
  %v881 = vadd.f32 %v291, %v880
  %882 = vadd.xlane.f32.xlu0 %v881
  %v883 = vpop.xlane.xlu0 %882
  %v884 = vsel %vm343, %v294, 0.0
  %v885 = vadd.f32 %v293, %v884
  %886 = vadd.xlane.f32.xlu0 %v885
  %v887 = vpop.xlane.xlu0 %886
  %v888 = vsel %vm343, %v296, 0.0
  %v889 = vadd.f32 %v295, %v888
  %890 = vadd.xlane.f32.xlu0 %v889
  %v891 = vpop.xlane.xlu0 %890
  %v892 = vsel %vm343, %v298, 0.0
  %v893 = vadd.f32 %v297, %v892
  %894 = vadd.xlane.f32.xlu0 %v893
  %v895 = vpop.xlane.xlu0 %894
  %v896 = vsel %vm343, %v300, 0.0
  %v897 = vadd.f32 %v299, %v896
  %898 = vadd.xlane.f32.xlu0 %v897
  %v899 = vpop.xlane.xlu0 %898
  %v900 = vsel %vm343, %v302, 0.0
  %v901 = vadd.f32 %v301, %v900
  %902 = vadd.xlane.f32.xlu0 %v901
  %v903 = vpop.xlane.xlu0 %902
  %v904 = vsel %vm343, %v304, 0.0
  %v905 = vadd.f32 %v303, %v904
  %906 = vadd.xlane.f32.xlu0 %v905
  %v907 = vpop.xlane.xlu0 %906
  %v908 = vsel %vm343, %v306, 0.0
  %v909 = vadd.f32 %v305, %v908
  %910 = vadd.xlane.f32.xlu0 %v909
  %v911 = vpop.xlane.xlu0 %910
  %v912 = vsel %vm343, %v308, 0.0
  %v913 = vadd.f32 %v307, %v912
  %914 = vadd.xlane.f32.xlu0 %v913
  %v915 = vpop.xlane.xlu0 %914
  %v916 = vsel %vm343, %v310, 0.0
  %v917 = vadd.f32 %v309, %v916
  %918 = vadd.xlane.f32.xlu0 %v917
  %v919 = vpop.xlane.xlu0 %918
  %v920 = vsel %vm343, %v312, 0.0
  %v921 = vadd.f32 %v311, %v920
  %922 = vadd.xlane.f32.xlu0 %v921
  %v923 = vpop.xlane.xlu0 %922
  %v924 = vsel %vm343, %v314, 0.0
  %v925 = vadd.f32 %v313, %v924
  %926 = vadd.xlane.f32.xlu0 %v925
  %v927 = vpop.xlane.xlu0 %926
  %v928 = vsel %vm343, %v316, 0.0
  %v929 = vadd.f32 %v315, %v928
  %930 = vadd.xlane.f32.xlu0 %v929
  %v931 = vpop.xlane.xlu0 %930
  %v932 = vsel %vm343, %v318, 0.0
  %v933 = vadd.f32 %v317, %v932
  %934 = vadd.xlane.f32.xlu0 %v933
  %v935 = vpop.xlane.xlu0 %934
  %v936 = vsel %vm343, %v320, 0.0
  %v937 = vadd.f32 %v319, %v936
  %938 = vadd.xlane.f32.xlu0 %v937
  %v939 = vpop.xlane.xlu0 %938
  %v940 = vsel %vm343, %v322, 0.0
  %v941 = vadd.f32 %v321, %v940
  %942 = vadd.xlane.f32.xlu0 %v941
  %v943 = vpop.xlane.xlu0 %942
  %v944 = vsel %vm343, %v324, 0.0
  %v945 = vadd.f32 %v323, %v944
  %946 = vadd.xlane.f32.xlu0 %v945
  %v947 = vpop.xlane.xlu0 %946
  %v948 = vsel %vm343, %v326, 0.0
  %v949 = vadd.f32 %v325, %v948
  %950 = vadd.xlane.f32.xlu0 %v949
  %v951 = vpop.xlane.xlu0 %950
  %v952 = vsel %vm343, %v328, 0.0
  %v953 = vadd.f32 %v327, %v952
  %954 = vadd.xlane.f32.xlu0 %v953
  %v955 = vpop.xlane.xlu0 %954
  %v956 = vsel %vm343, %v330, 0.0
  %v957 = vadd.f32 %v329, %v956
  %958 = vadd.xlane.f32.xlu0 %v957
  %v959 = vpop.xlane.xlu0 %958
  %v960 = vsel %vm343, %v332, 0.0
  %v961 = vadd.f32 %v331, %v960
  %962 = vadd.xlane.f32.xlu0 %v961
  %v963 = vpop.xlane.xlu0 %962
  %v964 = vsel %vm343, %v334, 0.0
  %v965 = vadd.f32 %v333, %v964
  %966 = vadd.xlane.f32.xlu0 %v965
  %v967 = vpop.xlane.xlu0 %966
  %v968 = vsel %vm343, %v336, 0.0
  %v969 = vadd.f32 %v335, %v968
  %970 = vadd.xlane.f32.xlu0 %v969
  %v971 = vpop.xlane.xlu0 %970
  %v972 = vsel %vm343, %v338, 0.0
  %v973 = vadd.f32 %v337, %v972
  %974 = vadd.xlane.f32.xlu0 %v973
  %v975 = vpop.xlane.xlu0 %974
  %v976 = vsel %vm343, %v340, 0.0
  %v977 = vadd.f32 %v339, %v976
  %978 = vadd.xlane.f32.xlu0 %v977
  %v979 = vpop.xlane.xlu0 %978
  %v980 = vsel %vm343, %v342, 0.0
  %v981 = vadd.f32 %v341, %v980
  %982 = vadd.xlane.f32.xlu0 %v981
  %v983 = vpop.xlane.xlu0 %982
  %v984 = vmul.f32 %v23, %v23
  %v985 = vmul.f32 %v24, %v24
  %v986 = vmul.f32 %v25, %v25
  %v987 = vmul.f32 %v26, %v26
  %v988 = vmul.f32 %v27, %v27
  %v989 = vmul.f32 %v28, %v28
  %v990 = vmul.f32 %v29, %v29
  %v991 = vmul.f32 %v30, %v30
  %v992 = vmul.f32 %v31, %v31
  %v993 = vmul.f32 %v32, %v32
  %v994 = vmul.f32 %v33, %v33
  %v995 = vmul.f32 %v34, %v34
  %v996 = vmul.f32 %v35, %v35
  %v997 = vmul.f32 %v36, %v36
  %v998 = vmul.f32 %v37, %v37
  %v999 = vmul.f32 %v38, %v38
  %v1000 = vmul.f32 %v39, %v39
  %v1001 = vmul.f32 %v40, %v40
  %v1002 = vmul.f32 %v41, %v41
  %v1003 = vmul.f32 %v42, %v42
  %v1004 = vmul.f32 %v43, %v43
  %v1005 = vmul.f32 %v44, %v44
  %v1006 = vmul.f32 %v45, %v45
  %v1007 = vmul.f32 %v46, %v46
  %v1008 = vmul.f32 %v47, %v47
  %v1009 = vmul.f32 %v48, %v48
  %v1010 = vmul.f32 %v49, %v49
  %v1011 = vmul.f32 %v50, %v50
  %v1012 = vmul.f32 %v51, %v51
  %v1013 = vmul.f32 %v52, %v52
  %v1014 = vmul.f32 %v53, %v53
  %v1015 = vmul.f32 %v54, %v54
  %v1016 = vmul.f32 %v55, %v55
  %v1017 = vmul.f32 %v56, %v56
  %v1018 = vmul.f32 %v57, %v57
  %v1019 = vmul.f32 %v58, %v58
  %v1020 = vmul.f32 %v59, %v59
  %v1021 = vmul.f32 %v60, %v60
  %v1022 = vmul.f32 %v61, %v61
  %v1023 = vmul.f32 %v62, %v62
  %v1024 = vmul.f32 %v63, %v63
  %v1025 = vmul.f32 %v64, %v64
  %v1026 = vmul.f32 %v65, %v65
  %v1027 = vmul.f32 %v66, %v66
  %v1028 = vmul.f32 %v67, %v67
  %v1029 = vmul.f32 %v68, %v68
  %v1030 = vmul.f32 %v69, %v69
  %v1031 = vmul.f32 %v70, %v70
  %v1032 = vmul.f32 %v71, %v71
  %v1033 = vmul.f32 %v72, %v72
  %v1034 = vmul.f32 %v73, %v73
  %v1035 = vmul.f32 %v74, %v74
  %v1036 = vmul.f32 %v75, %v75
  %v1037 = vmul.f32 %v76, %v76
  %v1038 = vmul.f32 %v77, %v77
  %v1039 = vmul.f32 %v78, %v78
  %v1040 = vmul.f32 %v79, %v79
  %v1041 = vmul.f32 %v80, %v80
  %v1042 = vmul.f32 %v81, %v81
  %v1043 = vmul.f32 %v82, %v82
  %v1044 = vmul.f32 %v83, %v83
  %v1045 = vmul.f32 %v84, %v84
  %v1046 = vmul.f32 %v85, %v85
  %v1047 = vmul.f32 %v86, %v86
  %v1048 = vmul.f32 %v87, %v87
  %v1049 = vmul.f32 %v88, %v88
  %v1050 = vmul.f32 %v89, %v89
  %v1051 = vmul.f32 %v90, %v90
  %v1052 = vmul.f32 %v91, %v91
  %v1053 = vmul.f32 %v92, %v92
  %v1054 = vmul.f32 %v93, %v93
  %v1055 = vmul.f32 %v94, %v94
  %v1056 = vmul.f32 %v95, %v95
  %v1057 = vmul.f32 %v96, %v96
  %v1058 = vmul.f32 %v97, %v97
  %v1059 = vmul.f32 %v98, %v98
  %v1060 = vmul.f32 %v99, %v99
  %v1061 = vmul.f32 %v100, %v100
  %v1062 = vmul.f32 %v101, %v101
  %v1063 = vmul.f32 %v102, %v102
  %v1064 = vmul.f32 %v103, %v103
  %v1065 = vmul.f32 %v104, %v104
  %v1066 = vmul.f32 %v105, %v105
  %v1067 = vmul.f32 %v106, %v106
  %v1068 = vmul.f32 %v107, %v107
  %v1069 = vmul.f32 %v108, %v108
  %v1070 = vmul.f32 %v109, %v109
  %v1071 = vmul.f32 %v110, %v110
  %v1072 = vmul.f32 %v111, %v111
  %v1073 = vmul.f32 %v112, %v112
  %v1074 = vmul.f32 %v113, %v113
  %v1075 = vmul.f32 %v114, %v114
  %v1076 = vmul.f32 %v115, %v115
  %v1077 = vmul.f32 %v116, %v116
  %v1078 = vmul.f32 %v117, %v117
  %v1079 = vmul.f32 %v118, %v118
  %v1080 = vmul.f32 %v119, %v119
  %v1081 = vmul.f32 %v120, %v120
  %v1082 = vmul.f32 %v121, %v121
  %v1083 = vmul.f32 %v122, %v122
  %v1084 = vmul.f32 %v123, %v123
  %v1085 = vmul.f32 %v124, %v124
  %v1086 = vmul.f32 %v125, %v125
  %v1087 = vmul.f32 %v126, %v126
  %v1088 = vmul.f32 %v127, %v127
  %v1089 = vmul.f32 %v128, %v128
  %v1090 = vmul.f32 %v129, %v129
  %v1091 = vmul.f32 %v130, %v130
  %v1092 = vmul.f32 %v131, %v131
  %v1093 = vmul.f32 %v132, %v132
  %v1094 = vmul.f32 %v133, %v133
  %v1095 = vmul.f32 %v134, %v134
  %v1096 = vmul.f32 %v135, %v135
  %v1097 = vmul.f32 %v136, %v136
  %v1098 = vmul.f32 %v137, %v137
  %v1099 = vmul.f32 %v138, %v138
  %v1100 = vmul.f32 %v139, %v139
  %v1101 = vmul.f32 %v140, %v140
  %v1102 = vmul.f32 %v141, %v141
  %v1103 = vmul.f32 %v142, %v142
  %v1104 = vmul.f32 %v143, %v143
  %v1105 = vmul.f32 %v144, %v144
  %v1106 = vmul.f32 %v145, %v145
  %v1107 = vmul.f32 %v146, %v146
  %v1108 = vmul.f32 %v147, %v147
  %v1109 = vmul.f32 %v148, %v148
  %v1110 = vmul.f32 %v149, %v149
  %v1111 = vmul.f32 %v150, %v150
  %v1112 = vmul.f32 %v151, %v151
  %v1113 = vmul.f32 %v152, %v152
  %v1114 = vmul.f32 %v153, %v153
  %v1115 = vmul.f32 %v154, %v154
  %v1116 = vmul.f32 %v155, %v155
  %v1117 = vmul.f32 %v156, %v156
  %v1118 = vmul.f32 %v157, %v157
  %v1119 = vmul.f32 %v158, %v158
  %v1120 = vmul.f32 %v159, %v159
  %v1121 = vmul.f32 %v160, %v160
  %v1122 = vmul.f32 %v161, %v161
  %v1123 = vmul.f32 %v162, %v162
  %v1124 = vmul.f32 %v163, %v163
  %v1125 = vmul.f32 %v164, %v164
  %v1126 = vmul.f32 %v165, %v165
  %v1127 = vmul.f32 %v166, %v166
  %v1128 = vmul.f32 %v167, %v167
  %v1129 = vmul.f32 %v168, %v168
  %v1130 = vmul.f32 %v169, %v169
  %v1131 = vmul.f32 %v170, %v170
  %v1132 = vmul.f32 %v171, %v171
  %v1133 = vmul.f32 %v172, %v172
  %v1134 = vmul.f32 %v173, %v173
  %v1135 = vmul.f32 %v174, %v174
  %v1136 = vmul.f32 %v175, %v175
  %v1137 = vmul.f32 %v176, %v176
  %v1138 = vmul.f32 %v177, %v177
  %v1139 = vmul.f32 %v178, %v178
  %v1140 = vmul.f32 %v179, %v179
  %v1141 = vmul.f32 %v180, %v180
  %v1142 = vmul.f32 %v181, %v181
  %v1143 = vmul.f32 %v182, %v182
  %v1144 = vmul.f32 %v183, %v183
  %v1145 = vmul.f32 %v184, %v184
  %v1146 = vmul.f32 %v185, %v185
  %v1147 = vmul.f32 %v186, %v186
  %v1148 = vmul.f32 %v187, %v187
  %v1149 = vmul.f32 %v188, %v188
  %v1150 = vmul.f32 %v189, %v189
  %v1151 = vmul.f32 %v190, %v190
  %v1152 = vmul.f32 %v191, %v191
  %v1153 = vmul.f32 %v192, %v192
  %v1154 = vmul.f32 %v193, %v193
  %v1155 = vmul.f32 %v194, %v194
  %v1156 = vmul.f32 %v195, %v195
  %v1157 = vmul.f32 %v196, %v196
  %v1158 = vmul.f32 %v197, %v197
  %v1159 = vmul.f32 %v198, %v198
  %v1160 = vmul.f32 %v199, %v199
  %v1161 = vmul.f32 %v200, %v200
  %v1162 = vmul.f32 %v201, %v201
  %v1163 = vmul.f32 %v202, %v202
  %v1164 = vmul.f32 %v203, %v203
  %v1165 = vmul.f32 %v204, %v204
  %v1166 = vmul.f32 %v205, %v205
  %v1167 = vmul.f32 %v206, %v206
  %v1168 = vmul.f32 %v207, %v207
  %v1169 = vmul.f32 %v208, %v208
  %v1170 = vmul.f32 %v209, %v209
  %v1171 = vmul.f32 %v210, %v210
  %v1172 = vmul.f32 %v211, %v211
  %v1173 = vmul.f32 %v212, %v212
  %v1174 = vmul.f32 %v213, %v213
  %v1175 = vmul.f32 %v214, %v214
  %v1176 = vmul.f32 %v215, %v215
  %v1177 = vmul.f32 %v216, %v216
  %v1178 = vmul.f32 %v217, %v217
  %v1179 = vmul.f32 %v218, %v218
  %v1180 = vmul.f32 %v219, %v219
  %v1181 = vmul.f32 %v220, %v220
  %v1182 = vmul.f32 %v221, %v221
  %v1183 = vmul.f32 %v222, %v222
  %v1184 = vmul.f32 %v223, %v223
  %v1185 = vmul.f32 %v224, %v224
  %v1186 = vmul.f32 %v225, %v225
  %v1187 = vmul.f32 %v226, %v226
  %v1188 = vmul.f32 %v227, %v227
  %v1189 = vmul.f32 %v228, %v228
  %v1190 = vmul.f32 %v229, %v229
  %v1191 = vmul.f32 %v230, %v230
  %v1192 = vmul.f32 %v231, %v231
  %v1193 = vmul.f32 %v232, %v232
  %v1194 = vmul.f32 %v233, %v233
  %v1195 = vmul.f32 %v234, %v234
  %v1196 = vmul.f32 %v235, %v235
  %v1197 = vmul.f32 %v236, %v236
  %v1198 = vmul.f32 %v237, %v237
  %v1199 = vmul.f32 %v238, %v238
  %v1200 = vmul.f32 %v239, %v239
  %v1201 = vmul.f32 %v240, %v240
  %v1202 = vmul.f32 %v241, %v241
  %v1203 = vmul.f32 %v242, %v242
  %v1204 = vmul.f32 %v243, %v243
  %v1205 = vmul.f32 %v244, %v244
  %v1206 = vmul.f32 %v245, %v245
  %v1207 = vmul.f32 %v246, %v246
  %v1208 = vmul.f32 %v247, %v247
  %v1209 = vmul.f32 %v248, %v248
  %v1210 = vmul.f32 %v249, %v249
  %v1211 = vmul.f32 %v250, %v250
  %v1212 = vmul.f32 %v251, %v251
  %v1213 = vmul.f32 %v252, %v252
  %v1214 = vmul.f32 %v253, %v253
  %v1215 = vmul.f32 %v254, %v254
  %v1216 = vmul.f32 %v255, %v255
  %v1217 = vmul.f32 %v256, %v256
  %v1218 = vmul.f32 %v257, %v257
  %v1219 = vmul.f32 %v258, %v258
  %v1220 = vmul.f32 %v259, %v259
  %v1221 = vmul.f32 %v260, %v260
  %v1222 = vmul.f32 %v261, %v261
  %v1223 = vmul.f32 %v262, %v262
  %v1224 = vmul.f32 %v263, %v263
  %v1225 = vmul.f32 %v264, %v264
  %v1226 = vmul.f32 %v265, %v265
  %v1227 = vmul.f32 %v266, %v266
  %v1228 = vmul.f32 %v267, %v267
  %v1229 = vmul.f32 %v268, %v268
  %v1230 = vmul.f32 %v269, %v269
  %v1231 = vmul.f32 %v270, %v270
  %v1232 = vmul.f32 %v271, %v271
  %v1233 = vmul.f32 %v272, %v272
  %v1234 = vmul.f32 %v273, %v273
  %v1235 = vmul.f32 %v274, %v274
  %v1236 = vmul.f32 %v275, %v275
  %v1237 = vmul.f32 %v276, %v276
  %v1238 = vmul.f32 %v277, %v277
  %v1239 = vmul.f32 %v278, %v278
  %v1240 = vmul.f32 %v279, %v279
  %v1241 = vmul.f32 %v280, %v280
  %v1242 = vmul.f32 %v281, %v281
  %v1243 = vmul.f32 %v282, %v282
  %v1244 = vmul.f32 %v283, %v283
  %v1245 = vmul.f32 %v284, %v284
  %v1246 = vmul.f32 %v285, %v285
  %v1247 = vmul.f32 %v286, %v286
  %v1248 = vmul.f32 %v287, %v287
  %v1249 = vmul.f32 %v288, %v288
  %v1250 = vmul.f32 %v289, %v289
  %v1251 = vmul.f32 %v290, %v290
  %v1252 = vmul.f32 %v291, %v291
  %v1253 = vmul.f32 %v292, %v292
  %v1254 = vmul.f32 %v293, %v293
  %v1255 = vmul.f32 %v294, %v294
  %v1256 = vmul.f32 %v295, %v295
  %v1257 = vmul.f32 %v296, %v296
  %v1258 = vmul.f32 %v297, %v297
  %v1259 = vmul.f32 %v298, %v298
  %v1260 = vmul.f32 %v299, %v299
  %v1261 = vmul.f32 %v300, %v300
  %v1262 = vmul.f32 %v301, %v301
  %v1263 = vmul.f32 %v302, %v302
  %v1264 = vmul.f32 %v303, %v303
  %v1265 = vmul.f32 %v304, %v304
  %v1266 = vmul.f32 %v305, %v305
  %v1267 = vmul.f32 %v306, %v306
  %v1268 = vmul.f32 %v307, %v307
  %v1269 = vmul.f32 %v308, %v308
  %v1270 = vmul.f32 %v309, %v309
  %v1271 = vmul.f32 %v310, %v310
  %v1272 = vmul.f32 %v311, %v311
  %v1273 = vmul.f32 %v312, %v312
  %v1274 = vmul.f32 %v313, %v313
  %v1275 = vmul.f32 %v314, %v314
  %v1276 = vmul.f32 %v315, %v315
  %v1277 = vmul.f32 %v316, %v316
  %v1278 = vmul.f32 %v317, %v317
  %v1279 = vmul.f32 %v318, %v318
  %v1280 = vmul.f32 %v319, %v319
  %v1281 = vmul.f32 %v320, %v320
  %v1282 = vmul.f32 %v321, %v321
  %v1283 = vmul.f32 %v322, %v322
  %v1284 = vmul.f32 %v323, %v323
  %v1285 = vmul.f32 %v324, %v324
  %v1286 = vmul.f32 %v325, %v325
  %v1287 = vmul.f32 %v326, %v326
  %v1288 = vmul.f32 %v327, %v327
  %v1289 = vmul.f32 %v328, %v328
  %v1290 = vmul.f32 %v329, %v329
  %v1291 = vmul.f32 %v330, %v330
  %v1292 = vmul.f32 %v331, %v331
  %v1293 = vmul.f32 %v332, %v332
  %v1294 = vmul.f32 %v333, %v333
  %v1295 = vmul.f32 %v334, %v334
  %v1296 = vmul.f32 %v335, %v335
  %v1297 = vmul.f32 %v336, %v336
  %v1298 = vmul.f32 %v337, %v337
  %v1299 = vmul.f32 %v338, %v338
  %v1300 = vmul.f32 %v339, %v339
  %v1301 = vmul.f32 %v340, %v340
  %v1302 = vmul.f32 %v341, %v341
  %v1303 = vmul.f32 %v342, %v342
  %v1304 = vsel %vm343, %v985, 0.0
  %v1305 = vadd.f32 %v984, %v1304
  %1306 = vadd.xlane.f32.xlu0 %v1305
  %v1307 = vpop.xlane.xlu0 %1306
  %v1308 = vsel %vm343, %v987, 0.0
  %v1309 = vadd.f32 %v986, %v1308
  %1310 = vadd.xlane.f32.xlu0 %v1309
  %v1311 = vpop.xlane.xlu0 %1310
  %v1312 = vsel %vm343, %v989, 0.0
  %v1313 = vadd.f32 %v988, %v1312
  %1314 = vadd.xlane.f32.xlu0 %v1313
  %v1315 = vpop.xlane.xlu0 %1314
  %v1316 = vsel %vm343, %v991, 0.0
  %v1317 = vadd.f32 %v990, %v1316
  %1318 = vadd.xlane.f32.xlu0 %v1317
  %v1319 = vpop.xlane.xlu0 %1318
  %v1320 = vsel %vm343, %v993, 0.0
  %v1321 = vadd.f32 %v992, %v1320
  %1322 = vadd.xlane.f32.xlu0 %v1321
  %v1323 = vpop.xlane.xlu0 %1322
  %v1324 = vsel %vm343, %v995, 0.0
  %v1325 = vadd.f32 %v994, %v1324
  %1326 = vadd.xlane.f32.xlu0 %v1325
  %v1327 = vpop.xlane.xlu0 %1326
  %v1328 = vsel %vm343, %v997, 0.0
  %v1329 = vadd.f32 %v996, %v1328
  %1330 = vadd.xlane.f32.xlu0 %v1329
  %v1331 = vpop.xlane.xlu0 %1330
  %v1332 = vsel %vm343, %v999, 0.0
  %v1333 = vadd.f32 %v998, %v1332
  %1334 = vadd.xlane.f32.xlu0 %v1333
  %v1335 = vpop.xlane.xlu0 %1334
  %v1336 = vsel %vm343, %v1001, 0.0
  %v1337 = vadd.f32 %v1000, %v1336
  %1338 = vadd.xlane.f32.xlu0 %v1337
  %v1339 = vpop.xlane.xlu0 %1338
  %v1340 = vsel %vm343, %v1003, 0.0
  %v1341 = vadd.f32 %v1002, %v1340
  %1342 = vadd.xlane.f32.xlu0 %v1341
  %v1343 = vpop.xlane.xlu0 %1342
  %v1344 = vsel %vm343, %v1005, 0.0
  %v1345 = vadd.f32 %v1004, %v1344
  %1346 = vadd.xlane.f32.xlu0 %v1345
  %v1347 = vpop.xlane.xlu0 %1346
  %v1348 = vsel %vm343, %v1007, 0.0
  %v1349 = vadd.f32 %v1006, %v1348
  %1350 = vadd.xlane.f32.xlu0 %v1349
  %v1351 = vpop.xlane.xlu0 %1350
  %v1352 = vsel %vm343, %v1009, 0.0
  %v1353 = vadd.f32 %v1008, %v1352
  %1354 = vadd.xlane.f32.xlu0 %v1353
  %v1355 = vpop.xlane.xlu0 %1354
  %v1356 = vsel %vm343, %v1011, 0.0
  %v1357 = vadd.f32 %v1010, %v1356
  %1358 = vadd.xlane.f32.xlu0 %v1357
  %v1359 = vpop.xlane.xlu0 %1358
  %v1360 = vsel %vm343, %v1013, 0.0
  %v1361 = vadd.f32 %v1012, %v1360
  %1362 = vadd.xlane.f32.xlu0 %v1361
  %v1363 = vpop.xlane.xlu0 %1362
  %v1364 = vsel %vm343, %v1015, 0.0
  %v1365 = vadd.f32 %v1014, %v1364
  %1366 = vadd.xlane.f32.xlu0 %v1365
  %v1367 = vpop.xlane.xlu0 %1366
  %v1368 = vsel %vm343, %v1017, 0.0
  %v1369 = vadd.f32 %v1016, %v1368
  %1370 = vadd.xlane.f32.xlu0 %v1369
  %v1371 = vpop.xlane.xlu0 %1370
  %v1372 = vsel %vm343, %v1019, 0.0
  %v1373 = vadd.f32 %v1018, %v1372
  %1374 = vadd.xlane.f32.xlu0 %v1373
  %v1375 = vpop.xlane.xlu0 %1374
  %v1376 = vsel %vm343, %v1021, 0.0
  %v1377 = vadd.f32 %v1020, %v1376
  %1378 = vadd.xlane.f32.xlu0 %v1377
  %v1379 = vpop.xlane.xlu0 %1378
  %v1380 = vsel %vm343, %v1023, 0.0
  %v1381 = vadd.f32 %v1022, %v1380
  %1382 = vadd.xlane.f32.xlu0 %v1381
  %v1383 = vpop.xlane.xlu0 %1382
  %v1384 = vsel %vm343, %v1025, 0.0
  %v1385 = vadd.f32 %v1024, %v1384
  %1386 = vadd.xlane.f32.xlu0 %v1385
  %v1387 = vpop.xlane.xlu0 %1386
  %v1388 = vsel %vm343, %v1027, 0.0
  %v1389 = vadd.f32 %v1026, %v1388
  %1390 = vadd.xlane.f32.xlu0 %v1389
  %v1391 = vpop.xlane.xlu0 %1390
  %v1392 = vsel %vm343, %v1029, 0.0
  %v1393 = vadd.f32 %v1028, %v1392
  %1394 = vadd.xlane.f32.xlu0 %v1393
  %v1395 = vpop.xlane.xlu0 %1394
  %v1396 = vsel %vm343, %v1031, 0.0
  %v1397 = vadd.f32 %v1030, %v1396
  %1398 = vadd.xlane.f32.xlu0 %v1397
  %v1399 = vpop.xlane.xlu0 %1398
  %v1400 = vsel %vm343, %v1033, 0.0
  %v1401 = vadd.f32 %v1032, %v1400
  %1402 = vadd.xlane.f32.xlu0 %v1401
  %v1403 = vpop.xlane.xlu0 %1402
  %v1404 = vsel %vm343, %v1035, 0.0
  %v1405 = vadd.f32 %v1034, %v1404
  %1406 = vadd.xlane.f32.xlu0 %v1405
  %v1407 = vpop.xlane.xlu0 %1406
  %v1408 = vsel %vm343, %v1037, 0.0
  %v1409 = vadd.f32 %v1036, %v1408
  %1410 = vadd.xlane.f32.xlu0 %v1409
  %v1411 = vpop.xlane.xlu0 %1410
  %v1412 = vsel %vm343, %v1039, 0.0
  %v1413 = vadd.f32 %v1038, %v1412
  %1414 = vadd.xlane.f32.xlu0 %v1413
  %v1415 = vpop.xlane.xlu0 %1414
  %v1416 = vsel %vm343, %v1041, 0.0
  %v1417 = vadd.f32 %v1040, %v1416
  %1418 = vadd.xlane.f32.xlu0 %v1417
  %v1419 = vpop.xlane.xlu0 %1418
  %v1420 = vsel %vm343, %v1043, 0.0
  %v1421 = vadd.f32 %v1042, %v1420
  %1422 = vadd.xlane.f32.xlu0 %v1421
  %v1423 = vpop.xlane.xlu0 %1422
  %v1424 = vsel %vm343, %v1045, 0.0
  %v1425 = vadd.f32 %v1044, %v1424
  %1426 = vadd.xlane.f32.xlu0 %v1425
  %v1427 = vpop.xlane.xlu0 %1426
  %v1428 = vsel %vm343, %v1047, 0.0
  %v1429 = vadd.f32 %v1046, %v1428
  %1430 = vadd.xlane.f32.xlu0 %v1429
  %v1431 = vpop.xlane.xlu0 %1430
  %v1432 = vsel %vm343, %v1049, 0.0
  %v1433 = vadd.f32 %v1048, %v1432
  %1434 = vadd.xlane.f32.xlu0 %v1433
  %v1435 = vpop.xlane.xlu0 %1434
  %v1436 = vsel %vm343, %v1051, 0.0
  %v1437 = vadd.f32 %v1050, %v1436
  %1438 = vadd.xlane.f32.xlu0 %v1437
  %v1439 = vpop.xlane.xlu0 %1438
  %v1440 = vsel %vm343, %v1053, 0.0
  %v1441 = vadd.f32 %v1052, %v1440
  %1442 = vadd.xlane.f32.xlu0 %v1441
  %v1443 = vpop.xlane.xlu0 %1442
  %v1444 = vsel %vm343, %v1055, 0.0
  %v1445 = vadd.f32 %v1054, %v1444
  %1446 = vadd.xlane.f32.xlu0 %v1445
  %v1447 = vpop.xlane.xlu0 %1446
  %v1448 = vsel %vm343, %v1057, 0.0
  %v1449 = vadd.f32 %v1056, %v1448
  %1450 = vadd.xlane.f32.xlu0 %v1449
  %v1451 = vpop.xlane.xlu0 %1450
  %v1452 = vsel %vm343, %v1059, 0.0
  %v1453 = vadd.f32 %v1058, %v1452
  %1454 = vadd.xlane.f32.xlu0 %v1453
  %v1455 = vpop.xlane.xlu0 %1454
  %v1456 = vsel %vm343, %v1061, 0.0
  %v1457 = vadd.f32 %v1060, %v1456
  %1458 = vadd.xlane.f32.xlu0 %v1457
  %v1459 = vpop.xlane.xlu0 %1458
  %v1460 = vsel %vm343, %v1063, 0.0
  %v1461 = vadd.f32 %v1062, %v1460
  %1462 = vadd.xlane.f32.xlu0 %v1461
  %v1463 = vpop.xlane.xlu0 %1462
  %v1464 = vsel %vm343, %v1065, 0.0
  %v1465 = vadd.f32 %v1064, %v1464
  %1466 = vadd.xlane.f32.xlu0 %v1465
  %v1467 = vpop.xlane.xlu0 %1466
  %v1468 = vsel %vm343, %v1067, 0.0
  %v1469 = vadd.f32 %v1066, %v1468
  %1470 = vadd.xlane.f32.xlu0 %v1469
  %v1471 = vpop.xlane.xlu0 %1470
  %v1472 = vsel %vm343, %v1069, 0.0
  %v1473 = vadd.f32 %v1068, %v1472
  %1474 = vadd.xlane.f32.xlu0 %v1473
  %v1475 = vpop.xlane.xlu0 %1474
  %v1476 = vsel %vm343, %v1071, 0.0
  %v1477 = vadd.f32 %v1070, %v1476
  %1478 = vadd.xlane.f32.xlu0 %v1477
  %v1479 = vpop.xlane.xlu0 %1478
  %v1480 = vsel %vm343, %v1073, 0.0
  %v1481 = vadd.f32 %v1072, %v1480
  %1482 = vadd.xlane.f32.xlu0 %v1481
  %v1483 = vpop.xlane.xlu0 %1482
  %v1484 = vsel %vm343, %v1075, 0.0
  %v1485 = vadd.f32 %v1074, %v1484
  %1486 = vadd.xlane.f32.xlu0 %v1485
  %v1487 = vpop.xlane.xlu0 %1486
  %v1488 = vsel %vm343, %v1077, 0.0
  %v1489 = vadd.f32 %v1076, %v1488
  %1490 = vadd.xlane.f32.xlu0 %v1489
  %v1491 = vpop.xlane.xlu0 %1490
  %v1492 = vsel %vm343, %v1079, 0.0
  %v1493 = vadd.f32 %v1078, %v1492
  %1494 = vadd.xlane.f32.xlu0 %v1493
  %v1495 = vpop.xlane.xlu0 %1494
  %v1496 = vsel %vm343, %v1081, 0.0
  %v1497 = vadd.f32 %v1080, %v1496
  %1498 = vadd.xlane.f32.xlu0 %v1497
  %v1499 = vpop.xlane.xlu0 %1498
  %v1500 = vsel %vm343, %v1083, 0.0
  %v1501 = vadd.f32 %v1082, %v1500
  %1502 = vadd.xlane.f32.xlu0 %v1501
  %v1503 = vpop.xlane.xlu0 %1502
  %v1504 = vsel %vm343, %v1085, 0.0
  %v1505 = vadd.f32 %v1084, %v1504
  %1506 = vadd.xlane.f32.xlu0 %v1505
  %v1507 = vpop.xlane.xlu0 %1506
  %v1508 = vsel %vm343, %v1087, 0.0
  %v1509 = vadd.f32 %v1086, %v1508
  %1510 = vadd.xlane.f32.xlu0 %v1509
  %v1511 = vpop.xlane.xlu0 %1510
  %v1512 = vsel %vm343, %v1089, 0.0
  %v1513 = vadd.f32 %v1088, %v1512
  %1514 = vadd.xlane.f32.xlu0 %v1513
  %v1515 = vpop.xlane.xlu0 %1514
  %v1516 = vsel %vm343, %v1091, 0.0
  %v1517 = vadd.f32 %v1090, %v1516
  %1518 = vadd.xlane.f32.xlu0 %v1517
  %v1519 = vpop.xlane.xlu0 %1518
  %v1520 = vsel %vm343, %v1093, 0.0
  %v1521 = vadd.f32 %v1092, %v1520
  %1522 = vadd.xlane.f32.xlu0 %v1521
  %v1523 = vpop.xlane.xlu0 %1522
  %v1524 = vsel %vm343, %v1095, 0.0
  %v1525 = vadd.f32 %v1094, %v1524
  %1526 = vadd.xlane.f32.xlu0 %v1525
  %v1527 = vpop.xlane.xlu0 %1526
  %v1528 = vsel %vm343, %v1097, 0.0
  %v1529 = vadd.f32 %v1096, %v1528
  %1530 = vadd.xlane.f32.xlu0 %v1529
  %v1531 = vpop.xlane.xlu0 %1530
  %v1532 = vsel %vm343, %v1099, 0.0
  %v1533 = vadd.f32 %v1098, %v1532
  %1534 = vadd.xlane.f32.xlu0 %v1533
  %v1535 = vpop.xlane.xlu0 %1534
  %v1536 = vsel %vm343, %v1101, 0.0
  %v1537 = vadd.f32 %v1100, %v1536
  %1538 = vadd.xlane.f32.xlu0 %v1537
  %v1539 = vpop.xlane.xlu0 %1538
  %v1540 = vsel %vm343, %v1103, 0.0
  %v1541 = vadd.f32 %v1102, %v1540
  %1542 = vadd.xlane.f32.xlu0 %v1541
  %v1543 = vpop.xlane.xlu0 %1542
  %v1544 = vsel %vm343, %v1105, 0.0
  %v1545 = vadd.f32 %v1104, %v1544
  %1546 = vadd.xlane.f32.xlu0 %v1545
  %v1547 = vpop.xlane.xlu0 %1546
  %v1548 = vsel %vm343, %v1107, 0.0
  %v1549 = vadd.f32 %v1106, %v1548
  %1550 = vadd.xlane.f32.xlu0 %v1549
  %v1551 = vpop.xlane.xlu0 %1550
  %v1552 = vsel %vm343, %v1109, 0.0
  %v1553 = vadd.f32 %v1108, %v1552
  %1554 = vadd.xlane.f32.xlu0 %v1553
  %v1555 = vpop.xlane.xlu0 %1554
  %v1556 = vsel %vm343, %v1111, 0.0
  %v1557 = vadd.f32 %v1110, %v1556
  %1558 = vadd.xlane.f32.xlu0 %v1557
  %v1559 = vpop.xlane.xlu0 %1558
  %v1560 = vsel %vm343, %v1113, 0.0
  %v1561 = vadd.f32 %v1112, %v1560
  %1562 = vadd.xlane.f32.xlu0 %v1561
  %v1563 = vpop.xlane.xlu0 %1562
  %v1564 = vsel %vm343, %v1115, 0.0
  %v1565 = vadd.f32 %v1114, %v1564
  %1566 = vadd.xlane.f32.xlu0 %v1565
  %v1567 = vpop.xlane.xlu0 %1566
  %v1568 = vsel %vm343, %v1117, 0.0
  %v1569 = vadd.f32 %v1116, %v1568
  %1570 = vadd.xlane.f32.xlu0 %v1569
  %v1571 = vpop.xlane.xlu0 %1570
  %v1572 = vsel %vm343, %v1119, 0.0
  %v1573 = vadd.f32 %v1118, %v1572
  %1574 = vadd.xlane.f32.xlu0 %v1573
  %v1575 = vpop.xlane.xlu0 %1574
  %v1576 = vsel %vm343, %v1121, 0.0
  %v1577 = vadd.f32 %v1120, %v1576
  %1578 = vadd.xlane.f32.xlu0 %v1577
  %v1579 = vpop.xlane.xlu0 %1578
  %v1580 = vsel %vm343, %v1123, 0.0
  %v1581 = vadd.f32 %v1122, %v1580
  %1582 = vadd.xlane.f32.xlu0 %v1581
  %v1583 = vpop.xlane.xlu0 %1582
  %v1584 = vsel %vm343, %v1125, 0.0
  %v1585 = vadd.f32 %v1124, %v1584
  %1586 = vadd.xlane.f32.xlu0 %v1585
  %v1587 = vpop.xlane.xlu0 %1586
  %v1588 = vsel %vm343, %v1127, 0.0
  %v1589 = vadd.f32 %v1126, %v1588
  %1590 = vadd.xlane.f32.xlu0 %v1589
  %v1591 = vpop.xlane.xlu0 %1590
  %v1592 = vsel %vm343, %v1129, 0.0
  %v1593 = vadd.f32 %v1128, %v1592
  %1594 = vadd.xlane.f32.xlu0 %v1593
  %v1595 = vpop.xlane.xlu0 %1594
  %v1596 = vsel %vm343, %v1131, 0.0
  %v1597 = vadd.f32 %v1130, %v1596
  %1598 = vadd.xlane.f32.xlu0 %v1597
  %v1599 = vpop.xlane.xlu0 %1598
  %v1600 = vsel %vm343, %v1133, 0.0
  %v1601 = vadd.f32 %v1132, %v1600
  %1602 = vadd.xlane.f32.xlu0 %v1601
  %v1603 = vpop.xlane.xlu0 %1602
  %v1604 = vsel %vm343, %v1135, 0.0
  %v1605 = vadd.f32 %v1134, %v1604
  %1606 = vadd.xlane.f32.xlu0 %v1605
  %v1607 = vpop.xlane.xlu0 %1606
  %v1608 = vsel %vm343, %v1137, 0.0
  %v1609 = vadd.f32 %v1136, %v1608
  %1610 = vadd.xlane.f32.xlu0 %v1609
  %v1611 = vpop.xlane.xlu0 %1610
  %v1612 = vsel %vm343, %v1139, 0.0
  %v1613 = vadd.f32 %v1138, %v1612
  %1614 = vadd.xlane.f32.xlu0 %v1613
  %v1615 = vpop.xlane.xlu0 %1614
  %v1616 = vsel %vm343, %v1141, 0.0
  %v1617 = vadd.f32 %v1140, %v1616
  %1618 = vadd.xlane.f32.xlu0 %v1617
  %v1619 = vpop.xlane.xlu0 %1618
  %v1620 = vsel %vm343, %v1143, 0.0
  %v1621 = vadd.f32 %v1142, %v1620
  %1622 = vadd.xlane.f32.xlu0 %v1621
  %v1623 = vpop.xlane.xlu0 %1622
  %v1624 = vsel %vm343, %v1145, 0.0
  %v1625 = vadd.f32 %v1144, %v1624
  %1626 = vadd.xlane.f32.xlu0 %v1625
  %v1627 = vpop.xlane.xlu0 %1626
  %v1628 = vsel %vm343, %v1147, 0.0
  %v1629 = vadd.f32 %v1146, %v1628
  %1630 = vadd.xlane.f32.xlu0 %v1629
  %v1631 = vpop.xlane.xlu0 %1630
  %v1632 = vsel %vm343, %v1149, 0.0
  %v1633 = vadd.f32 %v1148, %v1632
  %1634 = vadd.xlane.f32.xlu0 %v1633
  %v1635 = vpop.xlane.xlu0 %1634
  %v1636 = vsel %vm343, %v1151, 0.0
  %v1637 = vadd.f32 %v1150, %v1636
  %1638 = vadd.xlane.f32.xlu0 %v1637
  %v1639 = vpop.xlane.xlu0 %1638
  %v1640 = vsel %vm343, %v1153, 0.0
  %v1641 = vadd.f32 %v1152, %v1640
  %1642 = vadd.xlane.f32.xlu0 %v1641
  %v1643 = vpop.xlane.xlu0 %1642
  %v1644 = vsel %vm343, %v1155, 0.0
  %v1645 = vadd.f32 %v1154, %v1644
  %1646 = vadd.xlane.f32.xlu0 %v1645
  %v1647 = vpop.xlane.xlu0 %1646
  %v1648 = vsel %vm343, %v1157, 0.0
  %v1649 = vadd.f32 %v1156, %v1648
  %1650 = vadd.xlane.f32.xlu0 %v1649
  %v1651 = vpop.xlane.xlu0 %1650
  %v1652 = vsel %vm343, %v1159, 0.0
  %v1653 = vadd.f32 %v1158, %v1652
  %1654 = vadd.xlane.f32.xlu0 %v1653
  %v1655 = vpop.xlane.xlu0 %1654
  %v1656 = vsel %vm343, %v1161, 0.0
  %v1657 = vadd.f32 %v1160, %v1656
  %1658 = vadd.xlane.f32.xlu0 %v1657
  %v1659 = vpop.xlane.xlu0 %1658
  %v1660 = vsel %vm343, %v1163, 0.0
  %v1661 = vadd.f32 %v1162, %v1660
  %1662 = vadd.xlane.f32.xlu0 %v1661
  %v1663 = vpop.xlane.xlu0 %1662
  %v1664 = vsel %vm343, %v1165, 0.0
  %v1665 = vadd.f32 %v1164, %v1664
  %1666 = vadd.xlane.f32.xlu0 %v1665
  %v1667 = vpop.xlane.xlu0 %1666
  %v1668 = vsel %vm343, %v1167, 0.0
  %v1669 = vadd.f32 %v1166, %v1668
  %1670 = vadd.xlane.f32.xlu0 %v1669
  %v1671 = vpop.xlane.xlu0 %1670
  %v1672 = vsel %vm343, %v1169, 0.0
  %v1673 = vadd.f32 %v1168, %v1672
  %1674 = vadd.xlane.f32.xlu0 %v1673
  %v1675 = vpop.xlane.xlu0 %1674
  %v1676 = vsel %vm343, %v1171, 0.0
  %v1677 = vadd.f32 %v1170, %v1676
  %1678 = vadd.xlane.f32.xlu0 %v1677
  %v1679 = vpop.xlane.xlu0 %1678
  %v1680 = vsel %vm343, %v1173, 0.0
  %v1681 = vadd.f32 %v1172, %v1680
  %1682 = vadd.xlane.f32.xlu0 %v1681
  %v1683 = vpop.xlane.xlu0 %1682
  %v1684 = vsel %vm343, %v1175, 0.0
  %v1685 = vadd.f32 %v1174, %v1684
  %1686 = vadd.xlane.f32.xlu0 %v1685
  %v1687 = vpop.xlane.xlu0 %1686
  %v1688 = vsel %vm343, %v1177, 0.0
  %v1689 = vadd.f32 %v1176, %v1688
  %1690 = vadd.xlane.f32.xlu0 %v1689
  %v1691 = vpop.xlane.xlu0 %1690
  %v1692 = vsel %vm343, %v1179, 0.0
  %v1693 = vadd.f32 %v1178, %v1692
  %1694 = vadd.xlane.f32.xlu0 %v1693
  %v1695 = vpop.xlane.xlu0 %1694
  %v1696 = vsel %vm343, %v1181, 0.0
  %v1697 = vadd.f32 %v1180, %v1696
  %1698 = vadd.xlane.f32.xlu0 %v1697
  %v1699 = vpop.xlane.xlu0 %1698
  %v1700 = vsel %vm343, %v1183, 0.0
  %v1701 = vadd.f32 %v1182, %v1700
  %1702 = vadd.xlane.f32.xlu0 %v1701
  %v1703 = vpop.xlane.xlu0 %1702
  %v1704 = vsel %vm343, %v1185, 0.0
  %v1705 = vadd.f32 %v1184, %v1704
  %1706 = vadd.xlane.f32.xlu0 %v1705
  %v1707 = vpop.xlane.xlu0 %1706
  %v1708 = vsel %vm343, %v1187, 0.0
  %v1709 = vadd.f32 %v1186, %v1708
  %1710 = vadd.xlane.f32.xlu0 %v1709
  %v1711 = vpop.xlane.xlu0 %1710
  %v1712 = vsel %vm343, %v1189, 0.0
  %v1713 = vadd.f32 %v1188, %v1712
  %1714 = vadd.xlane.f32.xlu0 %v1713
  %v1715 = vpop.xlane.xlu0 %1714
  %v1716 = vsel %vm343, %v1191, 0.0
  %v1717 = vadd.f32 %v1190, %v1716
  %1718 = vadd.xlane.f32.xlu0 %v1717
  %v1719 = vpop.xlane.xlu0 %1718
  %v1720 = vsel %vm343, %v1193, 0.0
  %v1721 = vadd.f32 %v1192, %v1720
  %1722 = vadd.xlane.f32.xlu0 %v1721
  %v1723 = vpop.xlane.xlu0 %1722
  %v1724 = vsel %vm343, %v1195, 0.0
  %v1725 = vadd.f32 %v1194, %v1724
  %1726 = vadd.xlane.f32.xlu0 %v1725
  %v1727 = vpop.xlane.xlu0 %1726
  %v1728 = vsel %vm343, %v1197, 0.0
  %v1729 = vadd.f32 %v1196, %v1728
  %1730 = vadd.xlane.f32.xlu0 %v1729
  %v1731 = vpop.xlane.xlu0 %1730
  %v1732 = vsel %vm343, %v1199, 0.0
  %v1733 = vadd.f32 %v1198, %v1732
  %1734 = vadd.xlane.f32.xlu0 %v1733
  %v1735 = vpop.xlane.xlu0 %1734
  %v1736 = vsel %vm343, %v1201, 0.0
  %v1737 = vadd.f32 %v1200, %v1736
  %1738 = vadd.xlane.f32.xlu0 %v1737
  %v1739 = vpop.xlane.xlu0 %1738
  %v1740 = vsel %vm343, %v1203, 0.0
  %v1741 = vadd.f32 %v1202, %v1740
  %1742 = vadd.xlane.f32.xlu0 %v1741
  %v1743 = vpop.xlane.xlu0 %1742
  %v1744 = vsel %vm343, %v1205, 0.0
  %v1745 = vadd.f32 %v1204, %v1744
  %1746 = vadd.xlane.f32.xlu0 %v1745
  %v1747 = vpop.xlane.xlu0 %1746
  %v1748 = vsel %vm343, %v1207, 0.0
  %v1749 = vadd.f32 %v1206, %v1748
  %1750 = vadd.xlane.f32.xlu0 %v1749
  %v1751 = vpop.xlane.xlu0 %1750
  %v1752 = vsel %vm343, %v1209, 0.0
  %v1753 = vadd.f32 %v1208, %v1752
  %1754 = vadd.xlane.f32.xlu0 %v1753
  %v1755 = vpop.xlane.xlu0 %1754
  %v1756 = vsel %vm343, %v1211, 0.0
  %v1757 = vadd.f32 %v1210, %v1756
  %1758 = vadd.xlane.f32.xlu0 %v1757
  %v1759 = vpop.xlane.xlu0 %1758
  %v1760 = vsel %vm343, %v1213, 0.0
  %v1761 = vadd.f32 %v1212, %v1760
  %1762 = vadd.xlane.f32.xlu0 %v1761
  %v1763 = vpop.xlane.xlu0 %1762
  %v1764 = vsel %vm343, %v1215, 0.0
  %v1765 = vadd.f32 %v1214, %v1764
  %1766 = vadd.xlane.f32.xlu0 %v1765
  %v1767 = vpop.xlane.xlu0 %1766
  %v1768 = vsel %vm343, %v1217, 0.0
  %v1769 = vadd.f32 %v1216, %v1768
  %1770 = vadd.xlane.f32.xlu0 %v1769
  %v1771 = vpop.xlane.xlu0 %1770
  %v1772 = vsel %vm343, %v1219, 0.0
  %v1773 = vadd.f32 %v1218, %v1772
  %1774 = vadd.xlane.f32.xlu0 %v1773
  %v1775 = vpop.xlane.xlu0 %1774
  %v1776 = vsel %vm343, %v1221, 0.0
  %v1777 = vadd.f32 %v1220, %v1776
  %1778 = vadd.xlane.f32.xlu0 %v1777
  %v1779 = vpop.xlane.xlu0 %1778
  %v1780 = vsel %vm343, %v1223, 0.0
  %v1781 = vadd.f32 %v1222, %v1780
  %1782 = vadd.xlane.f32.xlu0 %v1781
  %v1783 = vpop.xlane.xlu0 %1782
  %v1784 = vsel %vm343, %v1225, 0.0
  %v1785 = vadd.f32 %v1224, %v1784
  %1786 = vadd.xlane.f32.xlu0 %v1785
  %v1787 = vpop.xlane.xlu0 %1786
  %v1788 = vsel %vm343, %v1227, 0.0
  %v1789 = vadd.f32 %v1226, %v1788
  %1790 = vadd.xlane.f32.xlu0 %v1789
  %v1791 = vpop.xlane.xlu0 %1790
  %v1792 = vsel %vm343, %v1229, 0.0
  %v1793 = vadd.f32 %v1228, %v1792
  %1794 = vadd.xlane.f32.xlu0 %v1793
  %v1795 = vpop.xlane.xlu0 %1794
  %v1796 = vsel %vm343, %v1231, 0.0
  %v1797 = vadd.f32 %v1230, %v1796
  %1798 = vadd.xlane.f32.xlu0 %v1797
  %v1799 = vpop.xlane.xlu0 %1798
  %v1800 = vsel %vm343, %v1233, 0.0
  %v1801 = vadd.f32 %v1232, %v1800
  %1802 = vadd.xlane.f32.xlu0 %v1801
  %v1803 = vpop.xlane.xlu0 %1802
  %v1804 = vsel %vm343, %v1235, 0.0
  %v1805 = vadd.f32 %v1234, %v1804
  %1806 = vadd.xlane.f32.xlu0 %v1805
  %v1807 = vpop.xlane.xlu0 %1806
  %v1808 = vsel %vm343, %v1237, 0.0
  %v1809 = vadd.f32 %v1236, %v1808
  %1810 = vadd.xlane.f32.xlu0 %v1809
  %v1811 = vpop.xlane.xlu0 %1810
  %v1812 = vsel %vm343, %v1239, 0.0
  %v1813 = vadd.f32 %v1238, %v1812
  %1814 = vadd.xlane.f32.xlu0 %v1813
  %v1815 = vpop.xlane.xlu0 %1814
  %v1816 = vsel %vm343, %v1241, 0.0
  %v1817 = vadd.f32 %v1240, %v1816
  %1818 = vadd.xlane.f32.xlu0 %v1817
  %v1819 = vpop.xlane.xlu0 %1818
  %v1820 = vsel %vm343, %v1243, 0.0
  %v1821 = vadd.f32 %v1242, %v1820
  %1822 = vadd.xlane.f32.xlu0 %v1821
  %v1823 = vpop.xlane.xlu0 %1822
  %v1824 = vsel %vm343, %v1245, 0.0
  %v1825 = vadd.f32 %v1244, %v1824
  %1826 = vadd.xlane.f32.xlu0 %v1825
  %v1827 = vpop.xlane.xlu0 %1826
  %v1828 = vsel %vm343, %v1247, 0.0
  %v1829 = vadd.f32 %v1246, %v1828
  %1830 = vadd.xlane.f32.xlu0 %v1829
  %v1831 = vpop.xlane.xlu0 %1830
  %v1832 = vsel %vm343, %v1249, 0.0
  %v1833 = vadd.f32 %v1248, %v1832
  %1834 = vadd.xlane.f32.xlu0 %v1833
  %v1835 = vpop.xlane.xlu0 %1834
  %v1836 = vsel %vm343, %v1251, 0.0
  %v1837 = vadd.f32 %v1250, %v1836
  %1838 = vadd.xlane.f32.xlu0 %v1837
  %v1839 = vpop.xlane.xlu0 %1838
  %v1840 = vsel %vm343, %v1253, 0.0
  %v1841 = vadd.f32 %v1252, %v1840
  %1842 = vadd.xlane.f32.xlu0 %v1841
  %v1843 = vpop.xlane.xlu0 %1842
  %v1844 = vsel %vm343, %v1255, 0.0
  %v1845 = vadd.f32 %v1254, %v1844
  %1846 = vadd.xlane.f32.xlu0 %v1845
  %v1847 = vpop.xlane.xlu0 %1846
  %v1848 = vsel %vm343, %v1257, 0.0
  %v1849 = vadd.f32 %v1256, %v1848
  %1850 = vadd.xlane.f32.xlu0 %v1849
  %v1851 = vpop.xlane.xlu0 %1850
  %v1852 = vsel %vm343, %v1259, 0.0
  %v1853 = vadd.f32 %v1258, %v1852
  %1854 = vadd.xlane.f32.xlu0 %v1853
  %v1855 = vpop.xlane.xlu0 %1854
  %v1856 = vsel %vm343, %v1261, 0.0
  %v1857 = vadd.f32 %v1260, %v1856
  %1858 = vadd.xlane.f32.xlu0 %v1857
  %v1859 = vpop.xlane.xlu0 %1858
  %v1860 = vsel %vm343, %v1263, 0.0
  %v1861 = vadd.f32 %v1262, %v1860
  %1862 = vadd.xlane.f32.xlu0 %v1861
  %v1863 = vpop.xlane.xlu0 %1862
  %v1864 = vsel %vm343, %v1265, 0.0
  %v1865 = vadd.f32 %v1264, %v1864
  %1866 = vadd.xlane.f32.xlu0 %v1865
  %v1867 = vpop.xlane.xlu0 %1866
  %v1868 = vsel %vm343, %v1267, 0.0
  %v1869 = vadd.f32 %v1266, %v1868
  %1870 = vadd.xlane.f32.xlu0 %v1869
  %v1871 = vpop.xlane.xlu0 %1870
  %v1872 = vsel %vm343, %v1269, 0.0
  %v1873 = vadd.f32 %v1268, %v1872
  %1874 = vadd.xlane.f32.xlu0 %v1873
  %v1875 = vpop.xlane.xlu0 %1874
  %v1876 = vsel %vm343, %v1271, 0.0
  %v1877 = vadd.f32 %v1270, %v1876
  %1878 = vadd.xlane.f32.xlu0 %v1877
  %v1879 = vpop.xlane.xlu0 %1878
  %v1880 = vsel %vm343, %v1273, 0.0
  %v1881 = vadd.f32 %v1272, %v1880
  %1882 = vadd.xlane.f32.xlu0 %v1881
  %v1883 = vpop.xlane.xlu0 %1882
  %v1884 = vsel %vm343, %v1275, 0.0
  %v1885 = vadd.f32 %v1274, %v1884
  %1886 = vadd.xlane.f32.xlu0 %v1885
  %v1887 = vpop.xlane.xlu0 %1886
  %v1888 = vsel %vm343, %v1277, 0.0
  %v1889 = vadd.f32 %v1276, %v1888
  %1890 = vadd.xlane.f32.xlu0 %v1889
  %v1891 = vpop.xlane.xlu0 %1890
  %v1892 = vsel %vm343, %v1279, 0.0
  %v1893 = vadd.f32 %v1278, %v1892
  %1894 = vadd.xlane.f32.xlu0 %v1893
  %v1895 = vpop.xlane.xlu0 %1894
  %v1896 = vsel %vm343, %v1281, 0.0
  %v1897 = vadd.f32 %v1280, %v1896
  %1898 = vadd.xlane.f32.xlu0 %v1897
  %v1899 = vpop.xlane.xlu0 %1898
  %v1900 = vsel %vm343, %v1283, 0.0
  %v1901 = vadd.f32 %v1282, %v1900
  %1902 = vadd.xlane.f32.xlu0 %v1901
  %v1903 = vpop.xlane.xlu0 %1902
  %v1904 = vsel %vm343, %v1285, 0.0
  %v1905 = vadd.f32 %v1284, %v1904
  %1906 = vadd.xlane.f32.xlu0 %v1905
  %v1907 = vpop.xlane.xlu0 %1906
  %v1908 = vsel %vm343, %v1287, 0.0
  %v1909 = vadd.f32 %v1286, %v1908
  %1910 = vadd.xlane.f32.xlu0 %v1909
  %v1911 = vpop.xlane.xlu0 %1910
  %v1912 = vsel %vm343, %v1289, 0.0
  %v1913 = vadd.f32 %v1288, %v1912
  %1914 = vadd.xlane.f32.xlu0 %v1913
  %v1915 = vpop.xlane.xlu0 %1914
  %v1916 = vsel %vm343, %v1291, 0.0
  %v1917 = vadd.f32 %v1290, %v1916
  %1918 = vadd.xlane.f32.xlu0 %v1917
  %v1919 = vpop.xlane.xlu0 %1918
  %v1920 = vsel %vm343, %v1293, 0.0
  %v1921 = vadd.f32 %v1292, %v1920
  %1922 = vadd.xlane.f32.xlu0 %v1921
  %v1923 = vpop.xlane.xlu0 %1922
  %v1924 = vsel %vm343, %v1295, 0.0
  %v1925 = vadd.f32 %v1294, %v1924
  %1926 = vadd.xlane.f32.xlu0 %v1925
  %v1927 = vpop.xlane.xlu0 %1926
  %v1928 = vsel %vm343, %v1297, 0.0
  %v1929 = vadd.f32 %v1296, %v1928
  %1930 = vadd.xlane.f32.xlu0 %v1929
  %v1931 = vpop.xlane.xlu0 %1930
  %v1932 = vsel %vm343, %v1299, 0.0
  %v1933 = vadd.f32 %v1298, %v1932
  %1934 = vadd.xlane.f32.xlu0 %v1933
  %v1935 = vpop.xlane.xlu0 %1934
  %v1936 = vsel %vm343, %v1301, 0.0
  %v1937 = vadd.f32 %v1300, %v1936
  %1938 = vadd.xlane.f32.xlu0 %v1937
  %v1939 = vpop.xlane.xlu0 %1938
  %v1940 = vsel %vm343, %v1303, 0.0
  %v1941 = vadd.f32 %v1302, %v1940
  %1942 = vadd.xlane.f32.xlu0 %v1941
  %v1943 = vpop.xlane.xlu0 %1942
  %v1944 = vmul.f32 %v347, 0.0051020407
  %v1945 = vmul.f32 %v351, 0.0051020407
  %v1946 = vmul.f32 %v355, 0.0051020407
  %v1947 = vmul.f32 %v359, 0.0051020407
  %v1948 = vmul.f32 %v363, 0.0051020407
  %v1949 = vmul.f32 %v367, 0.0051020407
  %v1950 = vmul.f32 %v371, 0.0051020407
  %v1951 = vmul.f32 %v375, 0.0051020407
  %v1952 = vmul.f32 %v379, 0.0051020407
  %v1953 = vmul.f32 %v383, 0.0051020407
  %v1954 = vmul.f32 %v387, 0.0051020407
  %v1955 = vmul.f32 %v391, 0.0051020407
  %v1956 = vmul.f32 %v395, 0.0051020407
  %v1957 = vmul.f32 %v399, 0.0051020407
  %v1958 = vmul.f32 %v403, 0.0051020407
  %v1959 = vmul.f32 %v407, 0.0051020407
  %v1960 = vmul.f32 %v411, 0.0051020407
  %v1961 = vmul.f32 %v415, 0.0051020407
  %v1962 = vmul.f32 %v419, 0.0051020407
  %v1963 = vmul.f32 %v423, 0.0051020407
  %v1964 = vmul.f32 %v427, 0.0051020407
  %v1965 = vmul.f32 %v431, 0.0051020407
  %v1966 = vmul.f32 %v435, 0.0051020407
  %v1967 = vmul.f32 %v439, 0.0051020407
  %v1968 = vmul.f32 %v443, 0.0051020407
  %v1969 = vmul.f32 %v447, 0.0051020407
  %v1970 = vmul.f32 %v451, 0.0051020407
  %v1971 = vmul.f32 %v455, 0.0051020407
  %v1972 = vmul.f32 %v459, 0.0051020407
  %v1973 = vmul.f32 %v463, 0.0051020407
  %v1974 = vmul.f32 %v467, 0.0051020407
  %v1975 = vmul.f32 %v471, 0.0051020407
  %v1976 = vmul.f32 %v475, 0.0051020407
  %v1977 = vmul.f32 %v479, 0.0051020407
  %v1978 = vmul.f32 %v483, 0.0051020407
  %v1979 = vmul.f32 %v487, 0.0051020407
  %v1980 = vmul.f32 %v491, 0.0051020407
  %v1981 = vmul.f32 %v495, 0.0051020407
  %v1982 = vmul.f32 %v499, 0.0051020407
  %v1983 = vmul.f32 %v503, 0.0051020407
  %v1984 = vmul.f32 %v507, 0.0051020407
  %v1985 = vmul.f32 %v511, 0.0051020407
  %v1986 = vmul.f32 %v515, 0.0051020407
  %v1987 = vmul.f32 %v519, 0.0051020407
  %v1988 = vmul.f32 %v523, 0.0051020407
  %v1989 = vmul.f32 %v527, 0.0051020407
  %v1990 = vmul.f32 %v531, 0.0051020407
  %v1991 = vmul.f32 %v535, 0.0051020407
  %v1992 = vmul.f32 %v539, 0.0051020407
  %v1993 = vmul.f32 %v543, 0.0051020407
  %v1994 = vmul.f32 %v547, 0.0051020407
  %v1995 = vmul.f32 %v551, 0.0051020407
  %v1996 = vmul.f32 %v555, 0.0051020407
  %v1997 = vmul.f32 %v559, 0.0051020407
  %v1998 = vmul.f32 %v563, 0.0051020407
  %v1999 = vmul.f32 %v567, 0.0051020407
  %v2000 = vmul.f32 %v571, 0.0051020407
  %v2001 = vmul.f32 %v575, 0.0051020407
  %v2002 = vmul.f32 %v579, 0.0051020407
  %v2003 = vmul.f32 %v583, 0.0051020407
  %v2004 = vmul.f32 %v587, 0.0051020407
  %v2005 = vmul.f32 %v591, 0.0051020407
  %v2006 = vmul.f32 %v595, 0.0051020407
  %v2007 = vmul.f32 %v599, 0.0051020407
  %v2008 = vmul.f32 %v603, 0.0051020407
  %v2009 = vmul.f32 %v607, 0.0051020407
  %v2010 = vmul.f32 %v611, 0.0051020407
  %v2011 = vmul.f32 %v615, 0.0051020407
  %v2012 = vmul.f32 %v619, 0.0051020407
  %v2013 = vmul.f32 %v623, 0.0051020407
  %v2014 = vmul.f32 %v627, 0.0051020407
  %v2015 = vmul.f32 %v631, 0.0051020407
  %v2016 = vmul.f32 %v635, 0.0051020407
  %v2017 = vmul.f32 %v639, 0.0051020407
  %v2018 = vmul.f32 %v643, 0.0051020407
  %v2019 = vmul.f32 %v647, 0.0051020407
  %v2020 = vmul.f32 %v651, 0.0051020407
  %v2021 = vmul.f32 %v655, 0.0051020407
  %v2022 = vmul.f32 %v659, 0.0051020407
  %v2023 = vmul.f32 %v663, 0.0051020407
  %v2024 = vmul.f32 %v667, 0.0051020407
  %v2025 = vmul.f32 %v671, 0.0051020407
  %v2026 = vmul.f32 %v675, 0.0051020407
  %v2027 = vmul.f32 %v679, 0.0051020407
  %v2028 = vmul.f32 %v683, 0.0051020407
  %v2029 = vmul.f32 %v687, 0.0051020407
  %v2030 = vmul.f32 %v691, 0.0051020407
  %v2031 = vmul.f32 %v695, 0.0051020407
  %v2032 = vmul.f32 %v699, 0.0051020407
  %v2033 = vmul.f32 %v703, 0.0051020407
  %v2034 = vmul.f32 %v707, 0.0051020407
  %v2035 = vmul.f32 %v711, 0.0051020407
  %v2036 = vmul.f32 %v715, 0.0051020407
  %v2037 = vmul.f32 %v719, 0.0051020407
  %v2038 = vmul.f32 %v723, 0.0051020407
  %v2039 = vmul.f32 %v727, 0.0051020407
  %v2040 = vmul.f32 %v731, 0.0051020407
  %v2041 = vmul.f32 %v735, 0.0051020407
  %v2042 = vmul.f32 %v739, 0.0051020407
  %v2043 = vmul.f32 %v743, 0.0051020407
  %v2044 = vmul.f32 %v747, 0.0051020407
  %v2045 = vmul.f32 %v751, 0.0051020407
  %v2046 = vmul.f32 %v755, 0.0051020407
  %v2047 = vmul.f32 %v759, 0.0051020407
  %v2048 = vmul.f32 %v763, 0.0051020407
  %v2049 = vmul.f32 %v767, 0.0051020407
  %v2050 = vmul.f32 %v771, 0.0051020407
  %v2051 = vmul.f32 %v775, 0.0051020407
  %v2052 = vmul.f32 %v779, 0.0051020407
  %v2053 = vmul.f32 %v783, 0.0051020407
  %v2054 = vmul.f32 %v787, 0.0051020407
  %v2055 = vmul.f32 %v791, 0.0051020407
  %v2056 = vmul.f32 %v795, 0.0051020407
  %v2057 = vmul.f32 %v799, 0.0051020407
  %v2058 = vmul.f32 %v803, 0.0051020407
  %v2059 = vmul.f32 %v807, 0.0051020407
  %v2060 = vmul.f32 %v811, 0.0051020407
  %v2061 = vmul.f32 %v815, 0.0051020407
  %v2062 = vmul.f32 %v819, 0.0051020407
  %v2063 = vmul.f32 %v823, 0.0051020407
  %v2064 = vmul.f32 %v827, 0.0051020407
  %v2065 = vmul.f32 %v831, 0.0051020407
  %v2066 = vmul.f32 %v835, 0.0051020407
  %v2067 = vmul.f32 %v839, 0.0051020407
  %v2068 = vmul.f32 %v843, 0.0051020407
  %v2069 = vmul.f32 %v847, 0.0051020407
  %v2070 = vmul.f32 %v851, 0.0051020407
  %v2071 = vmul.f32 %v855, 0.0051020407
  %v2072 = vmul.f32 %v859, 0.0051020407
  %v2073 = vmul.f32 %v863, 0.0051020407
  %v2074 = vmul.f32 %v867, 0.0051020407
  %v2075 = vmul.f32 %v871, 0.0051020407
  %v2076 = vmul.f32 %v875, 0.0051020407
  %v2077 = vmul.f32 %v879, 0.0051020407
  %v2078 = vmul.f32 %v883, 0.0051020407
  %v2079 = vmul.f32 %v887, 0.0051020407
  %v2080 = vmul.f32 %v891, 0.0051020407
  %v2081 = vmul.f32 %v895, 0.0051020407
  %v2082 = vmul.f32 %v899, 0.0051020407
  %v2083 = vmul.f32 %v903, 0.0051020407
  %v2084 = vmul.f32 %v907, 0.0051020407
  %v2085 = vmul.f32 %v911, 0.0051020407
  %v2086 = vmul.f32 %v915, 0.0051020407
  %v2087 = vmul.f32 %v919, 0.0051020407
  %v2088 = vmul.f32 %v923, 0.0051020407
  %v2089 = vmul.f32 %v927, 0.0051020407
  %v2090 = vmul.f32 %v931, 0.0051020407
  %v2091 = vmul.f32 %v935, 0.0051020407
  %v2092 = vmul.f32 %v939, 0.0051020407
  %v2093 = vmul.f32 %v943, 0.0051020407
  %v2094 = vmul.f32 %v947, 0.0051020407
  %v2095 = vmul.f32 %v951, 0.0051020407
  %v2096 = vmul.f32 %v955, 0.0051020407
  %v2097 = vmul.f32 %v959, 0.0051020407
  %v2098 = vmul.f32 %v963, 0.0051020407
  %v2099 = vmul.f32 %v967, 0.0051020407
  %v2100 = vmul.f32 %v971, 0.0051020407
  %v2101 = vmul.f32 %v975, 0.0051020407
  %v2102 = vmul.f32 %v979, 0.0051020407
  %v2103 = vmul.f32 %v983, 0.0051020407
  %v2104 = vmul.f32 %v1307, 0.0051020407
  %v2105 = vmul.f32 %v1311, 0.0051020407
  %v2106 = vmul.f32 %v1315, 0.0051020407
  %v2107 = vmul.f32 %v1319, 0.0051020407
  %v2108 = vmul.f32 %v1323, 0.0051020407
  %v2109 = vmul.f32 %v1327, 0.0051020407
  %v2110 = vmul.f32 %v1331, 0.0051020407
  %v2111 = vmul.f32 %v1335, 0.0051020407
  %v2112 = vmul.f32 %v1339, 0.0051020407
  %v2113 = vmul.f32 %v1343, 0.0051020407
  %v2114 = vmul.f32 %v1347, 0.0051020407
  %v2115 = vmul.f32 %v1351, 0.0051020407
  %v2116 = vmul.f32 %v1355, 0.0051020407
  %v2117 = vmul.f32 %v1359, 0.0051020407
  %v2118 = vmul.f32 %v1363, 0.0051020407
  %v2119 = vmul.f32 %v1367, 0.0051020407
  %v2120 = vmul.f32 %v1371, 0.0051020407
  %v2121 = vmul.f32 %v1375, 0.0051020407
  %v2122 = vmul.f32 %v1379, 0.0051020407
  %v2123 = vmul.f32 %v1383, 0.0051020407
  %v2124 = vmul.f32 %v1387, 0.0051020407
  %v2125 = vmul.f32 %v1391, 0.0051020407
  %v2126 = vmul.f32 %v1395, 0.0051020407
  %v2127 = vmul.f32 %v1399, 0.0051020407
  %v2128 = vmul.f32 %v1403, 0.0051020407
  %v2129 = vmul.f32 %v1407, 0.0051020407
  %v2130 = vmul.f32 %v1411, 0.0051020407
  %v2131 = vmul.f32 %v1415, 0.0051020407
  %v2132 = vmul.f32 %v1419, 0.0051020407
  %v2133 = vmul.f32 %v1423, 0.0051020407
  %v2134 = vmul.f32 %v1427, 0.0051020407
  %v2135 = vmul.f32 %v1431, 0.0051020407
  %v2136 = vmul.f32 %v1435, 0.0051020407
  %v2137 = vmul.f32 %v1439, 0.0051020407
  %v2138 = vmul.f32 %v1443, 0.0051020407
  %v2139 = vmul.f32 %v1447, 0.0051020407
  %v2140 = vmul.f32 %v1451, 0.0051020407
  %v2141 = vmul.f32 %v1455, 0.0051020407
  %v2142 = vmul.f32 %v1459, 0.0051020407
  %v2143 = vmul.f32 %v1463, 0.0051020407
  %v2144 = vmul.f32 %v1467, 0.0051020407
  %v2145 = vmul.f32 %v1471, 0.0051020407
  %v2146 = vmul.f32 %v1475, 0.0051020407
  %v2147 = vmul.f32 %v1479, 0.0051020407
  %v2148 = vmul.f32 %v1483, 0.0051020407
  %v2149 = vmul.f32 %v1487, 0.0051020407
  %v2150 = vmul.f32 %v1491, 0.0051020407
  %v2151 = vmul.f32 %v1495, 0.0051020407
  %v2152 = vmul.f32 %v1499, 0.0051020407
  %v2153 = vmul.f32 %v1503, 0.0051020407
  %v2154 = vmul.f32 %v1507, 0.0051020407
  %v2155 = vmul.f32 %v1511, 0.0051020407
  %v2156 = vmul.f32 %v1515, 0.0051020407
  %v2157 = vmul.f32 %v1519, 0.0051020407
  %v2158 = vmul.f32 %v1523, 0.0051020407
  %v2159 = vmul.f32 %v1527, 0.0051020407
  %v2160 = vmul.f32 %v1531, 0.0051020407
  %v2161 = vmul.f32 %v1535, 0.0051020407
  %v2162 = vmul.f32 %v1539, 0.0051020407
  %v2163 = vmul.f32 %v1543, 0.0051020407
  %v2164 = vmul.f32 %v1547, 0.0051020407
  %v2165 = vmul.f32 %v1551, 0.0051020407
  %v2166 = vmul.f32 %v1555, 0.0051020407
  %v2167 = vmul.f32 %v1559, 0.0051020407
  %v2168 = vmul.f32 %v1563, 0.0051020407
  %v2169 = vmul.f32 %v1567, 0.0051020407
  %v2170 = vmul.f32 %v1571, 0.0051020407
  %v2171 = vmul.f32 %v1575, 0.0051020407
  %v2172 = vmul.f32 %v1579, 0.0051020407
  %v2173 = vmul.f32 %v1583, 0.0051020407
  %v2174 = vmul.f32 %v1587, 0.0051020407
  %v2175 = vmul.f32 %v1591, 0.0051020407
  %v2176 = vmul.f32 %v1595, 0.0051020407
  %v2177 = vmul.f32 %v1599, 0.0051020407
  %v2178 = vmul.f32 %v1603, 0.0051020407
  %v2179 = vmul.f32 %v1607, 0.0051020407
  %v2180 = vmul.f32 %v1611, 0.0051020407
  %v2181 = vmul.f32 %v1615, 0.0051020407
  %v2182 = vmul.f32 %v1619, 0.0051020407
  %v2183 = vmul.f32 %v1623, 0.0051020407
  %v2184 = vmul.f32 %v1627, 0.0051020407
  %v2185 = vmul.f32 %v1631, 0.0051020407
  %v2186 = vmul.f32 %v1635, 0.0051020407
  %v2187 = vmul.f32 %v1639, 0.0051020407
  %v2188 = vmul.f32 %v1643, 0.0051020407
  %v2189 = vmul.f32 %v1647, 0.0051020407
  %v2190 = vmul.f32 %v1651, 0.0051020407
  %v2191 = vmul.f32 %v1655, 0.0051020407
  %v2192 = vmul.f32 %v1659, 0.0051020407
  %v2193 = vmul.f32 %v1663, 0.0051020407
  %v2194 = vmul.f32 %v1667, 0.0051020407
  %v2195 = vmul.f32 %v1671, 0.0051020407
  %v2196 = vmul.f32 %v1675, 0.0051020407
  %v2197 = vmul.f32 %v1679, 0.0051020407
  %v2198 = vmul.f32 %v1683, 0.0051020407
  %v2199 = vmul.f32 %v1687, 0.0051020407
  %v2200 = vmul.f32 %v1691, 0.0051020407
  %v2201 = vmul.f32 %v1695, 0.0051020407
  %v2202 = vmul.f32 %v1699, 0.0051020407
  %v2203 = vmul.f32 %v1703, 0.0051020407
  %v2204 = vmul.f32 %v1707, 0.0051020407
  %v2205 = vmul.f32 %v1711, 0.0051020407
  %v2206 = vmul.f32 %v1715, 0.0051020407
  %v2207 = vmul.f32 %v1719, 0.0051020407
  %v2208 = vmul.f32 %v1723, 0.0051020407
  %v2209 = vmul.f32 %v1727, 0.0051020407
  %v2210 = vmul.f32 %v1731, 0.0051020407
  %v2211 = vmul.f32 %v1735, 0.0051020407
  %v2212 = vmul.f32 %v1739, 0.0051020407
  %v2213 = vmul.f32 %v1743, 0.0051020407
  %v2214 = vmul.f32 %v1747, 0.0051020407
  %v2215 = vmul.f32 %v1751, 0.0051020407
  %v2216 = vmul.f32 %v1755, 0.0051020407
  %v2217 = vmul.f32 %v1759, 0.0051020407
  %v2218 = vmul.f32 %v1763, 0.0051020407
  %v2219 = vmul.f32 %v1767, 0.0051020407
  %v2220 = vmul.f32 %v1771, 0.0051020407
  %v2221 = vmul.f32 %v1775, 0.0051020407
  %v2222 = vmul.f32 %v1779, 0.0051020407
  %v2223 = vmul.f32 %v1783, 0.0051020407
  %v2224 = vmul.f32 %v1787, 0.0051020407
  %v2225 = vmul.f32 %v1791, 0.0051020407
  %v2226 = vmul.f32 %v1795, 0.0051020407
  %v2227 = vmul.f32 %v1799, 0.0051020407
  %v2228 = vmul.f32 %v1803, 0.0051020407
  %v2229 = vmul.f32 %v1807, 0.0051020407
  %v2230 = vmul.f32 %v1811, 0.0051020407
  %v2231 = vmul.f32 %v1815, 0.0051020407
  %v2232 = vmul.f32 %v1819, 0.0051020407
  %v2233 = vmul.f32 %v1823, 0.0051020407
  %v2234 = vmul.f32 %v1827, 0.0051020407
  %v2235 = vmul.f32 %v1831, 0.0051020407
  %v2236 = vmul.f32 %v1835, 0.0051020407
  %v2237 = vmul.f32 %v1839, 0.0051020407
  %v2238 = vmul.f32 %v1843, 0.0051020407
  %v2239 = vmul.f32 %v1847, 0.0051020407
  %v2240 = vmul.f32 %v1851, 0.0051020407
  %v2241 = vmul.f32 %v1855, 0.0051020407
  %v2242 = vmul.f32 %v1859, 0.0051020407
  %v2243 = vmul.f32 %v1863, 0.0051020407
  %v2244 = vmul.f32 %v1867, 0.0051020407
  %v2245 = vmul.f32 %v1871, 0.0051020407
  %v2246 = vmul.f32 %v1875, 0.0051020407
  %v2247 = vmul.f32 %v1879, 0.0051020407
  %v2248 = vmul.f32 %v1883, 0.0051020407
  %v2249 = vmul.f32 %v1887, 0.0051020407
  %v2250 = vmul.f32 %v1891, 0.0051020407
  %v2251 = vmul.f32 %v1895, 0.0051020407
  %v2252 = vmul.f32 %v1899, 0.0051020407
  %v2253 = vmul.f32 %v1903, 0.0051020407
  %v2254 = vmul.f32 %v1907, 0.0051020407
  %v2255 = vmul.f32 %v1911, 0.0051020407
  %v2256 = vmul.f32 %v1915, 0.0051020407
  %v2257 = vmul.f32 %v1919, 0.0051020407
  %v2258 = vmul.f32 %v1923, 0.0051020407
  %v2259 = vmul.f32 %v1927, 0.0051020407
  %v2260 = vmul.f32 %v1931, 0.0051020407
  %v2261 = vmul.f32 %v1935, 0.0051020407
  %v2262 = vmul.f32 %v1939, 0.0051020407
  %v2263 = vmul.f32 %v1943, 0.0051020407
  %v2264 = vmul.f32 %v1944, %v1944
  %v2265 = vmul.f32 %v1945, %v1945
  %v2266 = vmul.f32 %v1946, %v1946
  %v2267 = vmul.f32 %v1947, %v1947
  %v2268 = vmul.f32 %v1948, %v1948
  %v2269 = vmul.f32 %v1949, %v1949
  %v2270 = vmul.f32 %v1950, %v1950
  %v2271 = vmul.f32 %v1951, %v1951
  %v2272 = vmul.f32 %v1952, %v1952
  %v2273 = vmul.f32 %v1953, %v1953
  %v2274 = vmul.f32 %v1954, %v1954
  %v2275 = vmul.f32 %v1955, %v1955
  %v2276 = vmul.f32 %v1956, %v1956
  %v2277 = vmul.f32 %v1957, %v1957
  %v2278 = vmul.f32 %v1958, %v1958
  %v2279 = vmul.f32 %v1959, %v1959
  %v2280 = vmul.f32 %v1960, %v1960
  %v2281 = vmul.f32 %v1961, %v1961
  %v2282 = vmul.f32 %v1962, %v1962
  %v2283 = vmul.f32 %v1963, %v1963
  %v2284 = vmul.f32 %v1964, %v1964
  %v2285 = vmul.f32 %v1965, %v1965
  %v2286 = vmul.f32 %v1966, %v1966
  %v2287 = vmul.f32 %v1967, %v1967
  %v2288 = vmul.f32 %v1968, %v1968
  %v2289 = vmul.f32 %v1969, %v1969
  %v2290 = vmul.f32 %v1970, %v1970
  %v2291 = vmul.f32 %v1971, %v1971
  %v2292 = vmul.f32 %v1972, %v1972
  %v2293 = vmul.f32 %v1973, %v1973
  %v2294 = vmul.f32 %v1974, %v1974
  %v2295 = vmul.f32 %v1975, %v1975
  %v2296 = vmul.f32 %v1976, %v1976
  %v2297 = vmul.f32 %v1977, %v1977
  %v2298 = vmul.f32 %v1978, %v1978
  %v2299 = vmul.f32 %v1979, %v1979
  %v2300 = vmul.f32 %v1980, %v1980
  %v2301 = vmul.f32 %v1981, %v1981
  %v2302 = vmul.f32 %v1982, %v1982
  %v2303 = vmul.f32 %v1983, %v1983
  %v2304 = vmul.f32 %v1984, %v1984
  %v2305 = vmul.f32 %v1985, %v1985
  %v2306 = vmul.f32 %v1986, %v1986
  %v2307 = vmul.f32 %v1987, %v1987
  %v2308 = vmul.f32 %v1988, %v1988
  %v2309 = vmul.f32 %v1989, %v1989
  %v2310 = vmul.f32 %v1990, %v1990
  %v2311 = vmul.f32 %v1991, %v1991
  %v2312 = vmul.f32 %v1992, %v1992
  %v2313 = vmul.f32 %v1993, %v1993
  %v2314 = vmul.f32 %v1994, %v1994
  %v2315 = vmul.f32 %v1995, %v1995
  %v2316 = vmul.f32 %v1996, %v1996
  %v2317 = vmul.f32 %v1997, %v1997
  %v2318 = vmul.f32 %v1998, %v1998
  %v2319 = vmul.f32 %v1999, %v1999
  %v2320 = vmul.f32 %v2000, %v2000
  %v2321 = vmul.f32 %v2001, %v2001
  %v2322 = vmul.f32 %v2002, %v2002
  %v2323 = vmul.f32 %v2003, %v2003
  %v2324 = vmul.f32 %v2004, %v2004
  %v2325 = vmul.f32 %v2005, %v2005
  %v2326 = vmul.f32 %v2006, %v2006
  %v2327 = vmul.f32 %v2007, %v2007
  %v2328 = vmul.f32 %v2008, %v2008
  %v2329 = vmul.f32 %v2009, %v2009
  %v2330 = vmul.f32 %v2010, %v2010
  %v2331 = vmul.f32 %v2011, %v2011
  %v2332 = vmul.f32 %v2012, %v2012
  %v2333 = vmul.f32 %v2013, %v2013
  %v2334 = vmul.f32 %v2014, %v2014
  %v2335 = vmul.f32 %v2015, %v2015
  %v2336 = vmul.f32 %v2016, %v2016
  %v2337 = vmul.f32 %v2017, %v2017
  %v2338 = vmul.f32 %v2018, %v2018
  %v2339 = vmul.f32 %v2019, %v2019
  %v2340 = vmul.f32 %v2020, %v2020
  %v2341 = vmul.f32 %v2021, %v2021
  %v2342 = vmul.f32 %v2022, %v2022
  %v2343 = vmul.f32 %v2023, %v2023
  %v2344 = vmul.f32 %v2024, %v2024
  %v2345 = vmul.f32 %v2025, %v2025
  %v2346 = vmul.f32 %v2026, %v2026
  %v2347 = vmul.f32 %v2027, %v2027
  %v2348 = vmul.f32 %v2028, %v2028
  %v2349 = vmul.f32 %v2029, %v2029
  %v2350 = vmul.f32 %v2030, %v2030
  %v2351 = vmul.f32 %v2031, %v2031
  %v2352 = vmul.f32 %v2032, %v2032
  %v2353 = vmul.f32 %v2033, %v2033
  %v2354 = vmul.f32 %v2034, %v2034
  %v2355 = vmul.f32 %v2035, %v2035
  %v2356 = vmul.f32 %v2036, %v2036
  %v2357 = vmul.f32 %v2037, %v2037
  %v2358 = vmul.f32 %v2038, %v2038
  %v2359 = vmul.f32 %v2039, %v2039
  %v2360 = vmul.f32 %v2040, %v2040
  %v2361 = vmul.f32 %v2041, %v2041
  %v2362 = vmul.f32 %v2042, %v2042
  %v2363 = vmul.f32 %v2043, %v2043
  %v2364 = vmul.f32 %v2044, %v2044
  %v2365 = vmul.f32 %v2045, %v2045
  %v2366 = vmul.f32 %v2046, %v2046
  %v2367 = vmul.f32 %v2047, %v2047
  %v2368 = vmul.f32 %v2048, %v2048
  %v2369 = vmul.f32 %v2049, %v2049
  %v2370 = vmul.f32 %v2050, %v2050
  %v2371 = vmul.f32 %v2051, %v2051
  %v2372 = vmul.f32 %v2052, %v2052
  %v2373 = vmul.f32 %v2053, %v2053
  %v2374 = vmul.f32 %v2054, %v2054
  %v2375 = vmul.f32 %v2055, %v2055
  %v2376 = vmul.f32 %v2056, %v2056
  %v2377 = vmul.f32 %v2057, %v2057
  %v2378 = vmul.f32 %v2058, %v2058
  %v2379 = vmul.f32 %v2059, %v2059
  %v2380 = vmul.f32 %v2060, %v2060
  %v2381 = vmul.f32 %v2061, %v2061
  %v2382 = vmul.f32 %v2062, %v2062
  %v2383 = vmul.f32 %v2063, %v2063
  %v2384 = vmul.f32 %v2064, %v2064
  %v2385 = vmul.f32 %v2065, %v2065
  %v2386 = vmul.f32 %v2066, %v2066
  %v2387 = vmul.f32 %v2067, %v2067
  %v2388 = vmul.f32 %v2068, %v2068
  %v2389 = vmul.f32 %v2069, %v2069
  %v2390 = vmul.f32 %v2070, %v2070
  %v2391 = vmul.f32 %v2071, %v2071
  %v2392 = vmul.f32 %v2072, %v2072
  %v2393 = vmul.f32 %v2073, %v2073
  %v2394 = vmul.f32 %v2074, %v2074
  %v2395 = vmul.f32 %v2075, %v2075
  %v2396 = vmul.f32 %v2076, %v2076
  %v2397 = vmul.f32 %v2077, %v2077
  %v2398 = vmul.f32 %v2078, %v2078
  %v2399 = vmul.f32 %v2079, %v2079
  %v2400 = vmul.f32 %v2080, %v2080
  %v2401 = vmul.f32 %v2081, %v2081
  %v2402 = vmul.f32 %v2082, %v2082
  %v2403 = vmul.f32 %v2083, %v2083
  %v2404 = vmul.f32 %v2084, %v2084
  %v2405 = vmul.f32 %v2085, %v2085
  %v2406 = vmul.f32 %v2086, %v2086
  %v2407 = vmul.f32 %v2087, %v2087
  %v2408 = vmul.f32 %v2088, %v2088
  %v2409 = vmul.f32 %v2089, %v2089
  %v2410 = vmul.f32 %v2090, %v2090
  %v2411 = vmul.f32 %v2091, %v2091
  %v2412 = vmul.f32 %v2092, %v2092
  %v2413 = vmul.f32 %v2093, %v2093
  %v2414 = vmul.f32 %v2094, %v2094
  %v2415 = vmul.f32 %v2095, %v2095
  %v2416 = vmul.f32 %v2096, %v2096
  %v2417 = vmul.f32 %v2097, %v2097
  %v2418 = vmul.f32 %v2098, %v2098
  %v2419 = vmul.f32 %v2099, %v2099
  %v2420 = vmul.f32 %v2100, %v2100
  %v2421 = vmul.f32 %v2101, %v2101
  %v2422 = vmul.f32 %v2102, %v2102
  %v2423 = vmul.f32 %v2103, %v2103
  %v2424 = vsub.f32 %v2104, %v2264
  %v2425 = vsub.f32 %v2105, %v2265
  %v2426 = vsub.f32 %v2106, %v2266
  %v2427 = vsub.f32 %v2107, %v2267
  %v2428 = vsub.f32 %v2108, %v2268
  %v2429 = vsub.f32 %v2109, %v2269
  %v2430 = vsub.f32 %v2110, %v2270
  %v2431 = vsub.f32 %v2111, %v2271
  %v2432 = vsub.f32 %v2112, %v2272
  %v2433 = vsub.f32 %v2113, %v2273
  %v2434 = vsub.f32 %v2114, %v2274
  %v2435 = vsub.f32 %v2115, %v2275
  %v2436 = vsub.f32 %v2116, %v2276
  %v2437 = vsub.f32 %v2117, %v2277
  %v2438 = vsub.f32 %v2118, %v2278
  %v2439 = vsub.f32 %v2119, %v2279
  %v2440 = vsub.f32 %v2120, %v2280
  %v2441 = vsub.f32 %v2121, %v2281
  %v2442 = vsub.f32 %v2122, %v2282
  %v2443 = vsub.f32 %v2123, %v2283
  %v2444 = vsub.f32 %v2124, %v2284
  %v2445 = vsub.f32 %v2125, %v2285
  %v2446 = vsub.f32 %v2126, %v2286
  %v2447 = vsub.f32 %v2127, %v2287
  %v2448 = vsub.f32 %v2128, %v2288
  %v2449 = vsub.f32 %v2129, %v2289
  %v2450 = vsub.f32 %v2130, %v2290
  %v2451 = vsub.f32 %v2131, %v2291
  %v2452 = vsub.f32 %v2132, %v2292
  %v2453 = vsub.f32 %v2133, %v2293
  %v2454 = vsub.f32 %v2134, %v2294
  %v2455 = vsub.f32 %v2135, %v2295
  %v2456 = vsub.f32 %v2136, %v2296
  %v2457 = vsub.f32 %v2137, %v2297
  %v2458 = vsub.f32 %v2138, %v2298
  %v2459 = vsub.f32 %v2139, %v2299
  %v2460 = vsub.f32 %v2140, %v2300
  %v2461 = vsub.f32 %v2141, %v2301
  %v2462 = vsub.f32 %v2142, %v2302
  %v2463 = vsub.f32 %v2143, %v2303
  %v2464 = vsub.f32 %v2144, %v2304
  %v2465 = vsub.f32 %v2145, %v2305
  %v2466 = vsub.f32 %v2146, %v2306
  %v2467 = vsub.f32 %v2147, %v2307
  %v2468 = vsub.f32 %v2148, %v2308
  %v2469 = vsub.f32 %v2149, %v2309
  %v2470 = vsub.f32 %v2150, %v2310
  %v2471 = vsub.f32 %v2151, %v2311
  %v2472 = vsub.f32 %v2152, %v2312
  %v2473 = vsub.f32 %v2153, %v2313
  %v2474 = vsub.f32 %v2154, %v2314
  %v2475 = vsub.f32 %v2155, %v2315
  %v2476 = vsub.f32 %v2156, %v2316
  %v2477 = vsub.f32 %v2157, %v2317
  %v2478 = vsub.f32 %v2158, %v2318
  %v2479 = vsub.f32 %v2159, %v2319
  %v2480 = vsub.f32 %v2160, %v2320
  %v2481 = vsub.f32 %v2161, %v2321
  %v2482 = vsub.f32 %v2162, %v2322
  %v2483 = vsub.f32 %v2163, %v2323
  %v2484 = vsub.f32 %v2164, %v2324
  %v2485 = vsub.f32 %v2165, %v2325
  %v2486 = vsub.f32 %v2166, %v2326
  %v2487 = vsub.f32 %v2167, %v2327
  %v2488 = vsub.f32 %v2168, %v2328
  %v2489 = vsub.f32 %v2169, %v2329
  %v2490 = vsub.f32 %v2170, %v2330
  %v2491 = vsub.f32 %v2171, %v2331
  %v2492 = vsub.f32 %v2172, %v2332
  %v2493 = vsub.f32 %v2173, %v2333
  %v2494 = vsub.f32 %v2174, %v2334
  %v2495 = vsub.f32 %v2175, %v2335
  %v2496 = vsub.f32 %v2176, %v2336
  %v2497 = vsub.f32 %v2177, %v2337
  %v2498 = vsub.f32 %v2178, %v2338
  %v2499 = vsub.f32 %v2179, %v2339
  %v2500 = vsub.f32 %v2180, %v2340
  %v2501 = vsub.f32 %v2181, %v2341
  %v2502 = vsub.f32 %v2182, %v2342
  %v2503 = vsub.f32 %v2183, %v2343
  %v2504 = vsub.f32 %v2184, %v2344
  %v2505 = vsub.f32 %v2185, %v2345
  %v2506 = vsub.f32 %v2186, %v2346
  %v2507 = vsub.f32 %v2187, %v2347
  %v2508 = vsub.f32 %v2188, %v2348
  %v2509 = vsub.f32 %v2189, %v2349
  %v2510 = vsub.f32 %v2190, %v2350
  %v2511 = vsub.f32 %v2191, %v2351
  %v2512 = vsub.f32 %v2192, %v2352
  %v2513 = vsub.f32 %v2193, %v2353
  %v2514 = vsub.f32 %v2194, %v2354
  %v2515 = vsub.f32 %v2195, %v2355
  %v2516 = vsub.f32 %v2196, %v2356
  %v2517 = vsub.f32 %v2197, %v2357
  %v2518 = vsub.f32 %v2198, %v2358
  %v2519 = vsub.f32 %v2199, %v2359
  %v2520 = vsub.f32 %v2200, %v2360
  %v2521 = vsub.f32 %v2201, %v2361
  %v2522 = vsub.f32 %v2202, %v2362
  %v2523 = vsub.f32 %v2203, %v2363
  %v2524 = vsub.f32 %v2204, %v2364
  %v2525 = vsub.f32 %v2205, %v2365
  %v2526 = vsub.f32 %v2206, %v2366
  %v2527 = vsub.f32 %v2207, %v2367
  %v2528 = vsub.f32 %v2208, %v2368
  %v2529 = vsub.f32 %v2209, %v2369
  %v2530 = vsub.f32 %v2210, %v2370
  %v2531 = vsub.f32 %v2211, %v2371
  %v2532 = vsub.f32 %v2212, %v2372
  %v2533 = vsub.f32 %v2213, %v2373
  %v2534 = vsub.f32 %v2214, %v2374
  %v2535 = vsub.f32 %v2215, %v2375
  %v2536 = vsub.f32 %v2216, %v2376
  %v2537 = vsub.f32 %v2217, %v2377
  %v2538 = vsub.f32 %v2218, %v2378
  %v2539 = vsub.f32 %v2219, %v2379
  %v2540 = vsub.f32 %v2220, %v2380
  %v2541 = vsub.f32 %v2221, %v2381
  %v2542 = vsub.f32 %v2222, %v2382
  %v2543 = vsub.f32 %v2223, %v2383
  %v2544 = vsub.f32 %v2224, %v2384
  %v2545 = vsub.f32 %v2225, %v2385
  %v2546 = vsub.f32 %v2226, %v2386
  %v2547 = vsub.f32 %v2227, %v2387
  %v2548 = vsub.f32 %v2228, %v2388
  %v2549 = vsub.f32 %v2229, %v2389
  %v2550 = vsub.f32 %v2230, %v2390
  %v2551 = vsub.f32 %v2231, %v2391
  %v2552 = vsub.f32 %v2232, %v2392
  %v2553 = vsub.f32 %v2233, %v2393
  %v2554 = vsub.f32 %v2234, %v2394
  %v2555 = vsub.f32 %v2235, %v2395
  %v2556 = vsub.f32 %v2236, %v2396
  %v2557 = vsub.f32 %v2237, %v2397
  %v2558 = vsub.f32 %v2238, %v2398
  %v2559 = vsub.f32 %v2239, %v2399
  %v2560 = vsub.f32 %v2240, %v2400
  %v2561 = vsub.f32 %v2241, %v2401
  %v2562 = vsub.f32 %v2242, %v2402
  %v2563 = vsub.f32 %v2243, %v2403
  %v2564 = vsub.f32 %v2244, %v2404
  %v2565 = vsub.f32 %v2245, %v2405
  %v2566 = vsub.f32 %v2246, %v2406
  %v2567 = vsub.f32 %v2247, %v2407
  %v2568 = vsub.f32 %v2248, %v2408
  %v2569 = vsub.f32 %v2249, %v2409
  %v2570 = vsub.f32 %v2250, %v2410
  %v2571 = vsub.f32 %v2251, %v2411
  %v2572 = vsub.f32 %v2252, %v2412
  %v2573 = vsub.f32 %v2253, %v2413
  %v2574 = vsub.f32 %v2254, %v2414
  %v2575 = vsub.f32 %v2255, %v2415
  %v2576 = vsub.f32 %v2256, %v2416
  %v2577 = vsub.f32 %v2257, %v2417
  %v2578 = vsub.f32 %v2258, %v2418
  %v2579 = vsub.f32 %v2259, %v2419
  %v2580 = vsub.f32 %v2260, %v2420
  %v2581 = vsub.f32 %v2261, %v2421
  %v2582 = vsub.f32 %v2262, %v2422
  %v2583 = vsub.f32 %v2263, %v2423
  %v2584 = vmax.f32 %v2424, 0.0
  %v2585 = vmax.f32 %v2425, 0.0
  %v2586 = vmax.f32 %v2426, 0.0
  %v2587 = vmax.f32 %v2427, 0.0
  %v2588 = vmax.f32 %v2428, 0.0
  %v2589 = vmax.f32 %v2429, 0.0
  %v2590 = vmax.f32 %v2430, 0.0
  %v2591 = vmax.f32 %v2431, 0.0
  %v2592 = vmax.f32 %v2432, 0.0
  %v2593 = vmax.f32 %v2433, 0.0
  %v2594 = vmax.f32 %v2434, 0.0
  %v2595 = vmax.f32 %v2435, 0.0
  %v2596 = vmax.f32 %v2436, 0.0
  %v2597 = vmax.f32 %v2437, 0.0
  %v2598 = vmax.f32 %v2438, 0.0
  %v2599 = vmax.f32 %v2439, 0.0
  %v2600 = vmax.f32 %v2440, 0.0
  %v2601 = vmax.f32 %v2441, 0.0
  %v2602 = vmax.f32 %v2442, 0.0
  %v2603 = vmax.f32 %v2443, 0.0
  %v2604 = vmax.f32 %v2444, 0.0
  %v2605 = vmax.f32 %v2445, 0.0
  %v2606 = vmax.f32 %v2446, 0.0
  %v2607 = vmax.f32 %v2447, 0.0
  %v2608 = vmax.f32 %v2448, 0.0
  %v2609 = vmax.f32 %v2449, 0.0
  %v2610 = vmax.f32 %v2450, 0.0
  %v2611 = vmax.f32 %v2451, 0.0
  %v2612 = vmax.f32 %v2452, 0.0
  %v2613 = vmax.f32 %v2453, 0.0
  %v2614 = vmax.f32 %v2454, 0.0
  %v2615 = vmax.f32 %v2455, 0.0
  %v2616 = vmax.f32 %v2456, 0.0
  %v2617 = vmax.f32 %v2457, 0.0
  %v2618 = vmax.f32 %v2458, 0.0
  %v2619 = vmax.f32 %v2459, 0.0
  %v2620 = vmax.f32 %v2460, 0.0
  %v2621 = vmax.f32 %v2461, 0.0
  %v2622 = vmax.f32 %v2462, 0.0
  %v2623 = vmax.f32 %v2463, 0.0
  %v2624 = vmax.f32 %v2464, 0.0
  %v2625 = vmax.f32 %v2465, 0.0
  %v2626 = vmax.f32 %v2466, 0.0
  %v2627 = vmax.f32 %v2467, 0.0
  %v2628 = vmax.f32 %v2468, 0.0
  %v2629 = vmax.f32 %v2469, 0.0
  %v2630 = vmax.f32 %v2470, 0.0
  %v2631 = vmax.f32 %v2471, 0.0
  %v2632 = vmax.f32 %v2472, 0.0
  %v2633 = vmax.f32 %v2473, 0.0
  %v2634 = vmax.f32 %v2474, 0.0
  %v2635 = vmax.f32 %v2475, 0.0
  %v2636 = vmax.f32 %v2476, 0.0
  %v2637 = vmax.f32 %v2477, 0.0
  %v2638 = vmax.f32 %v2478, 0.0
  %v2639 = vmax.f32 %v2479, 0.0
  %v2640 = vmax.f32 %v2480, 0.0
  %v2641 = vmax.f32 %v2481, 0.0
  %v2642 = vmax.f32 %v2482, 0.0
  %v2643 = vmax.f32 %v2483, 0.0
  %v2644 = vmax.f32 %v2484, 0.0
  %v2645 = vmax.f32 %v2485, 0.0
  %v2646 = vmax.f32 %v2486, 0.0
  %v2647 = vmax.f32 %v2487, 0.0
  %v2648 = vmax.f32 %v2488, 0.0
  %v2649 = vmax.f32 %v2489, 0.0
  %v2650 = vmax.f32 %v2490, 0.0
  %v2651 = vmax.f32 %v2491, 0.0
  %v2652 = vmax.f32 %v2492, 0.0
  %v2653 = vmax.f32 %v2493, 0.0
  %v2654 = vmax.f32 %v2494, 0.0
  %v2655 = vmax.f32 %v2495, 0.0
  %v2656 = vmax.f32 %v2496, 0.0
  %v2657 = vmax.f32 %v2497, 0.0
  %v2658 = vmax.f32 %v2498, 0.0
  %v2659 = vmax.f32 %v2499, 0.0
  %v2660 = vmax.f32 %v2500, 0.0
  %v2661 = vmax.f32 %v2501, 0.0
  %v2662 = vmax.f32 %v2502, 0.0
  %v2663 = vmax.f32 %v2503, 0.0
  %v2664 = vmax.f32 %v2504, 0.0
  %v2665 = vmax.f32 %v2505, 0.0
  %v2666 = vmax.f32 %v2506, 0.0
  %v2667 = vmax.f32 %v2507, 0.0
  %v2668 = vmax.f32 %v2508, 0.0
  %v2669 = vmax.f32 %v2509, 0.0
  %v2670 = vmax.f32 %v2510, 0.0
  %v2671 = vmax.f32 %v2511, 0.0
  %v2672 = vmax.f32 %v2512, 0.0
  %v2673 = vmax.f32 %v2513, 0.0
  %v2674 = vmax.f32 %v2514, 0.0
  %v2675 = vmax.f32 %v2515, 0.0
  %v2676 = vmax.f32 %v2516, 0.0
  %v2677 = vmax.f32 %v2517, 0.0
  %v2678 = vmax.f32 %v2518, 0.0
  %v2679 = vmax.f32 %v2519, 0.0
  %v2680 = vmax.f32 %v2520, 0.0
  %v2681 = vmax.f32 %v2521, 0.0
  %v2682 = vmax.f32 %v2522, 0.0
  %v2683 = vmax.f32 %v2523, 0.0
  %v2684 = vmax.f32 %v2524, 0.0
  %v2685 = vmax.f32 %v2525, 0.0
  %v2686 = vmax.f32 %v2526, 0.0
  %v2687 = vmax.f32 %v2527, 0.0
  %v2688 = vmax.f32 %v2528, 0.0
  %v2689 = vmax.f32 %v2529, 0.0
  %v2690 = vmax.f32 %v2530, 0.0
  %v2691 = vmax.f32 %v2531, 0.0
  %v2692 = vmax.f32 %v2532, 0.0
  %v2693 = vmax.f32 %v2533, 0.0
  %v2694 = vmax.f32 %v2534, 0.0
  %v2695 = vmax.f32 %v2535, 0.0
  %v2696 = vmax.f32 %v2536, 0.0
  %v2697 = vmax.f32 %v2537, 0.0
  %v2698 = vmax.f32 %v2538, 0.0
  %v2699 = vmax.f32 %v2539, 0.0
  %v2700 = vmax.f32 %v2540, 0.0
  %v2701 = vmax.f32 %v2541, 0.0
  %v2702 = vmax.f32 %v2542, 0.0
  %v2703 = vmax.f32 %v2543, 0.0
  %v2704 = vmax.f32 %v2544, 0.0
  %v2705 = vmax.f32 %v2545, 0.0
  %v2706 = vmax.f32 %v2546, 0.0
  %v2707 = vmax.f32 %v2547, 0.0
  %v2708 = vmax.f32 %v2548, 0.0
  %v2709 = vmax.f32 %v2549, 0.0
  %v2710 = vmax.f32 %v2550, 0.0
  %v2711 = vmax.f32 %v2551, 0.0
  %v2712 = vmax.f32 %v2552, 0.0
  %v2713 = vmax.f32 %v2553, 0.0
  %v2714 = vmax.f32 %v2554, 0.0
  %v2715 = vmax.f32 %v2555, 0.0
  %v2716 = vmax.f32 %v2556, 0.0
  %v2717 = vmax.f32 %v2557, 0.0
  %v2718 = vmax.f32 %v2558, 0.0
  %v2719 = vmax.f32 %v2559, 0.0
  %v2720 = vmax.f32 %v2560, 0.0
  %v2721 = vmax.f32 %v2561, 0.0
  %v2722 = vmax.f32 %v2562, 0.0
  %v2723 = vmax.f32 %v2563, 0.0
  %v2724 = vmax.f32 %v2564, 0.0
  %v2725 = vmax.f32 %v2565, 0.0
  %v2726 = vmax.f32 %v2566, 0.0
  %v2727 = vmax.f32 %v2567, 0.0
  %v2728 = vmax.f32 %v2568, 0.0
  %v2729 = vmax.f32 %v2569, 0.0
  %v2730 = vmax.f32 %v2570, 0.0
  %v2731 = vmax.f32 %v2571, 0.0
  %v2732 = vmax.f32 %v2572, 0.0
  %v2733 = vmax.f32 %v2573, 0.0
  %v2734 = vmax.f32 %v2574, 0.0
  %v2735 = vmax.f32 %v2575, 0.0
  %v2736 = vmax.f32 %v2576, 0.0
  %v2737 = vmax.f32 %v2577, 0.0
  %v2738 = vmax.f32 %v2578, 0.0
  %v2739 = vmax.f32 %v2579, 0.0
  %v2740 = vmax.f32 %v2580, 0.0
  %v2741 = vmax.f32 %v2581, 0.0
  %v2742 = vmax.f32 %v2582, 0.0
  %v2743 = vmax.f32 %v2583, 0.0
  %v2744 = vld [vmem:[%s2] sm:$0xff]
  %v2745 = vld [vmem:[%s2 + $0x8] sm:$0xff]
  %v2746 = vld [vmem:[%s2 + $0x10] sm:$0xff]
  %v2747 = vld [vmem:[%s2 + $0x18] sm:$0xff]
  %v2748 = vld [vmem:[%s2 + $0x20] sm:$0xff]
  %v2749 = vld [vmem:[%s2 + $0x28] sm:$0xff]
  %v2750 = vld [vmem:[%s2 + $0x30] sm:$0xff]
  %v2751 = vld [vmem:[%s2 + $0x38] sm:$0xff]
  %v2752 = vld [vmem:[%s2 + $0x40] sm:$0xff]
  %v2753 = vld [vmem:[%s2 + $0x48] sm:$0xff]
  %v2754 = vld [vmem:[%s2 + $0x50] sm:$0xff]
  %v2755 = vld [vmem:[%s2 + $0x58] sm:$0xff]
  %v2756 = vld [vmem:[%s2 + $0x60] sm:$0xff]
  %v2757 = vld [vmem:[%s2 + $0x68] sm:$0xff]
  %v2758 = vld [vmem:[%s2 + $0x70] sm:$0xff]
  %v2759 = vld [vmem:[%s2 + $0x78] sm:$0xff]
  %v2760 = vld [vmem:[%s2 + $0x80] sm:$0xff]
  %v2761 = vld [vmem:[%s2 + $0x88] sm:$0xff]
  %v2762 = vld [vmem:[%s2 + $0x90] sm:$0xff]
  %v2763 = vld [vmem:[%s2 + $0x98] sm:$0xff]
  %v2764 = vld [vmem:[%s2 + $0xa0] sm:$0xff]
  %v2765 = vld [vmem:[%s2 + $0xa8] sm:$0xff]
  %v2766 = vld [vmem:[%s2 + $0xb0] sm:$0xff]
  %v2767 = vld [vmem:[%s2 + $0xb8] sm:$0xff]
  %v2768 = vld [vmem:[%s2 + $0xc0] sm:$0xff]
  %v2769 = vld [vmem:[%s2 + $0xc8] sm:$0xff]
  %v2770 = vld [vmem:[%s2 + $0xd0] sm:$0xff]
  %v2771 = vld [vmem:[%s2 + $0xd8] sm:$0xff]
  %v2772 = vld [vmem:[%s2 + $0xe0] sm:$0xff]
  %v2773 = vld [vmem:[%s2 + $0xe8] sm:$0xff]
  %v2774 = vld [vmem:[%s2 + $0xf0] sm:$0xff]
  %v2775 = vld [vmem:[%s2 + $0xf8] sm:$0xff]
  %v2776 = vld [vmem:[%s2 + $0x100] sm:$0xff]
  %v2777 = vld [vmem:[%s2 + $0x108] sm:$0xff]
  %v2778 = vld [vmem:[%s2 + $0x110] sm:$0xff]
  %v2779 = vld [vmem:[%s2 + $0x118] sm:$0xff]
  %v2780 = vld [vmem:[%s2 + $0x120] sm:$0xff]
  %v2781 = vld [vmem:[%s2 + $0x128] sm:$0xff]
  %v2782 = vld [vmem:[%s2 + $0x130] sm:$0xff]
  %v2783 = vld [vmem:[%s2 + $0x138] sm:$0xff]
  %v2784 = vld [vmem:[%s2 + $0x140] sm:$0xff]
  %v2785 = vld [vmem:[%s2 + $0x148] sm:$0xff]
  %v2786 = vld [vmem:[%s2 + $0x150] sm:$0xff]
  %v2787 = vld [vmem:[%s2 + $0x158] sm:$0xff]
  %v2788 = vld [vmem:[%s2 + $0x160] sm:$0xff]
  %v2789 = vld [vmem:[%s2 + $0x168] sm:$0xff]
  %v2790 = vld [vmem:[%s2 + $0x170] sm:$0xff]
  %v2791 = vld [vmem:[%s2 + $0x178] sm:$0xff]
  %v2792 = vld [vmem:[%s2 + $0x180] sm:$0xff]
  %v2793 = vld [vmem:[%s2 + $0x188] sm:$0xff]
  %v2794 = vld [vmem:[%s2 + $0x190] sm:$0xff]
  %v2795 = vld [vmem:[%s2 + $0x198] sm:$0xff]
  %v2796 = vld [vmem:[%s2 + $0x1a0] sm:$0xff]
  %v2797 = vld [vmem:[%s2 + $0x1a8] sm:$0xff]
  %v2798 = vld [vmem:[%s2 + $0x1b0] sm:$0xff]
  %v2799 = vld [vmem:[%s2 + $0x1b8] sm:$0xff]
  %v2800 = vld [vmem:[%s2 + $0x1c0] sm:$0xff]
  %v2801 = vld [vmem:[%s2 + $0x1c8] sm:$0xff]
  %v2802 = vld [vmem:[%s2 + $0x1d0] sm:$0xff]
  %v2803 = vld [vmem:[%s2 + $0x1d8] sm:$0xff]
  %v2804 = vld [vmem:[%s2 + $0x1e0] sm:$0xff]
  %v2805 = vld [vmem:[%s2 + $0x1e8] sm:$0xff]
  %v2806 = vld [vmem:[%s2 + $0x1f0] sm:$0xff]
  %v2807 = vld [vmem:[%s2 + $0x1f8] sm:$0xff]
  %v2808 = vld [vmem:[%s2 + $0x200] sm:$0xff]
  %v2809 = vld [vmem:[%s2 + $0x208] sm:$0xff]
  %v2810 = vld [vmem:[%s2 + $0x210] sm:$0xff]
  %v2811 = vld [vmem:[%s2 + $0x218] sm:$0xff]
  %v2812 = vld [vmem:[%s2 + $0x220] sm:$0xff]
  %v2813 = vld [vmem:[%s2 + $0x228] sm:$0xff]
  %v2814 = vld [vmem:[%s2 + $0x230] sm:$0xff]
  %v2815 = vld [vmem:[%s2 + $0x238] sm:$0xff]
  %v2816 = vld [vmem:[%s2 + $0x240] sm:$0xff]
  %v2817 = vld [vmem:[%s2 + $0x248] sm:$0xff]
  %v2818 = vld [vmem:[%s2 + $0x250] sm:$0xff]
  %v2819 = vld [vmem:[%s2 + $0x258] sm:$0xff]
  %v2820 = vld [vmem:[%s2 + $0x260] sm:$0xff]
  %v2821 = vld [vmem:[%s2 + $0x268] sm:$0xff]
  %v2822 = vld [vmem:[%s2 + $0x270] sm:$0xff]
  %v2823 = vld [vmem:[%s2 + $0x278] sm:$0xff]
  %v2824 = vld [vmem:[%s2 + $0x280] sm:$0xff]
  %v2825 = vld [vmem:[%s2 + $0x288] sm:$0xff]
  %v2826 = vld [vmem:[%s2 + $0x290] sm:$0xff]
  %v2827 = vld [vmem:[%s2 + $0x298] sm:$0xff]
  %v2828 = vld [vmem:[%s2 + $0x2a0] sm:$0xff]
  %v2829 = vld [vmem:[%s2 + $0x2a8] sm:$0xff]
  %v2830 = vld [vmem:[%s2 + $0x2b0] sm:$0xff]
  %v2831 = vld [vmem:[%s2 + $0x2b8] sm:$0xff]
  %v2832 = vld [vmem:[%s2 + $0x2c0] sm:$0xff]
  %v2833 = vld [vmem:[%s2 + $0x2c8] sm:$0xff]
  %v2834 = vld [vmem:[%s2 + $0x2d0] sm:$0xff]
  %v2835 = vld [vmem:[%s2 + $0x2d8] sm:$0xff]
  %v2836 = vld [vmem:[%s2 + $0x2e0] sm:$0xff]
  %v2837 = vld [vmem:[%s2 + $0x2e8] sm:$0xff]
  %v2838 = vld [vmem:[%s2 + $0x2f0] sm:$0xff]
  %v2839 = vld [vmem:[%s2 + $0x2f8] sm:$0xff]
  %v2840 = vld [vmem:[%s2 + $0x300] sm:$0xff]
  %v2841 = vld [vmem:[%s2 + $0x308] sm:$0xff]
  %v2842 = vld [vmem:[%s2 + $0x310] sm:$0xff]
  %v2843 = vld [vmem:[%s2 + $0x318] sm:$0xff]
  %v2844 = vld [vmem:[%s2 + $0x320] sm:$0xff]
  %v2845 = vld [vmem:[%s2 + $0x328] sm:$0xff]
  %v2846 = vld [vmem:[%s2 + $0x330] sm:$0xff]
  %v2847 = vld [vmem:[%s2 + $0x338] sm:$0xff]
  %v2848 = vld [vmem:[%s2 + $0x340] sm:$0xff]
  %v2849 = vld [vmem:[%s2 + $0x348] sm:$0xff]
  %v2850 = vld [vmem:[%s2 + $0x350] sm:$0xff]
  %v2851 = vld [vmem:[%s2 + $0x358] sm:$0xff]
  %v2852 = vld [vmem:[%s2 + $0x360] sm:$0xff]
  %v2853 = vld [vmem:[%s2 + $0x368] sm:$0xff]
  %v2854 = vld [vmem:[%s2 + $0x370] sm:$0xff]
  %v2855 = vld [vmem:[%s2 + $0x378] sm:$0xff]
  %v2856 = vld [vmem:[%s2 + $0x380] sm:$0xff]
  %v2857 = vld [vmem:[%s2 + $0x388] sm:$0xff]
  %v2858 = vld [vmem:[%s2 + $0x390] sm:$0xff]
  %v2859 = vld [vmem:[%s2 + $0x398] sm:$0xff]
  %v2860 = vld [vmem:[%s2 + $0x3a0] sm:$0xff]
  %v2861 = vld [vmem:[%s2 + $0x3a8] sm:$0xff]
  %v2862 = vld [vmem:[%s2 + $0x3b0] sm:$0xff]
  %v2863 = vld [vmem:[%s2 + $0x3b8] sm:$0xff]
  %v2864 = vld [vmem:[%s2 + $0x3c0] sm:$0xff]
  %v2865 = vld [vmem:[%s2 + $0x3c8] sm:$0xff]
  %v2866 = vld [vmem:[%s2 + $0x3d0] sm:$0xff]
  %v2867 = vld [vmem:[%s2 + $0x3d8] sm:$0xff]
  %v2868 = vld [vmem:[%s2 + $0x3e0] sm:$0xff]
  %v2869 = vld [vmem:[%s2 + $0x3e8] sm:$0xff]
  %v2870 = vld [vmem:[%s2 + $0x3f0] sm:$0xff]
  %v2871 = vld [vmem:[%s2 + $0x3f8] sm:$0xff]
  %v2872 = vld [vmem:[%s2 + $0x400] sm:$0xff]
  %v2873 = vld [vmem:[%s2 + $0x408] sm:$0xff]
  %v2874 = vld [vmem:[%s2 + $0x410] sm:$0xff]
  %v2875 = vld [vmem:[%s2 + $0x418] sm:$0xff]
  %v2876 = vld [vmem:[%s2 + $0x420] sm:$0xff]
  %v2877 = vld [vmem:[%s2 + $0x428] sm:$0xff]
  %v2878 = vld [vmem:[%s2 + $0x430] sm:$0xff]
  %v2879 = vld [vmem:[%s2 + $0x438] sm:$0xff]
  %v2880 = vld [vmem:[%s2 + $0x440] sm:$0xff]
  %v2881 = vld [vmem:[%s2 + $0x448] sm:$0xff]
  %v2882 = vld [vmem:[%s2 + $0x450] sm:$0xff]
  %v2883 = vld [vmem:[%s2 + $0x458] sm:$0xff]
  %v2884 = vld [vmem:[%s2 + $0x460] sm:$0xff]
  %v2885 = vld [vmem:[%s2 + $0x468] sm:$0xff]
  %v2886 = vld [vmem:[%s2 + $0x470] sm:$0xff]
  %v2887 = vld [vmem:[%s2 + $0x478] sm:$0xff]
  %v2888 = vld [vmem:[%s2 + $0x480] sm:$0xff]
  %v2889 = vld [vmem:[%s2 + $0x488] sm:$0xff]
  %v2890 = vld [vmem:[%s2 + $0x490] sm:$0xff]
  %v2891 = vld [vmem:[%s2 + $0x498] sm:$0xff]
  %v2892 = vld [vmem:[%s2 + $0x4a0] sm:$0xff]
  %v2893 = vld [vmem:[%s2 + $0x4a8] sm:$0xff]
  %v2894 = vld [vmem:[%s2 + $0x4b0] sm:$0xff]
  %v2895 = vld [vmem:[%s2 + $0x4b8] sm:$0xff]
  %v2896 = vld [vmem:[%s2 + $0x4c0] sm:$0xff]
  %v2897 = vld [vmem:[%s2 + $0x4c8] sm:$0xff]
  %v2898 = vld [vmem:[%s2 + $0x4d0] sm:$0xff]
  %v2899 = vld [vmem:[%s2 + $0x4d8] sm:$0xff]
  %v2900 = vld [vmem:[%s2 + $0x4e0] sm:$0xff]
  %v2901 = vld [vmem:[%s2 + $0x4e8] sm:$0xff]
  %v2902 = vld [vmem:[%s2 + $0x4f0] sm:$0xff]
  %v2903 = vld [vmem:[%s2 + $0x4f8] sm:$0xff]
  %v2904 = vadd.f32 %v2584, 1e-05
  %v2905 = vadd.f32 %v2585, 1e-05
  %v2906 = vadd.f32 %v2586, 1e-05
  %v2907 = vadd.f32 %v2587, 1e-05
  %v2908 = vadd.f32 %v2588, 1e-05
  %v2909 = vadd.f32 %v2589, 1e-05
  %v2910 = vadd.f32 %v2590, 1e-05
  %v2911 = vadd.f32 %v2591, 1e-05
  %v2912 = vadd.f32 %v2592, 1e-05
  %v2913 = vadd.f32 %v2593, 1e-05
  %v2914 = vadd.f32 %v2594, 1e-05
  %v2915 = vadd.f32 %v2595, 1e-05
  %v2916 = vadd.f32 %v2596, 1e-05
  %v2917 = vadd.f32 %v2597, 1e-05
  %v2918 = vadd.f32 %v2598, 1e-05
  %v2919 = vadd.f32 %v2599, 1e-05
  %v2920 = vadd.f32 %v2600, 1e-05
  %v2921 = vadd.f32 %v2601, 1e-05
  %v2922 = vadd.f32 %v2602, 1e-05
  %v2923 = vadd.f32 %v2603, 1e-05
  %v2924 = vadd.f32 %v2604, 1e-05
  %v2925 = vadd.f32 %v2605, 1e-05
  %v2926 = vadd.f32 %v2606, 1e-05
  %v2927 = vadd.f32 %v2607, 1e-05
  %v2928 = vadd.f32 %v2608, 1e-05
  %v2929 = vadd.f32 %v2609, 1e-05
  %v2930 = vadd.f32 %v2610, 1e-05
  %v2931 = vadd.f32 %v2611, 1e-05
  %v2932 = vadd.f32 %v2612, 1e-05
  %v2933 = vadd.f32 %v2613, 1e-05
  %v2934 = vadd.f32 %v2614, 1e-05
  %v2935 = vadd.f32 %v2615, 1e-05
  %v2936 = vadd.f32 %v2616, 1e-05
  %v2937 = vadd.f32 %v2617, 1e-05
  %v2938 = vadd.f32 %v2618, 1e-05
  %v2939 = vadd.f32 %v2619, 1e-05
  %v2940 = vadd.f32 %v2620, 1e-05
  %v2941 = vadd.f32 %v2621, 1e-05
  %v2942 = vadd.f32 %v2622, 1e-05
  %v2943 = vadd.f32 %v2623, 1e-05
  %v2944 = vadd.f32 %v2624, 1e-05
  %v2945 = vadd.f32 %v2625, 1e-05
  %v2946 = vadd.f32 %v2626, 1e-05
  %v2947 = vadd.f32 %v2627, 1e-05
  %v2948 = vadd.f32 %v2628, 1e-05
  %v2949 = vadd.f32 %v2629, 1e-05
  %v2950 = vadd.f32 %v2630, 1e-05
  %v2951 = vadd.f32 %v2631, 1e-05
  %v2952 = vadd.f32 %v2632, 1e-05
  %v2953 = vadd.f32 %v2633, 1e-05
  %v2954 = vadd.f32 %v2634, 1e-05
  %v2955 = vadd.f32 %v2635, 1e-05
  %v2956 = vadd.f32 %v2636, 1e-05
  %v2957 = vadd.f32 %v2637, 1e-05
  %v2958 = vadd.f32 %v2638, 1e-05
  %v2959 = vadd.f32 %v2639, 1e-05
  %v2960 = vadd.f32 %v2640, 1e-05
  %v2961 = vadd.f32 %v2641, 1e-05
  %v2962 = vadd.f32 %v2642, 1e-05
  %v2963 = vadd.f32 %v2643, 1e-05
  %v2964 = vadd.f32 %v2644, 1e-05
  %v2965 = vadd.f32 %v2645, 1e-05
  %v2966 = vadd.f32 %v2646, 1e-05
  %v2967 = vadd.f32 %v2647, 1e-05
  %v2968 = vadd.f32 %v2648, 1e-05
  %v2969 = vadd.f32 %v2649, 1e-05
  %v2970 = vadd.f32 %v2650, 1e-05
  %v2971 = vadd.f32 %v2651, 1e-05
  %v2972 = vadd.f32 %v2652, 1e-05
  %v2973 = vadd.f32 %v2653, 1e-05
  %v2974 = vadd.f32 %v2654, 1e-05
  %v2975 = vadd.f32 %v2655, 1e-05
  %v2976 = vadd.f32 %v2656, 1e-05
  %v2977 = vadd.f32 %v2657, 1e-05
  %v2978 = vadd.f32 %v2658, 1e-05
  %v2979 = vadd.f32 %v2659, 1e-05
  %v2980 = vadd.f32 %v2660, 1e-05
  %v2981 = vadd.f32 %v2661, 1e-05
  %v2982 = vadd.f32 %v2662, 1e-05
  %v2983 = vadd.f32 %v2663, 1e-05
  %v2984 = vadd.f32 %v2664, 1e-05
  %v2985 = vadd.f32 %v2665, 1e-05
  %v2986 = vadd.f32 %v2666, 1e-05
  %v2987 = vadd.f32 %v2667, 1e-05
  %v2988 = vadd.f32 %v2668, 1e-05
  %v2989 = vadd.f32 %v2669, 1e-05
  %v2990 = vadd.f32 %v2670, 1e-05
  %v2991 = vadd.f32 %v2671, 1e-05
  %v2992 = vadd.f32 %v2672, 1e-05
  %v2993 = vadd.f32 %v2673, 1e-05
  %v2994 = vadd.f32 %v2674, 1e-05
  %v2995 = vadd.f32 %v2675, 1e-05
  %v2996 = vadd.f32 %v2676, 1e-05
  %v2997 = vadd.f32 %v2677, 1e-05
  %v2998 = vadd.f32 %v2678, 1e-05
  %v2999 = vadd.f32 %v2679, 1e-05
  %v3000 = vadd.f32 %v2680, 1e-05
  %v3001 = vadd.f32 %v2681, 1e-05
  %v3002 = vadd.f32 %v2682, 1e-05
  %v3003 = vadd.f32 %v2683, 1e-05
  %v3004 = vadd.f32 %v2684, 1e-05
  %v3005 = vadd.f32 %v2685, 1e-05
  %v3006 = vadd.f32 %v2686, 1e-05
  %v3007 = vadd.f32 %v2687, 1e-05
  %v3008 = vadd.f32 %v2688, 1e-05
  %v3009 = vadd.f32 %v2689, 1e-05
  %v3010 = vadd.f32 %v2690, 1e-05
  %v3011 = vadd.f32 %v2691, 1e-05
  %v3012 = vadd.f32 %v2692, 1e-05
  %v3013 = vadd.f32 %v2693, 1e-05
  %v3014 = vadd.f32 %v2694, 1e-05
  %v3015 = vadd.f32 %v2695, 1e-05
  %v3016 = vadd.f32 %v2696, 1e-05
  %v3017 = vadd.f32 %v2697, 1e-05
  %v3018 = vadd.f32 %v2698, 1e-05
  %v3019 = vadd.f32 %v2699, 1e-05
  %v3020 = vadd.f32 %v2700, 1e-05
  %v3021 = vadd.f32 %v2701, 1e-05
  %v3022 = vadd.f32 %v2702, 1e-05
  %v3023 = vadd.f32 %v2703, 1e-05
  %v3024 = vadd.f32 %v2704, 1e-05
  %v3025 = vadd.f32 %v2705, 1e-05
  %v3026 = vadd.f32 %v2706, 1e-05
  %v3027 = vadd.f32 %v2707, 1e-05
  %v3028 = vadd.f32 %v2708, 1e-05
  %v3029 = vadd.f32 %v2709, 1e-05
  %v3030 = vadd.f32 %v2710, 1e-05
  %v3031 = vadd.f32 %v2711, 1e-05
  %v3032 = vadd.f32 %v2712, 1e-05
  %v3033 = vadd.f32 %v2713, 1e-05
  %v3034 = vadd.f32 %v2714, 1e-05
  %v3035 = vadd.f32 %v2715, 1e-05
  %v3036 = vadd.f32 %v2716, 1e-05
  %v3037 = vadd.f32 %v2717, 1e-05
  %v3038 = vadd.f32 %v2718, 1e-05
  %v3039 = vadd.f32 %v2719, 1e-05
  %v3040 = vadd.f32 %v2720, 1e-05
  %v3041 = vadd.f32 %v2721, 1e-05
  %v3042 = vadd.f32 %v2722, 1e-05
  %v3043 = vadd.f32 %v2723, 1e-05
  %v3044 = vadd.f32 %v2724, 1e-05
  %v3045 = vadd.f32 %v2725, 1e-05
  %v3046 = vadd.f32 %v2726, 1e-05
  %v3047 = vadd.f32 %v2727, 1e-05
  %v3048 = vadd.f32 %v2728, 1e-05
  %v3049 = vadd.f32 %v2729, 1e-05
  %v3050 = vadd.f32 %v2730, 1e-05
  %v3051 = vadd.f32 %v2731, 1e-05
  %v3052 = vadd.f32 %v2732, 1e-05
  %v3053 = vadd.f32 %v2733, 1e-05
  %v3054 = vadd.f32 %v2734, 1e-05
  %v3055 = vadd.f32 %v2735, 1e-05
  %v3056 = vadd.f32 %v2736, 1e-05
  %v3057 = vadd.f32 %v2737, 1e-05
  %v3058 = vadd.f32 %v2738, 1e-05
  %v3059 = vadd.f32 %v2739, 1e-05
  %v3060 = vadd.f32 %v2740, 1e-05
  %v3061 = vadd.f32 %v2741, 1e-05
  %v3062 = vadd.f32 %v2742, 1e-05
  %v3063 = vadd.f32 %v2743, 1e-05
  %v3064 = vrsqrt.pop %v2904
  %v3065 = vrsqrt.pop %v2905
  %v3066 = vrsqrt.pop %v2906
  %v3067 = vrsqrt.pop %v2907
  %v3068 = vrsqrt.pop %v2908
  %v3069 = vrsqrt.pop %v2909
  %v3070 = vrsqrt.pop %v2910
  %v3071 = vrsqrt.pop %v2911
  %v3072 = vrsqrt.pop %v2912
  %v3073 = vrsqrt.pop %v2913
  %v3074 = vrsqrt.pop %v2914
  %v3075 = vrsqrt.pop %v2915
  %v3076 = vrsqrt.pop %v2916
  %v3077 = vrsqrt.pop %v2917
  %v3078 = vrsqrt.pop %v2918
  %v3079 = vrsqrt.pop %v2919
  %v3080 = vrsqrt.pop %v2920
  %v3081 = vrsqrt.pop %v2921
  %v3082 = vrsqrt.pop %v2922
  %v3083 = vrsqrt.pop %v2923
  %v3084 = vrsqrt.pop %v2924
  %v3085 = vrsqrt.pop %v2925
  %v3086 = vrsqrt.pop %v2926
  %v3087 = vrsqrt.pop %v2927
  %v3088 = vrsqrt.pop %v2928
  %v3089 = vrsqrt.pop %v2929
  %v3090 = vrsqrt.pop %v2930
  %v3091 = vrsqrt.pop %v2931
  %v3092 = vrsqrt.pop %v2932
  %v3093 = vrsqrt.pop %v2933
  %v3094 = vrsqrt.pop %v2934
  %v3095 = vrsqrt.pop %v2935
  %v3096 = vrsqrt.pop %v2936
  %v3097 = vrsqrt.pop %v2937
  %v3098 = vrsqrt.pop %v2938
  %v3099 = vrsqrt.pop %v2939
  %v3100 = vrsqrt.pop %v2940
  %v3101 = vrsqrt.pop %v2941
  %v3102 = vrsqrt.pop %v2942
  %v3103 = vrsqrt.pop %v2943
  %v3104 = vrsqrt.pop %v2944
  %v3105 = vrsqrt.pop %v2945
  %v3106 = vrsqrt.pop %v2946
  %v3107 = vrsqrt.pop %v2947
  %v3108 = vrsqrt.pop %v2948
  %v3109 = vrsqrt.pop %v2949
  %v3110 = vrsqrt.pop %v2950
  %v3111 = vrsqrt.pop %v2951
  %v3112 = vrsqrt.pop %v2952
  %v3113 = vrsqrt.pop %v2953
  %v3114 = vrsqrt.pop %v2954
  %v3115 = vrsqrt.pop %v2955
  %v3116 = vrsqrt.pop %v2956
  %v3117 = vrsqrt.pop %v2957
  %v3118 = vrsqrt.pop %v2958
  %v3119 = vrsqrt.pop %v2959
  %v3120 = vrsqrt.pop %v2960
  %v3121 = vrsqrt.pop %v2961
  %v3122 = vrsqrt.pop %v2962
  %v3123 = vrsqrt.pop %v2963
  %v3124 = vrsqrt.pop %v2964
  %v3125 = vrsqrt.pop %v2965
  %v3126 = vrsqrt.pop %v2966
  %v3127 = vrsqrt.pop %v2967
  %v3128 = vrsqrt.pop %v2968
  %v3129 = vrsqrt.pop %v2969
  %v3130 = vrsqrt.pop %v2970
  %v3131 = vrsqrt.pop %v2971
  %v3132 = vrsqrt.pop %v2972
  %v3133 = vrsqrt.pop %v2973
  %v3134 = vrsqrt.pop %v2974
  %v3135 = vrsqrt.pop %v2975
  %v3136 = vrsqrt.pop %v2976
  %v3137 = vrsqrt.pop %v2977
  %v3138 = vrsqrt.pop %v2978
  %v3139 = vrsqrt.pop %v2979
  %v3140 = vrsqrt.pop %v2980
  %v3141 = vrsqrt.pop %v2981
  %v3142 = vrsqrt.pop %v2982
  %v3143 = vrsqrt.pop %v2983
  %v3144 = vrsqrt.pop %v2984
  %v3145 = vrsqrt.pop %v2985
  %v3146 = vrsqrt.pop %v2986
  %v3147 = vrsqrt.pop %v2987
  %v3148 = vrsqrt.pop %v2988
  %v3149 = vrsqrt.pop %v2989
  %v3150 = vrsqrt.pop %v2990
  %v3151 = vrsqrt.pop %v2991
  %v3152 = vrsqrt.pop %v2992
  %v3153 = vrsqrt.pop %v2993
  %v3154 = vrsqrt.pop %v2994
  %v3155 = vrsqrt.pop %v2995
  %v3156 = vrsqrt.pop %v2996
  %v3157 = vrsqrt.pop %v2997
  %v3158 = vrsqrt.pop %v2998
  %v3159 = vrsqrt.pop %v2999
  %v3160 = vrsqrt.pop %v3000
  %v3161 = vrsqrt.pop %v3001
  %v3162 = vrsqrt.pop %v3002
  %v3163 = vrsqrt.pop %v3003
  %v3164 = vrsqrt.pop %v3004
  %v3165 = vrsqrt.pop %v3005
  %v3166 = vrsqrt.pop %v3006
  %v3167 = vrsqrt.pop %v3007
  %v3168 = vrsqrt.pop %v3008
  %v3169 = vrsqrt.pop %v3009
  %v3170 = vrsqrt.pop %v3010
  %v3171 = vrsqrt.pop %v3011
  %v3172 = vrsqrt.pop %v3012
  %v3173 = vrsqrt.pop %v3013
  %v3174 = vrsqrt.pop %v3014
  %v3175 = vrsqrt.pop %v3015
  %v3176 = vrsqrt.pop %v3016
  %v3177 = vrsqrt.pop %v3017
  %v3178 = vrsqrt.pop %v3018
  %v3179 = vrsqrt.pop %v3019
  %v3180 = vrsqrt.pop %v3020
  %v3181 = vrsqrt.pop %v3021
  %v3182 = vrsqrt.pop %v3022
  %v3183 = vrsqrt.pop %v3023
  %v3184 = vrsqrt.pop %v3024
  %v3185 = vrsqrt.pop %v3025
  %v3186 = vrsqrt.pop %v3026
  %v3187 = vrsqrt.pop %v3027
  %v3188 = vrsqrt.pop %v3028
  %v3189 = vrsqrt.pop %v3029
  %v3190 = vrsqrt.pop %v3030
  %v3191 = vrsqrt.pop %v3031
  %v3192 = vrsqrt.pop %v3032
  %v3193 = vrsqrt.pop %v3033
  %v3194 = vrsqrt.pop %v3034
  %v3195 = vrsqrt.pop %v3035
  %v3196 = vrsqrt.pop %v3036
  %v3197 = vrsqrt.pop %v3037
  %v3198 = vrsqrt.pop %v3038
  %v3199 = vrsqrt.pop %v3039
  %v3200 = vrsqrt.pop %v3040
  %v3201 = vrsqrt.pop %v3041
  %v3202 = vrsqrt.pop %v3042
  %v3203 = vrsqrt.pop %v3043
  %v3204 = vrsqrt.pop %v3044
  %v3205 = vrsqrt.pop %v3045
  %v3206 = vrsqrt.pop %v3046
  %v3207 = vrsqrt.pop %v3047
  %v3208 = vrsqrt.pop %v3048
  %v3209 = vrsqrt.pop %v3049
  %v3210 = vrsqrt.pop %v3050
  %v3211 = vrsqrt.pop %v3051
  %v3212 = vrsqrt.pop %v3052
  %v3213 = vrsqrt.pop %v3053
  %v3214 = vrsqrt.pop %v3054
  %v3215 = vrsqrt.pop %v3055
  %v3216 = vrsqrt.pop %v3056
  %v3217 = vrsqrt.pop %v3057
  %v3218 = vrsqrt.pop %v3058
  %v3219 = vrsqrt.pop %v3059
  %v3220 = vrsqrt.pop %v3060
  %v3221 = vrsqrt.pop %v3061
  %v3222 = vrsqrt.pop %v3062
  %v3223 = vrsqrt.pop %v3063
  %v3224 = vmul.f32 %v2744, %v3064
  %v3225 = vmul.f32 %v2745, %v3065
  %v3226 = vmul.f32 %v2746, %v3066
  %v3227 = vmul.f32 %v2747, %v3067
  %v3228 = vmul.f32 %v2748, %v3068
  %v3229 = vmul.f32 %v2749, %v3069
  %v3230 = vmul.f32 %v2750, %v3070
  %v3231 = vmul.f32 %v2751, %v3071
  %v3232 = vmul.f32 %v2752, %v3072
  %v3233 = vmul.f32 %v2753, %v3073
  %v3234 = vmul.f32 %v2754, %v3074
  %v3235 = vmul.f32 %v2755, %v3075
  %v3236 = vmul.f32 %v2756, %v3076
  %v3237 = vmul.f32 %v2757, %v3077
  %v3238 = vmul.f32 %v2758, %v3078
  %v3239 = vmul.f32 %v2759, %v3079
  %v3240 = vmul.f32 %v2760, %v3080
  %v3241 = vmul.f32 %v2761, %v3081
  %v3242 = vmul.f32 %v2762, %v3082
  %v3243 = vmul.f32 %v2763, %v3083
  %v3244 = vmul.f32 %v2764, %v3084
  %v3245 = vmul.f32 %v2765, %v3085
  %v3246 = vmul.f32 %v2766, %v3086
  %v3247 = vmul.f32 %v2767, %v3087
  %v3248 = vmul.f32 %v2768, %v3088
  %v3249 = vmul.f32 %v2769, %v3089
  %v3250 = vmul.f32 %v2770, %v3090
  %v3251 = vmul.f32 %v2771, %v3091
  %v3252 = vmul.f32 %v2772, %v3092
  %v3253 = vmul.f32 %v2773, %v3093
  %v3254 = vmul.f32 %v2774, %v3094
  %v3255 = vmul.f32 %v2775, %v3095
  %v3256 = vmul.f32 %v2776, %v3096
  %v3257 = vmul.f32 %v2777, %v3097
  %v3258 = vmul.f32 %v2778, %v3098
  %v3259 = vmul.f32 %v2779, %v3099
  %v3260 = vmul.f32 %v2780, %v3100
  %v3261 = vmul.f32 %v2781, %v3101
  %v3262 = vmul.f32 %v2782, %v3102
  %v3263 = vmul.f32 %v2783, %v3103
  %v3264 = vmul.f32 %v2784, %v3104
  %v3265 = vmul.f32 %v2785, %v3105
  %v3266 = vmul.f32 %v2786, %v3106
  %v3267 = vmul.f32 %v2787, %v3107
  %v3268 = vmul.f32 %v2788, %v3108
  %v3269 = vmul.f32 %v2789, %v3109
  %v3270 = vmul.f32 %v2790, %v3110
  %v3271 = vmul.f32 %v2791, %v3111
  %v3272 = vmul.f32 %v2792, %v3112
  %v3273 = vmul.f32 %v2793, %v3113
  %v3274 = vmul.f32 %v2794, %v3114
  %v3275 = vmul.f32 %v2795, %v3115
  %v3276 = vmul.f32 %v2796, %v3116
  %v3277 = vmul.f32 %v2797, %v3117
  %v3278 = vmul.f32 %v2798, %v3118
  %v3279 = vmul.f32 %v2799, %v3119
  %v3280 = vmul.f32 %v2800, %v3120
  %v3281 = vmul.f32 %v2801, %v3121
  %v3282 = vmul.f32 %v2802, %v3122
  %v3283 = vmul.f32 %v2803, %v3123
  %v3284 = vmul.f32 %v2804, %v3124
  %v3285 = vmul.f32 %v2805, %v3125
  %v3286 = vmul.f32 %v2806, %v3126
  %v3287 = vmul.f32 %v2807, %v3127
  %v3288 = vmul.f32 %v2808, %v3128
  %v3289 = vmul.f32 %v2809, %v3129
  %v3290 = vmul.f32 %v2810, %v3130
  %v3291 = vmul.f32 %v2811, %v3131
  %v3292 = vmul.f32 %v2812, %v3132
  %v3293 = vmul.f32 %v2813, %v3133
  %v3294 = vmul.f32 %v2814, %v3134
  %v3295 = vmul.f32 %v2815, %v3135
  %v3296 = vmul.f32 %v2816, %v3136
  %v3297 = vmul.f32 %v2817, %v3137
  %v3298 = vmul.f32 %v2818, %v3138
  %v3299 = vmul.f32 %v2819, %v3139
  %v3300 = vmul.f32 %v2820, %v3140
  %v3301 = vmul.f32 %v2821, %v3141
  %v3302 = vmul.f32 %v2822, %v3142
  %v3303 = vmul.f32 %v2823, %v3143
  %v3304 = vmul.f32 %v2824, %v3144
  %v3305 = vmul.f32 %v2825, %v3145
  %v3306 = vmul.f32 %v2826, %v3146
  %v3307 = vmul.f32 %v2827, %v3147
  %v3308 = vmul.f32 %v2828, %v3148
  %v3309 = vmul.f32 %v2829, %v3149
  %v3310 = vmul.f32 %v2830, %v3150
  %v3311 = vmul.f32 %v2831, %v3151
  %v3312 = vmul.f32 %v2832, %v3152
  %v3313 = vmul.f32 %v2833, %v3153
  %v3314 = vmul.f32 %v2834, %v3154
  %v3315 = vmul.f32 %v2835, %v3155
  %v3316 = vmul.f32 %v2836, %v3156
  %v3317 = vmul.f32 %v2837, %v3157
  %v3318 = vmul.f32 %v2838, %v3158
  %v3319 = vmul.f32 %v2839, %v3159
  %v3320 = vmul.f32 %v2840, %v3160
  %v3321 = vmul.f32 %v2841, %v3161
  %v3322 = vmul.f32 %v2842, %v3162
  %v3323 = vmul.f32 %v2843, %v3163
  %v3324 = vmul.f32 %v2844, %v3164
  %v3325 = vmul.f32 %v2845, %v3165
  %v3326 = vmul.f32 %v2846, %v3166
  %v3327 = vmul.f32 %v2847, %v3167
  %v3328 = vmul.f32 %v2848, %v3168
  %v3329 = vmul.f32 %v2849, %v3169
  %v3330 = vmul.f32 %v2850, %v3170
  %v3331 = vmul.f32 %v2851, %v3171
  %v3332 = vmul.f32 %v2852, %v3172
  %v3333 = vmul.f32 %v2853, %v3173
  %v3334 = vmul.f32 %v2854, %v3174
  %v3335 = vmul.f32 %v2855, %v3175
  %v3336 = vmul.f32 %v2856, %v3176
  %v3337 = vmul.f32 %v2857, %v3177
  %v3338 = vmul.f32 %v2858, %v3178
  %v3339 = vmul.f32 %v2859, %v3179
  %v3340 = vmul.f32 %v2860, %v3180
  %v3341 = vmul.f32 %v2861, %v3181
  %v3342 = vmul.f32 %v2862, %v3182
  %v3343 = vmul.f32 %v2863, %v3183
  %v3344 = vmul.f32 %v2864, %v3184
  %v3345 = vmul.f32 %v2865, %v3185
  %v3346 = vmul.f32 %v2866, %v3186
  %v3347 = vmul.f32 %v2867, %v3187
  %v3348 = vmul.f32 %v2868, %v3188
  %v3349 = vmul.f32 %v2869, %v3189
  %v3350 = vmul.f32 %v2870, %v3190
  %v3351 = vmul.f32 %v2871, %v3191
  %v3352 = vmul.f32 %v2872, %v3192
  %v3353 = vmul.f32 %v2873, %v3193
  %v3354 = vmul.f32 %v2874, %v3194
  %v3355 = vmul.f32 %v2875, %v3195
  %v3356 = vmul.f32 %v2876, %v3196
  %v3357 = vmul.f32 %v2877, %v3197
  %v3358 = vmul.f32 %v2878, %v3198
  %v3359 = vmul.f32 %v2879, %v3199
  %v3360 = vmul.f32 %v2880, %v3200
  %v3361 = vmul.f32 %v2881, %v3201
  %v3362 = vmul.f32 %v2882, %v3202
  %v3363 = vmul.f32 %v2883, %v3203
  %v3364 = vmul.f32 %v2884, %v3204
  %v3365 = vmul.f32 %v2885, %v3205
  %v3366 = vmul.f32 %v2886, %v3206
  %v3367 = vmul.f32 %v2887, %v3207
  %v3368 = vmul.f32 %v2888, %v3208
  %v3369 = vmul.f32 %v2889, %v3209
  %v3370 = vmul.f32 %v2890, %v3210
  %v3371 = vmul.f32 %v2891, %v3211
  %v3372 = vmul.f32 %v2892, %v3212
  %v3373 = vmul.f32 %v2893, %v3213
  %v3374 = vmul.f32 %v2894, %v3214
  %v3375 = vmul.f32 %v2895, %v3215
  %v3376 = vmul.f32 %v2896, %v3216
  %v3377 = vmul.f32 %v2897, %v3217
  %v3378 = vmul.f32 %v2898, %v3218
  %v3379 = vmul.f32 %v2899, %v3219
  %v3380 = vmul.f32 %v2900, %v3220
  %v3381 = vmul.f32 %v2901, %v3221
  %v3382 = vmul.f32 %v2902, %v3222
  %v3383 = vmul.f32 %v2903, %v3223
  %v3384 = vld [vmem:[%s3] sm:$0xff]
  %v3385 = vld [vmem:[%s3 + $0x8] sm:$0xff]
  %v3386 = vld [vmem:[%s3 + $0x10] sm:$0xff]
  %v3387 = vld [vmem:[%s3 + $0x18] sm:$0xff]
  %v3388 = vld [vmem:[%s3 + $0x20] sm:$0xff]
  %v3389 = vld [vmem:[%s3 + $0x28] sm:$0xff]
  %v3390 = vld [vmem:[%s3 + $0x30] sm:$0xff]
  %v3391 = vld [vmem:[%s3 + $0x38] sm:$0xff]
  %v3392 = vld [vmem:[%s3 + $0x40] sm:$0xff]
  %v3393 = vld [vmem:[%s3 + $0x48] sm:$0xff]
  %v3394 = vld [vmem:[%s3 + $0x50] sm:$0xff]
  %v3395 = vld [vmem:[%s3 + $0x58] sm:$0xff]
  %v3396 = vld [vmem:[%s3 + $0x60] sm:$0xff]
  %v3397 = vld [vmem:[%s3 + $0x68] sm:$0xff]
  %v3398 = vld [vmem:[%s3 + $0x70] sm:$0xff]
  %v3399 = vld [vmem:[%s3 + $0x78] sm:$0xff]
  %v3400 = vld [vmem:[%s3 + $0x80] sm:$0xff]
  %v3401 = vld [vmem:[%s3 + $0x88] sm:$0xff]
  %v3402 = vld [vmem:[%s3 + $0x90] sm:$0xff]
  %v3403 = vld [vmem:[%s3 + $0x98] sm:$0xff]
  %v3404 = vld [vmem:[%s3 + $0xa0] sm:$0xff]
  %v3405 = vld [vmem:[%s3 + $0xa8] sm:$0xff]
  %v3406 = vld [vmem:[%s3 + $0xb0] sm:$0xff]
  %v3407 = vld [vmem:[%s3 + $0xb8] sm:$0xff]
  %v3408 = vld [vmem:[%s3 + $0xc0] sm:$0xff]
  %v3409 = vld [vmem:[%s3 + $0xc8] sm:$0xff]
  %v3410 = vld [vmem:[%s3 + $0xd0] sm:$0xff]
  %v3411 = vld [vmem:[%s3 + $0xd8] sm:$0xff]
  %v3412 = vld [vmem:[%s3 + $0xe0] sm:$0xff]
  %v3413 = vld [vmem:[%s3 + $0xe8] sm:$0xff]
  %v3414 = vld [vmem:[%s3 + $0xf0] sm:$0xff]
  %v3415 = vld [vmem:[%s3 + $0xf8] sm:$0xff]
  %v3416 = vld [vmem:[%s3 + $0x100] sm:$0xff]
  %v3417 = vld [vmem:[%s3 + $0x108] sm:$0xff]
  %v3418 = vld [vmem:[%s3 + $0x110] sm:$0xff]
  %v3419 = vld [vmem:[%s3 + $0x118] sm:$0xff]
  %v3420 = vld [vmem:[%s3 + $0x120] sm:$0xff]
  %v3421 = vld [vmem:[%s3 + $0x128] sm:$0xff]
  %v3422 = vld [vmem:[%s3 + $0x130] sm:$0xff]
  %v3423 = vld [vmem:[%s3 + $0x138] sm:$0xff]
  %v3424 = vld [vmem:[%s3 + $0x140] sm:$0xff]
  %v3425 = vld [vmem:[%s3 + $0x148] sm:$0xff]
  %v3426 = vld [vmem:[%s3 + $0x150] sm:$0xff]
  %v3427 = vld [vmem:[%s3 + $0x158] sm:$0xff]
  %v3428 = vld [vmem:[%s3 + $0x160] sm:$0xff]
  %v3429 = vld [vmem:[%s3 + $0x168] sm:$0xff]
  %v3430 = vld [vmem:[%s3 + $0x170] sm:$0xff]
  %v3431 = vld [vmem:[%s3 + $0x178] sm:$0xff]
  %v3432 = vld [vmem:[%s3 + $0x180] sm:$0xff]
  %v3433 = vld [vmem:[%s3 + $0x188] sm:$0xff]
  %v3434 = vld [vmem:[%s3 + $0x190] sm:$0xff]
  %v3435 = vld [vmem:[%s3 + $0x198] sm:$0xff]
  %v3436 = vld [vmem:[%s3 + $0x1a0] sm:$0xff]
  %v3437 = vld [vmem:[%s3 + $0x1a8] sm:$0xff]
  %v3438 = vld [vmem:[%s3 + $0x1b0] sm:$0xff]
  %v3439 = vld [vmem:[%s3 + $0x1b8] sm:$0xff]
  %v3440 = vld [vmem:[%s3 + $0x1c0] sm:$0xff]
  %v3441 = vld [vmem:[%s3 + $0x1c8] sm:$0xff]
  %v3442 = vld [vmem:[%s3 + $0x1d0] sm:$0xff]
  %v3443 = vld [vmem:[%s3 + $0x1d8] sm:$0xff]
  %v3444 = vld [vmem:[%s3 + $0x1e0] sm:$0xff]
  %v3445 = vld [vmem:[%s3 + $0x1e8] sm:$0xff]
  %v3446 = vld [vmem:[%s3 + $0x1f0] sm:$0xff]
  %v3447 = vld [vmem:[%s3 + $0x1f8] sm:$0xff]
  %v3448 = vld [vmem:[%s3 + $0x200] sm:$0xff]
  %v3449 = vld [vmem:[%s3 + $0x208] sm:$0xff]
  %v3450 = vld [vmem:[%s3 + $0x210] sm:$0xff]
  %v3451 = vld [vmem:[%s3 + $0x218] sm:$0xff]
  %v3452 = vld [vmem:[%s3 + $0x220] sm:$0xff]
  %v3453 = vld [vmem:[%s3 + $0x228] sm:$0xff]
  %v3454 = vld [vmem:[%s3 + $0x230] sm:$0xff]
  %v3455 = vld [vmem:[%s3 + $0x238] sm:$0xff]
  %v3456 = vld [vmem:[%s3 + $0x240] sm:$0xff]
  %v3457 = vld [vmem:[%s3 + $0x248] sm:$0xff]
  %v3458 = vld [vmem:[%s3 + $0x250] sm:$0xff]
  %v3459 = vld [vmem:[%s3 + $0x258] sm:$0xff]
  %v3460 = vld [vmem:[%s3 + $0x260] sm:$0xff]
  %v3461 = vld [vmem:[%s3 + $0x268] sm:$0xff]
  %v3462 = vld [vmem:[%s3 + $0x270] sm:$0xff]
  %v3463 = vld [vmem:[%s3 + $0x278] sm:$0xff]
  %v3464 = vld [vmem:[%s3 + $0x280] sm:$0xff]
  %v3465 = vld [vmem:[%s3 + $0x288] sm:$0xff]
  %v3466 = vld [vmem:[%s3 + $0x290] sm:$0xff]
  %v3467 = vld [vmem:[%s3 + $0x298] sm:$0xff]
  %v3468 = vld [vmem:[%s3 + $0x2a0] sm:$0xff]
  %v3469 = vld [vmem:[%s3 + $0x2a8] sm:$0xff]
  %v3470 = vld [vmem:[%s3 + $0x2b0] sm:$0xff]
  %v3471 = vld [vmem:[%s3 + $0x2b8] sm:$0xff]
  %v3472 = vld [vmem:[%s3 + $0x2c0] sm:$0xff]
  %v3473 = vld [vmem:[%s3 + $0x2c8] sm:$0xff]
  %v3474 = vld [vmem:[%s3 + $0x2d0] sm:$0xff]
  %v3475 = vld [vmem:[%s3 + $0x2d8] sm:$0xff]
  %v3476 = vld [vmem:[%s3 + $0x2e0] sm:$0xff]
  %v3477 = vld [vmem:[%s3 + $0x2e8] sm:$0xff]
  %v3478 = vld [vmem:[%s3 + $0x2f0] sm:$0xff]
  %v3479 = vld [vmem:[%s3 + $0x2f8] sm:$0xff]
  %v3480 = vld [vmem:[%s3 + $0x300] sm:$0xff]
  %v3481 = vld [vmem:[%s3 + $0x308] sm:$0xff]
  %v3482 = vld [vmem:[%s3 + $0x310] sm:$0xff]
  %v3483 = vld [vmem:[%s3 + $0x318] sm:$0xff]
  %v3484 = vld [vmem:[%s3 + $0x320] sm:$0xff]
  %v3485 = vld [vmem:[%s3 + $0x328] sm:$0xff]
  %v3486 = vld [vmem:[%s3 + $0x330] sm:$0xff]
  %v3487 = vld [vmem:[%s3 + $0x338] sm:$0xff]
  %v3488 = vld [vmem:[%s3 + $0x340] sm:$0xff]
  %v3489 = vld [vmem:[%s3 + $0x348] sm:$0xff]
  %v3490 = vld [vmem:[%s3 + $0x350] sm:$0xff]
  %v3491 = vld [vmem:[%s3 + $0x358] sm:$0xff]
  %v3492 = vld [vmem:[%s3 + $0x360] sm:$0xff]
  %v3493 = vld [vmem:[%s3 + $0x368] sm:$0xff]
  %v3494 = vld [vmem:[%s3 + $0x370] sm:$0xff]
  %v3495 = vld [vmem:[%s3 + $0x378] sm:$0xff]
  %v3496 = vld [vmem:[%s3 + $0x380] sm:$0xff]
  %v3497 = vld [vmem:[%s3 + $0x388] sm:$0xff]
  %v3498 = vld [vmem:[%s3 + $0x390] sm:$0xff]
  %v3499 = vld [vmem:[%s3 + $0x398] sm:$0xff]
  %v3500 = vld [vmem:[%s3 + $0x3a0] sm:$0xff]
  %v3501 = vld [vmem:[%s3 + $0x3a8] sm:$0xff]
  %v3502 = vld [vmem:[%s3 + $0x3b0] sm:$0xff]
  %v3503 = vld [vmem:[%s3 + $0x3b8] sm:$0xff]
  %v3504 = vld [vmem:[%s3 + $0x3c0] sm:$0xff]
  %v3505 = vld [vmem:[%s3 + $0x3c8] sm:$0xff]
  %v3506 = vld [vmem:[%s3 + $0x3d0] sm:$0xff]
  %v3507 = vld [vmem:[%s3 + $0x3d8] sm:$0xff]
  %v3508 = vld [vmem:[%s3 + $0x3e0] sm:$0xff]
  %v3509 = vld [vmem:[%s3 + $0x3e8] sm:$0xff]
  %v3510 = vld [vmem:[%s3 + $0x3f0] sm:$0xff]
  %v3511 = vld [vmem:[%s3 + $0x3f8] sm:$0xff]
  %v3512 = vld [vmem:[%s3 + $0x400] sm:$0xff]
  %v3513 = vld [vmem:[%s3 + $0x408] sm:$0xff]
  %v3514 = vld [vmem:[%s3 + $0x410] sm:$0xff]
  %v3515 = vld [vmem:[%s3 + $0x418] sm:$0xff]
  %v3516 = vld [vmem:[%s3 + $0x420] sm:$0xff]
  %v3517 = vld [vmem:[%s3 + $0x428] sm:$0xff]
  %v3518 = vld [vmem:[%s3 + $0x430] sm:$0xff]
  %v3519 = vld [vmem:[%s3 + $0x438] sm:$0xff]
  %v3520 = vld [vmem:[%s3 + $0x440] sm:$0xff]
  %v3521 = vld [vmem:[%s3 + $0x448] sm:$0xff]
  %v3522 = vld [vmem:[%s3 + $0x450] sm:$0xff]
  %v3523 = vld [vmem:[%s3 + $0x458] sm:$0xff]
  %v3524 = vld [vmem:[%s3 + $0x460] sm:$0xff]
  %v3525 = vld [vmem:[%s3 + $0x468] sm:$0xff]
  %v3526 = vld [vmem:[%s3 + $0x470] sm:$0xff]
  %v3527 = vld [vmem:[%s3 + $0x478] sm:$0xff]
  %v3528 = vld [vmem:[%s3 + $0x480] sm:$0xff]
  %v3529 = vld [vmem:[%s3 + $0x488] sm:$0xff]
  %v3530 = vld [vmem:[%s3 + $0x490] sm:$0xff]
  %v3531 = vld [vmem:[%s3 + $0x498] sm:$0xff]
  %v3532 = vld [vmem:[%s3 + $0x4a0] sm:$0xff]
  %v3533 = vld [vmem:[%s3 + $0x4a8] sm:$0xff]
  %v3534 = vld [vmem:[%s3 + $0x4b0] sm:$0xff]
  %v3535 = vld [vmem:[%s3 + $0x4b8] sm:$0xff]
  %v3536 = vld [vmem:[%s3 + $0x4c0] sm:$0xff]
  %v3537 = vld [vmem:[%s3 + $0x4c8] sm:$0xff]
  %v3538 = vld [vmem:[%s3 + $0x4d0] sm:$0xff]
  %v3539 = vld [vmem:[%s3 + $0x4d8] sm:$0xff]
  %v3540 = vld [vmem:[%s3 + $0x4e0] sm:$0xff]
  %v3541 = vld [vmem:[%s3 + $0x4e8] sm:$0xff]
  %v3542 = vld [vmem:[%s3 + $0x4f0] sm:$0xff]
  %v3543 = vld [vmem:[%s3 + $0x4f8] sm:$0xff]
  %v3544 = vmul.f32 %v1944, %v3224
  %v3545 = vmul.f32 %v1945, %v3225
  %v3546 = vmul.f32 %v1946, %v3226
  %v3547 = vmul.f32 %v1947, %v3227
  %v3548 = vmul.f32 %v1948, %v3228
  %v3549 = vmul.f32 %v1949, %v3229
  %v3550 = vmul.f32 %v1950, %v3230
  %v3551 = vmul.f32 %v1951, %v3231
  %v3552 = vmul.f32 %v1952, %v3232
  %v3553 = vmul.f32 %v1953, %v3233
  %v3554 = vmul.f32 %v1954, %v3234
  %v3555 = vmul.f32 %v1955, %v3235
  %v3556 = vmul.f32 %v1956, %v3236
  %v3557 = vmul.f32 %v1957, %v3237
  %v3558 = vmul.f32 %v1958, %v3238
  %v3559 = vmul.f32 %v1959, %v3239
  %v3560 = vmul.f32 %v1960, %v3240
  %v3561 = vmul.f32 %v1961, %v3241
  %v3562 = vmul.f32 %v1962, %v3242
  %v3563 = vmul.f32 %v1963, %v3243
  %v3564 = vmul.f32 %v1964, %v3244
  %v3565 = vmul.f32 %v1965, %v3245
  %v3566 = vmul.f32 %v1966, %v3246
  %v3567 = vmul.f32 %v1967, %v3247
  %v3568 = vmul.f32 %v1968, %v3248
  %v3569 = vmul.f32 %v1969, %v3249
  %v3570 = vmul.f32 %v1970, %v3250
  %v3571 = vmul.f32 %v1971, %v3251
  %v3572 = vmul.f32 %v1972, %v3252
  %v3573 = vmul.f32 %v1973, %v3253
  %v3574 = vmul.f32 %v1974, %v3254
  %v3575 = vmul.f32 %v1975, %v3255
  %v3576 = vmul.f32 %v1976, %v3256
  %v3577 = vmul.f32 %v1977, %v3257
  %v3578 = vmul.f32 %v1978, %v3258
  %v3579 = vmul.f32 %v1979, %v3259
  %v3580 = vmul.f32 %v1980, %v3260
  %v3581 = vmul.f32 %v1981, %v3261
  %v3582 = vmul.f32 %v1982, %v3262
  %v3583 = vmul.f32 %v1983, %v3263
  %v3584 = vmul.f32 %v1984, %v3264
  %v3585 = vmul.f32 %v1985, %v3265
  %v3586 = vmul.f32 %v1986, %v3266
  %v3587 = vmul.f32 %v1987, %v3267
  %v3588 = vmul.f32 %v1988, %v3268
  %v3589 = vmul.f32 %v1989, %v3269
  %v3590 = vmul.f32 %v1990, %v3270
  %v3591 = vmul.f32 %v1991, %v3271
  %v3592 = vmul.f32 %v1992, %v3272
  %v3593 = vmul.f32 %v1993, %v3273
  %v3594 = vmul.f32 %v1994, %v3274
  %v3595 = vmul.f32 %v1995, %v3275
  %v3596 = vmul.f32 %v1996, %v3276
  %v3597 = vmul.f32 %v1997, %v3277
  %v3598 = vmul.f32 %v1998, %v3278
  %v3599 = vmul.f32 %v1999, %v3279
  %v3600 = vmul.f32 %v2000, %v3280
  %v3601 = vmul.f32 %v2001, %v3281
  %v3602 = vmul.f32 %v2002, %v3282
  %v3603 = vmul.f32 %v2003, %v3283
  %v3604 = vmul.f32 %v2004, %v3284
  %v3605 = vmul.f32 %v2005, %v3285
  %v3606 = vmul.f32 %v2006, %v3286
  %v3607 = vmul.f32 %v2007, %v3287
  %v3608 = vmul.f32 %v2008, %v3288
  %v3609 = vmul.f32 %v2009, %v3289
  %v3610 = vmul.f32 %v2010, %v3290
  %v3611 = vmul.f32 %v2011, %v3291
  %v3612 = vmul.f32 %v2012, %v3292
  %v3613 = vmul.f32 %v2013, %v3293
  %v3614 = vmul.f32 %v2014, %v3294
  %v3615 = vmul.f32 %v2015, %v3295
  %v3616 = vmul.f32 %v2016, %v3296
  %v3617 = vmul.f32 %v2017, %v3297
  %v3618 = vmul.f32 %v2018, %v3298
  %v3619 = vmul.f32 %v2019, %v3299
  %v3620 = vmul.f32 %v2020, %v3300
  %v3621 = vmul.f32 %v2021, %v3301
  %v3622 = vmul.f32 %v2022, %v3302
  %v3623 = vmul.f32 %v2023, %v3303
  %v3624 = vmul.f32 %v2024, %v3304
  %v3625 = vmul.f32 %v2025, %v3305
  %v3626 = vmul.f32 %v2026, %v3306
  %v3627 = vmul.f32 %v2027, %v3307
  %v3628 = vmul.f32 %v2028, %v3308
  %v3629 = vmul.f32 %v2029, %v3309
  %v3630 = vmul.f32 %v2030, %v3310
  %v3631 = vmul.f32 %v2031, %v3311
  %v3632 = vmul.f32 %v2032, %v3312
  %v3633 = vmul.f32 %v2033, %v3313
  %v3634 = vmul.f32 %v2034, %v3314
  %v3635 = vmul.f32 %v2035, %v3315
  %v3636 = vmul.f32 %v2036, %v3316
  %v3637 = vmul.f32 %v2037, %v3317
  %v3638 = vmul.f32 %v2038, %v3318
  %v3639 = vmul.f32 %v2039, %v3319
  %v3640 = vmul.f32 %v2040, %v3320
  %v3641 = vmul.f32 %v2041, %v3321
  %v3642 = vmul.f32 %v2042, %v3322
  %v3643 = vmul.f32 %v2043, %v3323
  %v3644 = vmul.f32 %v2044, %v3324
  %v3645 = vmul.f32 %v2045, %v3325
  %v3646 = vmul.f32 %v2046, %v3326
  %v3647 = vmul.f32 %v2047, %v3327
  %v3648 = vmul.f32 %v2048, %v3328
  %v3649 = vmul.f32 %v2049, %v3329
  %v3650 = vmul.f32 %v2050, %v3330
  %v3651 = vmul.f32 %v2051, %v3331
  %v3652 = vmul.f32 %v2052, %v3332
  %v3653 = vmul.f32 %v2053, %v3333
  %v3654 = vmul.f32 %v2054, %v3334
  %v3655 = vmul.f32 %v2055, %v3335
  %v3656 = vmul.f32 %v2056, %v3336
  %v3657 = vmul.f32 %v2057, %v3337
  %v3658 = vmul.f32 %v2058, %v3338
  %v3659 = vmul.f32 %v2059, %v3339
  %v3660 = vmul.f32 %v2060, %v3340
  %v3661 = vmul.f32 %v2061, %v3341
  %v3662 = vmul.f32 %v2062, %v3342
  %v3663 = vmul.f32 %v2063, %v3343
  %v3664 = vmul.f32 %v2064, %v3344
  %v3665 = vmul.f32 %v2065, %v3345
  %v3666 = vmul.f32 %v2066, %v3346
  %v3667 = vmul.f32 %v2067, %v3347
  %v3668 = vmul.f32 %v2068, %v3348
  %v3669 = vmul.f32 %v2069, %v3349
  %v3670 = vmul.f32 %v2070, %v3350
  %v3671 = vmul.f32 %v2071, %v3351
  %v3672 = vmul.f32 %v2072, %v3352
  %v3673 = vmul.f32 %v2073, %v3353
  %v3674 = vmul.f32 %v2074, %v3354
  %v3675 = vmul.f32 %v2075, %v3355
  %v3676 = vmul.f32 %v2076, %v3356
  %v3677 = vmul.f32 %v2077, %v3357
  %v3678 = vmul.f32 %v2078, %v3358
  %v3679 = vmul.f32 %v2079, %v3359
  %v3680 = vmul.f32 %v2080, %v3360
  %v3681 = vmul.f32 %v2081, %v3361
  %v3682 = vmul.f32 %v2082, %v3362
  %v3683 = vmul.f32 %v2083, %v3363
  %v3684 = vmul.f32 %v2084, %v3364
  %v3685 = vmul.f32 %v2085, %v3365
  %v3686 = vmul.f32 %v2086, %v3366
  %v3687 = vmul.f32 %v2087, %v3367
  %v3688 = vmul.f32 %v2088, %v3368
  %v3689 = vmul.f32 %v2089, %v3369
  %v3690 = vmul.f32 %v2090, %v3370
  %v3691 = vmul.f32 %v2091, %v3371
  %v3692 = vmul.f32 %v2092, %v3372
  %v3693 = vmul.f32 %v2093, %v3373
  %v3694 = vmul.f32 %v2094, %v3374
  %v3695 = vmul.f32 %v2095, %v3375
  %v3696 = vmul.f32 %v2096, %v3376
  %v3697 = vmul.f32 %v2097, %v3377
  %v3698 = vmul.f32 %v2098, %v3378
  %v3699 = vmul.f32 %v2099, %v3379
  %v3700 = vmul.f32 %v2100, %v3380
  %v3701 = vmul.f32 %v2101, %v3381
  %v3702 = vmul.f32 %v2102, %v3382
  %v3703 = vmul.f32 %v2103, %v3383
  %v3704 = vsub.f32 %v3384, %v3544
  %v3705 = vsub.f32 %v3385, %v3545
  %v3706 = vsub.f32 %v3386, %v3546
  %v3707 = vsub.f32 %v3387, %v3547
  %v3708 = vsub.f32 %v3388, %v3548
  %v3709 = vsub.f32 %v3389, %v3549
  %v3710 = vsub.f32 %v3390, %v3550
  %v3711 = vsub.f32 %v3391, %v3551
  %v3712 = vsub.f32 %v3392, %v3552
  %v3713 = vsub.f32 %v3393, %v3553
  %v3714 = vsub.f32 %v3394, %v3554
  %v3715 = vsub.f32 %v3395, %v3555
  %v3716 = vsub.f32 %v3396, %v3556
  %v3717 = vsub.f32 %v3397, %v3557
  %v3718 = vsub.f32 %v3398, %v3558
  %v3719 = vsub.f32 %v3399, %v3559
  %v3720 = vsub.f32 %v3400, %v3560
  %v3721 = vsub.f32 %v3401, %v3561
  %v3722 = vsub.f32 %v3402, %v3562
  %v3723 = vsub.f32 %v3403, %v3563
  %v3724 = vsub.f32 %v3404, %v3564
  %v3725 = vsub.f32 %v3405, %v3565
  %v3726 = vsub.f32 %v3406, %v3566
  %v3727 = vsub.f32 %v3407, %v3567
  %v3728 = vsub.f32 %v3408, %v3568
  %v3729 = vsub.f32 %v3409, %v3569
  %v3730 = vsub.f32 %v3410, %v3570
  %v3731 = vsub.f32 %v3411, %v3571
  %v3732 = vsub.f32 %v3412, %v3572
  %v3733 = vsub.f32 %v3413, %v3573
  %v3734 = vsub.f32 %v3414, %v3574
  %v3735 = vsub.f32 %v3415, %v3575
  %v3736 = vsub.f32 %v3416, %v3576
  %v3737 = vsub.f32 %v3417, %v3577
  %v3738 = vsub.f32 %v3418, %v3578
  %v3739 = vsub.f32 %v3419, %v3579
  %v3740 = vsub.f32 %v3420, %v3580
  %v3741 = vsub.f32 %v3421, %v3581
  %v3742 = vsub.f32 %v3422, %v3582
  %v3743 = vsub.f32 %v3423, %v3583
  %v3744 = vsub.f32 %v3424, %v3584
  %v3745 = vsub.f32 %v3425, %v3585
  %v3746 = vsub.f32 %v3426, %v3586
  %v3747 = vsub.f32 %v3427, %v3587
  %v3748 = vsub.f32 %v3428, %v3588
  %v3749 = vsub.f32 %v3429, %v3589
  %v3750 = vsub.f32 %v3430, %v3590
  %v3751 = vsub.f32 %v3431, %v3591
  %v3752 = vsub.f32 %v3432, %v3592
  %v3753 = vsub.f32 %v3433, %v3593
  %v3754 = vsub.f32 %v3434, %v3594
  %v3755 = vsub.f32 %v3435, %v3595
  %v3756 = vsub.f32 %v3436, %v3596
  %v3757 = vsub.f32 %v3437, %v3597
  %v3758 = vsub.f32 %v3438, %v3598
  %v3759 = vsub.f32 %v3439, %v3599
  %v3760 = vsub.f32 %v3440, %v3600
  %v3761 = vsub.f32 %v3441, %v3601
  %v3762 = vsub.f32 %v3442, %v3602
  %v3763 = vsub.f32 %v3443, %v3603
  %v3764 = vsub.f32 %v3444, %v3604
  %v3765 = vsub.f32 %v3445, %v3605
  %v3766 = vsub.f32 %v3446, %v3606
  %v3767 = vsub.f32 %v3447, %v3607
  %v3768 = vsub.f32 %v3448, %v3608
  %v3769 = vsub.f32 %v3449, %v3609
  %v3770 = vsub.f32 %v3450, %v3610
  %v3771 = vsub.f32 %v3451, %v3611
  %v3772 = vsub.f32 %v3452, %v3612
  %v3773 = vsub.f32 %v3453, %v3613
  %v3774 = vsub.f32 %v3454, %v3614
  %v3775 = vsub.f32 %v3455, %v3615
  %v3776 = vsub.f32 %v3456, %v3616
  %v3777 = vsub.f32 %v3457, %v3617
  %v3778 = vsub.f32 %v3458, %v3618
  %v3779 = vsub.f32 %v3459, %v3619
  %v3780 = vsub.f32 %v3460, %v3620
  %v3781 = vsub.f32 %v3461, %v3621
  %v3782 = vsub.f32 %v3462, %v3622
  %v3783 = vsub.f32 %v3463, %v3623
  %v3784 = vsub.f32 %v3464, %v3624
  %v3785 = vsub.f32 %v3465, %v3625
  %v3786 = vsub.f32 %v3466, %v3626
  %v3787 = vsub.f32 %v3467, %v3627
  %v3788 = vsub.f32 %v3468, %v3628
  %v3789 = vsub.f32 %v3469, %v3629
  %v3790 = vsub.f32 %v3470, %v3630
  %v3791 = vsub.f32 %v3471, %v3631
  %v3792 = vsub.f32 %v3472, %v3632
  %v3793 = vsub.f32 %v3473, %v3633
  %v3794 = vsub.f32 %v3474, %v3634
  %v3795 = vsub.f32 %v3475, %v3635
  %v3796 = vsub.f32 %v3476, %v3636
  %v3797 = vsub.f32 %v3477, %v3637
  %v3798 = vsub.f32 %v3478, %v3638
  %v3799 = vsub.f32 %v3479, %v3639
  %v3800 = vsub.f32 %v3480, %v3640
  %v3801 = vsub.f32 %v3481, %v3641
  %v3802 = vsub.f32 %v3482, %v3642
  %v3803 = vsub.f32 %v3483, %v3643
  %v3804 = vsub.f32 %v3484, %v3644
  %v3805 = vsub.f32 %v3485, %v3645
  %v3806 = vsub.f32 %v3486, %v3646
  %v3807 = vsub.f32 %v3487, %v3647
  %v3808 = vsub.f32 %v3488, %v3648
  %v3809 = vsub.f32 %v3489, %v3649
  %v3810 = vsub.f32 %v3490, %v3650
  %v3811 = vsub.f32 %v3491, %v3651
  %v3812 = vsub.f32 %v3492, %v3652
  %v3813 = vsub.f32 %v3493, %v3653
  %v3814 = vsub.f32 %v3494, %v3654
  %v3815 = vsub.f32 %v3495, %v3655
  %v3816 = vsub.f32 %v3496, %v3656
  %v3817 = vsub.f32 %v3497, %v3657
  %v3818 = vsub.f32 %v3498, %v3658
  %v3819 = vsub.f32 %v3499, %v3659
  %v3820 = vsub.f32 %v3500, %v3660
  %v3821 = vsub.f32 %v3501, %v3661
  %v3822 = vsub.f32 %v3502, %v3662
  %v3823 = vsub.f32 %v3503, %v3663
  %v3824 = vsub.f32 %v3504, %v3664
  %v3825 = vsub.f32 %v3505, %v3665
  %v3826 = vsub.f32 %v3506, %v3666
  %v3827 = vsub.f32 %v3507, %v3667
  %v3828 = vsub.f32 %v3508, %v3668
  %v3829 = vsub.f32 %v3509, %v3669
  %v3830 = vsub.f32 %v3510, %v3670
  %v3831 = vsub.f32 %v3511, %v3671
  %v3832 = vsub.f32 %v3512, %v3672
  %v3833 = vsub.f32 %v3513, %v3673
  %v3834 = vsub.f32 %v3514, %v3674
  %v3835 = vsub.f32 %v3515, %v3675
  %v3836 = vsub.f32 %v3516, %v3676
  %v3837 = vsub.f32 %v3517, %v3677
  %v3838 = vsub.f32 %v3518, %v3678
  %v3839 = vsub.f32 %v3519, %v3679
  %v3840 = vsub.f32 %v3520, %v3680
  %v3841 = vsub.f32 %v3521, %v3681
  %v3842 = vsub.f32 %v3522, %v3682
  %v3843 = vsub.f32 %v3523, %v3683
  %v3844 = vsub.f32 %v3524, %v3684
  %v3845 = vsub.f32 %v3525, %v3685
  %v3846 = vsub.f32 %v3526, %v3686
  %v3847 = vsub.f32 %v3527, %v3687
  %v3848 = vsub.f32 %v3528, %v3688
  %v3849 = vsub.f32 %v3529, %v3689
  %v3850 = vsub.f32 %v3530, %v3690
  %v3851 = vsub.f32 %v3531, %v3691
  %v3852 = vsub.f32 %v3532, %v3692
  %v3853 = vsub.f32 %v3533, %v3693
  %v3854 = vsub.f32 %v3534, %v3694
  %v3855 = vsub.f32 %v3535, %v3695
  %v3856 = vsub.f32 %v3536, %v3696
  %v3857 = vsub.f32 %v3537, %v3697
  %v3858 = vsub.f32 %v3538, %v3698
  %v3859 = vsub.f32 %v3539, %v3699
  %v3860 = vsub.f32 %v3540, %v3700
  %v3861 = vsub.f32 %v3541, %v3701
  %v3862 = vsub.f32 %v3542, %v3702
  %v3863 = vsub.f32 %v3543, %v3703
  %3865 = vset.pattern.permute.xlu0 0
  %3866 = vperm.xlu0 %3865, %v3224
  %v3867 = vpop.permute.xlu0 %3866
  %3870 = vset.pattern.permute.xlu0 0
  %3871 = vperm.xlu0 %3870, %v3225
  %v3872 = vpop.permute.xlu0 %3871
  %3875 = vset.pattern.permute.xlu0 0
  %3876 = vperm.xlu0 %3875, %v3226
  %v3877 = vpop.permute.xlu0 %3876
  %3880 = vset.pattern.permute.xlu0 0
  %3881 = vperm.xlu0 %3880, %v3227
  %v3882 = vpop.permute.xlu0 %3881
  %3885 = vset.pattern.permute.xlu0 0
  %3886 = vperm.xlu0 %3885, %v3228
  %v3887 = vpop.permute.xlu0 %3886
  %3890 = vset.pattern.permute.xlu0 0
  %3891 = vperm.xlu0 %3890, %v3229
  %v3892 = vpop.permute.xlu0 %3891
  %3895 = vset.pattern.permute.xlu0 0
  %3896 = vperm.xlu0 %3895, %v3230
  %v3897 = vpop.permute.xlu0 %3896
  %3900 = vset.pattern.permute.xlu0 0
  %3901 = vperm.xlu0 %3900, %v3231
  %v3902 = vpop.permute.xlu0 %3901
  %3905 = vset.pattern.permute.xlu0 0
  %3906 = vperm.xlu0 %3905, %v3232
  %v3907 = vpop.permute.xlu0 %3906
  %3910 = vset.pattern.permute.xlu0 0
  %3911 = vperm.xlu0 %3910, %v3233
  %v3912 = vpop.permute.xlu0 %3911
  %3915 = vset.pattern.permute.xlu0 0
  %3916 = vperm.xlu0 %3915, %v3234
  %v3917 = vpop.permute.xlu0 %3916
  %3920 = vset.pattern.permute.xlu0 0
  %3921 = vperm.xlu0 %3920, %v3235
  %v3922 = vpop.permute.xlu0 %3921
  %3925 = vset.pattern.permute.xlu0 0
  %3926 = vperm.xlu0 %3925, %v3236
  %v3927 = vpop.permute.xlu0 %3926
  %3930 = vset.pattern.permute.xlu0 0
  %3931 = vperm.xlu0 %3930, %v3237
  %v3932 = vpop.permute.xlu0 %3931
  %3935 = vset.pattern.permute.xlu0 0
  %3936 = vperm.xlu0 %3935, %v3238
  %v3937 = vpop.permute.xlu0 %3936
  %3940 = vset.pattern.permute.xlu0 0
  %3941 = vperm.xlu0 %3940, %v3239
  %v3942 = vpop.permute.xlu0 %3941
  %3945 = vset.pattern.permute.xlu0 0
  %3946 = vperm.xlu0 %3945, %v3240
  %v3947 = vpop.permute.xlu0 %3946
  %3950 = vset.pattern.permute.xlu0 0
  %3951 = vperm.xlu0 %3950, %v3241
  %v3952 = vpop.permute.xlu0 %3951
  %3955 = vset.pattern.permute.xlu0 0
  %3956 = vperm.xlu0 %3955, %v3242
  %v3957 = vpop.permute.xlu0 %3956
  %3960 = vset.pattern.permute.xlu0 0
  %3961 = vperm.xlu0 %3960, %v3243
  %v3962 = vpop.permute.xlu0 %3961
  %3965 = vset.pattern.permute.xlu0 0
  %3966 = vperm.xlu0 %3965, %v3244
  %v3967 = vpop.permute.xlu0 %3966
  %3970 = vset.pattern.permute.xlu0 0
  %3971 = vperm.xlu0 %3970, %v3245
  %v3972 = vpop.permute.xlu0 %3971
  %3975 = vset.pattern.permute.xlu0 0
  %3976 = vperm.xlu0 %3975, %v3246
  %v3977 = vpop.permute.xlu0 %3976
  %3980 = vset.pattern.permute.xlu0 0
  %3981 = vperm.xlu0 %3980, %v3247
  %v3982 = vpop.permute.xlu0 %3981
  %3985 = vset.pattern.permute.xlu0 0
  %3986 = vperm.xlu0 %3985, %v3248
  %v3987 = vpop.permute.xlu0 %3986
  %3990 = vset.pattern.permute.xlu0 0
  %3991 = vperm.xlu0 %3990, %v3249
  %v3992 = vpop.permute.xlu0 %3991
  %3995 = vset.pattern.permute.xlu0 0
  %3996 = vperm.xlu0 %3995, %v3250
  %v3997 = vpop.permute.xlu0 %3996
  %4000 = vset.pattern.permute.xlu0 0
  %4001 = vperm.xlu0 %4000, %v3251
  %v4002 = vpop.permute.xlu0 %4001
  %4005 = vset.pattern.permute.xlu0 0
  %4006 = vperm.xlu0 %4005, %v3252
  %v4007 = vpop.permute.xlu0 %4006
  %4010 = vset.pattern.permute.xlu0 0
  %4011 = vperm.xlu0 %4010, %v3253
  %v4012 = vpop.permute.xlu0 %4011
  %4015 = vset.pattern.permute.xlu0 0
  %4016 = vperm.xlu0 %4015, %v3254
  %v4017 = vpop.permute.xlu0 %4016
  %4020 = vset.pattern.permute.xlu0 0
  %4021 = vperm.xlu0 %4020, %v3255
  %v4022 = vpop.permute.xlu0 %4021
  %4025 = vset.pattern.permute.xlu0 0
  %4026 = vperm.xlu0 %4025, %v3256
  %v4027 = vpop.permute.xlu0 %4026
  %4030 = vset.pattern.permute.xlu0 0
  %4031 = vperm.xlu0 %4030, %v3257
  %v4032 = vpop.permute.xlu0 %4031
  %4035 = vset.pattern.permute.xlu0 0
  %4036 = vperm.xlu0 %4035, %v3258
  %v4037 = vpop.permute.xlu0 %4036
  %4040 = vset.pattern.permute.xlu0 0
  %4041 = vperm.xlu0 %4040, %v3259
  %v4042 = vpop.permute.xlu0 %4041
  %4045 = vset.pattern.permute.xlu0 0
  %4046 = vperm.xlu0 %4045, %v3260
  %v4047 = vpop.permute.xlu0 %4046
  %4050 = vset.pattern.permute.xlu0 0
  %4051 = vperm.xlu0 %4050, %v3261
  %v4052 = vpop.permute.xlu0 %4051
  %4055 = vset.pattern.permute.xlu0 0
  %4056 = vperm.xlu0 %4055, %v3262
  %v4057 = vpop.permute.xlu0 %4056
  %4060 = vset.pattern.permute.xlu0 0
  %4061 = vperm.xlu0 %4060, %v3263
  %v4062 = vpop.permute.xlu0 %4061
  %4065 = vset.pattern.permute.xlu0 0
  %4066 = vperm.xlu0 %4065, %v3264
  %v4067 = vpop.permute.xlu0 %4066
  %4070 = vset.pattern.permute.xlu0 0
  %4071 = vperm.xlu0 %4070, %v3265
  %v4072 = vpop.permute.xlu0 %4071
  %4075 = vset.pattern.permute.xlu0 0
  %4076 = vperm.xlu0 %4075, %v3266
  %v4077 = vpop.permute.xlu0 %4076
  %4080 = vset.pattern.permute.xlu0 0
  %4081 = vperm.xlu0 %4080, %v3267
  %v4082 = vpop.permute.xlu0 %4081
  %4085 = vset.pattern.permute.xlu0 0
  %4086 = vperm.xlu0 %4085, %v3268
  %v4087 = vpop.permute.xlu0 %4086
  %4090 = vset.pattern.permute.xlu0 0
  %4091 = vperm.xlu0 %4090, %v3269
  %v4092 = vpop.permute.xlu0 %4091
  %4095 = vset.pattern.permute.xlu0 0
  %4096 = vperm.xlu0 %4095, %v3270
  %v4097 = vpop.permute.xlu0 %4096
  %4100 = vset.pattern.permute.xlu0 0
  %4101 = vperm.xlu0 %4100, %v3271
  %v4102 = vpop.permute.xlu0 %4101
  %4105 = vset.pattern.permute.xlu0 0
  %4106 = vperm.xlu0 %4105, %v3272
  %v4107 = vpop.permute.xlu0 %4106
  %4110 = vset.pattern.permute.xlu0 0
  %4111 = vperm.xlu0 %4110, %v3273
  %v4112 = vpop.permute.xlu0 %4111
  %4115 = vset.pattern.permute.xlu0 0
  %4116 = vperm.xlu0 %4115, %v3274
  %v4117 = vpop.permute.xlu0 %4116
  %4120 = vset.pattern.permute.xlu0 0
  %4121 = vperm.xlu0 %4120, %v3275
  %v4122 = vpop.permute.xlu0 %4121
  %4125 = vset.pattern.permute.xlu0 0
  %4126 = vperm.xlu0 %4125, %v3276
  %v4127 = vpop.permute.xlu0 %4126
  %4130 = vset.pattern.permute.xlu0 0
  %4131 = vperm.xlu0 %4130, %v3277
  %v4132 = vpop.permute.xlu0 %4131
  %4135 = vset.pattern.permute.xlu0 0
  %4136 = vperm.xlu0 %4135, %v3278
  %v4137 = vpop.permute.xlu0 %4136
  %4140 = vset.pattern.permute.xlu0 0
  %4141 = vperm.xlu0 %4140, %v3279
  %v4142 = vpop.permute.xlu0 %4141
  %4145 = vset.pattern.permute.xlu0 0
  %4146 = vperm.xlu0 %4145, %v3280
  %v4147 = vpop.permute.xlu0 %4146
  %4150 = vset.pattern.permute.xlu0 0
  %4151 = vperm.xlu0 %4150, %v3281
  %v4152 = vpop.permute.xlu0 %4151
  %4155 = vset.pattern.permute.xlu0 0
  %4156 = vperm.xlu0 %4155, %v3282
  %v4157 = vpop.permute.xlu0 %4156
  %4160 = vset.pattern.permute.xlu0 0
  %4161 = vperm.xlu0 %4160, %v3283
  %v4162 = vpop.permute.xlu0 %4161
  %4165 = vset.pattern.permute.xlu0 0
  %4166 = vperm.xlu0 %4165, %v3284
  %v4167 = vpop.permute.xlu0 %4166
  %4170 = vset.pattern.permute.xlu0 0
  %4171 = vperm.xlu0 %4170, %v3285
  %v4172 = vpop.permute.xlu0 %4171
  %4175 = vset.pattern.permute.xlu0 0
  %4176 = vperm.xlu0 %4175, %v3286
  %v4177 = vpop.permute.xlu0 %4176
  %4180 = vset.pattern.permute.xlu0 0
  %4181 = vperm.xlu0 %4180, %v3287
  %v4182 = vpop.permute.xlu0 %4181
  %4185 = vset.pattern.permute.xlu0 0
  %4186 = vperm.xlu0 %4185, %v3288
  %v4187 = vpop.permute.xlu0 %4186
  %4190 = vset.pattern.permute.xlu0 0
  %4191 = vperm.xlu0 %4190, %v3289
  %v4192 = vpop.permute.xlu0 %4191
  %4195 = vset.pattern.permute.xlu0 0
  %4196 = vperm.xlu0 %4195, %v3290
  %v4197 = vpop.permute.xlu0 %4196
  %4200 = vset.pattern.permute.xlu0 0
  %4201 = vperm.xlu0 %4200, %v3291
  %v4202 = vpop.permute.xlu0 %4201
  %4205 = vset.pattern.permute.xlu0 0
  %4206 = vperm.xlu0 %4205, %v3292
  %v4207 = vpop.permute.xlu0 %4206
  %4210 = vset.pattern.permute.xlu0 0
  %4211 = vperm.xlu0 %4210, %v3293
  %v4212 = vpop.permute.xlu0 %4211
  %4215 = vset.pattern.permute.xlu0 0
  %4216 = vperm.xlu0 %4215, %v3294
  %v4217 = vpop.permute.xlu0 %4216
  %4220 = vset.pattern.permute.xlu0 0
  %4221 = vperm.xlu0 %4220, %v3295
  %v4222 = vpop.permute.xlu0 %4221
  %4225 = vset.pattern.permute.xlu0 0
  %4226 = vperm.xlu0 %4225, %v3296
  %v4227 = vpop.permute.xlu0 %4226
  %4230 = vset.pattern.permute.xlu0 0
  %4231 = vperm.xlu0 %4230, %v3297
  %v4232 = vpop.permute.xlu0 %4231
  %4235 = vset.pattern.permute.xlu0 0
  %4236 = vperm.xlu0 %4235, %v3298
  %v4237 = vpop.permute.xlu0 %4236
  %4240 = vset.pattern.permute.xlu0 0
  %4241 = vperm.xlu0 %4240, %v3299
  %v4242 = vpop.permute.xlu0 %4241
  %4245 = vset.pattern.permute.xlu0 0
  %4246 = vperm.xlu0 %4245, %v3300
  %v4247 = vpop.permute.xlu0 %4246
  %4250 = vset.pattern.permute.xlu0 0
  %4251 = vperm.xlu0 %4250, %v3301
  %v4252 = vpop.permute.xlu0 %4251
  %4255 = vset.pattern.permute.xlu0 0
  %4256 = vperm.xlu0 %4255, %v3302
  %v4257 = vpop.permute.xlu0 %4256
  %4260 = vset.pattern.permute.xlu0 0
  %4261 = vperm.xlu0 %4260, %v3303
  %v4262 = vpop.permute.xlu0 %4261
  %4265 = vset.pattern.permute.xlu0 0
  %4266 = vperm.xlu0 %4265, %v3304
  %v4267 = vpop.permute.xlu0 %4266
  %4270 = vset.pattern.permute.xlu0 0
  %4271 = vperm.xlu0 %4270, %v3305
  %v4272 = vpop.permute.xlu0 %4271
  %4275 = vset.pattern.permute.xlu0 0
  %4276 = vperm.xlu0 %4275, %v3306
  %v4277 = vpop.permute.xlu0 %4276
  %4280 = vset.pattern.permute.xlu0 0
  %4281 = vperm.xlu0 %4280, %v3307
  %v4282 = vpop.permute.xlu0 %4281
  %4285 = vset.pattern.permute.xlu0 0
  %4286 = vperm.xlu0 %4285, %v3308
  %v4287 = vpop.permute.xlu0 %4286
  %4290 = vset.pattern.permute.xlu0 0
  %4291 = vperm.xlu0 %4290, %v3309
  %v4292 = vpop.permute.xlu0 %4291
  %4295 = vset.pattern.permute.xlu0 0
  %4296 = vperm.xlu0 %4295, %v3310
  %v4297 = vpop.permute.xlu0 %4296
  %4300 = vset.pattern.permute.xlu0 0
  %4301 = vperm.xlu0 %4300, %v3311
  %v4302 = vpop.permute.xlu0 %4301
  %4305 = vset.pattern.permute.xlu0 0
  %4306 = vperm.xlu0 %4305, %v3312
  %v4307 = vpop.permute.xlu0 %4306
  %4310 = vset.pattern.permute.xlu0 0
  %4311 = vperm.xlu0 %4310, %v3313
  %v4312 = vpop.permute.xlu0 %4311
  %4315 = vset.pattern.permute.xlu0 0
  %4316 = vperm.xlu0 %4315, %v3314
  %v4317 = vpop.permute.xlu0 %4316
  %4320 = vset.pattern.permute.xlu0 0
  %4321 = vperm.xlu0 %4320, %v3315
  %v4322 = vpop.permute.xlu0 %4321
  %4325 = vset.pattern.permute.xlu0 0
  %4326 = vperm.xlu0 %4325, %v3316
  %v4327 = vpop.permute.xlu0 %4326
  %4330 = vset.pattern.permute.xlu0 0
  %4331 = vperm.xlu0 %4330, %v3317
  %v4332 = vpop.permute.xlu0 %4331
  %4335 = vset.pattern.permute.xlu0 0
  %4336 = vperm.xlu0 %4335, %v3318
  %v4337 = vpop.permute.xlu0 %4336
  %4340 = vset.pattern.permute.xlu0 0
  %4341 = vperm.xlu0 %4340, %v3319
  %v4342 = vpop.permute.xlu0 %4341
  %4345 = vset.pattern.permute.xlu0 0
  %4346 = vperm.xlu0 %4345, %v3320
  %v4347 = vpop.permute.xlu0 %4346
  %4350 = vset.pattern.permute.xlu0 0
  %4351 = vperm.xlu0 %4350, %v3321
  %v4352 = vpop.permute.xlu0 %4351
  %4355 = vset.pattern.permute.xlu0 0
  %4356 = vperm.xlu0 %4355, %v3322
  %v4357 = vpop.permute.xlu0 %4356
  %4360 = vset.pattern.permute.xlu0 0
  %4361 = vperm.xlu0 %4360, %v3323
  %v4362 = vpop.permute.xlu0 %4361
  %4365 = vset.pattern.permute.xlu0 0
  %4366 = vperm.xlu0 %4365, %v3324
  %v4367 = vpop.permute.xlu0 %4366
  %4370 = vset.pattern.permute.xlu0 0
  %4371 = vperm.xlu0 %4370, %v3325
  %v4372 = vpop.permute.xlu0 %4371
  %4375 = vset.pattern.permute.xlu0 0
  %4376 = vperm.xlu0 %4375, %v3326
  %v4377 = vpop.permute.xlu0 %4376
  %4380 = vset.pattern.permute.xlu0 0
  %4381 = vperm.xlu0 %4380, %v3327
  %v4382 = vpop.permute.xlu0 %4381
  %4385 = vset.pattern.permute.xlu0 0
  %4386 = vperm.xlu0 %4385, %v3328
  %v4387 = vpop.permute.xlu0 %4386
  %4390 = vset.pattern.permute.xlu0 0
  %4391 = vperm.xlu0 %4390, %v3329
  %v4392 = vpop.permute.xlu0 %4391
  %4395 = vset.pattern.permute.xlu0 0
  %4396 = vperm.xlu0 %4395, %v3330
  %v4397 = vpop.permute.xlu0 %4396
  %4400 = vset.pattern.permute.xlu0 0
  %4401 = vperm.xlu0 %4400, %v3331
  %v4402 = vpop.permute.xlu0 %4401
  %4405 = vset.pattern.permute.xlu0 0
  %4406 = vperm.xlu0 %4405, %v3332
  %v4407 = vpop.permute.xlu0 %4406
  %4410 = vset.pattern.permute.xlu0 0
  %4411 = vperm.xlu0 %4410, %v3333
  %v4412 = vpop.permute.xlu0 %4411
  %4415 = vset.pattern.permute.xlu0 0
  %4416 = vperm.xlu0 %4415, %v3334
  %v4417 = vpop.permute.xlu0 %4416
  %4420 = vset.pattern.permute.xlu0 0
  %4421 = vperm.xlu0 %4420, %v3335
  %v4422 = vpop.permute.xlu0 %4421
  %4425 = vset.pattern.permute.xlu0 0
  %4426 = vperm.xlu0 %4425, %v3336
  %v4427 = vpop.permute.xlu0 %4426
  %4430 = vset.pattern.permute.xlu0 0
  %4431 = vperm.xlu0 %4430, %v3337
  %v4432 = vpop.permute.xlu0 %4431
  %4435 = vset.pattern.permute.xlu0 0
  %4436 = vperm.xlu0 %4435, %v3338
  %v4437 = vpop.permute.xlu0 %4436
  %4440 = vset.pattern.permute.xlu0 0
  %4441 = vperm.xlu0 %4440, %v3339
  %v4442 = vpop.permute.xlu0 %4441
  %4445 = vset.pattern.permute.xlu0 0
  %4446 = vperm.xlu0 %4445, %v3340
  %v4447 = vpop.permute.xlu0 %4446
  %4450 = vset.pattern.permute.xlu0 0
  %4451 = vperm.xlu0 %4450, %v3341
  %v4452 = vpop.permute.xlu0 %4451
  %4455 = vset.pattern.permute.xlu0 0
  %4456 = vperm.xlu0 %4455, %v3342
  %v4457 = vpop.permute.xlu0 %4456
  %4460 = vset.pattern.permute.xlu0 0
  %4461 = vperm.xlu0 %4460, %v3343
  %v4462 = vpop.permute.xlu0 %4461
  %4465 = vset.pattern.permute.xlu0 0
  %4466 = vperm.xlu0 %4465, %v3344
  %v4467 = vpop.permute.xlu0 %4466
  %4470 = vset.pattern.permute.xlu0 0
  %4471 = vperm.xlu0 %4470, %v3345
  %v4472 = vpop.permute.xlu0 %4471
  %4475 = vset.pattern.permute.xlu0 0
  %4476 = vperm.xlu0 %4475, %v3346
  %v4477 = vpop.permute.xlu0 %4476
  %4480 = vset.pattern.permute.xlu0 0
  %4481 = vperm.xlu0 %4480, %v3347
  %v4482 = vpop.permute.xlu0 %4481
  %4485 = vset.pattern.permute.xlu0 0
  %4486 = vperm.xlu0 %4485, %v3348
  %v4487 = vpop.permute.xlu0 %4486
  %4490 = vset.pattern.permute.xlu0 0
  %4491 = vperm.xlu0 %4490, %v3349
  %v4492 = vpop.permute.xlu0 %4491
  %4495 = vset.pattern.permute.xlu0 0
  %4496 = vperm.xlu0 %4495, %v3350
  %v4497 = vpop.permute.xlu0 %4496
  %4500 = vset.pattern.permute.xlu0 0
  %4501 = vperm.xlu0 %4500, %v3351
  %v4502 = vpop.permute.xlu0 %4501
  %4505 = vset.pattern.permute.xlu0 0
  %4506 = vperm.xlu0 %4505, %v3352
  %v4507 = vpop.permute.xlu0 %4506
  %4510 = vset.pattern.permute.xlu0 0
  %4511 = vperm.xlu0 %4510, %v3353
  %v4512 = vpop.permute.xlu0 %4511
  %4515 = vset.pattern.permute.xlu0 0
  %4516 = vperm.xlu0 %4515, %v3354
  %v4517 = vpop.permute.xlu0 %4516
  %4520 = vset.pattern.permute.xlu0 0
  %4521 = vperm.xlu0 %4520, %v3355
  %v4522 = vpop.permute.xlu0 %4521
  %4525 = vset.pattern.permute.xlu0 0
  %4526 = vperm.xlu0 %4525, %v3356
  %v4527 = vpop.permute.xlu0 %4526
  %4530 = vset.pattern.permute.xlu0 0
  %4531 = vperm.xlu0 %4530, %v3357
  %v4532 = vpop.permute.xlu0 %4531
  %4535 = vset.pattern.permute.xlu0 0
  %4536 = vperm.xlu0 %4535, %v3358
  %v4537 = vpop.permute.xlu0 %4536
  %4540 = vset.pattern.permute.xlu0 0
  %4541 = vperm.xlu0 %4540, %v3359
  %v4542 = vpop.permute.xlu0 %4541
  %4545 = vset.pattern.permute.xlu0 0
  %4546 = vperm.xlu0 %4545, %v3360
  %v4547 = vpop.permute.xlu0 %4546
  %4550 = vset.pattern.permute.xlu0 0
  %4551 = vperm.xlu0 %4550, %v3361
  %v4552 = vpop.permute.xlu0 %4551
  %4555 = vset.pattern.permute.xlu0 0
  %4556 = vperm.xlu0 %4555, %v3362
  %v4557 = vpop.permute.xlu0 %4556
  %4560 = vset.pattern.permute.xlu0 0
  %4561 = vperm.xlu0 %4560, %v3363
  %v4562 = vpop.permute.xlu0 %4561
  %4565 = vset.pattern.permute.xlu0 0
  %4566 = vperm.xlu0 %4565, %v3364
  %v4567 = vpop.permute.xlu0 %4566
  %4570 = vset.pattern.permute.xlu0 0
  %4571 = vperm.xlu0 %4570, %v3365
  %v4572 = vpop.permute.xlu0 %4571
  %4575 = vset.pattern.permute.xlu0 0
  %4576 = vperm.xlu0 %4575, %v3366
  %v4577 = vpop.permute.xlu0 %4576
  %4580 = vset.pattern.permute.xlu0 0
  %4581 = vperm.xlu0 %4580, %v3367
  %v4582 = vpop.permute.xlu0 %4581
  %4585 = vset.pattern.permute.xlu0 0
  %4586 = vperm.xlu0 %4585, %v3368
  %v4587 = vpop.permute.xlu0 %4586
  %4590 = vset.pattern.permute.xlu0 0
  %4591 = vperm.xlu0 %4590, %v3369
  %v4592 = vpop.permute.xlu0 %4591
  %4595 = vset.pattern.permute.xlu0 0
  %4596 = vperm.xlu0 %4595, %v3370
  %v4597 = vpop.permute.xlu0 %4596
  %4600 = vset.pattern.permute.xlu0 0
  %4601 = vperm.xlu0 %4600, %v3371
  %v4602 = vpop.permute.xlu0 %4601
  %4605 = vset.pattern.permute.xlu0 0
  %4606 = vperm.xlu0 %4605, %v3372
  %v4607 = vpop.permute.xlu0 %4606
  %4610 = vset.pattern.permute.xlu0 0
  %4611 = vperm.xlu0 %4610, %v3373
  %v4612 = vpop.permute.xlu0 %4611
  %4615 = vset.pattern.permute.xlu0 0
  %4616 = vperm.xlu0 %4615, %v3374
  %v4617 = vpop.permute.xlu0 %4616
  %4620 = vset.pattern.permute.xlu0 0
  %4621 = vperm.xlu0 %4620, %v3375
  %v4622 = vpop.permute.xlu0 %4621
  %4625 = vset.pattern.permute.xlu0 0
  %4626 = vperm.xlu0 %4625, %v3376
  %v4627 = vpop.permute.xlu0 %4626
  %4630 = vset.pattern.permute.xlu0 0
  %4631 = vperm.xlu0 %4630, %v3377
  %v4632 = vpop.permute.xlu0 %4631
  %4635 = vset.pattern.permute.xlu0 0
  %4636 = vperm.xlu0 %4635, %v3378
  %v4637 = vpop.permute.xlu0 %4636
  %4640 = vset.pattern.permute.xlu0 0
  %4641 = vperm.xlu0 %4640, %v3379
  %v4642 = vpop.permute.xlu0 %4641
  %4645 = vset.pattern.permute.xlu0 0
  %4646 = vperm.xlu0 %4645, %v3380
  %v4647 = vpop.permute.xlu0 %4646
  %4650 = vset.pattern.permute.xlu0 0
  %4651 = vperm.xlu0 %4650, %v3381
  %v4652 = vpop.permute.xlu0 %4651
  %4655 = vset.pattern.permute.xlu0 0
  %4656 = vperm.xlu0 %4655, %v3382
  %v4657 = vpop.permute.xlu0 %4656
  %4660 = vset.pattern.permute.xlu0 0
  %4661 = vperm.xlu0 %4660, %v3383
  %v4662 = vpop.permute.xlu0 %4661
  %v4664 = vmul.f32 %v23, %v3867
  %v4665 = vmul.f32 %v24, %v3867
  %v4666 = vmul.f32 %v25, %v3872
  %v4667 = vmul.f32 %v26, %v3872
  %v4668 = vmul.f32 %v27, %v3877
  %v4669 = vmul.f32 %v28, %v3877
  %v4670 = vmul.f32 %v29, %v3882
  %v4671 = vmul.f32 %v30, %v3882
  %v4672 = vmul.f32 %v31, %v3887
  %v4673 = vmul.f32 %v32, %v3887
  %v4674 = vmul.f32 %v33, %v3892
  %v4675 = vmul.f32 %v34, %v3892
  %v4676 = vmul.f32 %v35, %v3897
  %v4677 = vmul.f32 %v36, %v3897
  %v4678 = vmul.f32 %v37, %v3902
  %v4679 = vmul.f32 %v38, %v3902
  %v4680 = vmul.f32 %v39, %v3907
  %v4681 = vmul.f32 %v40, %v3907
  %v4682 = vmul.f32 %v41, %v3912
  %v4683 = vmul.f32 %v42, %v3912
  %v4684 = vmul.f32 %v43, %v3917
  %v4685 = vmul.f32 %v44, %v3917
  %v4686 = vmul.f32 %v45, %v3922
  %v4687 = vmul.f32 %v46, %v3922
  %v4688 = vmul.f32 %v47, %v3927
  %v4689 = vmul.f32 %v48, %v3927
  %v4690 = vmul.f32 %v49, %v3932
  %v4691 = vmul.f32 %v50, %v3932
  %v4692 = vmul.f32 %v51, %v3937
  %v4693 = vmul.f32 %v52, %v3937
  %v4694 = vmul.f32 %v53, %v3942
  %v4695 = vmul.f32 %v54, %v3942
  %v4696 = vmul.f32 %v55, %v3947
  %v4697 = vmul.f32 %v56, %v3947
  %v4698 = vmul.f32 %v57, %v3952
  %v4699 = vmul.f32 %v58, %v3952
  %v4700 = vmul.f32 %v59, %v3957
  %v4701 = vmul.f32 %v60, %v3957
  %v4702 = vmul.f32 %v61, %v3962
  %v4703 = vmul.f32 %v62, %v3962
  %v4704 = vmul.f32 %v63, %v3967
  %v4705 = vmul.f32 %v64, %v3967
  %v4706 = vmul.f32 %v65, %v3972
  %v4707 = vmul.f32 %v66, %v3972
  %v4708 = vmul.f32 %v67, %v3977
  %v4709 = vmul.f32 %v68, %v3977
  %v4710 = vmul.f32 %v69, %v3982
  %v4711 = vmul.f32 %v70, %v3982
  %v4712 = vmul.f32 %v71, %v3987
  %v4713 = vmul.f32 %v72, %v3987
  %v4714 = vmul.f32 %v73, %v3992
  %v4715 = vmul.f32 %v74, %v3992
  %v4716 = vmul.f32 %v75, %v3997
  %v4717 = vmul.f32 %v76, %v3997
  %v4718 = vmul.f32 %v77, %v4002
  %v4719 = vmul.f32 %v78, %v4002
  %v4720 = vmul.f32 %v79, %v4007
  %v4721 = vmul.f32 %v80, %v4007
  %v4722 = vmul.f32 %v81, %v4012
  %v4723 = vmul.f32 %v82, %v4012
  %v4724 = vmul.f32 %v83, %v4017
  %v4725 = vmul.f32 %v84, %v4017
  %v4726 = vmul.f32 %v85, %v4022
  %v4727 = vmul.f32 %v86, %v4022
  %v4728 = vmul.f32 %v87, %v4027
  %v4729 = vmul.f32 %v88, %v4027
  %v4730 = vmul.f32 %v89, %v4032
  %v4731 = vmul.f32 %v90, %v4032
  %v4732 = vmul.f32 %v91, %v4037
  %v4733 = vmul.f32 %v92, %v4037
  %v4734 = vmul.f32 %v93, %v4042
  %v4735 = vmul.f32 %v94, %v4042
  %v4736 = vmul.f32 %v95, %v4047
  %v4737 = vmul.f32 %v96, %v4047
  %v4738 = vmul.f32 %v97, %v4052
  %v4739 = vmul.f32 %v98, %v4052
  %v4740 = vmul.f32 %v99, %v4057
  %v4741 = vmul.f32 %v100, %v4057
  %v4742 = vmul.f32 %v101, %v4062
  %v4743 = vmul.f32 %v102, %v4062
  %v4744 = vmul.f32 %v103, %v4067
  %v4745 = vmul.f32 %v104, %v4067
  %v4746 = vmul.f32 %v105, %v4072
  %v4747 = vmul.f32 %v106, %v4072
  %v4748 = vmul.f32 %v107, %v4077
  %v4749 = vmul.f32 %v108, %v4077
  %v4750 = vmul.f32 %v109, %v4082
  %v4751 = vmul.f32 %v110, %v4082
  %v4752 = vmul.f32 %v111, %v4087
  %v4753 = vmul.f32 %v112, %v4087
  %v4754 = vmul.f32 %v113, %v4092
  %v4755 = vmul.f32 %v114, %v4092
  %v4756 = vmul.f32 %v115, %v4097
  %v4757 = vmul.f32 %v116, %v4097
  %v4758 = vmul.f32 %v117, %v4102
  %v4759 = vmul.f32 %v118, %v4102
  %v4760 = vmul.f32 %v119, %v4107
  %v4761 = vmul.f32 %v120, %v4107
  %v4762 = vmul.f32 %v121, %v4112
  %v4763 = vmul.f32 %v122, %v4112
  %v4764 = vmul.f32 %v123, %v4117
  %v4765 = vmul.f32 %v124, %v4117
  %v4766 = vmul.f32 %v125, %v4122
  %v4767 = vmul.f32 %v126, %v4122
  %v4768 = vmul.f32 %v127, %v4127
  %v4769 = vmul.f32 %v128, %v4127
  %v4770 = vmul.f32 %v129, %v4132
  %v4771 = vmul.f32 %v130, %v4132
  %v4772 = vmul.f32 %v131, %v4137
  %v4773 = vmul.f32 %v132, %v4137
  %v4774 = vmul.f32 %v133, %v4142
  %v4775 = vmul.f32 %v134, %v4142
  %v4776 = vmul.f32 %v135, %v4147
  %v4777 = vmul.f32 %v136, %v4147
  %v4778 = vmul.f32 %v137, %v4152
  %v4779 = vmul.f32 %v138, %v4152
  %v4780 = vmul.f32 %v139, %v4157
  %v4781 = vmul.f32 %v140, %v4157
  %v4782 = vmul.f32 %v141, %v4162
  %v4783 = vmul.f32 %v142, %v4162
  %v4784 = vmul.f32 %v143, %v4167
  %v4785 = vmul.f32 %v144, %v4167
  %v4786 = vmul.f32 %v145, %v4172
  %v4787 = vmul.f32 %v146, %v4172
  %v4788 = vmul.f32 %v147, %v4177
  %v4789 = vmul.f32 %v148, %v4177
  %v4790 = vmul.f32 %v149, %v4182
  %v4791 = vmul.f32 %v150, %v4182
  %v4792 = vmul.f32 %v151, %v4187
  %v4793 = vmul.f32 %v152, %v4187
  %v4794 = vmul.f32 %v153, %v4192
  %v4795 = vmul.f32 %v154, %v4192
  %v4796 = vmul.f32 %v155, %v4197
  %v4797 = vmul.f32 %v156, %v4197
  %v4798 = vmul.f32 %v157, %v4202
  %v4799 = vmul.f32 %v158, %v4202
  %v4800 = vmul.f32 %v159, %v4207
  %v4801 = vmul.f32 %v160, %v4207
  %v4802 = vmul.f32 %v161, %v4212
  %v4803 = vmul.f32 %v162, %v4212
  %v4804 = vmul.f32 %v163, %v4217
  %v4805 = vmul.f32 %v164, %v4217
  %v4806 = vmul.f32 %v165, %v4222
  %v4807 = vmul.f32 %v166, %v4222
  %v4808 = vmul.f32 %v167, %v4227
  %v4809 = vmul.f32 %v168, %v4227
  %v4810 = vmul.f32 %v169, %v4232
  %v4811 = vmul.f32 %v170, %v4232
  %v4812 = vmul.f32 %v171, %v4237
  %v4813 = vmul.f32 %v172, %v4237
  %v4814 = vmul.f32 %v173, %v4242
  %v4815 = vmul.f32 %v174, %v4242
  %v4816 = vmul.f32 %v175, %v4247
  %v4817 = vmul.f32 %v176, %v4247
  %v4818 = vmul.f32 %v177, %v4252
  %v4819 = vmul.f32 %v178, %v4252
  %v4820 = vmul.f32 %v179, %v4257
  %v4821 = vmul.f32 %v180, %v4257
  %v4822 = vmul.f32 %v181, %v4262
  %v4823 = vmul.f32 %v182, %v4262
  %v4824 = vmul.f32 %v183, %v4267
  %v4825 = vmul.f32 %v184, %v4267
  %v4826 = vmul.f32 %v185, %v4272
  %v4827 = vmul.f32 %v186, %v4272
  %v4828 = vmul.f32 %v187, %v4277
  %v4829 = vmul.f32 %v188, %v4277
  %v4830 = vmul.f32 %v189, %v4282
  %v4831 = vmul.f32 %v190, %v4282
  %v4832 = vmul.f32 %v191, %v4287
  %v4833 = vmul.f32 %v192, %v4287
  %v4834 = vmul.f32 %v193, %v4292
  %v4835 = vmul.f32 %v194, %v4292
  %v4836 = vmul.f32 %v195, %v4297
  %v4837 = vmul.f32 %v196, %v4297
  %v4838 = vmul.f32 %v197, %v4302
  %v4839 = vmul.f32 %v198, %v4302
  %v4840 = vmul.f32 %v199, %v4307
  %v4841 = vmul.f32 %v200, %v4307
  %v4842 = vmul.f32 %v201, %v4312
  %v4843 = vmul.f32 %v202, %v4312
  %v4844 = vmul.f32 %v203, %v4317
  %v4845 = vmul.f32 %v204, %v4317
  %v4846 = vmul.f32 %v205, %v4322
  %v4847 = vmul.f32 %v206, %v4322
  %v4848 = vmul.f32 %v207, %v4327
  %v4849 = vmul.f32 %v208, %v4327
  %v4850 = vmul.f32 %v209, %v4332
  %v4851 = vmul.f32 %v210, %v4332
  %v4852 = vmul.f32 %v211, %v4337
  %v4853 = vmul.f32 %v212, %v4337
  %v4854 = vmul.f32 %v213, %v4342
  %v4855 = vmul.f32 %v214, %v4342
  %v4856 = vmul.f32 %v215, %v4347
  %v4857 = vmul.f32 %v216, %v4347
  %v4858 = vmul.f32 %v217, %v4352
  %v4859 = vmul.f32 %v218, %v4352
  %v4860 = vmul.f32 %v219, %v4357
  %v4861 = vmul.f32 %v220, %v4357
  %v4862 = vmul.f32 %v221, %v4362
  %v4863 = vmul.f32 %v222, %v4362
  %v4864 = vmul.f32 %v223, %v4367
  %v4865 = vmul.f32 %v224, %v4367
  %v4866 = vmul.f32 %v225, %v4372
  %v4867 = vmul.f32 %v226, %v4372
  %v4868 = vmul.f32 %v227, %v4377
  %v4869 = vmul.f32 %v228, %v4377
  %v4870 = vmul.f32 %v229, %v4382
  %v4871 = vmul.f32 %v230, %v4382
  %v4872 = vmul.f32 %v231, %v4387
  %v4873 = vmul.f32 %v232, %v4387
  %v4874 = vmul.f32 %v233, %v4392
  %v4875 = vmul.f32 %v234, %v4392
  %v4876 = vmul.f32 %v235, %v4397
  %v4877 = vmul.f32 %v236, %v4397
  %v4878 = vmul.f32 %v237, %v4402
  %v4879 = vmul.f32 %v238, %v4402
  %v4880 = vmul.f32 %v239, %v4407
  %v4881 = vmul.f32 %v240, %v4407
  %v4882 = vmul.f32 %v241, %v4412
  %v4883 = vmul.f32 %v242, %v4412
  %v4884 = vmul.f32 %v243, %v4417
  %v4885 = vmul.f32 %v244, %v4417
  %v4886 = vmul.f32 %v245, %v4422
  %v4887 = vmul.f32 %v246, %v4422
  %v4888 = vmul.f32 %v247, %v4427
  %v4889 = vmul.f32 %v248, %v4427
  %v4890 = vmul.f32 %v249, %v4432
  %v4891 = vmul.f32 %v250, %v4432
  %v4892 = vmul.f32 %v251, %v4437
  %v4893 = vmul.f32 %v252, %v4437
  %v4894 = vmul.f32 %v253, %v4442
  %v4895 = vmul.f32 %v254, %v4442
  %v4896 = vmul.f32 %v255, %v4447
  %v4897 = vmul.f32 %v256, %v4447
  %v4898 = vmul.f32 %v257, %v4452
  %v4899 = vmul.f32 %v258, %v4452
  %v4900 = vmul.f32 %v259, %v4457
  %v4901 = vmul.f32 %v260, %v4457
  %v4902 = vmul.f32 %v261, %v4462
  %v4903 = vmul.f32 %v262, %v4462
  %v4904 = vmul.f32 %v263, %v4467
  %v4905 = vmul.f32 %v264, %v4467
  %v4906 = vmul.f32 %v265, %v4472
  %v4907 = vmul.f32 %v266, %v4472
  %v4908 = vmul.f32 %v267, %v4477
  %v4909 = vmul.f32 %v268, %v4477
  %v4910 = vmul.f32 %v269, %v4482
  %v4911 = vmul.f32 %v270, %v4482
  %v4912 = vmul.f32 %v271, %v4487
  %v4913 = vmul.f32 %v272, %v4487
  %v4914 = vmul.f32 %v273, %v4492
  %v4915 = vmul.f32 %v274, %v4492
  %v4916 = vmul.f32 %v275, %v4497
  %v4917 = vmul.f32 %v276, %v4497
  %v4918 = vmul.f32 %v277, %v4502
  %v4919 = vmul.f32 %v278, %v4502
  %v4920 = vmul.f32 %v279, %v4507
  %v4921 = vmul.f32 %v280, %v4507
  %v4922 = vmul.f32 %v281, %v4512
  %v4923 = vmul.f32 %v282, %v4512
  %v4924 = vmul.f32 %v283, %v4517
  %v4925 = vmul.f32 %v284, %v4517
  %v4926 = vmul.f32 %v285, %v4522
  %v4927 = vmul.f32 %v286, %v4522
  %v4928 = vmul.f32 %v287, %v4527
  %v4929 = vmul.f32 %v288, %v4527
  %v4930 = vmul.f32 %v289, %v4532
  %v4931 = vmul.f32 %v290, %v4532
  %v4932 = vmul.f32 %v291, %v4537
  %v4933 = vmul.f32 %v292, %v4537
  %v4934 = vmul.f32 %v293, %v4542
  %v4935 = vmul.f32 %v294, %v4542
  %v4936 = vmul.f32 %v295, %v4547
  %v4937 = vmul.f32 %v296, %v4547
  %v4938 = vmul.f32 %v297, %v4552
  %v4939 = vmul.f32 %v298, %v4552
  %v4940 = vmul.f32 %v299, %v4557
  %v4941 = vmul.f32 %v300, %v4557
  %v4942 = vmul.f32 %v301, %v4562
  %v4943 = vmul.f32 %v302, %v4562
  %v4944 = vmul.f32 %v303, %v4567
  %v4945 = vmul.f32 %v304, %v4567
  %v4946 = vmul.f32 %v305, %v4572
  %v4947 = vmul.f32 %v306, %v4572
  %v4948 = vmul.f32 %v307, %v4577
  %v4949 = vmul.f32 %v308, %v4577
  %v4950 = vmul.f32 %v309, %v4582
  %v4951 = vmul.f32 %v310, %v4582
  %v4952 = vmul.f32 %v311, %v4587
  %v4953 = vmul.f32 %v312, %v4587
  %v4954 = vmul.f32 %v313, %v4592
  %v4955 = vmul.f32 %v314, %v4592
  %v4956 = vmul.f32 %v315, %v4597
  %v4957 = vmul.f32 %v316, %v4597
  %v4958 = vmul.f32 %v317, %v4602
  %v4959 = vmul.f32 %v318, %v4602
  %v4960 = vmul.f32 %v319, %v4607
  %v4961 = vmul.f32 %v320, %v4607
  %v4962 = vmul.f32 %v321, %v4612
  %v4963 = vmul.f32 %v322, %v4612
  %v4964 = vmul.f32 %v323, %v4617
  %v4965 = vmul.f32 %v324, %v4617
  %v4966 = vmul.f32 %v325, %v4622
  %v4967 = vmul.f32 %v326, %v4622
  %v4968 = vmul.f32 %v327, %v4627
  %v4969 = vmul.f32 %v328, %v4627
  %v4970 = vmul.f32 %v329, %v4632
  %v4971 = vmul.f32 %v330, %v4632
  %v4972 = vmul.f32 %v331, %v4637
  %v4973 = vmul.f32 %v332, %v4637
  %v4974 = vmul.f32 %v333, %v4642
  %v4975 = vmul.f32 %v334, %v4642
  %v4976 = vmul.f32 %v335, %v4647
  %v4977 = vmul.f32 %v336, %v4647
  %v4978 = vmul.f32 %v337, %v4652
  %v4979 = vmul.f32 %v338, %v4652
  %v4980 = vmul.f32 %v339, %v4657
  %v4981 = vmul.f32 %v340, %v4657
  %v4982 = vmul.f32 %v341, %v4662
  %v4983 = vmul.f32 %v342, %v4662
  %4985 = vset.pattern.permute.xlu0 0
  %4986 = vperm.xlu0 %4985, %v3704
  %v4987 = vpop.permute.xlu0 %4986
  %4990 = vset.pattern.permute.xlu0 0
  %4991 = vperm.xlu0 %4990, %v3705
  %v4992 = vpop.permute.xlu0 %4991
  %4995 = vset.pattern.permute.xlu0 0
  %4996 = vperm.xlu0 %4995, %v3706
  %v4997 = vpop.permute.xlu0 %4996
  %5000 = vset.pattern.permute.xlu0 0
  %5001 = vperm.xlu0 %5000, %v3707
  %v5002 = vpop.permute.xlu0 %5001
  %5005 = vset.pattern.permute.xlu0 0
  %5006 = vperm.xlu0 %5005, %v3708
  %v5007 = vpop.permute.xlu0 %5006
  %5010 = vset.pattern.permute.xlu0 0
  %5011 = vperm.xlu0 %5010, %v3709
  %v5012 = vpop.permute.xlu0 %5011
  %5015 = vset.pattern.permute.xlu0 0
  %5016 = vperm.xlu0 %5015, %v3710
  %v5017 = vpop.permute.xlu0 %5016
  %5020 = vset.pattern.permute.xlu0 0
  %5021 = vperm.xlu0 %5020, %v3711
  %v5022 = vpop.permute.xlu0 %5021
  %5025 = vset.pattern.permute.xlu0 0
  %5026 = vperm.xlu0 %5025, %v3712
  %v5027 = vpop.permute.xlu0 %5026
  %5030 = vset.pattern.permute.xlu0 0
  %5031 = vperm.xlu0 %5030, %v3713
  %v5032 = vpop.permute.xlu0 %5031
  %5035 = vset.pattern.permute.xlu0 0
  %5036 = vperm.xlu0 %5035, %v3714
  %v5037 = vpop.permute.xlu0 %5036
  %5040 = vset.pattern.permute.xlu0 0
  %5041 = vperm.xlu0 %5040, %v3715
  %v5042 = vpop.permute.xlu0 %5041
  %5045 = vset.pattern.permute.xlu0 0
  %5046 = vperm.xlu0 %5045, %v3716
  %v5047 = vpop.permute.xlu0 %5046
  %5050 = vset.pattern.permute.xlu0 0
  %5051 = vperm.xlu0 %5050, %v3717
  %v5052 = vpop.permute.xlu0 %5051
  %5055 = vset.pattern.permute.xlu0 0
  %5056 = vperm.xlu0 %5055, %v3718
  %v5057 = vpop.permute.xlu0 %5056
  %5060 = vset.pattern.permute.xlu0 0
  %5061 = vperm.xlu0 %5060, %v3719
  %v5062 = vpop.permute.xlu0 %5061
  %5065 = vset.pattern.permute.xlu0 0
  %5066 = vperm.xlu0 %5065, %v3720
  %v5067 = vpop.permute.xlu0 %5066
  %5070 = vset.pattern.permute.xlu0 0
  %5071 = vperm.xlu0 %5070, %v3721
  %v5072 = vpop.permute.xlu0 %5071
  %5075 = vset.pattern.permute.xlu0 0
  %5076 = vperm.xlu0 %5075, %v3722
  %v5077 = vpop.permute.xlu0 %5076
  %5080 = vset.pattern.permute.xlu0 0
  %5081 = vperm.xlu0 %5080, %v3723
  %v5082 = vpop.permute.xlu0 %5081
  %5085 = vset.pattern.permute.xlu0 0
  %5086 = vperm.xlu0 %5085, %v3724
  %v5087 = vpop.permute.xlu0 %5086
  %5090 = vset.pattern.permute.xlu0 0
  %5091 = vperm.xlu0 %5090, %v3725
  %v5092 = vpop.permute.xlu0 %5091
  %5095 = vset.pattern.permute.xlu0 0
  %5096 = vperm.xlu0 %5095, %v3726
  %v5097 = vpop.permute.xlu0 %5096
  %5100 = vset.pattern.permute.xlu0 0
  %5101 = vperm.xlu0 %5100, %v3727
  %v5102 = vpop.permute.xlu0 %5101
  %5105 = vset.pattern.permute.xlu0 0
  %5106 = vperm.xlu0 %5105, %v3728
  %v5107 = vpop.permute.xlu0 %5106
  %5110 = vset.pattern.permute.xlu0 0
  %5111 = vperm.xlu0 %5110, %v3729
  %v5112 = vpop.permute.xlu0 %5111
  %5115 = vset.pattern.permute.xlu0 0
  %5116 = vperm.xlu0 %5115, %v3730
  %v5117 = vpop.permute.xlu0 %5116
  %5120 = vset.pattern.permute.xlu0 0
  %5121 = vperm.xlu0 %5120, %v3731
  %v5122 = vpop.permute.xlu0 %5121
  %5125 = vset.pattern.permute.xlu0 0
  %5126 = vperm.xlu0 %5125, %v3732
  %v5127 = vpop.permute.xlu0 %5126
  %5130 = vset.pattern.permute.xlu0 0
  %5131 = vperm.xlu0 %5130, %v3733
  %v5132 = vpop.permute.xlu0 %5131
  %5135 = vset.pattern.permute.xlu0 0
  %5136 = vperm.xlu0 %5135, %v3734
  %v5137 = vpop.permute.xlu0 %5136
  %5140 = vset.pattern.permute.xlu0 0
  %5141 = vperm.xlu0 %5140, %v3735
  %v5142 = vpop.permute.xlu0 %5141
  %5145 = vset.pattern.permute.xlu0 0
  %5146 = vperm.xlu0 %5145, %v3736
  %v5147 = vpop.permute.xlu0 %5146
  %5150 = vset.pattern.permute.xlu0 0
  %5151 = vperm.xlu0 %5150, %v3737
  %v5152 = vpop.permute.xlu0 %5151
  %5155 = vset.pattern.permute.xlu0 0
  %5156 = vperm.xlu0 %5155, %v3738
  %v5157 = vpop.permute.xlu0 %5156
  %5160 = vset.pattern.permute.xlu0 0
  %5161 = vperm.xlu0 %5160, %v3739
  %v5162 = vpop.permute.xlu0 %5161
  %5165 = vset.pattern.permute.xlu0 0
  %5166 = vperm.xlu0 %5165, %v3740
  %v5167 = vpop.permute.xlu0 %5166
  %5170 = vset.pattern.permute.xlu0 0
  %5171 = vperm.xlu0 %5170, %v3741
  %v5172 = vpop.permute.xlu0 %5171
  %5175 = vset.pattern.permute.xlu0 0
  %5176 = vperm.xlu0 %5175, %v3742
  %v5177 = vpop.permute.xlu0 %5176
  %5180 = vset.pattern.permute.xlu0 0
  %5181 = vperm.xlu0 %5180, %v3743
  %v5182 = vpop.permute.xlu0 %5181
  %5185 = vset.pattern.permute.xlu0 0
  %5186 = vperm.xlu0 %5185, %v3744
  %v5187 = vpop.permute.xlu0 %5186
  %5190 = vset.pattern.permute.xlu0 0
  %5191 = vperm.xlu0 %5190, %v3745
  %v5192 = vpop.permute.xlu0 %5191
  %5195 = vset.pattern.permute.xlu0 0
  %5196 = vperm.xlu0 %5195, %v3746
  %v5197 = vpop.permute.xlu0 %5196
  %5200 = vset.pattern.permute.xlu0 0
  %5201 = vperm.xlu0 %5200, %v3747
  %v5202 = vpop.permute.xlu0 %5201
  %5205 = vset.pattern.permute.xlu0 0
  %5206 = vperm.xlu0 %5205, %v3748
  %v5207 = vpop.permute.xlu0 %5206
  %5210 = vset.pattern.permute.xlu0 0
  %5211 = vperm.xlu0 %5210, %v3749
  %v5212 = vpop.permute.xlu0 %5211
  %5215 = vset.pattern.permute.xlu0 0
  %5216 = vperm.xlu0 %5215, %v3750
  %v5217 = vpop.permute.xlu0 %5216
  %5220 = vset.pattern.permute.xlu0 0
  %5221 = vperm.xlu0 %5220, %v3751
  %v5222 = vpop.permute.xlu0 %5221
  %5225 = vset.pattern.permute.xlu0 0
  %5226 = vperm.xlu0 %5225, %v3752
  %v5227 = vpop.permute.xlu0 %5226
  %5230 = vset.pattern.permute.xlu0 0
  %5231 = vperm.xlu0 %5230, %v3753
  %v5232 = vpop.permute.xlu0 %5231
  %5235 = vset.pattern.permute.xlu0 0
  %5236 = vperm.xlu0 %5235, %v3754
  %v5237 = vpop.permute.xlu0 %5236
  %5240 = vset.pattern.permute.xlu0 0
  %5241 = vperm.xlu0 %5240, %v3755
  %v5242 = vpop.permute.xlu0 %5241
  %5245 = vset.pattern.permute.xlu0 0
  %5246 = vperm.xlu0 %5245, %v3756
  %v5247 = vpop.permute.xlu0 %5246
  %5250 = vset.pattern.permute.xlu0 0
  %5251 = vperm.xlu0 %5250, %v3757
  %v5252 = vpop.permute.xlu0 %5251
  %5255 = vset.pattern.permute.xlu0 0
  %5256 = vperm.xlu0 %5255, %v3758
  %v5257 = vpop.permute.xlu0 %5256
  %5260 = vset.pattern.permute.xlu0 0
  %5261 = vperm.xlu0 %5260, %v3759
  %v5262 = vpop.permute.xlu0 %5261
  %5265 = vset.pattern.permute.xlu0 0
  %5266 = vperm.xlu0 %5265, %v3760
  %v5267 = vpop.permute.xlu0 %5266
  %5270 = vset.pattern.permute.xlu0 0
  %5271 = vperm.xlu0 %5270, %v3761
  %v5272 = vpop.permute.xlu0 %5271
  %5275 = vset.pattern.permute.xlu0 0
  %5276 = vperm.xlu0 %5275, %v3762
  %v5277 = vpop.permute.xlu0 %5276
  %5280 = vset.pattern.permute.xlu0 0
  %5281 = vperm.xlu0 %5280, %v3763
  %v5282 = vpop.permute.xlu0 %5281
  %5285 = vset.pattern.permute.xlu0 0
  %5286 = vperm.xlu0 %5285, %v3764
  %v5287 = vpop.permute.xlu0 %5286
  %5290 = vset.pattern.permute.xlu0 0
  %5291 = vperm.xlu0 %5290, %v3765
  %v5292 = vpop.permute.xlu0 %5291
  %5295 = vset.pattern.permute.xlu0 0
  %5296 = vperm.xlu0 %5295, %v3766
  %v5297 = vpop.permute.xlu0 %5296
  %5300 = vset.pattern.permute.xlu0 0
  %5301 = vperm.xlu0 %5300, %v3767
  %v5302 = vpop.permute.xlu0 %5301
  %5305 = vset.pattern.permute.xlu0 0
  %5306 = vperm.xlu0 %5305, %v3768
  %v5307 = vpop.permute.xlu0 %5306
  %5310 = vset.pattern.permute.xlu0 0
  %5311 = vperm.xlu0 %5310, %v3769
  %v5312 = vpop.permute.xlu0 %5311
  %5315 = vset.pattern.permute.xlu0 0
  %5316 = vperm.xlu0 %5315, %v3770
  %v5317 = vpop.permute.xlu0 %5316
  %5320 = vset.pattern.permute.xlu0 0
  %5321 = vperm.xlu0 %5320, %v3771
  %v5322 = vpop.permute.xlu0 %5321
  %5325 = vset.pattern.permute.xlu0 0
  %5326 = vperm.xlu0 %5325, %v3772
  %v5327 = vpop.permute.xlu0 %5326
  %5330 = vset.pattern.permute.xlu0 0
  %5331 = vperm.xlu0 %5330, %v3773
  %v5332 = vpop.permute.xlu0 %5331
  %5335 = vset.pattern.permute.xlu0 0
  %5336 = vperm.xlu0 %5335, %v3774
  %v5337 = vpop.permute.xlu0 %5336
  %5340 = vset.pattern.permute.xlu0 0
  %5341 = vperm.xlu0 %5340, %v3775
  %v5342 = vpop.permute.xlu0 %5341
  %5345 = vset.pattern.permute.xlu0 0
  %5346 = vperm.xlu0 %5345, %v3776
  %v5347 = vpop.permute.xlu0 %5346
  %5350 = vset.pattern.permute.xlu0 0
  %5351 = vperm.xlu0 %5350, %v3777
  %v5352 = vpop.permute.xlu0 %5351
  %5355 = vset.pattern.permute.xlu0 0
  %5356 = vperm.xlu0 %5355, %v3778
  %v5357 = vpop.permute.xlu0 %5356
  %5360 = vset.pattern.permute.xlu0 0
  %5361 = vperm.xlu0 %5360, %v3779
  %v5362 = vpop.permute.xlu0 %5361
  %5365 = vset.pattern.permute.xlu0 0
  %5366 = vperm.xlu0 %5365, %v3780
  %v5367 = vpop.permute.xlu0 %5366
  %5370 = vset.pattern.permute.xlu0 0
  %5371 = vperm.xlu0 %5370, %v3781
  %v5372 = vpop.permute.xlu0 %5371
  %5375 = vset.pattern.permute.xlu0 0
  %5376 = vperm.xlu0 %5375, %v3782
  %v5377 = vpop.permute.xlu0 %5376
  %5380 = vset.pattern.permute.xlu0 0
  %5381 = vperm.xlu0 %5380, %v3783
  %v5382 = vpop.permute.xlu0 %5381
  %5385 = vset.pattern.permute.xlu0 0
  %5386 = vperm.xlu0 %5385, %v3784
  %v5387 = vpop.permute.xlu0 %5386
  %5390 = vset.pattern.permute.xlu0 0
  %5391 = vperm.xlu0 %5390, %v3785
  %v5392 = vpop.permute.xlu0 %5391
  %5395 = vset.pattern.permute.xlu0 0
  %5396 = vperm.xlu0 %5395, %v3786
  %v5397 = vpop.permute.xlu0 %5396
  %5400 = vset.pattern.permute.xlu0 0
  %5401 = vperm.xlu0 %5400, %v3787
  %v5402 = vpop.permute.xlu0 %5401
  %5405 = vset.pattern.permute.xlu0 0
  %5406 = vperm.xlu0 %5405, %v3788
  %v5407 = vpop.permute.xlu0 %5406
  %5410 = vset.pattern.permute.xlu0 0
  %5411 = vperm.xlu0 %5410, %v3789
  %v5412 = vpop.permute.xlu0 %5411
  %5415 = vset.pattern.permute.xlu0 0
  %5416 = vperm.xlu0 %5415, %v3790
  %v5417 = vpop.permute.xlu0 %5416
  %5420 = vset.pattern.permute.xlu0 0
  %5421 = vperm.xlu0 %5420, %v3791
  %v5422 = vpop.permute.xlu0 %5421
  %5425 = vset.pattern.permute.xlu0 0
  %5426 = vperm.xlu0 %5425, %v3792
  %v5427 = vpop.permute.xlu0 %5426
  %5430 = vset.pattern.permute.xlu0 0
  %5431 = vperm.xlu0 %5430, %v3793
  %v5432 = vpop.permute.xlu0 %5431
  %5435 = vset.pattern.permute.xlu0 0
  %5436 = vperm.xlu0 %5435, %v3794
  %v5437 = vpop.permute.xlu0 %5436
  %5440 = vset.pattern.permute.xlu0 0
  %5441 = vperm.xlu0 %5440, %v3795
  %v5442 = vpop.permute.xlu0 %5441
  %5445 = vset.pattern.permute.xlu0 0
  %5446 = vperm.xlu0 %5445, %v3796
  %v5447 = vpop.permute.xlu0 %5446
  %5450 = vset.pattern.permute.xlu0 0
  %5451 = vperm.xlu0 %5450, %v3797
  %v5452 = vpop.permute.xlu0 %5451
  %5455 = vset.pattern.permute.xlu0 0
  %5456 = vperm.xlu0 %5455, %v3798
  %v5457 = vpop.permute.xlu0 %5456
  %5460 = vset.pattern.permute.xlu0 0
  %5461 = vperm.xlu0 %5460, %v3799
  %v5462 = vpop.permute.xlu0 %5461
  %5465 = vset.pattern.permute.xlu0 0
  %5466 = vperm.xlu0 %5465, %v3800
  %v5467 = vpop.permute.xlu0 %5466
  %5470 = vset.pattern.permute.xlu0 0
  %5471 = vperm.xlu0 %5470, %v3801
  %v5472 = vpop.permute.xlu0 %5471
  %5475 = vset.pattern.permute.xlu0 0
  %5476 = vperm.xlu0 %5475, %v3802
  %v5477 = vpop.permute.xlu0 %5476
  %5480 = vset.pattern.permute.xlu0 0
  %5481 = vperm.xlu0 %5480, %v3803
  %v5482 = vpop.permute.xlu0 %5481
  %5485 = vset.pattern.permute.xlu0 0
  %5486 = vperm.xlu0 %5485, %v3804
  %v5487 = vpop.permute.xlu0 %5486
  %5490 = vset.pattern.permute.xlu0 0
  %5491 = vperm.xlu0 %5490, %v3805
  %v5492 = vpop.permute.xlu0 %5491
  %5495 = vset.pattern.permute.xlu0 0
  %5496 = vperm.xlu0 %5495, %v3806
  %v5497 = vpop.permute.xlu0 %5496
  %5500 = vset.pattern.permute.xlu0 0
  %5501 = vperm.xlu0 %5500, %v3807
  %v5502 = vpop.permute.xlu0 %5501
  %5505 = vset.pattern.permute.xlu0 0
  %5506 = vperm.xlu0 %5505, %v3808
  %v5507 = vpop.permute.xlu0 %5506
  %5510 = vset.pattern.permute.xlu0 0
  %5511 = vperm.xlu0 %5510, %v3809
  %v5512 = vpop.permute.xlu0 %5511
  %5515 = vset.pattern.permute.xlu0 0
  %5516 = vperm.xlu0 %5515, %v3810
  %v5517 = vpop.permute.xlu0 %5516
  %5520 = vset.pattern.permute.xlu0 0
  %5521 = vperm.xlu0 %5520, %v3811
  %v5522 = vpop.permute.xlu0 %5521
  %5525 = vset.pattern.permute.xlu0 0
  %5526 = vperm.xlu0 %5525, %v3812
  %v5527 = vpop.permute.xlu0 %5526
  %5530 = vset.pattern.permute.xlu0 0
  %5531 = vperm.xlu0 %5530, %v3813
  %v5532 = vpop.permute.xlu0 %5531
  %5535 = vset.pattern.permute.xlu0 0
  %5536 = vperm.xlu0 %5535, %v3814
  %v5537 = vpop.permute.xlu0 %5536
  %5540 = vset.pattern.permute.xlu0 0
  %5541 = vperm.xlu0 %5540, %v3815
  %v5542 = vpop.permute.xlu0 %5541
  %5545 = vset.pattern.permute.xlu0 0
  %5546 = vperm.xlu0 %5545, %v3816
  %v5547 = vpop.permute.xlu0 %5546
  %5550 = vset.pattern.permute.xlu0 0
  %5551 = vperm.xlu0 %5550, %v3817
  %v5552 = vpop.permute.xlu0 %5551
  %5555 = vset.pattern.permute.xlu0 0
  %5556 = vperm.xlu0 %5555, %v3818
  %v5557 = vpop.permute.xlu0 %5556
  %5560 = vset.pattern.permute.xlu0 0
  %5561 = vperm.xlu0 %5560, %v3819
  %v5562 = vpop.permute.xlu0 %5561
  %5565 = vset.pattern.permute.xlu0 0
  %5566 = vperm.xlu0 %5565, %v3820
  %v5567 = vpop.permute.xlu0 %5566
  %5570 = vset.pattern.permute.xlu0 0
  %5571 = vperm.xlu0 %5570, %v3821
  %v5572 = vpop.permute.xlu0 %5571
  %5575 = vset.pattern.permute.xlu0 0
  %5576 = vperm.xlu0 %5575, %v3822
  %v5577 = vpop.permute.xlu0 %5576
  %5580 = vset.pattern.permute.xlu0 0
  %5581 = vperm.xlu0 %5580, %v3823
  %v5582 = vpop.permute.xlu0 %5581
  %5585 = vset.pattern.permute.xlu0 0
  %5586 = vperm.xlu0 %5585, %v3824
  %v5587 = vpop.permute.xlu0 %5586
  %5590 = vset.pattern.permute.xlu0 0
  %5591 = vperm.xlu0 %5590, %v3825
  %v5592 = vpop.permute.xlu0 %5591
  %5595 = vset.pattern.permute.xlu0 0
  %5596 = vperm.xlu0 %5595, %v3826
  %v5597 = vpop.permute.xlu0 %5596
  %5600 = vset.pattern.permute.xlu0 0
  %5601 = vperm.xlu0 %5600, %v3827
  %v5602 = vpop.permute.xlu0 %5601
  %5605 = vset.pattern.permute.xlu0 0
  %5606 = vperm.xlu0 %5605, %v3828
  %v5607 = vpop.permute.xlu0 %5606
  %5610 = vset.pattern.permute.xlu0 0
  %5611 = vperm.xlu0 %5610, %v3829
  %v5612 = vpop.permute.xlu0 %5611
  %5615 = vset.pattern.permute.xlu0 0
  %5616 = vperm.xlu0 %5615, %v3830
  %v5617 = vpop.permute.xlu0 %5616
  %5620 = vset.pattern.permute.xlu0 0
  %5621 = vperm.xlu0 %5620, %v3831
  %v5622 = vpop.permute.xlu0 %5621
  %5625 = vset.pattern.permute.xlu0 0
  %5626 = vperm.xlu0 %5625, %v3832
  %v5627 = vpop.permute.xlu0 %5626
  %5630 = vset.pattern.permute.xlu0 0
  %5631 = vperm.xlu0 %5630, %v3833
  %v5632 = vpop.permute.xlu0 %5631
  %5635 = vset.pattern.permute.xlu0 0
  %5636 = vperm.xlu0 %5635, %v3834
  %v5637 = vpop.permute.xlu0 %5636
  %5640 = vset.pattern.permute.xlu0 0
  %5641 = vperm.xlu0 %5640, %v3835
  %v5642 = vpop.permute.xlu0 %5641
  %5645 = vset.pattern.permute.xlu0 0
  %5646 = vperm.xlu0 %5645, %v3836
  %v5647 = vpop.permute.xlu0 %5646
  %5650 = vset.pattern.permute.xlu0 0
  %5651 = vperm.xlu0 %5650, %v3837
  %v5652 = vpop.permute.xlu0 %5651
  %5655 = vset.pattern.permute.xlu0 0
  %5656 = vperm.xlu0 %5655, %v3838
  %v5657 = vpop.permute.xlu0 %5656
  %5660 = vset.pattern.permute.xlu0 0
  %5661 = vperm.xlu0 %5660, %v3839
  %v5662 = vpop.permute.xlu0 %5661
  %5665 = vset.pattern.permute.xlu0 0
  %5666 = vperm.xlu0 %5665, %v3840
  %v5667 = vpop.permute.xlu0 %5666
  %5670 = vset.pattern.permute.xlu0 0
  %5671 = vperm.xlu0 %5670, %v3841
  %v5672 = vpop.permute.xlu0 %5671
  %5675 = vset.pattern.permute.xlu0 0
  %5676 = vperm.xlu0 %5675, %v3842
  %v5677 = vpop.permute.xlu0 %5676
  %5680 = vset.pattern.permute.xlu0 0
  %5681 = vperm.xlu0 %5680, %v3843
  %v5682 = vpop.permute.xlu0 %5681
  %5685 = vset.pattern.permute.xlu0 0
  %5686 = vperm.xlu0 %5685, %v3844
  %v5687 = vpop.permute.xlu0 %5686
  %5690 = vset.pattern.permute.xlu0 0
  %5691 = vperm.xlu0 %5690, %v3845
  %v5692 = vpop.permute.xlu0 %5691
  %5695 = vset.pattern.permute.xlu0 0
  %5696 = vperm.xlu0 %5695, %v3846
  %v5697 = vpop.permute.xlu0 %5696
  %5700 = vset.pattern.permute.xlu0 0
  %5701 = vperm.xlu0 %5700, %v3847
  %v5702 = vpop.permute.xlu0 %5701
  %5705 = vset.pattern.permute.xlu0 0
  %5706 = vperm.xlu0 %5705, %v3848
  %v5707 = vpop.permute.xlu0 %5706
  %5710 = vset.pattern.permute.xlu0 0
  %5711 = vperm.xlu0 %5710, %v3849
  %v5712 = vpop.permute.xlu0 %5711
  %5715 = vset.pattern.permute.xlu0 0
  %5716 = vperm.xlu0 %5715, %v3850
  %v5717 = vpop.permute.xlu0 %5716
  %5720 = vset.pattern.permute.xlu0 0
  %5721 = vperm.xlu0 %5720, %v3851
  %v5722 = vpop.permute.xlu0 %5721
  %5725 = vset.pattern.permute.xlu0 0
  %5726 = vperm.xlu0 %5725, %v3852
  %v5727 = vpop.permute.xlu0 %5726
  %5730 = vset.pattern.permute.xlu0 0
  %5731 = vperm.xlu0 %5730, %v3853
  %v5732 = vpop.permute.xlu0 %5731
  %5735 = vset.pattern.permute.xlu0 0
  %5736 = vperm.xlu0 %5735, %v3854
  %v5737 = vpop.permute.xlu0 %5736
  %5740 = vset.pattern.permute.xlu0 0
  %5741 = vperm.xlu0 %5740, %v3855
  %v5742 = vpop.permute.xlu0 %5741
  %5745 = vset.pattern.permute.xlu0 0
  %5746 = vperm.xlu0 %5745, %v3856
  %v5747 = vpop.permute.xlu0 %5746
  %5750 = vset.pattern.permute.xlu0 0
  %5751 = vperm.xlu0 %5750, %v3857
  %v5752 = vpop.permute.xlu0 %5751
  %5755 = vset.pattern.permute.xlu0 0
  %5756 = vperm.xlu0 %5755, %v3858
  %v5757 = vpop.permute.xlu0 %5756
  %5760 = vset.pattern.permute.xlu0 0
  %5761 = vperm.xlu0 %5760, %v3859
  %v5762 = vpop.permute.xlu0 %5761
  %5765 = vset.pattern.permute.xlu0 0
  %5766 = vperm.xlu0 %5765, %v3860
  %v5767 = vpop.permute.xlu0 %5766
  %5770 = vset.pattern.permute.xlu0 0
  %5771 = vperm.xlu0 %5770, %v3861
  %v5772 = vpop.permute.xlu0 %5771
  %5775 = vset.pattern.permute.xlu0 0
  %5776 = vperm.xlu0 %5775, %v3862
  %v5777 = vpop.permute.xlu0 %5776
  %5780 = vset.pattern.permute.xlu0 0
  %5781 = vperm.xlu0 %5780, %v3863
  %v5782 = vpop.permute.xlu0 %5781
  %v5784 = vadd.f32 %v4664, %v4987
  %v5785 = vadd.f32 %v4665, %v4987
  %v5786 = vadd.f32 %v4666, %v4992
  %v5787 = vadd.f32 %v4667, %v4992
  %v5788 = vadd.f32 %v4668, %v4997
  %v5789 = vadd.f32 %v4669, %v4997
  %v5790 = vadd.f32 %v4670, %v5002
  %v5791 = vadd.f32 %v4671, %v5002
  %v5792 = vadd.f32 %v4672, %v5007
  %v5793 = vadd.f32 %v4673, %v5007
  %v5794 = vadd.f32 %v4674, %v5012
  %v5795 = vadd.f32 %v4675, %v5012
  %v5796 = vadd.f32 %v4676, %v5017
  %v5797 = vadd.f32 %v4677, %v5017
  %v5798 = vadd.f32 %v4678, %v5022
  %v5799 = vadd.f32 %v4679, %v5022
  %v5800 = vadd.f32 %v4680, %v5027
  %v5801 = vadd.f32 %v4681, %v5027
  %v5802 = vadd.f32 %v4682, %v5032
  %v5803 = vadd.f32 %v4683, %v5032
  %v5804 = vadd.f32 %v4684, %v5037
  %v5805 = vadd.f32 %v4685, %v5037
  %v5806 = vadd.f32 %v4686, %v5042
  %v5807 = vadd.f32 %v4687, %v5042
  %v5808 = vadd.f32 %v4688, %v5047
  %v5809 = vadd.f32 %v4689, %v5047
  %v5810 = vadd.f32 %v4690, %v5052
  %v5811 = vadd.f32 %v4691, %v5052
  %v5812 = vadd.f32 %v4692, %v5057
  %v5813 = vadd.f32 %v4693, %v5057
  %v5814 = vadd.f32 %v4694, %v5062
  %v5815 = vadd.f32 %v4695, %v5062
  %v5816 = vadd.f32 %v4696, %v5067
  %v5817 = vadd.f32 %v4697, %v5067
  %v5818 = vadd.f32 %v4698, %v5072
  %v5819 = vadd.f32 %v4699, %v5072
  %v5820 = vadd.f32 %v4700, %v5077
  %v5821 = vadd.f32 %v4701, %v5077
  %v5822 = vadd.f32 %v4702, %v5082
  %v5823 = vadd.f32 %v4703, %v5082
  %v5824 = vadd.f32 %v4704, %v5087
  %v5825 = vadd.f32 %v4705, %v5087
  %v5826 = vadd.f32 %v4706, %v5092
  %v5827 = vadd.f32 %v4707, %v5092
  %v5828 = vadd.f32 %v4708, %v5097
  %v5829 = vadd.f32 %v4709, %v5097
  %v5830 = vadd.f32 %v4710, %v5102
  %v5831 = vadd.f32 %v4711, %v5102
  %v5832 = vadd.f32 %v4712, %v5107
  %v5833 = vadd.f32 %v4713, %v5107
  %v5834 = vadd.f32 %v4714, %v5112
  %v5835 = vadd.f32 %v4715, %v5112
  %v5836 = vadd.f32 %v4716, %v5117
  %v5837 = vadd.f32 %v4717, %v5117
  %v5838 = vadd.f32 %v4718, %v5122
  %v5839 = vadd.f32 %v4719, %v5122
  %v5840 = vadd.f32 %v4720, %v5127
  %v5841 = vadd.f32 %v4721, %v5127
  %v5842 = vadd.f32 %v4722, %v5132
  %v5843 = vadd.f32 %v4723, %v5132
  %v5844 = vadd.f32 %v4724, %v5137
  %v5845 = vadd.f32 %v4725, %v5137
  %v5846 = vadd.f32 %v4726, %v5142
  %v5847 = vadd.f32 %v4727, %v5142
  %v5848 = vadd.f32 %v4728, %v5147
  %v5849 = vadd.f32 %v4729, %v5147
  %v5850 = vadd.f32 %v4730, %v5152
  %v5851 = vadd.f32 %v4731, %v5152
  %v5852 = vadd.f32 %v4732, %v5157
  %v5853 = vadd.f32 %v4733, %v5157
  %v5854 = vadd.f32 %v4734, %v5162
  %v5855 = vadd.f32 %v4735, %v5162
  %v5856 = vadd.f32 %v4736, %v5167
  %v5857 = vadd.f32 %v4737, %v5167
  %v5858 = vadd.f32 %v4738, %v5172
  %v5859 = vadd.f32 %v4739, %v5172
  %v5860 = vadd.f32 %v4740, %v5177
  %v5861 = vadd.f32 %v4741, %v5177
  %v5862 = vadd.f32 %v4742, %v5182
  %v5863 = vadd.f32 %v4743, %v5182
  %v5864 = vadd.f32 %v4744, %v5187
  %v5865 = vadd.f32 %v4745, %v5187
  %v5866 = vadd.f32 %v4746, %v5192
  %v5867 = vadd.f32 %v4747, %v5192
  %v5868 = vadd.f32 %v4748, %v5197
  %v5869 = vadd.f32 %v4749, %v5197
  %v5870 = vadd.f32 %v4750, %v5202
  %v5871 = vadd.f32 %v4751, %v5202
  %v5872 = vadd.f32 %v4752, %v5207
  %v5873 = vadd.f32 %v4753, %v5207
  %v5874 = vadd.f32 %v4754, %v5212
  %v5875 = vadd.f32 %v4755, %v5212
  %v5876 = vadd.f32 %v4756, %v5217
  %v5877 = vadd.f32 %v4757, %v5217
  %v5878 = vadd.f32 %v4758, %v5222
  %v5879 = vadd.f32 %v4759, %v5222
  %v5880 = vadd.f32 %v4760, %v5227
  %v5881 = vadd.f32 %v4761, %v5227
  %v5882 = vadd.f32 %v4762, %v5232
  %v5883 = vadd.f32 %v4763, %v5232
  %v5884 = vadd.f32 %v4764, %v5237
  %v5885 = vadd.f32 %v4765, %v5237
  %v5886 = vadd.f32 %v4766, %v5242
  %v5887 = vadd.f32 %v4767, %v5242
  %v5888 = vadd.f32 %v4768, %v5247
  %v5889 = vadd.f32 %v4769, %v5247
  %v5890 = vadd.f32 %v4770, %v5252
  %v5891 = vadd.f32 %v4771, %v5252
  %v5892 = vadd.f32 %v4772, %v5257
  %v5893 = vadd.f32 %v4773, %v5257
  %v5894 = vadd.f32 %v4774, %v5262
  %v5895 = vadd.f32 %v4775, %v5262
  %v5896 = vadd.f32 %v4776, %v5267
  %v5897 = vadd.f32 %v4777, %v5267
  %v5898 = vadd.f32 %v4778, %v5272
  %v5899 = vadd.f32 %v4779, %v5272
  %v5900 = vadd.f32 %v4780, %v5277
  %v5901 = vadd.f32 %v4781, %v5277
  %v5902 = vadd.f32 %v4782, %v5282
  %v5903 = vadd.f32 %v4783, %v5282
  %v5904 = vadd.f32 %v4784, %v5287
  %v5905 = vadd.f32 %v4785, %v5287
  %v5906 = vadd.f32 %v4786, %v5292
  %v5907 = vadd.f32 %v4787, %v5292
  %v5908 = vadd.f32 %v4788, %v5297
  %v5909 = vadd.f32 %v4789, %v5297
  %v5910 = vadd.f32 %v4790, %v5302
  %v5911 = vadd.f32 %v4791, %v5302
  %v5912 = vadd.f32 %v4792, %v5307
  %v5913 = vadd.f32 %v4793, %v5307
  %v5914 = vadd.f32 %v4794, %v5312
  %v5915 = vadd.f32 %v4795, %v5312
  %v5916 = vadd.f32 %v4796, %v5317
  %v5917 = vadd.f32 %v4797, %v5317
  %v5918 = vadd.f32 %v4798, %v5322
  %v5919 = vadd.f32 %v4799, %v5322
  %v5920 = vadd.f32 %v4800, %v5327
  %v5921 = vadd.f32 %v4801, %v5327
  %v5922 = vadd.f32 %v4802, %v5332
  %v5923 = vadd.f32 %v4803, %v5332
  %v5924 = vadd.f32 %v4804, %v5337
  %v5925 = vadd.f32 %v4805, %v5337
  %v5926 = vadd.f32 %v4806, %v5342
  %v5927 = vadd.f32 %v4807, %v5342
  %v5928 = vadd.f32 %v4808, %v5347
  %v5929 = vadd.f32 %v4809, %v5347
  %v5930 = vadd.f32 %v4810, %v5352
  %v5931 = vadd.f32 %v4811, %v5352
  %v5932 = vadd.f32 %v4812, %v5357
  %v5933 = vadd.f32 %v4813, %v5357
  %v5934 = vadd.f32 %v4814, %v5362
  %v5935 = vadd.f32 %v4815, %v5362
  %v5936 = vadd.f32 %v4816, %v5367
  %v5937 = vadd.f32 %v4817, %v5367
  %v5938 = vadd.f32 %v4818, %v5372
  %v5939 = vadd.f32 %v4819, %v5372
  %v5940 = vadd.f32 %v4820, %v5377
  %v5941 = vadd.f32 %v4821, %v5377
  %v5942 = vadd.f32 %v4822, %v5382
  %v5943 = vadd.f32 %v4823, %v5382
  %v5944 = vadd.f32 %v4824, %v5387
  %v5945 = vadd.f32 %v4825, %v5387
  %v5946 = vadd.f32 %v4826, %v5392
  %v5947 = vadd.f32 %v4827, %v5392
  %v5948 = vadd.f32 %v4828, %v5397
  %v5949 = vadd.f32 %v4829, %v5397
  %v5950 = vadd.f32 %v4830, %v5402
  %v5951 = vadd.f32 %v4831, %v5402
  %v5952 = vadd.f32 %v4832, %v5407
  %v5953 = vadd.f32 %v4833, %v5407
  %v5954 = vadd.f32 %v4834, %v5412
  %v5955 = vadd.f32 %v4835, %v5412
  %v5956 = vadd.f32 %v4836, %v5417
  %v5957 = vadd.f32 %v4837, %v5417
  %v5958 = vadd.f32 %v4838, %v5422
  %v5959 = vadd.f32 %v4839, %v5422
  %v5960 = vadd.f32 %v4840, %v5427
  %v5961 = vadd.f32 %v4841, %v5427
  %v5962 = vadd.f32 %v4842, %v5432
  %v5963 = vadd.f32 %v4843, %v5432
  %v5964 = vadd.f32 %v4844, %v5437
  %v5965 = vadd.f32 %v4845, %v5437
  %v5966 = vadd.f32 %v4846, %v5442
  %v5967 = vadd.f32 %v4847, %v5442
  %v5968 = vadd.f32 %v4848, %v5447
  %v5969 = vadd.f32 %v4849, %v5447
  %v5970 = vadd.f32 %v4850, %v5452
  %v5971 = vadd.f32 %v4851, %v5452
  %v5972 = vadd.f32 %v4852, %v5457
  %v5973 = vadd.f32 %v4853, %v5457
  %v5974 = vadd.f32 %v4854, %v5462
  %v5975 = vadd.f32 %v4855, %v5462
  %v5976 = vadd.f32 %v4856, %v5467
  %v5977 = vadd.f32 %v4857, %v5467
  %v5978 = vadd.f32 %v4858, %v5472
  %v5979 = vadd.f32 %v4859, %v5472
  %v5980 = vadd.f32 %v4860, %v5477
  %v5981 = vadd.f32 %v4861, %v5477
  %v5982 = vadd.f32 %v4862, %v5482
  %v5983 = vadd.f32 %v4863, %v5482
  %v5984 = vadd.f32 %v4864, %v5487
  %v5985 = vadd.f32 %v4865, %v5487
  %v5986 = vadd.f32 %v4866, %v5492
  %v5987 = vadd.f32 %v4867, %v5492
  %v5988 = vadd.f32 %v4868, %v5497
  %v5989 = vadd.f32 %v4869, %v5497
  %v5990 = vadd.f32 %v4870, %v5502
  %v5991 = vadd.f32 %v4871, %v5502
  %v5992 = vadd.f32 %v4872, %v5507
  %v5993 = vadd.f32 %v4873, %v5507
  %v5994 = vadd.f32 %v4874, %v5512
  %v5995 = vadd.f32 %v4875, %v5512
  %v5996 = vadd.f32 %v4876, %v5517
  %v5997 = vadd.f32 %v4877, %v5517
  %v5998 = vadd.f32 %v4878, %v5522
  %v5999 = vadd.f32 %v4879, %v5522
  %v6000 = vadd.f32 %v4880, %v5527
  %v6001 = vadd.f32 %v4881, %v5527
  %v6002 = vadd.f32 %v4882, %v5532
  %v6003 = vadd.f32 %v4883, %v5532
  %v6004 = vadd.f32 %v4884, %v5537
  %v6005 = vadd.f32 %v4885, %v5537
  %v6006 = vadd.f32 %v4886, %v5542
  %v6007 = vadd.f32 %v4887, %v5542
  %v6008 = vadd.f32 %v4888, %v5547
  %v6009 = vadd.f32 %v4889, %v5547
  %v6010 = vadd.f32 %v4890, %v5552
  %v6011 = vadd.f32 %v4891, %v5552
  %v6012 = vadd.f32 %v4892, %v5557
  %v6013 = vadd.f32 %v4893, %v5557
  %v6014 = vadd.f32 %v4894, %v5562
  %v6015 = vadd.f32 %v4895, %v5562
  %v6016 = vadd.f32 %v4896, %v5567
  %v6017 = vadd.f32 %v4897, %v5567
  %v6018 = vadd.f32 %v4898, %v5572
  %v6019 = vadd.f32 %v4899, %v5572
  %v6020 = vadd.f32 %v4900, %v5577
  %v6021 = vadd.f32 %v4901, %v5577
  %v6022 = vadd.f32 %v4902, %v5582
  %v6023 = vadd.f32 %v4903, %v5582
  %v6024 = vadd.f32 %v4904, %v5587
  %v6025 = vadd.f32 %v4905, %v5587
  %v6026 = vadd.f32 %v4906, %v5592
  %v6027 = vadd.f32 %v4907, %v5592
  %v6028 = vadd.f32 %v4908, %v5597
  %v6029 = vadd.f32 %v4909, %v5597
  %v6030 = vadd.f32 %v4910, %v5602
  %v6031 = vadd.f32 %v4911, %v5602
  %v6032 = vadd.f32 %v4912, %v5607
  %v6033 = vadd.f32 %v4913, %v5607
  %v6034 = vadd.f32 %v4914, %v5612
  %v6035 = vadd.f32 %v4915, %v5612
  %v6036 = vadd.f32 %v4916, %v5617
  %v6037 = vadd.f32 %v4917, %v5617
  %v6038 = vadd.f32 %v4918, %v5622
  %v6039 = vadd.f32 %v4919, %v5622
  %v6040 = vadd.f32 %v4920, %v5627
  %v6041 = vadd.f32 %v4921, %v5627
  %v6042 = vadd.f32 %v4922, %v5632
  %v6043 = vadd.f32 %v4923, %v5632
  %v6044 = vadd.f32 %v4924, %v5637
  %v6045 = vadd.f32 %v4925, %v5637
  %v6046 = vadd.f32 %v4926, %v5642
  %v6047 = vadd.f32 %v4927, %v5642
  %v6048 = vadd.f32 %v4928, %v5647
  %v6049 = vadd.f32 %v4929, %v5647
  %v6050 = vadd.f32 %v4930, %v5652
  %v6051 = vadd.f32 %v4931, %v5652
  %v6052 = vadd.f32 %v4932, %v5657
  %v6053 = vadd.f32 %v4933, %v5657
  %v6054 = vadd.f32 %v4934, %v5662
  %v6055 = vadd.f32 %v4935, %v5662
  %v6056 = vadd.f32 %v4936, %v5667
  %v6057 = vadd.f32 %v4937, %v5667
  %v6058 = vadd.f32 %v4938, %v5672
  %v6059 = vadd.f32 %v4939, %v5672
  %v6060 = vadd.f32 %v4940, %v5677
  %v6061 = vadd.f32 %v4941, %v5677
  %v6062 = vadd.f32 %v4942, %v5682
  %v6063 = vadd.f32 %v4943, %v5682
  %v6064 = vadd.f32 %v4944, %v5687
  %v6065 = vadd.f32 %v4945, %v5687
  %v6066 = vadd.f32 %v4946, %v5692
  %v6067 = vadd.f32 %v4947, %v5692
  %v6068 = vadd.f32 %v4948, %v5697
  %v6069 = vadd.f32 %v4949, %v5697
  %v6070 = vadd.f32 %v4950, %v5702
  %v6071 = vadd.f32 %v4951, %v5702
  %v6072 = vadd.f32 %v4952, %v5707
  %v6073 = vadd.f32 %v4953, %v5707
  %v6074 = vadd.f32 %v4954, %v5712
  %v6075 = vadd.f32 %v4955, %v5712
  %v6076 = vadd.f32 %v4956, %v5717
  %v6077 = vadd.f32 %v4957, %v5717
  %v6078 = vadd.f32 %v4958, %v5722
  %v6079 = vadd.f32 %v4959, %v5722
  %v6080 = vadd.f32 %v4960, %v5727
  %v6081 = vadd.f32 %v4961, %v5727
  %v6082 = vadd.f32 %v4962, %v5732
  %v6083 = vadd.f32 %v4963, %v5732
  %v6084 = vadd.f32 %v4964, %v5737
  %v6085 = vadd.f32 %v4965, %v5737
  %v6086 = vadd.f32 %v4966, %v5742
  %v6087 = vadd.f32 %v4967, %v5742
  %v6088 = vadd.f32 %v4968, %v5747
  %v6089 = vadd.f32 %v4969, %v5747
  %v6090 = vadd.f32 %v4970, %v5752
  %v6091 = vadd.f32 %v4971, %v5752
  %v6092 = vadd.f32 %v4972, %v5757
  %v6093 = vadd.f32 %v4973, %v5757
  %v6094 = vadd.f32 %v4974, %v5762
  %v6095 = vadd.f32 %v4975, %v5762
  %v6096 = vadd.f32 %v4976, %v5767
  %v6097 = vadd.f32 %v4977, %v5767
  %v6098 = vadd.f32 %v4978, %v5772
  %v6099 = vadd.f32 %v4979, %v5772
  %v6100 = vadd.f32 %v4980, %v5777
  %v6101 = vadd.f32 %v4981, %v5777
  %v6102 = vadd.f32 %v4982, %v5782
  %v6103 = vadd.f32 %v4983, %v5782
  %v6104 = vmax.f32 %v5784, 0.0
  %v6105 = vmax.f32 %v5785, 0.0
  %v6106 = vmax.f32 %v5786, 0.0
  %v6107 = vmax.f32 %v5787, 0.0
  %v6108 = vmax.f32 %v5788, 0.0
  %v6109 = vmax.f32 %v5789, 0.0
  %v6110 = vmax.f32 %v5790, 0.0
  %v6111 = vmax.f32 %v5791, 0.0
  %v6112 = vmax.f32 %v5792, 0.0
  %v6113 = vmax.f32 %v5793, 0.0
  %v6114 = vmax.f32 %v5794, 0.0
  %v6115 = vmax.f32 %v5795, 0.0
  %v6116 = vmax.f32 %v5796, 0.0
  %v6117 = vmax.f32 %v5797, 0.0
  %v6118 = vmax.f32 %v5798, 0.0
  %v6119 = vmax.f32 %v5799, 0.0
  %v6120 = vmax.f32 %v5800, 0.0
  %v6121 = vmax.f32 %v5801, 0.0
  %v6122 = vmax.f32 %v5802, 0.0
  %v6123 = vmax.f32 %v5803, 0.0
  %v6124 = vmax.f32 %v5804, 0.0
  %v6125 = vmax.f32 %v5805, 0.0
  %v6126 = vmax.f32 %v5806, 0.0
  %v6127 = vmax.f32 %v5807, 0.0
  %v6128 = vmax.f32 %v5808, 0.0
  %v6129 = vmax.f32 %v5809, 0.0
  %v6130 = vmax.f32 %v5810, 0.0
  %v6131 = vmax.f32 %v5811, 0.0
  %v6132 = vmax.f32 %v5812, 0.0
  %v6133 = vmax.f32 %v5813, 0.0
  %v6134 = vmax.f32 %v5814, 0.0
  %v6135 = vmax.f32 %v5815, 0.0
  %v6136 = vmax.f32 %v5816, 0.0
  %v6137 = vmax.f32 %v5817, 0.0
  %v6138 = vmax.f32 %v5818, 0.0
  %v6139 = vmax.f32 %v5819, 0.0
  %v6140 = vmax.f32 %v5820, 0.0
  %v6141 = vmax.f32 %v5821, 0.0
  %v6142 = vmax.f32 %v5822, 0.0
  %v6143 = vmax.f32 %v5823, 0.0
  %v6144 = vmax.f32 %v5824, 0.0
  %v6145 = vmax.f32 %v5825, 0.0
  %v6146 = vmax.f32 %v5826, 0.0
  %v6147 = vmax.f32 %v5827, 0.0
  %v6148 = vmax.f32 %v5828, 0.0
  %v6149 = vmax.f32 %v5829, 0.0
  %v6150 = vmax.f32 %v5830, 0.0
  %v6151 = vmax.f32 %v5831, 0.0
  %v6152 = vmax.f32 %v5832, 0.0
  %v6153 = vmax.f32 %v5833, 0.0
  %v6154 = vmax.f32 %v5834, 0.0
  %v6155 = vmax.f32 %v5835, 0.0
  %v6156 = vmax.f32 %v5836, 0.0
  %v6157 = vmax.f32 %v5837, 0.0
  %v6158 = vmax.f32 %v5838, 0.0
  %v6159 = vmax.f32 %v5839, 0.0
  %v6160 = vmax.f32 %v5840, 0.0
  %v6161 = vmax.f32 %v5841, 0.0
  %v6162 = vmax.f32 %v5842, 0.0
  %v6163 = vmax.f32 %v5843, 0.0
  %v6164 = vmax.f32 %v5844, 0.0
  %v6165 = vmax.f32 %v5845, 0.0
  %v6166 = vmax.f32 %v5846, 0.0
  %v6167 = vmax.f32 %v5847, 0.0
  %v6168 = vmax.f32 %v5848, 0.0
  %v6169 = vmax.f32 %v5849, 0.0
  %v6170 = vmax.f32 %v5850, 0.0
  %v6171 = vmax.f32 %v5851, 0.0
  %v6172 = vmax.f32 %v5852, 0.0
  %v6173 = vmax.f32 %v5853, 0.0
  %v6174 = vmax.f32 %v5854, 0.0
  %v6175 = vmax.f32 %v5855, 0.0
  %v6176 = vmax.f32 %v5856, 0.0
  %v6177 = vmax.f32 %v5857, 0.0
  %v6178 = vmax.f32 %v5858, 0.0
  %v6179 = vmax.f32 %v5859, 0.0
  %v6180 = vmax.f32 %v5860, 0.0
  %v6181 = vmax.f32 %v5861, 0.0
  %v6182 = vmax.f32 %v5862, 0.0
  %v6183 = vmax.f32 %v5863, 0.0
  %v6184 = vmax.f32 %v5864, 0.0
  %v6185 = vmax.f32 %v5865, 0.0
  %v6186 = vmax.f32 %v5866, 0.0
  %v6187 = vmax.f32 %v5867, 0.0
  %v6188 = vmax.f32 %v5868, 0.0
  %v6189 = vmax.f32 %v5869, 0.0
  %v6190 = vmax.f32 %v5870, 0.0
  %v6191 = vmax.f32 %v5871, 0.0
  %v6192 = vmax.f32 %v5872, 0.0
  %v6193 = vmax.f32 %v5873, 0.0
  %v6194 = vmax.f32 %v5874, 0.0
  %v6195 = vmax.f32 %v5875, 0.0
  %v6196 = vmax.f32 %v5876, 0.0
  %v6197 = vmax.f32 %v5877, 0.0
  %v6198 = vmax.f32 %v5878, 0.0
  %v6199 = vmax.f32 %v5879, 0.0
  %v6200 = vmax.f32 %v5880, 0.0
  %v6201 = vmax.f32 %v5881, 0.0
  %v6202 = vmax.f32 %v5882, 0.0
  %v6203 = vmax.f32 %v5883, 0.0
  %v6204 = vmax.f32 %v5884, 0.0
  %v6205 = vmax.f32 %v5885, 0.0
  %v6206 = vmax.f32 %v5886, 0.0
  %v6207 = vmax.f32 %v5887, 0.0
  %v6208 = vmax.f32 %v5888, 0.0
  %v6209 = vmax.f32 %v5889, 0.0
  %v6210 = vmax.f32 %v5890, 0.0
  %v6211 = vmax.f32 %v5891, 0.0
  %v6212 = vmax.f32 %v5892, 0.0
  %v6213 = vmax.f32 %v5893, 0.0
  %v6214 = vmax.f32 %v5894, 0.0
  %v6215 = vmax.f32 %v5895, 0.0
  %v6216 = vmax.f32 %v5896, 0.0
  %v6217 = vmax.f32 %v5897, 0.0
  %v6218 = vmax.f32 %v5898, 0.0
  %v6219 = vmax.f32 %v5899, 0.0
  %v6220 = vmax.f32 %v5900, 0.0
  %v6221 = vmax.f32 %v5901, 0.0
  %v6222 = vmax.f32 %v5902, 0.0
  %v6223 = vmax.f32 %v5903, 0.0
  %v6224 = vmax.f32 %v5904, 0.0
  %v6225 = vmax.f32 %v5905, 0.0
  %v6226 = vmax.f32 %v5906, 0.0
  %v6227 = vmax.f32 %v5907, 0.0
  %v6228 = vmax.f32 %v5908, 0.0
  %v6229 = vmax.f32 %v5909, 0.0
  %v6230 = vmax.f32 %v5910, 0.0
  %v6231 = vmax.f32 %v5911, 0.0
  %v6232 = vmax.f32 %v5912, 0.0
  %v6233 = vmax.f32 %v5913, 0.0
  %v6234 = vmax.f32 %v5914, 0.0
  %v6235 = vmax.f32 %v5915, 0.0
  %v6236 = vmax.f32 %v5916, 0.0
  %v6237 = vmax.f32 %v5917, 0.0
  %v6238 = vmax.f32 %v5918, 0.0
  %v6239 = vmax.f32 %v5919, 0.0
  %v6240 = vmax.f32 %v5920, 0.0
  %v6241 = vmax.f32 %v5921, 0.0
  %v6242 = vmax.f32 %v5922, 0.0
  %v6243 = vmax.f32 %v5923, 0.0
  %v6244 = vmax.f32 %v5924, 0.0
  %v6245 = vmax.f32 %v5925, 0.0
  %v6246 = vmax.f32 %v5926, 0.0
  %v6247 = vmax.f32 %v5927, 0.0
  %v6248 = vmax.f32 %v5928, 0.0
  %v6249 = vmax.f32 %v5929, 0.0
  %v6250 = vmax.f32 %v5930, 0.0
  %v6251 = vmax.f32 %v5931, 0.0
  %v6252 = vmax.f32 %v5932, 0.0
  %v6253 = vmax.f32 %v5933, 0.0
  %v6254 = vmax.f32 %v5934, 0.0
  %v6255 = vmax.f32 %v5935, 0.0
  %v6256 = vmax.f32 %v5936, 0.0
  %v6257 = vmax.f32 %v5937, 0.0
  %v6258 = vmax.f32 %v5938, 0.0
  %v6259 = vmax.f32 %v5939, 0.0
  %v6260 = vmax.f32 %v5940, 0.0
  %v6261 = vmax.f32 %v5941, 0.0
  %v6262 = vmax.f32 %v5942, 0.0
  %v6263 = vmax.f32 %v5943, 0.0
  %v6264 = vmax.f32 %v5944, 0.0
  %v6265 = vmax.f32 %v5945, 0.0
  %v6266 = vmax.f32 %v5946, 0.0
  %v6267 = vmax.f32 %v5947, 0.0
  %v6268 = vmax.f32 %v5948, 0.0
  %v6269 = vmax.f32 %v5949, 0.0
  %v6270 = vmax.f32 %v5950, 0.0
  %v6271 = vmax.f32 %v5951, 0.0
  %v6272 = vmax.f32 %v5952, 0.0
  %v6273 = vmax.f32 %v5953, 0.0
  %v6274 = vmax.f32 %v5954, 0.0
  %v6275 = vmax.f32 %v5955, 0.0
  %v6276 = vmax.f32 %v5956, 0.0
  %v6277 = vmax.f32 %v5957, 0.0
  %v6278 = vmax.f32 %v5958, 0.0
  %v6279 = vmax.f32 %v5959, 0.0
  %v6280 = vmax.f32 %v5960, 0.0
  %v6281 = vmax.f32 %v5961, 0.0
  %v6282 = vmax.f32 %v5962, 0.0
  %v6283 = vmax.f32 %v5963, 0.0
  %v6284 = vmax.f32 %v5964, 0.0
  %v6285 = vmax.f32 %v5965, 0.0
  %v6286 = vmax.f32 %v5966, 0.0
  %v6287 = vmax.f32 %v5967, 0.0
  %v6288 = vmax.f32 %v5968, 0.0
  %v6289 = vmax.f32 %v5969, 0.0
  %v6290 = vmax.f32 %v5970, 0.0
  %v6291 = vmax.f32 %v5971, 0.0
  %v6292 = vmax.f32 %v5972, 0.0
  %v6293 = vmax.f32 %v5973, 0.0
  %v6294 = vmax.f32 %v5974, 0.0
  %v6295 = vmax.f32 %v5975, 0.0
  %v6296 = vmax.f32 %v5976, 0.0
  %v6297 = vmax.f32 %v5977, 0.0
  %v6298 = vmax.f32 %v5978, 0.0
  %v6299 = vmax.f32 %v5979, 0.0
  %v6300 = vmax.f32 %v5980, 0.0
  %v6301 = vmax.f32 %v5981, 0.0
  %v6302 = vmax.f32 %v5982, 0.0
  %v6303 = vmax.f32 %v5983, 0.0
  %v6304 = vmax.f32 %v5984, 0.0
  %v6305 = vmax.f32 %v5985, 0.0
  %v6306 = vmax.f32 %v5986, 0.0
  %v6307 = vmax.f32 %v5987, 0.0
  %v6308 = vmax.f32 %v5988, 0.0
  %v6309 = vmax.f32 %v5989, 0.0
  %v6310 = vmax.f32 %v5990, 0.0
  %v6311 = vmax.f32 %v5991, 0.0
  %v6312 = vmax.f32 %v5992, 0.0
  %v6313 = vmax.f32 %v5993, 0.0
  %v6314 = vmax.f32 %v5994, 0.0
  %v6315 = vmax.f32 %v5995, 0.0
  %v6316 = vmax.f32 %v5996, 0.0
  %v6317 = vmax.f32 %v5997, 0.0
  %v6318 = vmax.f32 %v5998, 0.0
  %v6319 = vmax.f32 %v5999, 0.0
  %v6320 = vmax.f32 %v6000, 0.0
  %v6321 = vmax.f32 %v6001, 0.0
  %v6322 = vmax.f32 %v6002, 0.0
  %v6323 = vmax.f32 %v6003, 0.0
  %v6324 = vmax.f32 %v6004, 0.0
  %v6325 = vmax.f32 %v6005, 0.0
  %v6326 = vmax.f32 %v6006, 0.0
  %v6327 = vmax.f32 %v6007, 0.0
  %v6328 = vmax.f32 %v6008, 0.0
  %v6329 = vmax.f32 %v6009, 0.0
  %v6330 = vmax.f32 %v6010, 0.0
  %v6331 = vmax.f32 %v6011, 0.0
  %v6332 = vmax.f32 %v6012, 0.0
  %v6333 = vmax.f32 %v6013, 0.0
  %v6334 = vmax.f32 %v6014, 0.0
  %v6335 = vmax.f32 %v6015, 0.0
  %v6336 = vmax.f32 %v6016, 0.0
  %v6337 = vmax.f32 %v6017, 0.0
  %v6338 = vmax.f32 %v6018, 0.0
  %v6339 = vmax.f32 %v6019, 0.0
  %v6340 = vmax.f32 %v6020, 0.0
  %v6341 = vmax.f32 %v6021, 0.0
  %v6342 = vmax.f32 %v6022, 0.0
  %v6343 = vmax.f32 %v6023, 0.0
  %v6344 = vmax.f32 %v6024, 0.0
  %v6345 = vmax.f32 %v6025, 0.0
  %v6346 = vmax.f32 %v6026, 0.0
  %v6347 = vmax.f32 %v6027, 0.0
  %v6348 = vmax.f32 %v6028, 0.0
  %v6349 = vmax.f32 %v6029, 0.0
  %v6350 = vmax.f32 %v6030, 0.0
  %v6351 = vmax.f32 %v6031, 0.0
  %v6352 = vmax.f32 %v6032, 0.0
  %v6353 = vmax.f32 %v6033, 0.0
  %v6354 = vmax.f32 %v6034, 0.0
  %v6355 = vmax.f32 %v6035, 0.0
  %v6356 = vmax.f32 %v6036, 0.0
  %v6357 = vmax.f32 %v6037, 0.0
  %v6358 = vmax.f32 %v6038, 0.0
  %v6359 = vmax.f32 %v6039, 0.0
  %v6360 = vmax.f32 %v6040, 0.0
  %v6361 = vmax.f32 %v6041, 0.0
  %v6362 = vmax.f32 %v6042, 0.0
  %v6363 = vmax.f32 %v6043, 0.0
  %v6364 = vmax.f32 %v6044, 0.0
  %v6365 = vmax.f32 %v6045, 0.0
  %v6366 = vmax.f32 %v6046, 0.0
  %v6367 = vmax.f32 %v6047, 0.0
  %v6368 = vmax.f32 %v6048, 0.0
  %v6369 = vmax.f32 %v6049, 0.0
  %v6370 = vmax.f32 %v6050, 0.0
  %v6371 = vmax.f32 %v6051, 0.0
  %v6372 = vmax.f32 %v6052, 0.0
  %v6373 = vmax.f32 %v6053, 0.0
  %v6374 = vmax.f32 %v6054, 0.0
  %v6375 = vmax.f32 %v6055, 0.0
  %v6376 = vmax.f32 %v6056, 0.0
  %v6377 = vmax.f32 %v6057, 0.0
  %v6378 = vmax.f32 %v6058, 0.0
  %v6379 = vmax.f32 %v6059, 0.0
  %v6380 = vmax.f32 %v6060, 0.0
  %v6381 = vmax.f32 %v6061, 0.0
  %v6382 = vmax.f32 %v6062, 0.0
  %v6383 = vmax.f32 %v6063, 0.0
  %v6384 = vmax.f32 %v6064, 0.0
  %v6385 = vmax.f32 %v6065, 0.0
  %v6386 = vmax.f32 %v6066, 0.0
  %v6387 = vmax.f32 %v6067, 0.0
  %v6388 = vmax.f32 %v6068, 0.0
  %v6389 = vmax.f32 %v6069, 0.0
  %v6390 = vmax.f32 %v6070, 0.0
  %v6391 = vmax.f32 %v6071, 0.0
  %v6392 = vmax.f32 %v6072, 0.0
  %v6393 = vmax.f32 %v6073, 0.0
  %v6394 = vmax.f32 %v6074, 0.0
  %v6395 = vmax.f32 %v6075, 0.0
  %v6396 = vmax.f32 %v6076, 0.0
  %v6397 = vmax.f32 %v6077, 0.0
  %v6398 = vmax.f32 %v6078, 0.0
  %v6399 = vmax.f32 %v6079, 0.0
  %v6400 = vmax.f32 %v6080, 0.0
  %v6401 = vmax.f32 %v6081, 0.0
  %v6402 = vmax.f32 %v6082, 0.0
  %v6403 = vmax.f32 %v6083, 0.0
  %v6404 = vmax.f32 %v6084, 0.0
  %v6405 = vmax.f32 %v6085, 0.0
  %v6406 = vmax.f32 %v6086, 0.0
  %v6407 = vmax.f32 %v6087, 0.0
  %v6408 = vmax.f32 %v6088, 0.0
  %v6409 = vmax.f32 %v6089, 0.0
  %v6410 = vmax.f32 %v6090, 0.0
  %v6411 = vmax.f32 %v6091, 0.0
  %v6412 = vmax.f32 %v6092, 0.0
  %v6413 = vmax.f32 %v6093, 0.0
  %v6414 = vmax.f32 %v6094, 0.0
  %v6415 = vmax.f32 %v6095, 0.0
  %v6416 = vmax.f32 %v6096, 0.0
  %v6417 = vmax.f32 %v6097, 0.0
  %v6418 = vmax.f32 %v6098, 0.0
  %v6419 = vmax.f32 %v6099, 0.0
  %v6420 = vmax.f32 %v6100, 0.0
  %v6421 = vmax.f32 %v6101, 0.0
  %v6422 = vmax.f32 %v6102, 0.0
  %v6423 = vmax.f32 %v6103, 0.0
  %v6424 = vld [vmem:[%s1] sm:$0xff]
  %v6425 = vld [vmem:[%s1 + $0x8] sm:$0xff]
  %v6426 = vld [vmem:[%s1 + $0x10] sm:$0xff]
  %v6427 = vld [vmem:[%s1 + $0x18] sm:$0xff]
  %v6428 = vld [vmem:[%s1 + $0x20] sm:$0xff]
  %v6429 = vld [vmem:[%s1 + $0x28] sm:$0xff]
  %v6430 = vld [vmem:[%s1 + $0x30] sm:$0xff]
  %v6431 = vld [vmem:[%s1 + $0x38] sm:$0xff]
  %v6432 = vld [vmem:[%s1 + $0x40] sm:$0xff]
  %v6433 = vld [vmem:[%s1 + $0x48] sm:$0xff]
  %v6434 = vld [vmem:[%s1 + $0x50] sm:$0xff]
  %v6435 = vld [vmem:[%s1 + $0x58] sm:$0xff]
  %v6436 = vld [vmem:[%s1 + $0x60] sm:$0xff]
  %v6437 = vld [vmem:[%s1 + $0x68] sm:$0xff]
  %v6438 = vld [vmem:[%s1 + $0x70] sm:$0xff]
  %v6439 = vld [vmem:[%s1 + $0x78] sm:$0xff]
  %v6440 = vld [vmem:[%s1 + $0x80] sm:$0xff]
  %v6441 = vld [vmem:[%s1 + $0x88] sm:$0xff]
  %v6442 = vld [vmem:[%s1 + $0x90] sm:$0xff]
  %v6443 = vld [vmem:[%s1 + $0x98] sm:$0xff]
  %v6444 = vld [vmem:[%s1 + $0xa0] sm:$0xff]
  %v6445 = vld [vmem:[%s1 + $0xa8] sm:$0xff]
  %v6446 = vld [vmem:[%s1 + $0xb0] sm:$0xff]
  %v6447 = vld [vmem:[%s1 + $0xb8] sm:$0xff]
  %v6448 = vld [vmem:[%s1 + $0xc0] sm:$0xff]
  %v6449 = vld [vmem:[%s1 + $0xc8] sm:$0xff]
  %v6450 = vld [vmem:[%s1 + $0xd0] sm:$0xff]
  %v6451 = vld [vmem:[%s1 + $0xd8] sm:$0xff]
  %v6452 = vld [vmem:[%s1 + $0xe0] sm:$0xff]
  %v6453 = vld [vmem:[%s1 + $0xe8] sm:$0xff]
  %v6454 = vld [vmem:[%s1 + $0xf0] sm:$0xff]
  %v6455 = vld [vmem:[%s1 + $0xf8] sm:$0xff]
  %v6456 = vld [vmem:[%s1 + $0x100] sm:$0xff]
  %v6457 = vld [vmem:[%s1 + $0x108] sm:$0xff]
  %v6458 = vld [vmem:[%s1 + $0x110] sm:$0xff]
  %v6459 = vld [vmem:[%s1 + $0x118] sm:$0xff]
  %v6460 = vld [vmem:[%s1 + $0x120] sm:$0xff]
  %v6461 = vld [vmem:[%s1 + $0x128] sm:$0xff]
  %v6462 = vld [vmem:[%s1 + $0x130] sm:$0xff]
  %v6463 = vld [vmem:[%s1 + $0x138] sm:$0xff]
  %v6464 = vld [vmem:[%s1 + $0x140] sm:$0xff]
  %v6465 = vld [vmem:[%s1 + $0x148] sm:$0xff]
  %v6466 = vld [vmem:[%s1 + $0x150] sm:$0xff]
  %v6467 = vld [vmem:[%s1 + $0x158] sm:$0xff]
  %v6468 = vld [vmem:[%s1 + $0x160] sm:$0xff]
  %v6469 = vld [vmem:[%s1 + $0x168] sm:$0xff]
  %v6470 = vld [vmem:[%s1 + $0x170] sm:$0xff]
  %v6471 = vld [vmem:[%s1 + $0x178] sm:$0xff]
  %v6472 = vld [vmem:[%s1 + $0x180] sm:$0xff]
  %v6473 = vld [vmem:[%s1 + $0x188] sm:$0xff]
  %v6474 = vld [vmem:[%s1 + $0x190] sm:$0xff]
  %v6475 = vld [vmem:[%s1 + $0x198] sm:$0xff]
  %v6476 = vld [vmem:[%s1 + $0x1a0] sm:$0xff]
  %v6477 = vld [vmem:[%s1 + $0x1a8] sm:$0xff]
  %v6478 = vld [vmem:[%s1 + $0x1b0] sm:$0xff]
  %v6479 = vld [vmem:[%s1 + $0x1b8] sm:$0xff]
  %v6480 = vld [vmem:[%s1 + $0x1c0] sm:$0xff]
  %v6481 = vld [vmem:[%s1 + $0x1c8] sm:$0xff]
  %v6482 = vld [vmem:[%s1 + $0x1d0] sm:$0xff]
  %v6483 = vld [vmem:[%s1 + $0x1d8] sm:$0xff]
  %v6484 = vld [vmem:[%s1 + $0x1e0] sm:$0xff]
  %v6485 = vld [vmem:[%s1 + $0x1e8] sm:$0xff]
  %v6486 = vld [vmem:[%s1 + $0x1f0] sm:$0xff]
  %v6487 = vld [vmem:[%s1 + $0x1f8] sm:$0xff]
  %v6488 = vld [vmem:[%s1 + $0x200] sm:$0xff]
  %v6489 = vld [vmem:[%s1 + $0x208] sm:$0xff]
  %v6490 = vld [vmem:[%s1 + $0x210] sm:$0xff]
  %v6491 = vld [vmem:[%s1 + $0x218] sm:$0xff]
  %v6492 = vld [vmem:[%s1 + $0x220] sm:$0xff]
  %v6493 = vld [vmem:[%s1 + $0x228] sm:$0xff]
  %v6494 = vld [vmem:[%s1 + $0x230] sm:$0xff]
  %v6495 = vld [vmem:[%s1 + $0x238] sm:$0xff]
  %v6496 = vld [vmem:[%s1 + $0x240] sm:$0xff]
  %v6497 = vld [vmem:[%s1 + $0x248] sm:$0xff]
  %v6498 = vld [vmem:[%s1 + $0x250] sm:$0xff]
  %v6499 = vld [vmem:[%s1 + $0x258] sm:$0xff]
  %v6500 = vld [vmem:[%s1 + $0x260] sm:$0xff]
  %v6501 = vld [vmem:[%s1 + $0x268] sm:$0xff]
  %v6502 = vld [vmem:[%s1 + $0x270] sm:$0xff]
  %v6503 = vld [vmem:[%s1 + $0x278] sm:$0xff]
  %v6504 = vld [vmem:[%s1 + $0x280] sm:$0xff]
  %v6505 = vld [vmem:[%s1 + $0x288] sm:$0xff]
  %v6506 = vld [vmem:[%s1 + $0x290] sm:$0xff]
  %v6507 = vld [vmem:[%s1 + $0x298] sm:$0xff]
  %v6508 = vld [vmem:[%s1 + $0x2a0] sm:$0xff]
  %v6509 = vld [vmem:[%s1 + $0x2a8] sm:$0xff]
  %v6510 = vld [vmem:[%s1 + $0x2b0] sm:$0xff]
  %v6511 = vld [vmem:[%s1 + $0x2b8] sm:$0xff]
  %v6512 = vld [vmem:[%s1 + $0x2c0] sm:$0xff]
  %v6513 = vld [vmem:[%s1 + $0x2c8] sm:$0xff]
  %v6514 = vld [vmem:[%s1 + $0x2d0] sm:$0xff]
  %v6515 = vld [vmem:[%s1 + $0x2d8] sm:$0xff]
  %v6516 = vld [vmem:[%s1 + $0x2e0] sm:$0xff]
  %v6517 = vld [vmem:[%s1 + $0x2e8] sm:$0xff]
  %v6518 = vld [vmem:[%s1 + $0x2f0] sm:$0xff]
  %v6519 = vld [vmem:[%s1 + $0x2f8] sm:$0xff]
  %v6520 = vld [vmem:[%s1 + $0x300] sm:$0xff]
  %v6521 = vld [vmem:[%s1 + $0x308] sm:$0xff]
  %v6522 = vld [vmem:[%s1 + $0x310] sm:$0xff]
  %v6523 = vld [vmem:[%s1 + $0x318] sm:$0xff]
  %v6524 = vld [vmem:[%s1 + $0x320] sm:$0xff]
  %v6525 = vld [vmem:[%s1 + $0x328] sm:$0xff]
  %v6526 = vld [vmem:[%s1 + $0x330] sm:$0xff]
  %v6527 = vld [vmem:[%s1 + $0x338] sm:$0xff]
  %v6528 = vld [vmem:[%s1 + $0x340] sm:$0xff]
  %v6529 = vld [vmem:[%s1 + $0x348] sm:$0xff]
  %v6530 = vld [vmem:[%s1 + $0x350] sm:$0xff]
  %v6531 = vld [vmem:[%s1 + $0x358] sm:$0xff]
  %v6532 = vld [vmem:[%s1 + $0x360] sm:$0xff]
  %v6533 = vld [vmem:[%s1 + $0x368] sm:$0xff]
  %v6534 = vld [vmem:[%s1 + $0x370] sm:$0xff]
  %v6535 = vld [vmem:[%s1 + $0x378] sm:$0xff]
  %v6536 = vld [vmem:[%s1 + $0x380] sm:$0xff]
  %v6537 = vld [vmem:[%s1 + $0x388] sm:$0xff]
  %v6538 = vld [vmem:[%s1 + $0x390] sm:$0xff]
  %v6539 = vld [vmem:[%s1 + $0x398] sm:$0xff]
  %v6540 = vld [vmem:[%s1 + $0x3a0] sm:$0xff]
  %v6541 = vld [vmem:[%s1 + $0x3a8] sm:$0xff]
  %v6542 = vld [vmem:[%s1 + $0x3b0] sm:$0xff]
  %v6543 = vld [vmem:[%s1 + $0x3b8] sm:$0xff]
  %v6544 = vld [vmem:[%s1 + $0x3c0] sm:$0xff]
  %v6545 = vld [vmem:[%s1 + $0x3c8] sm:$0xff]
  %v6546 = vld [vmem:[%s1 + $0x3d0] sm:$0xff]
  %v6547 = vld [vmem:[%s1 + $0x3d8] sm:$0xff]
  %v6548 = vld [vmem:[%s1 + $0x3e0] sm:$0xff]
  %v6549 = vld [vmem:[%s1 + $0x3e8] sm:$0xff]
  %v6550 = vld [vmem:[%s1 + $0x3f0] sm:$0xff]
  %v6551 = vld [vmem:[%s1 + $0x3f8] sm:$0xff]
  %v6552 = vld [vmem:[%s1 + $0x400] sm:$0xff]
  %v6553 = vld [vmem:[%s1 + $0x408] sm:$0xff]
  %v6554 = vld [vmem:[%s1 + $0x410] sm:$0xff]
  %v6555 = vld [vmem:[%s1 + $0x418] sm:$0xff]
  %v6556 = vld [vmem:[%s1 + $0x420] sm:$0xff]
  %v6557 = vld [vmem:[%s1 + $0x428] sm:$0xff]
  %v6558 = vld [vmem:[%s1 + $0x430] sm:$0xff]
  %v6559 = vld [vmem:[%s1 + $0x438] sm:$0xff]
  %v6560 = vld [vmem:[%s1 + $0x440] sm:$0xff]
  %v6561 = vld [vmem:[%s1 + $0x448] sm:$0xff]
  %v6562 = vld [vmem:[%s1 + $0x450] sm:$0xff]
  %v6563 = vld [vmem:[%s1 + $0x458] sm:$0xff]
  %v6564 = vld [vmem:[%s1 + $0x460] sm:$0xff]
  %v6565 = vld [vmem:[%s1 + $0x468] sm:$0xff]
  %v6566 = vld [vmem:[%s1 + $0x470] sm:$0xff]
  %v6567 = vld [vmem:[%s1 + $0x478] sm:$0xff]
  %v6568 = vld [vmem:[%s1 + $0x480] sm:$0xff]
  %v6569 = vld [vmem:[%s1 + $0x488] sm:$0xff]
  %v6570 = vld [vmem:[%s1 + $0x490] sm:$0xff]
  %v6571 = vld [vmem:[%s1 + $0x498] sm:$0xff]
  %v6572 = vld [vmem:[%s1 + $0x4a0] sm:$0xff]
  %v6573 = vld [vmem:[%s1 + $0x4a8] sm:$0xff]
  %v6574 = vld [vmem:[%s1 + $0x4b0] sm:$0xff]
  %v6575 = vld [vmem:[%s1 + $0x4b8] sm:$0xff]
  %v6576 = vld [vmem:[%s1 + $0x4c0] sm:$0xff]
  %v6577 = vld [vmem:[%s1 + $0x4c8] sm:$0xff]
  %v6578 = vld [vmem:[%s1 + $0x4d0] sm:$0xff]
  %v6579 = vld [vmem:[%s1 + $0x4d8] sm:$0xff]
  %v6580 = vld [vmem:[%s1 + $0x4e0] sm:$0xff]
  %v6581 = vld [vmem:[%s1 + $0x4e8] sm:$0xff]
  %v6582 = vld [vmem:[%s1 + $0x4f0] sm:$0xff]
  %v6583 = vld [vmem:[%s1 + $0x4f8] sm:$0xff]
  %6584 = vmatprep.subr.mxu0 %v6135
  %6585 = vmatpush1.msra.mxu0 %v6134
  %6586 = vmatprep.subr.mxu0 %v6133
  %6587 = vmatpush1.msra.mxu0 %v6132
  %6588 = vmatprep.subr.mxu0 %v6131
  %6589 = vmatpush1.msra.mxu0 %v6130
  %6590 = vmatprep.subr.mxu0 %v6129
  %6591 = vmatpush1.msra.mxu0 %v6128
  %6592 = vmatprep.subr.mxu0 %v6127
  %6593 = vmatpush1.msra.mxu0 %v6126
  %6594 = vmatprep.subr.mxu0 %v6125
  %6595 = vmatpush1.msra.mxu0 %v6124
  %6596 = vmatprep.subr.mxu0 %v6123
  %6597 = vmatpush1.msra.mxu0 %v6122
  %6598 = vmatprep.subr.mxu0 %v6121
  %6599 = vmatpush1.msra.mxu0 %v6120
  %6600 = vmatprep.subr.mxu0 %v6119
  %6601 = vmatpush1.msra.mxu0 %v6118
  %6602 = vmatprep.subr.mxu0 %v6117
  %6603 = vmatpush1.msra.mxu0 %v6116
  %6604 = vmatprep.subr.mxu0 %v6115
  %6605 = vmatpush1.msra.mxu0 %v6114
  %6606 = vmatprep.subr.mxu0 %v6113
  %6607 = vmatpush1.msra.mxu0 %v6112
  %6608 = vmatprep.subr.mxu0 %v6111
  %6609 = vmatpush1.msra.mxu0 %v6110
  %6610 = vmatprep.subr.mxu0 %v6109
  %6611 = vmatpush1.msra.mxu0 %v6108
  %6612 = vmatprep.subr.mxu0 %v6107
  %6613 = vmatpush1.msra.mxu0 %v6106
  %6614 = vmatprep.subr.mxu0 %v6105
  %6615 = vmatpush1.msra.mxu0 %v6104
  %6616 = vmatprep.subr.mxu0 %v6167
  %6617 = vmatpush2.msra.mxu0 %v6166
  %6618 = vmatprep.subr.mxu0 %v6165
  %6619 = vmatpush2.msra.mxu0 %v6164
  %6620 = vmatprep.subr.mxu0 %v6163
  %6621 = vmatpush2.msra.mxu0 %v6162
  %6622 = vmatprep.subr.mxu0 %v6161
  %6623 = vmatpush2.msra.mxu0 %v6160
  %6624 = vmatprep.subr.mxu0 %v6159
  %6625 = vmatpush2.msra.mxu0 %v6158
  %6626 = vmatprep.subr.mxu0 %v6157
  %6627 = vmatpush2.msra.mxu0 %v6156
  %6628 = vmatprep.subr.mxu0 %v6155
  %6629 = vmatpush2.msra.mxu0 %v6154
  %6630 = vmatprep.subr.mxu0 %v6153
  %6631 = vmatpush2.msra.mxu0 %v6152
  %6632 = vmatprep.subr.mxu0 %v6151
  %6633 = vmatpush2.msra.mxu0 %v6150
  %6634 = vmatprep.subr.mxu0 %v6149
  %6635 = vmatpush2.msra.mxu0 %v6148
  %6636 = vmatprep.subr.mxu0 %v6147
  %6637 = vmatpush2.msra.mxu0 %v6146
  %6638 = vmatprep.subr.mxu0 %v6145
  %6639 = vmatpush2.msra.mxu0 %v6144
  %6640 = vmatprep.subr.mxu0 %v6143
  %6641 = vmatpush2.msra.mxu0 %v6142
  %6642 = vmatprep.subr.mxu0 %v6141
  %6643 = vmatpush2.msra.mxu0 %v6140
  %6644 = vmatprep.subr.mxu0 %v6139
  %6645 = vmatpush2.msra.mxu0 %v6138
  %6646 = vmatprep.subr.mxu0 %v6137
  %6647 = vmatpush2.msra.mxu0 %v6136
  %6648 = vmatprep.mubr.f32.mxu0 %v6425
  %6649 = vmatmul.mubr.f32.gmra.mxu0 %v6424
  %v6650 = vpop.f32.mrf.mxu0
  %v6651 = vadd.f32 0.0, %v6650
  %v6652 = vpop.f32.mrf.mxu0
  %v6653 = vadd.f32 0.0, %v6652
  %6654 = vmatprep.mubr.f32.mxu0 %v6435
  %6655 = vmatmul.mubr.f32.gmra.mxu0 %v6434
  %v6656 = vpop.f32.mrf.mxu0
  %v6657 = vadd.f32 0.0, %v6656
  %v6658 = vpop.f32.mrf.mxu0
  %v6659 = vadd.f32 0.0, %v6658
  %6660 = vmatprep.mubr.f32.mxu0 %v6445
  %6661 = vmatmul.mubr.f32.gmra.mxu0 %v6444
  %v6662 = vpop.f32.mrf.mxu0
  %v6663 = vadd.f32 0.0, %v6662
  %v6664 = vpop.f32.mrf.mxu0
  %v6665 = vadd.f32 0.0, %v6664
  %6666 = vmatprep.mubr.f32.mxu0 %v6455
  %6667 = vmatmul.mubr.f32.gmra.mxu0 %v6454
  %v6668 = vpop.f32.mrf.mxu0
  %v6669 = vadd.f32 0.0, %v6668
  %v6670 = vpop.f32.mrf.mxu0
  %v6671 = vadd.f32 0.0, %v6670
  %6672 = vmatprep.mubr.f32.mxu0 %v6465
  %6673 = vmatmul.mubr.f32.gmra.mxu0 %v6464
  %v6674 = vpop.f32.mrf.mxu0
  %v6675 = vadd.f32 0.0, %v6674
  %v6676 = vpop.f32.mrf.mxu0
  %v6677 = vadd.f32 0.0, %v6676
  %6678 = vmatprep.mubr.f32.mxu0 %v6475
  %6679 = vmatmul.mubr.f32.gmra.mxu0 %v6474
  %v6680 = vpop.f32.mrf.mxu0
  %v6681 = vadd.f32 0.0, %v6680
  %v6682 = vpop.f32.mrf.mxu0
  %v6683 = vadd.f32 0.0, %v6682
  %6684 = vmatprep.mubr.f32.mxu0 %v6485
  %6685 = vmatmul.mubr.f32.gmra.mxu0 %v6484
  %v6686 = vpop.f32.mrf.mxu0
  %v6687 = vadd.f32 0.0, %v6686
  %v6688 = vpop.f32.mrf.mxu0
  %v6689 = vadd.f32 0.0, %v6688
  %6690 = vmatprep.mubr.f32.mxu0 %v6495
  %6691 = vmatmul.mubr.f32.gmra.mxu0 %v6494
  %v6692 = vpop.f32.mrf.mxu0
  %v6693 = vadd.f32 0.0, %v6692
  %v6694 = vpop.f32.mrf.mxu0
  %v6695 = vadd.f32 0.0, %v6694
  %6696 = vmatprep.mubr.f32.mxu0 %v6505
  %6697 = vmatmul.mubr.f32.gmra.mxu0 %v6504
  %v6698 = vpop.f32.mrf.mxu0
  %v6699 = vadd.f32 0.0, %v6698
  %v6700 = vpop.f32.mrf.mxu0
  %v6701 = vadd.f32 0.0, %v6700
  %6702 = vmatprep.mubr.f32.mxu0 %v6515
  %6703 = vmatmul.mubr.f32.gmra.mxu0 %v6514
  %v6704 = vpop.f32.mrf.mxu0
  %v6705 = vadd.f32 0.0, %v6704
  %v6706 = vpop.f32.mrf.mxu0
  %v6707 = vadd.f32 0.0, %v6706
  %6708 = vmatprep.mubr.f32.mxu0 %v6525
  %6709 = vmatmul.mubr.f32.gmra.mxu0 %v6524
  %v6710 = vpop.f32.mrf.mxu0
  %v6711 = vadd.f32 0.0, %v6710
  %v6712 = vpop.f32.mrf.mxu0
  %v6713 = vadd.f32 0.0, %v6712
  %6714 = vmatprep.mubr.f32.mxu0 %v6535
  %6715 = vmatmul.mubr.f32.gmra.mxu0 %v6534
  %v6716 = vpop.f32.mrf.mxu0
  %v6717 = vadd.f32 0.0, %v6716
  %v6718 = vpop.f32.mrf.mxu0
  %v6719 = vadd.f32 0.0, %v6718
  %6720 = vmatprep.mubr.f32.mxu0 %v6545
  %6721 = vmatmul.mubr.f32.gmra.mxu0 %v6544
  %v6722 = vpop.f32.mrf.mxu0
  %v6723 = vadd.f32 0.0, %v6722
  %v6724 = vpop.f32.mrf.mxu0
  %v6725 = vadd.f32 0.0, %v6724
  %6726 = vmatprep.mubr.f32.mxu0 %v6555
  %6727 = vmatmul.mubr.f32.gmra.mxu0 %v6554
  %v6728 = vpop.f32.mrf.mxu0
  %v6729 = vadd.f32 0.0, %v6728
  %v6730 = vpop.f32.mrf.mxu0
  %v6731 = vadd.f32 0.0, %v6730
  %6732 = vmatprep.mubr.f32.mxu0 %v6565
  %6733 = vmatmul.mubr.f32.gmra.mxu0 %v6564
  %v6734 = vpop.f32.mrf.mxu0
  %v6735 = vadd.f32 0.0, %v6734
  %v6736 = vpop.f32.mrf.mxu0
  %v6737 = vadd.f32 0.0, %v6736
  %6738 = vmatprep.mubr.f32.mxu0 %v6575
  %6739 = vmatmul.mubr.f32.gmra.mxu0 %v6574
  %v6740 = vpop.f32.mrf.mxu0
  %v6741 = vadd.f32 0.0, %v6740
  %v6742 = vpop.f32.mrf.mxu0
  %v6743 = vadd.f32 0.0, %v6742
  %6744 = vdwg.mxu0
  %6745 = vmatprep.subr.mxu0 %v6199
  %6746 = vmatpush1.msra.mxu0 %v6198
  %6747 = vmatprep.subr.mxu0 %v6197
  %6748 = vmatpush1.msra.mxu0 %v6196
  %6749 = vmatprep.subr.mxu0 %v6195
  %6750 = vmatpush1.msra.mxu0 %v6194
  %6751 = vmatprep.subr.mxu0 %v6193
  %6752 = vmatpush1.msra.mxu0 %v6192
  %6753 = vmatprep.subr.mxu0 %v6191
  %6754 = vmatpush1.msra.mxu0 %v6190
  %6755 = vmatprep.subr.mxu0 %v6189
  %6756 = vmatpush1.msra.mxu0 %v6188
  %6757 = vmatprep.subr.mxu0 %v6187
  %6758 = vmatpush1.msra.mxu0 %v6186
  %6759 = vmatprep.subr.mxu0 %v6185
  %6760 = vmatpush1.msra.mxu0 %v6184
  %6761 = vmatprep.subr.mxu0 %v6183
  %6762 = vmatpush1.msra.mxu0 %v6182
  %6763 = vmatprep.subr.mxu0 %v6181
  %6764 = vmatpush1.msra.mxu0 %v6180
  %6765 = vmatprep.subr.mxu0 %v6179
  %6766 = vmatpush1.msra.mxu0 %v6178
  %6767 = vmatprep.subr.mxu0 %v6177
  %6768 = vmatpush1.msra.mxu0 %v6176
  %6769 = vmatprep.subr.mxu0 %v6175
  %6770 = vmatpush1.msra.mxu0 %v6174
  %6771 = vmatprep.subr.mxu0 %v6173
  %6772 = vmatpush1.msra.mxu0 %v6172
  %6773 = vmatprep.subr.mxu0 %v6171
  %6774 = vmatpush1.msra.mxu0 %v6170
  %6775 = vmatprep.subr.mxu0 %v6169
  %6776 = vmatpush1.msra.mxu0 %v6168
  %6777 = vmatprep.subr.mxu0 %v6231
  %6778 = vmatpush2.msra.mxu0 %v6230
  %6779 = vmatprep.subr.mxu0 %v6229
  %6780 = vmatpush2.msra.mxu0 %v6228
  %6781 = vmatprep.subr.mxu0 %v6227
  %6782 = vmatpush2.msra.mxu0 %v6226
  %6783 = vmatprep.subr.mxu0 %v6225
  %6784 = vmatpush2.msra.mxu0 %v6224
  %6785 = vmatprep.subr.mxu0 %v6223
  %6786 = vmatpush2.msra.mxu0 %v6222
  %6787 = vmatprep.subr.mxu0 %v6221
  %6788 = vmatpush2.msra.mxu0 %v6220
  %6789 = vmatprep.subr.mxu0 %v6219
  %6790 = vmatpush2.msra.mxu0 %v6218
  %6791 = vmatprep.subr.mxu0 %v6217
  %6792 = vmatpush2.msra.mxu0 %v6216
  %6793 = vmatprep.subr.mxu0 %v6215
  %6794 = vmatpush2.msra.mxu0 %v6214
  %6795 = vmatprep.subr.mxu0 %v6213
  %6796 = vmatpush2.msra.mxu0 %v6212
  %6797 = vmatprep.subr.mxu0 %v6211
  %6798 = vmatpush2.msra.mxu0 %v6210
  %6799 = vmatprep.subr.mxu0 %v6209
  %6800 = vmatpush2.msra.mxu0 %v6208
  %6801 = vmatprep.subr.mxu0 %v6207
  %6802 = vmatpush2.msra.mxu0 %v6206
  %6803 = vmatprep.subr.mxu0 %v6205
  %6804 = vmatpush2.msra.mxu0 %v6204
  %6805 = vmatprep.subr.mxu0 %v6203
  %6806 = vmatpush2.msra.mxu0 %v6202
  %6807 = vmatprep.subr.mxu0 %v6201
  %6808 = vmatpush2.msra.mxu0 %v6200
  %6809 = vmatprep.mubr.f32.mxu0 %v6427
  %6810 = vmatmul.mubr.f32.gmra.mxu0 %v6426
  %v6811 = vpop.f32.mrf.mxu0
  %v6812 = vadd.f32 %v6651, %v6811
  %v6813 = vpop.f32.mrf.mxu0
  %v6814 = vadd.f32 %v6653, %v6813
  %6815 = vmatprep.mubr.f32.mxu0 %v6437
  %6816 = vmatmul.mubr.f32.gmra.mxu0 %v6436
  %v6817 = vpop.f32.mrf.mxu0
  %v6818 = vadd.f32 %v6657, %v6817
  %v6819 = vpop.f32.mrf.mxu0
  %v6820 = vadd.f32 %v6659, %v6819
  %6821 = vmatprep.mubr.f32.mxu0 %v6447
  %6822 = vmatmul.mubr.f32.gmra.mxu0 %v6446
  %v6823 = vpop.f32.mrf.mxu0
  %v6824 = vadd.f32 %v6663, %v6823
  %v6825 = vpop.f32.mrf.mxu0
  %v6826 = vadd.f32 %v6665, %v6825
  %6827 = vmatprep.mubr.f32.mxu0 %v6457
  %6828 = vmatmul.mubr.f32.gmra.mxu0 %v6456
  %v6829 = vpop.f32.mrf.mxu0
  %v6830 = vadd.f32 %v6669, %v6829
  %v6831 = vpop.f32.mrf.mxu0
  %v6832 = vadd.f32 %v6671, %v6831
  %6833 = vmatprep.mubr.f32.mxu0 %v6467
  %6834 = vmatmul.mubr.f32.gmra.mxu0 %v6466
  %v6835 = vpop.f32.mrf.mxu0
  %v6836 = vadd.f32 %v6675, %v6835
  %v6837 = vpop.f32.mrf.mxu0
  %v6838 = vadd.f32 %v6677, %v6837
  %6839 = vmatprep.mubr.f32.mxu0 %v6477
  %6840 = vmatmul.mubr.f32.gmra.mxu0 %v6476
  %v6841 = vpop.f32.mrf.mxu0
  %v6842 = vadd.f32 %v6681, %v6841
  %v6843 = vpop.f32.mrf.mxu0
  %v6844 = vadd.f32 %v6683, %v6843
  %6845 = vmatprep.mubr.f32.mxu0 %v6487
  %6846 = vmatmul.mubr.f32.gmra.mxu0 %v6486
  %v6847 = vpop.f32.mrf.mxu0
  %v6848 = vadd.f32 %v6687, %v6847
  %v6849 = vpop.f32.mrf.mxu0
  %v6850 = vadd.f32 %v6689, %v6849
  %6851 = vmatprep.mubr.f32.mxu0 %v6497
  %6852 = vmatmul.mubr.f32.gmra.mxu0 %v6496
  %v6853 = vpop.f32.mrf.mxu0
  %v6854 = vadd.f32 %v6693, %v6853
  %v6855 = vpop.f32.mrf.mxu0
  %v6856 = vadd.f32 %v6695, %v6855
  %6857 = vmatprep.mubr.f32.mxu0 %v6507
  %6858 = vmatmul.mubr.f32.gmra.mxu0 %v6506
  %v6859 = vpop.f32.mrf.mxu0
  %v6860 = vadd.f32 %v6699, %v6859
  %v6861 = vpop.f32.mrf.mxu0
  %v6862 = vadd.f32 %v6701, %v6861
  %6863 = vmatprep.mubr.f32.mxu0 %v6517
  %6864 = vmatmul.mubr.f32.gmra.mxu0 %v6516
  %v6865 = vpop.f32.mrf.mxu0
  %v6866 = vadd.f32 %v6705, %v6865
  %v6867 = vpop.f32.mrf.mxu0
  %v6868 = vadd.f32 %v6707, %v6867
  %6869 = vmatprep.mubr.f32.mxu0 %v6527
  %6870 = vmatmul.mubr.f32.gmra.mxu0 %v6526
  %v6871 = vpop.f32.mrf.mxu0
  %v6872 = vadd.f32 %v6711, %v6871
  %v6873 = vpop.f32.mrf.mxu0
  %v6874 = vadd.f32 %v6713, %v6873
  %6875 = vmatprep.mubr.f32.mxu0 %v6537
  %6876 = vmatmul.mubr.f32.gmra.mxu0 %v6536
  %v6877 = vpop.f32.mrf.mxu0
  %v6878 = vadd.f32 %v6717, %v6877
  %v6879 = vpop.f32.mrf.mxu0
  %v6880 = vadd.f32 %v6719, %v6879
  %6881 = vmatprep.mubr.f32.mxu0 %v6547
  %6882 = vmatmul.mubr.f32.gmra.mxu0 %v6546
  %v6883 = vpop.f32.mrf.mxu0
  %v6884 = vadd.f32 %v6723, %v6883
  %v6885 = vpop.f32.mrf.mxu0
  %v6886 = vadd.f32 %v6725, %v6885
  %6887 = vmatprep.mubr.f32.mxu0 %v6557
  %6888 = vmatmul.mubr.f32.gmra.mxu0 %v6556
  %v6889 = vpop.f32.mrf.mxu0
  %v6890 = vadd.f32 %v6729, %v6889
  %v6891 = vpop.f32.mrf.mxu0
  %v6892 = vadd.f32 %v6731, %v6891
  %6893 = vmatprep.mubr.f32.mxu0 %v6567
  %6894 = vmatmul.mubr.f32.gmra.mxu0 %v6566
  %v6895 = vpop.f32.mrf.mxu0
  %v6896 = vadd.f32 %v6735, %v6895
  %v6897 = vpop.f32.mrf.mxu0
  %v6898 = vadd.f32 %v6737, %v6897
  %6899 = vmatprep.mubr.f32.mxu0 %v6577
  %6900 = vmatmul.mubr.f32.gmra.mxu0 %v6576
  %v6901 = vpop.f32.mrf.mxu0
  %v6902 = vadd.f32 %v6741, %v6901
  %v6903 = vpop.f32.mrf.mxu0
  %v6904 = vadd.f32 %v6743, %v6903
  %6905 = vdwg.mxu0
  %6906 = vmatprep.subr.mxu0 %v6263
  %6907 = vmatpush1.msra.mxu0 %v6262
  %6908 = vmatprep.subr.mxu0 %v6261
  %6909 = vmatpush1.msra.mxu0 %v6260
  %6910 = vmatprep.subr.mxu0 %v6259
  %6911 = vmatpush1.msra.mxu0 %v6258
  %6912 = vmatprep.subr.mxu0 %v6257
  %6913 = vmatpush1.msra.mxu0 %v6256
  %6914 = vmatprep.subr.mxu0 %v6255
  %6915 = vmatpush1.msra.mxu0 %v6254
  %6916 = vmatprep.subr.mxu0 %v6253
  %6917 = vmatpush1.msra.mxu0 %v6252
  %6918 = vmatprep.subr.mxu0 %v6251
  %6919 = vmatpush1.msra.mxu0 %v6250
  %6920 = vmatprep.subr.mxu0 %v6249
  %6921 = vmatpush1.msra.mxu0 %v6248
  %6922 = vmatprep.subr.mxu0 %v6247
  %6923 = vmatpush1.msra.mxu0 %v6246
  %6924 = vmatprep.subr.mxu0 %v6245
  %6925 = vmatpush1.msra.mxu0 %v6244
  %6926 = vmatprep.subr.mxu0 %v6243
  %6927 = vmatpush1.msra.mxu0 %v6242
  %6928 = vmatprep.subr.mxu0 %v6241
  %6929 = vmatpush1.msra.mxu0 %v6240
  %6930 = vmatprep.subr.mxu0 %v6239
  %6931 = vmatpush1.msra.mxu0 %v6238
  %6932 = vmatprep.subr.mxu0 %v6237
  %6933 = vmatpush1.msra.mxu0 %v6236
  %6934 = vmatprep.subr.mxu0 %v6235
  %6935 = vmatpush1.msra.mxu0 %v6234
  %6936 = vmatprep.subr.mxu0 %v6233
  %6937 = vmatpush1.msra.mxu0 %v6232
  %6938 = vmatprep.subr.mxu0 %v6295
  %6939 = vmatpush2.msra.mxu0 %v6294
  %6940 = vmatprep.subr.mxu0 %v6293
  %6941 = vmatpush2.msra.mxu0 %v6292
  %6942 = vmatprep.subr.mxu0 %v6291
  %6943 = vmatpush2.msra.mxu0 %v6290
  %6944 = vmatprep.subr.mxu0 %v6289
  %6945 = vmatpush2.msra.mxu0 %v6288
  %6946 = vmatprep.subr.mxu0 %v6287
  %6947 = vmatpush2.msra.mxu0 %v6286
  %6948 = vmatprep.subr.mxu0 %v6285
  %6949 = vmatpush2.msra.mxu0 %v6284
  %6950 = vmatprep.subr.mxu0 %v6283
  %6951 = vmatpush2.msra.mxu0 %v6282
  %6952 = vmatprep.subr.mxu0 %v6281
  %6953 = vmatpush2.msra.mxu0 %v6280
  %6954 = vmatprep.subr.mxu0 %v6279
  %6955 = vmatpush2.msra.mxu0 %v6278
  %6956 = vmatprep.subr.mxu0 %v6277
  %6957 = vmatpush2.msra.mxu0 %v6276
  %6958 = vmatprep.subr.mxu0 %v6275
  %6959 = vmatpush2.msra.mxu0 %v6274
  %6960 = vmatprep.subr.mxu0 %v6273
  %6961 = vmatpush2.msra.mxu0 %v6272
  %6962 = vmatprep.subr.mxu0 %v6271
  %6963 = vmatpush2.msra.mxu0 %v6270
  %6964 = vmatprep.subr.mxu0 %v6269
  %6965 = vmatpush2.msra.mxu0 %v6268
  %6966 = vmatprep.subr.mxu0 %v6267
  %6967 = vmatpush2.msra.mxu0 %v6266
  %6968 = vmatprep.subr.mxu0 %v6265
  %6969 = vmatpush2.msra.mxu0 %v6264
  %6970 = vmatprep.mubr.f32.mxu0 %v6429
  %6971 = vmatmul.mubr.f32.gmra.mxu0 %v6428
  %v6972 = vpop.f32.mrf.mxu0
  %v6973 = vadd.f32 %v6812, %v6972
  %v6974 = vpop.f32.mrf.mxu0
  %v6975 = vadd.f32 %v6814, %v6974
  %6976 = vmatprep.mubr.f32.mxu0 %v6439
  %6977 = vmatmul.mubr.f32.gmra.mxu0 %v6438
  %v6978 = vpop.f32.mrf.mxu0
  %v6979 = vadd.f32 %v6818, %v6978
  %v6980 = vpop.f32.mrf.mxu0
  %v6981 = vadd.f32 %v6820, %v6980
  %6982 = vmatprep.mubr.f32.mxu0 %v6449
  %6983 = vmatmul.mubr.f32.gmra.mxu0 %v6448
  %v6984 = vpop.f32.mrf.mxu0
  %v6985 = vadd.f32 %v6824, %v6984
  %v6986 = vpop.f32.mrf.mxu0
  %v6987 = vadd.f32 %v6826, %v6986
  %6988 = vmatprep.mubr.f32.mxu0 %v6459
  %6989 = vmatmul.mubr.f32.gmra.mxu0 %v6458
  %v6990 = vpop.f32.mrf.mxu0
  %v6991 = vadd.f32 %v6830, %v6990
  %v6992 = vpop.f32.mrf.mxu0
  %v6993 = vadd.f32 %v6832, %v6992
  %6994 = vmatprep.mubr.f32.mxu0 %v6469
  %6995 = vmatmul.mubr.f32.gmra.mxu0 %v6468
  %v6996 = vpop.f32.mrf.mxu0
  %v6997 = vadd.f32 %v6836, %v6996
  %v6998 = vpop.f32.mrf.mxu0
  %v6999 = vadd.f32 %v6838, %v6998
  %7000 = vmatprep.mubr.f32.mxu0 %v6479
  %7001 = vmatmul.mubr.f32.gmra.mxu0 %v6478
  %v7002 = vpop.f32.mrf.mxu0
  %v7003 = vadd.f32 %v6842, %v7002
  %v7004 = vpop.f32.mrf.mxu0
  %v7005 = vadd.f32 %v6844, %v7004
  %7006 = vmatprep.mubr.f32.mxu0 %v6489
  %7007 = vmatmul.mubr.f32.gmra.mxu0 %v6488
  %v7008 = vpop.f32.mrf.mxu0
  %v7009 = vadd.f32 %v6848, %v7008
  %v7010 = vpop.f32.mrf.mxu0
  %v7011 = vadd.f32 %v6850, %v7010
  %7012 = vmatprep.mubr.f32.mxu0 %v6499
  %7013 = vmatmul.mubr.f32.gmra.mxu0 %v6498
  %v7014 = vpop.f32.mrf.mxu0
  %v7015 = vadd.f32 %v6854, %v7014
  %v7016 = vpop.f32.mrf.mxu0
  %v7017 = vadd.f32 %v6856, %v7016
  %7018 = vmatprep.mubr.f32.mxu0 %v6509
  %7019 = vmatmul.mubr.f32.gmra.mxu0 %v6508
  %v7020 = vpop.f32.mrf.mxu0
  %v7021 = vadd.f32 %v6860, %v7020
  %v7022 = vpop.f32.mrf.mxu0
  %v7023 = vadd.f32 %v6862, %v7022
  %7024 = vmatprep.mubr.f32.mxu0 %v6519
  %7025 = vmatmul.mubr.f32.gmra.mxu0 %v6518
  %v7026 = vpop.f32.mrf.mxu0
  %v7027 = vadd.f32 %v6866, %v7026
  %v7028 = vpop.f32.mrf.mxu0
  %v7029 = vadd.f32 %v6868, %v7028
  %7030 = vmatprep.mubr.f32.mxu0 %v6529
  %7031 = vmatmul.mubr.f32.gmra.mxu0 %v6528
  %v7032 = vpop.f32.mrf.mxu0
  %v7033 = vadd.f32 %v6872, %v7032
  %v7034 = vpop.f32.mrf.mxu0
  %v7035 = vadd.f32 %v6874, %v7034
  %7036 = vmatprep.mubr.f32.mxu0 %v6539
  %7037 = vmatmul.mubr.f32.gmra.mxu0 %v6538
  %v7038 = vpop.f32.mrf.mxu0
  %v7039 = vadd.f32 %v6878, %v7038
  %v7040 = vpop.f32.mrf.mxu0
  %v7041 = vadd.f32 %v6880, %v7040
  %7042 = vmatprep.mubr.f32.mxu0 %v6549
  %7043 = vmatmul.mubr.f32.gmra.mxu0 %v6548
  %v7044 = vpop.f32.mrf.mxu0
  %v7045 = vadd.f32 %v6884, %v7044
  %v7046 = vpop.f32.mrf.mxu0
  %v7047 = vadd.f32 %v6886, %v7046
  %7048 = vmatprep.mubr.f32.mxu0 %v6559
  %7049 = vmatmul.mubr.f32.gmra.mxu0 %v6558
  %v7050 = vpop.f32.mrf.mxu0
  %v7051 = vadd.f32 %v6890, %v7050
  %v7052 = vpop.f32.mrf.mxu0
  %v7053 = vadd.f32 %v6892, %v7052
  %7054 = vmatprep.mubr.f32.mxu0 %v6569
  %7055 = vmatmul.mubr.f32.gmra.mxu0 %v6568
  %v7056 = vpop.f32.mrf.mxu0
  %v7057 = vadd.f32 %v6896, %v7056
  %v7058 = vpop.f32.mrf.mxu0
  %v7059 = vadd.f32 %v6898, %v7058
  %7060 = vmatprep.mubr.f32.mxu0 %v6579
  %7061 = vmatmul.mubr.f32.gmra.mxu0 %v6578
  %v7062 = vpop.f32.mrf.mxu0
  %v7063 = vadd.f32 %v6902, %v7062
  %v7064 = vpop.f32.mrf.mxu0
  %v7065 = vadd.f32 %v6904, %v7064
  %7066 = vdwg.mxu0
  %7067 = vmatprep.subr.mxu0 %v6327
  %7068 = vmatpush1.msra.mxu0 %v6326
  %7069 = vmatprep.subr.mxu0 %v6325
  %7070 = vmatpush1.msra.mxu0 %v6324
  %7071 = vmatprep.subr.mxu0 %v6323
  %7072 = vmatpush1.msra.mxu0 %v6322
  %7073 = vmatprep.subr.mxu0 %v6321
  %7074 = vmatpush1.msra.mxu0 %v6320
  %7075 = vmatprep.subr.mxu0 %v6319
  %7076 = vmatpush1.msra.mxu0 %v6318
  %7077 = vmatprep.subr.mxu0 %v6317
  %7078 = vmatpush1.msra.mxu0 %v6316
  %7079 = vmatprep.subr.mxu0 %v6315
  %7080 = vmatpush1.msra.mxu0 %v6314
  %7081 = vmatprep.subr.mxu0 %v6313
  %7082 = vmatpush1.msra.mxu0 %v6312
  %7083 = vmatprep.subr.mxu0 %v6311
  %7084 = vmatpush1.msra.mxu0 %v6310
  %7085 = vmatprep.subr.mxu0 %v6309
  %7086 = vmatpush1.msra.mxu0 %v6308
  %7087 = vmatprep.subr.mxu0 %v6307
  %7088 = vmatpush1.msra.mxu0 %v6306
  %7089 = vmatprep.subr.mxu0 %v6305
  %7090 = vmatpush1.msra.mxu0 %v6304
  %7091 = vmatprep.subr.mxu0 %v6303
  %7092 = vmatpush1.msra.mxu0 %v6302
  %7093 = vmatprep.subr.mxu0 %v6301
  %7094 = vmatpush1.msra.mxu0 %v6300
  %7095 = vmatprep.subr.mxu0 %v6299
  %7096 = vmatpush1.msra.mxu0 %v6298
  %7097 = vmatprep.subr.mxu0 %v6297
  %7098 = vmatpush1.msra.mxu0 %v6296
  %7099 = vmatprep.subr.mxu0 %v6359
  %7100 = vmatpush2.msra.mxu0 %v6358
  %7101 = vmatprep.subr.mxu0 %v6357
  %7102 = vmatpush2.msra.mxu0 %v6356
  %7103 = vmatprep.subr.mxu0 %v6355
  %7104 = vmatpush2.msra.mxu0 %v6354
  %7105 = vmatprep.subr.mxu0 %v6353
  %7106 = vmatpush2.msra.mxu0 %v6352
  %7107 = vmatprep.subr.mxu0 %v6351
  %7108 = vmatpush2.msra.mxu0 %v6350
  %7109 = vmatprep.subr.mxu0 %v6349
  %7110 = vmatpush2.msra.mxu0 %v6348
  %7111 = vmatprep.subr.mxu0 %v6347
  %7112 = vmatpush2.msra.mxu0 %v6346
  %7113 = vmatprep.subr.mxu0 %v6345
  %7114 = vmatpush2.msra.mxu0 %v6344
  %7115 = vmatprep.subr.mxu0 %v6343
  %7116 = vmatpush2.msra.mxu0 %v6342
  %7117 = vmatprep.subr.mxu0 %v6341
  %7118 = vmatpush2.msra.mxu0 %v6340
  %7119 = vmatprep.subr.mxu0 %v6339
  %7120 = vmatpush2.msra.mxu0 %v6338
  %7121 = vmatprep.subr.mxu0 %v6337
  %7122 = vmatpush2.msra.mxu0 %v6336
  %7123 = vmatprep.subr.mxu0 %v6335
  %7124 = vmatpush2.msra.mxu0 %v6334
  %7125 = vmatprep.subr.mxu0 %v6333
  %7126 = vmatpush2.msra.mxu0 %v6332
  %7127 = vmatprep.subr.mxu0 %v6331
  %7128 = vmatpush2.msra.mxu0 %v6330
  %7129 = vmatprep.subr.mxu0 %v6329
  %7130 = vmatpush2.msra.mxu0 %v6328
  %7131 = vmatprep.mubr.f32.mxu0 %v6431
  %7132 = vmatmul.mubr.f32.gmra.mxu0 %v6430
  %v7133 = vpop.f32.mrf.mxu0
  %v7134 = vadd.f32 %v6973, %v7133
  %v7135 = vpop.f32.mrf.mxu0
  %v7136 = vadd.f32 %v6975, %v7135
  %7137 = vmatprep.mubr.f32.mxu0 %v6441
  %7138 = vmatmul.mubr.f32.gmra.mxu0 %v6440
  %v7139 = vpop.f32.mrf.mxu0
  %v7140 = vadd.f32 %v6979, %v7139
  %v7141 = vpop.f32.mrf.mxu0
  %v7142 = vadd.f32 %v6981, %v7141
  %7143 = vmatprep.mubr.f32.mxu0 %v6451
  %7144 = vmatmul.mubr.f32.gmra.mxu0 %v6450
  %v7145 = vpop.f32.mrf.mxu0
  %v7146 = vadd.f32 %v6985, %v7145
  %v7147 = vpop.f32.mrf.mxu0
  %v7148 = vadd.f32 %v6987, %v7147
  %7149 = vmatprep.mubr.f32.mxu0 %v6461
  %7150 = vmatmul.mubr.f32.gmra.mxu0 %v6460
  %v7151 = vpop.f32.mrf.mxu0
  %v7152 = vadd.f32 %v6991, %v7151
  %v7153 = vpop.f32.mrf.mxu0
  %v7154 = vadd.f32 %v6993, %v7153
  %7155 = vmatprep.mubr.f32.mxu0 %v6471
  %7156 = vmatmul.mubr.f32.gmra.mxu0 %v6470
  %v7157 = vpop.f32.mrf.mxu0
  %v7158 = vadd.f32 %v6997, %v7157
  %v7159 = vpop.f32.mrf.mxu0
  %v7160 = vadd.f32 %v6999, %v7159
  %7161 = vmatprep.mubr.f32.mxu0 %v6481
  %7162 = vmatmul.mubr.f32.gmra.mxu0 %v6480
  %v7163 = vpop.f32.mrf.mxu0
  %v7164 = vadd.f32 %v7003, %v7163
  %v7165 = vpop.f32.mrf.mxu0
  %v7166 = vadd.f32 %v7005, %v7165
  %7167 = vmatprep.mubr.f32.mxu0 %v6491
  %7168 = vmatmul.mubr.f32.gmra.mxu0 %v6490
  %v7169 = vpop.f32.mrf.mxu0
  %v7170 = vadd.f32 %v7009, %v7169
  %v7171 = vpop.f32.mrf.mxu0
  %v7172 = vadd.f32 %v7011, %v7171
  %7173 = vmatprep.mubr.f32.mxu0 %v6501
  %7174 = vmatmul.mubr.f32.gmra.mxu0 %v6500
  %v7175 = vpop.f32.mrf.mxu0
  %v7176 = vadd.f32 %v7015, %v7175
  %v7177 = vpop.f32.mrf.mxu0
  %v7178 = vadd.f32 %v7017, %v7177
  %7179 = vmatprep.mubr.f32.mxu0 %v6511
  %7180 = vmatmul.mubr.f32.gmra.mxu0 %v6510
  %v7181 = vpop.f32.mrf.mxu0
  %v7182 = vadd.f32 %v7021, %v7181
  %v7183 = vpop.f32.mrf.mxu0
  %v7184 = vadd.f32 %v7023, %v7183
  %7185 = vmatprep.mubr.f32.mxu0 %v6521
  %7186 = vmatmul.mubr.f32.gmra.mxu0 %v6520
  %v7187 = vpop.f32.mrf.mxu0
  %v7188 = vadd.f32 %v7027, %v7187
  %v7189 = vpop.f32.mrf.mxu0
  %v7190 = vadd.f32 %v7029, %v7189
  %7191 = vmatprep.mubr.f32.mxu0 %v6531
  %7192 = vmatmul.mubr.f32.gmra.mxu0 %v6530
  %v7193 = vpop.f32.mrf.mxu0
  %v7194 = vadd.f32 %v7033, %v7193
  %v7195 = vpop.f32.mrf.mxu0
  %v7196 = vadd.f32 %v7035, %v7195
  %7197 = vmatprep.mubr.f32.mxu0 %v6541
  %7198 = vmatmul.mubr.f32.gmra.mxu0 %v6540
  %v7199 = vpop.f32.mrf.mxu0
  %v7200 = vadd.f32 %v7039, %v7199
  %v7201 = vpop.f32.mrf.mxu0
  %v7202 = vadd.f32 %v7041, %v7201
  %7203 = vmatprep.mubr.f32.mxu0 %v6551
  %7204 = vmatmul.mubr.f32.gmra.mxu0 %v6550
  %v7205 = vpop.f32.mrf.mxu0
  %v7206 = vadd.f32 %v7045, %v7205
  %v7207 = vpop.f32.mrf.mxu0
  %v7208 = vadd.f32 %v7047, %v7207
  %7209 = vmatprep.mubr.f32.mxu0 %v6561
  %7210 = vmatmul.mubr.f32.gmra.mxu0 %v6560
  %v7211 = vpop.f32.mrf.mxu0
  %v7212 = vadd.f32 %v7051, %v7211
  %v7213 = vpop.f32.mrf.mxu0
  %v7214 = vadd.f32 %v7053, %v7213
  %7215 = vmatprep.mubr.f32.mxu0 %v6571
  %7216 = vmatmul.mubr.f32.gmra.mxu0 %v6570
  %v7217 = vpop.f32.mrf.mxu0
  %v7218 = vadd.f32 %v7057, %v7217
  %v7219 = vpop.f32.mrf.mxu0
  %v7220 = vadd.f32 %v7059, %v7219
  %7221 = vmatprep.mubr.f32.mxu0 %v6581
  %7222 = vmatmul.mubr.f32.gmra.mxu0 %v6580
  %v7223 = vpop.f32.mrf.mxu0
  %v7224 = vadd.f32 %v7063, %v7223
  %v7225 = vpop.f32.mrf.mxu0
  %v7226 = vadd.f32 %v7065, %v7225
  %7227 = vdwg.mxu0
  %7228 = vmatprep.subr.mxu0 %v6391
  %7229 = vmatpush1.msra.mxu0 %v6390
  %7230 = vmatprep.subr.mxu0 %v6389
  %7231 = vmatpush1.msra.mxu0 %v6388
  %7232 = vmatprep.subr.mxu0 %v6387
  %7233 = vmatpush1.msra.mxu0 %v6386
  %7234 = vmatprep.subr.mxu0 %v6385
  %7235 = vmatpush1.msra.mxu0 %v6384
  %7236 = vmatprep.subr.mxu0 %v6383
  %7237 = vmatpush1.msra.mxu0 %v6382
  %7238 = vmatprep.subr.mxu0 %v6381
  %7239 = vmatpush1.msra.mxu0 %v6380
  %7240 = vmatprep.subr.mxu0 %v6379
  %7241 = vmatpush1.msra.mxu0 %v6378
  %7242 = vmatprep.subr.mxu0 %v6377
  %7243 = vmatpush1.msra.mxu0 %v6376
  %7244 = vmatprep.subr.mxu0 %v6375
  %7245 = vmatpush1.msra.mxu0 %v6374
  %7246 = vmatprep.subr.mxu0 %v6373
  %7247 = vmatpush1.msra.mxu0 %v6372
  %7248 = vmatprep.subr.mxu0 %v6371
  %7249 = vmatpush1.msra.mxu0 %v6370
  %7250 = vmatprep.subr.mxu0 %v6369
  %7251 = vmatpush1.msra.mxu0 %v6368
  %7252 = vmatprep.subr.mxu0 %v6367
  %7253 = vmatpush1.msra.mxu0 %v6366
  %7254 = vmatprep.subr.mxu0 %v6365
  %7255 = vmatpush1.msra.mxu0 %v6364
  %7256 = vmatprep.subr.mxu0 %v6363
  %7257 = vmatpush1.msra.mxu0 %v6362
  %7258 = vmatprep.subr.mxu0 %v6361
  %7259 = vmatpush1.msra.mxu0 %v6360
  %7260 = vmatprep.subr.mxu0 %v6423
  %7261 = vmatpush2.msra.mxu0 %v6422
  %7262 = vmatprep.subr.mxu0 %v6421
  %7263 = vmatpush2.msra.mxu0 %v6420
  %7264 = vmatprep.subr.mxu0 %v6419
  %7265 = vmatpush2.msra.mxu0 %v6418
  %7266 = vmatprep.subr.mxu0 %v6417
  %7267 = vmatpush2.msra.mxu0 %v6416
  %7268 = vmatprep.subr.mxu0 %v6415
  %7269 = vmatpush2.msra.mxu0 %v6414
  %7270 = vmatprep.subr.mxu0 %v6413
  %7271 = vmatpush2.msra.mxu0 %v6412
  %7272 = vmatprep.subr.mxu0 %v6411
  %7273 = vmatpush2.msra.mxu0 %v6410
  %7274 = vmatprep.subr.mxu0 %v6409
  %7275 = vmatpush2.msra.mxu0 %v6408
  %7276 = vmatprep.subr.mxu0 %v6407
  %7277 = vmatpush2.msra.mxu0 %v6406
  %7278 = vmatprep.subr.mxu0 %v6405
  %7279 = vmatpush2.msra.mxu0 %v6404
  %7280 = vmatprep.subr.mxu0 %v6403
  %7281 = vmatpush2.msra.mxu0 %v6402
  %7282 = vmatprep.subr.mxu0 %v6401
  %7283 = vmatpush2.msra.mxu0 %v6400
  %7284 = vmatprep.subr.mxu0 %v6399
  %7285 = vmatpush2.msra.mxu0 %v6398
  %7286 = vmatprep.subr.mxu0 %v6397
  %7287 = vmatpush2.msra.mxu0 %v6396
  %7288 = vmatprep.subr.mxu0 %v6395
  %7289 = vmatpush2.msra.mxu0 %v6394
  %7290 = vmatprep.subr.mxu0 %v6393
  %7291 = vmatpush2.msra.mxu0 %v6392
  %7292 = vmatprep.mubr.f32.mxu0 %v6433
  %7293 = vmatmul.mubr.f32.gmra.mxu0 %v6432
  %v7294 = vpop.f32.mrf.mxu0
  %v7295 = vadd.f32 %v7134, %v7294
  %v7296 = vpop.f32.mrf.mxu0
  %v7297 = vadd.f32 %v7136, %v7296
  %7298 = vmatprep.mubr.f32.mxu0 %v6443
  %7299 = vmatmul.mubr.f32.gmra.mxu0 %v6442
  %v7300 = vpop.f32.mrf.mxu0
  %v7301 = vadd.f32 %v7140, %v7300
  %v7302 = vpop.f32.mrf.mxu0
  %v7303 = vadd.f32 %v7142, %v7302
  %7304 = vmatprep.mubr.f32.mxu0 %v6453
  %7305 = vmatmul.mubr.f32.gmra.mxu0 %v6452
  %v7306 = vpop.f32.mrf.mxu0
  %v7307 = vadd.f32 %v7146, %v7306
  %v7308 = vpop.f32.mrf.mxu0
  %v7309 = vadd.f32 %v7148, %v7308
  %7310 = vmatprep.mubr.f32.mxu0 %v6463
  %7311 = vmatmul.mubr.f32.gmra.mxu0 %v6462
  %v7312 = vpop.f32.mrf.mxu0
  %v7313 = vadd.f32 %v7152, %v7312
  %v7314 = vpop.f32.mrf.mxu0
  %v7315 = vadd.f32 %v7154, %v7314
  %7316 = vmatprep.mubr.f32.mxu0 %v6473
  %7317 = vmatmul.mubr.f32.gmra.mxu0 %v6472
  %v7318 = vpop.f32.mrf.mxu0
  %v7319 = vadd.f32 %v7158, %v7318
  %v7320 = vpop.f32.mrf.mxu0
  %v7321 = vadd.f32 %v7160, %v7320
  %7322 = vmatprep.mubr.f32.mxu0 %v6483
  %7323 = vmatmul.mubr.f32.gmra.mxu0 %v6482
  %v7324 = vpop.f32.mrf.mxu0
  %v7325 = vadd.f32 %v7164, %v7324
  %v7326 = vpop.f32.mrf.mxu0
  %v7327 = vadd.f32 %v7166, %v7326
  %7328 = vmatprep.mubr.f32.mxu0 %v6493
  %7329 = vmatmul.mubr.f32.gmra.mxu0 %v6492
  %v7330 = vpop.f32.mrf.mxu0
  %v7331 = vadd.f32 %v7170, %v7330
  %v7332 = vpop.f32.mrf.mxu0
  %v7333 = vadd.f32 %v7172, %v7332
  %7334 = vmatprep.mubr.f32.mxu0 %v6503
  %7335 = vmatmul.mubr.f32.gmra.mxu0 %v6502
  %v7336 = vpop.f32.mrf.mxu0
  %v7337 = vadd.f32 %v7176, %v7336
  %v7338 = vpop.f32.mrf.mxu0
  %v7339 = vadd.f32 %v7178, %v7338
  %7340 = vmatprep.mubr.f32.mxu0 %v6513
  %7341 = vmatmul.mubr.f32.gmra.mxu0 %v6512
  %v7342 = vpop.f32.mrf.mxu0
  %v7343 = vadd.f32 %v7182, %v7342
  %v7344 = vpop.f32.mrf.mxu0
  %v7345 = vadd.f32 %v7184, %v7344
  %7346 = vmatprep.mubr.f32.mxu0 %v6523
  %7347 = vmatmul.mubr.f32.gmra.mxu0 %v6522
  %v7348 = vpop.f32.mrf.mxu0
  %v7349 = vadd.f32 %v7188, %v7348
  %v7350 = vpop.f32.mrf.mxu0
  %v7351 = vadd.f32 %v7190, %v7350
  %7352 = vmatprep.mubr.f32.mxu0 %v6533
  %7353 = vmatmul.mubr.f32.gmra.mxu0 %v6532
  %v7354 = vpop.f32.mrf.mxu0
  %v7355 = vadd.f32 %v7194, %v7354
  %v7356 = vpop.f32.mrf.mxu0
  %v7357 = vadd.f32 %v7196, %v7356
  %7358 = vmatprep.mubr.f32.mxu0 %v6543
  %7359 = vmatmul.mubr.f32.gmra.mxu0 %v6542
  %v7360 = vpop.f32.mrf.mxu0
  %v7361 = vadd.f32 %v7200, %v7360
  %v7362 = vpop.f32.mrf.mxu0
  %v7363 = vadd.f32 %v7202, %v7362
  %7364 = vmatprep.mubr.f32.mxu0 %v6553
  %7365 = vmatmul.mubr.f32.gmra.mxu0 %v6552
  %v7366 = vpop.f32.mrf.mxu0
  %v7367 = vadd.f32 %v7206, %v7366
  %v7368 = vpop.f32.mrf.mxu0
  %v7369 = vadd.f32 %v7208, %v7368
  %7370 = vmatprep.mubr.f32.mxu0 %v6563
  %7371 = vmatmul.mubr.f32.gmra.mxu0 %v6562
  %v7372 = vpop.f32.mrf.mxu0
  %v7373 = vadd.f32 %v7212, %v7372
  %v7374 = vpop.f32.mrf.mxu0
  %v7375 = vadd.f32 %v7214, %v7374
  %7376 = vmatprep.mubr.f32.mxu0 %v6573
  %7377 = vmatmul.mubr.f32.gmra.mxu0 %v6572
  %v7378 = vpop.f32.mrf.mxu0
  %v7379 = vadd.f32 %v7218, %v7378
  %v7380 = vpop.f32.mrf.mxu0
  %v7381 = vadd.f32 %v7220, %v7380
  %7382 = vmatprep.mubr.f32.mxu0 %v6583
  %7383 = vmatmul.mubr.f32.gmra.mxu0 %v6582
  %v7384 = vpop.f32.mrf.mxu0
  %v7385 = vadd.f32 %v7224, %v7384
  %v7386 = vpop.f32.mrf.mxu0
  %v7387 = vadd.f32 %v7226, %v7386
  %7388 = vdwg.mxu0
  %v7389 = vsel %vm343, %v7297, 0.0
  %v7390 = vadd.f32 %v7295, %v7389
  %7391 = vadd.xlane.f32.xlu0 %v7390
  %v7392 = vpop.xlane.xlu0 %7391
  %v7393 = vsel %vm343, %v7303, 0.0
  %v7394 = vadd.f32 %v7301, %v7393
  %7395 = vadd.xlane.f32.xlu0 %v7394
  %v7396 = vpop.xlane.xlu0 %7395
  %v7397 = vsel %vm343, %v7309, 0.0
  %v7398 = vadd.f32 %v7307, %v7397
  %7399 = vadd.xlane.f32.xlu0 %v7398
  %v7400 = vpop.xlane.xlu0 %7399
  %v7401 = vsel %vm343, %v7315, 0.0
  %v7402 = vadd.f32 %v7313, %v7401
  %7403 = vadd.xlane.f32.xlu0 %v7402
  %v7404 = vpop.xlane.xlu0 %7403
  %v7405 = vsel %vm343, %v7321, 0.0
  %v7406 = vadd.f32 %v7319, %v7405
  %7407 = vadd.xlane.f32.xlu0 %v7406
  %v7408 = vpop.xlane.xlu0 %7407
  %v7409 = vsel %vm343, %v7327, 0.0
  %v7410 = vadd.f32 %v7325, %v7409
  %7411 = vadd.xlane.f32.xlu0 %v7410
  %v7412 = vpop.xlane.xlu0 %7411
  %v7413 = vsel %vm343, %v7333, 0.0
  %v7414 = vadd.f32 %v7331, %v7413
  %7415 = vadd.xlane.f32.xlu0 %v7414
  %v7416 = vpop.xlane.xlu0 %7415
  %v7417 = vsel %vm343, %v7339, 0.0
  %v7418 = vadd.f32 %v7337, %v7417
  %7419 = vadd.xlane.f32.xlu0 %v7418
  %v7420 = vpop.xlane.xlu0 %7419
  %v7421 = vsel %vm343, %v7345, 0.0
  %v7422 = vadd.f32 %v7343, %v7421
  %7423 = vadd.xlane.f32.xlu0 %v7422
  %v7424 = vpop.xlane.xlu0 %7423
  %v7425 = vsel %vm343, %v7351, 0.0
  %v7426 = vadd.f32 %v7349, %v7425
  %7427 = vadd.xlane.f32.xlu0 %v7426
  %v7428 = vpop.xlane.xlu0 %7427
  %v7429 = vsel %vm343, %v7357, 0.0
  %v7430 = vadd.f32 %v7355, %v7429
  %7431 = vadd.xlane.f32.xlu0 %v7430
  %v7432 = vpop.xlane.xlu0 %7431
  %v7433 = vsel %vm343, %v7363, 0.0
  %v7434 = vadd.f32 %v7361, %v7433
  %7435 = vadd.xlane.f32.xlu0 %v7434
  %v7436 = vpop.xlane.xlu0 %7435
  %v7437 = vsel %vm343, %v7369, 0.0
  %v7438 = vadd.f32 %v7367, %v7437
  %7439 = vadd.xlane.f32.xlu0 %v7438
  %v7440 = vpop.xlane.xlu0 %7439
  %v7441 = vsel %vm343, %v7375, 0.0
  %v7442 = vadd.f32 %v7373, %v7441
  %7443 = vadd.xlane.f32.xlu0 %v7442
  %v7444 = vpop.xlane.xlu0 %7443
  %v7445 = vsel %vm343, %v7381, 0.0
  %v7446 = vadd.f32 %v7379, %v7445
  %7447 = vadd.xlane.f32.xlu0 %v7446
  %v7448 = vpop.xlane.xlu0 %7447
  %v7449 = vsel %vm343, %v7387, 0.0
  %v7450 = vadd.f32 %v7385, %v7449
  %7451 = vadd.xlane.f32.xlu0 %v7450
  %v7452 = vpop.xlane.xlu0 %7451
  %v7453 = vmul.f32 %v7295, %v7295
  %v7454 = vmul.f32 %v7297, %v7297
  %v7455 = vmul.f32 %v7301, %v7301
  %v7456 = vmul.f32 %v7303, %v7303
  %v7457 = vmul.f32 %v7307, %v7307
  %v7458 = vmul.f32 %v7309, %v7309
  %v7459 = vmul.f32 %v7313, %v7313
  %v7460 = vmul.f32 %v7315, %v7315
  %v7461 = vmul.f32 %v7319, %v7319
  %v7462 = vmul.f32 %v7321, %v7321
  %v7463 = vmul.f32 %v7325, %v7325
  %v7464 = vmul.f32 %v7327, %v7327
  %v7465 = vmul.f32 %v7331, %v7331
  %v7466 = vmul.f32 %v7333, %v7333
  %v7467 = vmul.f32 %v7337, %v7337
  %v7468 = vmul.f32 %v7339, %v7339
  %v7469 = vmul.f32 %v7343, %v7343
  %v7470 = vmul.f32 %v7345, %v7345
  %v7471 = vmul.f32 %v7349, %v7349
  %v7472 = vmul.f32 %v7351, %v7351
  %v7473 = vmul.f32 %v7355, %v7355
  %v7474 = vmul.f32 %v7357, %v7357
  %v7475 = vmul.f32 %v7361, %v7361
  %v7476 = vmul.f32 %v7363, %v7363
  %v7477 = vmul.f32 %v7367, %v7367
  %v7478 = vmul.f32 %v7369, %v7369
  %v7479 = vmul.f32 %v7373, %v7373
  %v7480 = vmul.f32 %v7375, %v7375
  %v7481 = vmul.f32 %v7379, %v7379
  %v7482 = vmul.f32 %v7381, %v7381
  %v7483 = vmul.f32 %v7385, %v7385
  %v7484 = vmul.f32 %v7387, %v7387
  %v7485 = vsel %vm343, %v7454, 0.0
  %v7486 = vadd.f32 %v7453, %v7485
  %7487 = vadd.xlane.f32.xlu0 %v7486
  %v7488 = vpop.xlane.xlu0 %7487
  %v7489 = vsel %vm343, %v7456, 0.0
  %v7490 = vadd.f32 %v7455, %v7489
  %7491 = vadd.xlane.f32.xlu0 %v7490
  %v7492 = vpop.xlane.xlu0 %7491
  %v7493 = vsel %vm343, %v7458, 0.0
  %v7494 = vadd.f32 %v7457, %v7493
  %7495 = vadd.xlane.f32.xlu0 %v7494
  %v7496 = vpop.xlane.xlu0 %7495
  %v7497 = vsel %vm343, %v7460, 0.0
  %v7498 = vadd.f32 %v7459, %v7497
  %7499 = vadd.xlane.f32.xlu0 %v7498
  %v7500 = vpop.xlane.xlu0 %7499
  %v7501 = vsel %vm343, %v7462, 0.0
  %v7502 = vadd.f32 %v7461, %v7501
  %7503 = vadd.xlane.f32.xlu0 %v7502
  %v7504 = vpop.xlane.xlu0 %7503
  %v7505 = vsel %vm343, %v7464, 0.0
  %v7506 = vadd.f32 %v7463, %v7505
  %7507 = vadd.xlane.f32.xlu0 %v7506
  %v7508 = vpop.xlane.xlu0 %7507
  %v7509 = vsel %vm343, %v7466, 0.0
  %v7510 = vadd.f32 %v7465, %v7509
  %7511 = vadd.xlane.f32.xlu0 %v7510
  %v7512 = vpop.xlane.xlu0 %7511
  %v7513 = vsel %vm343, %v7468, 0.0
  %v7514 = vadd.f32 %v7467, %v7513
  %7515 = vadd.xlane.f32.xlu0 %v7514
  %v7516 = vpop.xlane.xlu0 %7515
  %v7517 = vsel %vm343, %v7470, 0.0
  %v7518 = vadd.f32 %v7469, %v7517
  %7519 = vadd.xlane.f32.xlu0 %v7518
  %v7520 = vpop.xlane.xlu0 %7519
  %v7521 = vsel %vm343, %v7472, 0.0
  %v7522 = vadd.f32 %v7471, %v7521
  %7523 = vadd.xlane.f32.xlu0 %v7522
  %v7524 = vpop.xlane.xlu0 %7523
  %v7525 = vsel %vm343, %v7474, 0.0
  %v7526 = vadd.f32 %v7473, %v7525
  %7527 = vadd.xlane.f32.xlu0 %v7526
  %v7528 = vpop.xlane.xlu0 %7527
  %v7529 = vsel %vm343, %v7476, 0.0
  %v7530 = vadd.f32 %v7475, %v7529
  %7531 = vadd.xlane.f32.xlu0 %v7530
  %v7532 = vpop.xlane.xlu0 %7531
  %v7533 = vsel %vm343, %v7478, 0.0
  %v7534 = vadd.f32 %v7477, %v7533
  %7535 = vadd.xlane.f32.xlu0 %v7534
  %v7536 = vpop.xlane.xlu0 %7535
  %v7537 = vsel %vm343, %v7480, 0.0
  %v7538 = vadd.f32 %v7479, %v7537
  %7539 = vadd.xlane.f32.xlu0 %v7538
  %v7540 = vpop.xlane.xlu0 %7539
  %v7541 = vsel %vm343, %v7482, 0.0
  %v7542 = vadd.f32 %v7481, %v7541
  %7543 = vadd.xlane.f32.xlu0 %v7542
  %v7544 = vpop.xlane.xlu0 %7543
  %v7545 = vsel %vm343, %v7484, 0.0
  %v7546 = vadd.f32 %v7483, %v7545
  %7547 = vadd.xlane.f32.xlu0 %v7546
  %v7548 = vpop.xlane.xlu0 %7547
  %v7549 = vmul.f32 %v7392, 0.0051020407
  %v7550 = vmul.f32 %v7396, 0.0051020407
  %v7551 = vmul.f32 %v7400, 0.0051020407
  %v7552 = vmul.f32 %v7404, 0.0051020407
  %v7553 = vmul.f32 %v7408, 0.0051020407
  %v7554 = vmul.f32 %v7412, 0.0051020407
  %v7555 = vmul.f32 %v7416, 0.0051020407
  %v7556 = vmul.f32 %v7420, 0.0051020407
  %v7557 = vmul.f32 %v7424, 0.0051020407
  %v7558 = vmul.f32 %v7428, 0.0051020407
  %v7559 = vmul.f32 %v7432, 0.0051020407
  %v7560 = vmul.f32 %v7436, 0.0051020407
  %v7561 = vmul.f32 %v7440, 0.0051020407
  %v7562 = vmul.f32 %v7444, 0.0051020407
  %v7563 = vmul.f32 %v7448, 0.0051020407
  %v7564 = vmul.f32 %v7452, 0.0051020407
  %v7565 = vmul.f32 %v7488, 0.0051020407
  %v7566 = vmul.f32 %v7492, 0.0051020407
  %v7567 = vmul.f32 %v7496, 0.0051020407
  %v7568 = vmul.f32 %v7500, 0.0051020407
  %v7569 = vmul.f32 %v7504, 0.0051020407
  %v7570 = vmul.f32 %v7508, 0.0051020407
  %v7571 = vmul.f32 %v7512, 0.0051020407
  %v7572 = vmul.f32 %v7516, 0.0051020407
  %v7573 = vmul.f32 %v7520, 0.0051020407
  %v7574 = vmul.f32 %v7524, 0.0051020407
  %v7575 = vmul.f32 %v7528, 0.0051020407
  %v7576 = vmul.f32 %v7532, 0.0051020407
  %v7577 = vmul.f32 %v7536, 0.0051020407
  %v7578 = vmul.f32 %v7540, 0.0051020407
  %v7579 = vmul.f32 %v7544, 0.0051020407
  %v7580 = vmul.f32 %v7548, 0.0051020407
  %v7581 = vmul.f32 %v7549, %v7549
  %v7582 = vmul.f32 %v7550, %v7550
  %v7583 = vmul.f32 %v7551, %v7551
  %v7584 = vmul.f32 %v7552, %v7552
  %v7585 = vmul.f32 %v7553, %v7553
  %v7586 = vmul.f32 %v7554, %v7554
  %v7587 = vmul.f32 %v7555, %v7555
  %v7588 = vmul.f32 %v7556, %v7556
  %v7589 = vmul.f32 %v7557, %v7557
  %v7590 = vmul.f32 %v7558, %v7558
  %v7591 = vmul.f32 %v7559, %v7559
  %v7592 = vmul.f32 %v7560, %v7560
  %v7593 = vmul.f32 %v7561, %v7561
  %v7594 = vmul.f32 %v7562, %v7562
  %v7595 = vmul.f32 %v7563, %v7563
  %v7596 = vmul.f32 %v7564, %v7564
  %v7597 = vsub.f32 %v7565, %v7581
  %v7598 = vsub.f32 %v7566, %v7582
  %v7599 = vsub.f32 %v7567, %v7583
  %v7600 = vsub.f32 %v7568, %v7584
  %v7601 = vsub.f32 %v7569, %v7585
  %v7602 = vsub.f32 %v7570, %v7586
  %v7603 = vsub.f32 %v7571, %v7587
  %v7604 = vsub.f32 %v7572, %v7588
  %v7605 = vsub.f32 %v7573, %v7589
  %v7606 = vsub.f32 %v7574, %v7590
  %v7607 = vsub.f32 %v7575, %v7591
  %v7608 = vsub.f32 %v7576, %v7592
  %v7609 = vsub.f32 %v7577, %v7593
  %v7610 = vsub.f32 %v7578, %v7594
  %v7611 = vsub.f32 %v7579, %v7595
  %v7612 = vsub.f32 %v7580, %v7596
  %v7613 = vmax.f32 %v7597, 0.0
  %v7614 = vmax.f32 %v7598, 0.0
  %v7615 = vmax.f32 %v7599, 0.0
  %v7616 = vmax.f32 %v7600, 0.0
  %v7617 = vmax.f32 %v7601, 0.0
  %v7618 = vmax.f32 %v7602, 0.0
  %v7619 = vmax.f32 %v7603, 0.0
  %v7620 = vmax.f32 %v7604, 0.0
  %v7621 = vmax.f32 %v7605, 0.0
  %v7622 = vmax.f32 %v7606, 0.0
  %v7623 = vmax.f32 %v7607, 0.0
  %v7624 = vmax.f32 %v7608, 0.0
  %v7625 = vmax.f32 %v7609, 0.0
  %v7626 = vmax.f32 %v7610, 0.0
  %v7627 = vmax.f32 %v7611, 0.0
  %v7628 = vmax.f32 %v7612, 0.0
  %v7629 = vld [vmem:[%s4] sm:$0xff]
  %v7630 = vld [vmem:[%s4 + $0x8] sm:$0xff]
  %v7631 = vld [vmem:[%s4 + $0x10] sm:$0xff]
  %v7632 = vld [vmem:[%s4 + $0x18] sm:$0xff]
  %v7633 = vld [vmem:[%s4 + $0x20] sm:$0xff]
  %v7634 = vld [vmem:[%s4 + $0x28] sm:$0xff]
  %v7635 = vld [vmem:[%s4 + $0x30] sm:$0xff]
  %v7636 = vld [vmem:[%s4 + $0x38] sm:$0xff]
  %v7637 = vld [vmem:[%s4 + $0x40] sm:$0xff]
  %v7638 = vld [vmem:[%s4 + $0x48] sm:$0xff]
  %v7639 = vld [vmem:[%s4 + $0x50] sm:$0xff]
  %v7640 = vld [vmem:[%s4 + $0x58] sm:$0xff]
  %v7641 = vld [vmem:[%s4 + $0x60] sm:$0xff]
  %v7642 = vld [vmem:[%s4 + $0x68] sm:$0xff]
  %v7643 = vld [vmem:[%s4 + $0x70] sm:$0xff]
  %v7644 = vld [vmem:[%s4 + $0x78] sm:$0xff]
  %v7645 = vadd.f32 %v7613, 1e-05
  %v7646 = vadd.f32 %v7614, 1e-05
  %v7647 = vadd.f32 %v7615, 1e-05
  %v7648 = vadd.f32 %v7616, 1e-05
  %v7649 = vadd.f32 %v7617, 1e-05
  %v7650 = vadd.f32 %v7618, 1e-05
  %v7651 = vadd.f32 %v7619, 1e-05
  %v7652 = vadd.f32 %v7620, 1e-05
  %v7653 = vadd.f32 %v7621, 1e-05
  %v7654 = vadd.f32 %v7622, 1e-05
  %v7655 = vadd.f32 %v7623, 1e-05
  %v7656 = vadd.f32 %v7624, 1e-05
  %v7657 = vadd.f32 %v7625, 1e-05
  %v7658 = vadd.f32 %v7626, 1e-05
  %v7659 = vadd.f32 %v7627, 1e-05
  %v7660 = vadd.f32 %v7628, 1e-05
  %v7661 = vrsqrt.pop %v7645
  %v7662 = vrsqrt.pop %v7646
  %v7663 = vrsqrt.pop %v7647
  %v7664 = vrsqrt.pop %v7648
  %v7665 = vrsqrt.pop %v7649
  %v7666 = vrsqrt.pop %v7650
  %v7667 = vrsqrt.pop %v7651
  %v7668 = vrsqrt.pop %v7652
  %v7669 = vrsqrt.pop %v7653
  %v7670 = vrsqrt.pop %v7654
  %v7671 = vrsqrt.pop %v7655
  %v7672 = vrsqrt.pop %v7656
  %v7673 = vrsqrt.pop %v7657
  %v7674 = vrsqrt.pop %v7658
  %v7675 = vrsqrt.pop %v7659
  %v7676 = vrsqrt.pop %v7660
  %v7677 = vmul.f32 %v7629, %v7661
  %v7678 = vmul.f32 %v7630, %v7662
  %v7679 = vmul.f32 %v7631, %v7663
  %v7680 = vmul.f32 %v7632, %v7664
  %v7681 = vmul.f32 %v7633, %v7665
  %v7682 = vmul.f32 %v7634, %v7666
  %v7683 = vmul.f32 %v7635, %v7667
  %v7684 = vmul.f32 %v7636, %v7668
  %v7685 = vmul.f32 %v7637, %v7669
  %v7686 = vmul.f32 %v7638, %v7670
  %v7687 = vmul.f32 %v7639, %v7671
  %v7688 = vmul.f32 %v7640, %v7672
  %v7689 = vmul.f32 %v7641, %v7673
  %v7690 = vmul.f32 %v7642, %v7674
  %v7691 = vmul.f32 %v7643, %v7675
  %v7692 = vmul.f32 %v7644, %v7676
  %v7693 = vld [vmem:[%s5] sm:$0xff]
  %v7694 = vld [vmem:[%s5 + $0x8] sm:$0xff]
  %v7695 = vld [vmem:[%s5 + $0x10] sm:$0xff]
  %v7696 = vld [vmem:[%s5 + $0x18] sm:$0xff]
  %v7697 = vld [vmem:[%s5 + $0x20] sm:$0xff]
  %v7698 = vld [vmem:[%s5 + $0x28] sm:$0xff]
  %v7699 = vld [vmem:[%s5 + $0x30] sm:$0xff]
  %v7700 = vld [vmem:[%s5 + $0x38] sm:$0xff]
  %v7701 = vld [vmem:[%s5 + $0x40] sm:$0xff]
  %v7702 = vld [vmem:[%s5 + $0x48] sm:$0xff]
  %v7703 = vld [vmem:[%s5 + $0x50] sm:$0xff]
  %v7704 = vld [vmem:[%s5 + $0x58] sm:$0xff]
  %v7705 = vld [vmem:[%s5 + $0x60] sm:$0xff]
  %v7706 = vld [vmem:[%s5 + $0x68] sm:$0xff]
  %v7707 = vld [vmem:[%s5 + $0x70] sm:$0xff]
  %v7708 = vld [vmem:[%s5 + $0x78] sm:$0xff]
  %v7709 = vmul.f32 %v7549, %v7677
  %v7710 = vmul.f32 %v7550, %v7678
  %v7711 = vmul.f32 %v7551, %v7679
  %v7712 = vmul.f32 %v7552, %v7680
  %v7713 = vmul.f32 %v7553, %v7681
  %v7714 = vmul.f32 %v7554, %v7682
  %v7715 = vmul.f32 %v7555, %v7683
  %v7716 = vmul.f32 %v7556, %v7684
  %v7717 = vmul.f32 %v7557, %v7685
  %v7718 = vmul.f32 %v7558, %v7686
  %v7719 = vmul.f32 %v7559, %v7687
  %v7720 = vmul.f32 %v7560, %v7688
  %v7721 = vmul.f32 %v7561, %v7689
  %v7722 = vmul.f32 %v7562, %v7690
  %v7723 = vmul.f32 %v7563, %v7691
  %v7724 = vmul.f32 %v7564, %v7692
  %v7725 = vsub.f32 %v7693, %v7709
  %v7726 = vsub.f32 %v7694, %v7710
  %v7727 = vsub.f32 %v7695, %v7711
  %v7728 = vsub.f32 %v7696, %v7712
  %v7729 = vsub.f32 %v7697, %v7713
  %v7730 = vsub.f32 %v7698, %v7714
  %v7731 = vsub.f32 %v7699, %v7715
  %v7732 = vsub.f32 %v7700, %v7716
  %v7733 = vsub.f32 %v7701, %v7717
  %v7734 = vsub.f32 %v7702, %v7718
  %v7735 = vsub.f32 %v7703, %v7719
  %v7736 = vsub.f32 %v7704, %v7720
  %v7737 = vsub.f32 %v7705, %v7721
  %v7738 = vsub.f32 %v7706, %v7722
  %v7739 = vsub.f32 %v7707, %v7723
  %v7740 = vsub.f32 %v7708, %v7724
  %7742 = vset.pattern.permute.xlu0 0
  %7743 = vperm.xlu0 %7742, %v7677
  %v7744 = vpop.permute.xlu0 %7743
  %7747 = vset.pattern.permute.xlu0 0
  %7748 = vperm.xlu0 %7747, %v7678
  %v7749 = vpop.permute.xlu0 %7748
  %7752 = vset.pattern.permute.xlu0 0
  %7753 = vperm.xlu0 %7752, %v7679
  %v7754 = vpop.permute.xlu0 %7753
  %7757 = vset.pattern.permute.xlu0 0
  %7758 = vperm.xlu0 %7757, %v7680
  %v7759 = vpop.permute.xlu0 %7758
  %7762 = vset.pattern.permute.xlu0 0
  %7763 = vperm.xlu0 %7762, %v7681
  %v7764 = vpop.permute.xlu0 %7763
  %7767 = vset.pattern.permute.xlu0 0
  %7768 = vperm.xlu0 %7767, %v7682
  %v7769 = vpop.permute.xlu0 %7768
  %7772 = vset.pattern.permute.xlu0 0
  %7773 = vperm.xlu0 %7772, %v7683
  %v7774 = vpop.permute.xlu0 %7773
  %7777 = vset.pattern.permute.xlu0 0
  %7778 = vperm.xlu0 %7777, %v7684
  %v7779 = vpop.permute.xlu0 %7778
  %7782 = vset.pattern.permute.xlu0 0
  %7783 = vperm.xlu0 %7782, %v7685
  %v7784 = vpop.permute.xlu0 %7783
  %7787 = vset.pattern.permute.xlu0 0
  %7788 = vperm.xlu0 %7787, %v7686
  %v7789 = vpop.permute.xlu0 %7788
  %7792 = vset.pattern.permute.xlu0 0
  %7793 = vperm.xlu0 %7792, %v7687
  %v7794 = vpop.permute.xlu0 %7793
  %7797 = vset.pattern.permute.xlu0 0
  %7798 = vperm.xlu0 %7797, %v7688
  %v7799 = vpop.permute.xlu0 %7798
  %7802 = vset.pattern.permute.xlu0 0
  %7803 = vperm.xlu0 %7802, %v7689
  %v7804 = vpop.permute.xlu0 %7803
  %7807 = vset.pattern.permute.xlu0 0
  %7808 = vperm.xlu0 %7807, %v7690
  %v7809 = vpop.permute.xlu0 %7808
  %7812 = vset.pattern.permute.xlu0 0
  %7813 = vperm.xlu0 %7812, %v7691
  %v7814 = vpop.permute.xlu0 %7813
  %7817 = vset.pattern.permute.xlu0 0
  %7818 = vperm.xlu0 %7817, %v7692
  %v7819 = vpop.permute.xlu0 %7818
  %v7821 = vmul.f32 %v7295, %v7744
  %v7822 = vmul.f32 %v7297, %v7744
  %v7823 = vmul.f32 %v7301, %v7749
  %v7824 = vmul.f32 %v7303, %v7749
  %v7825 = vmul.f32 %v7307, %v7754
  %v7826 = vmul.f32 %v7309, %v7754
  %v7827 = vmul.f32 %v7313, %v7759
  %v7828 = vmul.f32 %v7315, %v7759
  %v7829 = vmul.f32 %v7319, %v7764
  %v7830 = vmul.f32 %v7321, %v7764
  %v7831 = vmul.f32 %v7325, %v7769
  %v7832 = vmul.f32 %v7327, %v7769
  %v7833 = vmul.f32 %v7331, %v7774
  %v7834 = vmul.f32 %v7333, %v7774
  %v7835 = vmul.f32 %v7337, %v7779
  %v7836 = vmul.f32 %v7339, %v7779
  %v7837 = vmul.f32 %v7343, %v7784
  %v7838 = vmul.f32 %v7345, %v7784
  %v7839 = vmul.f32 %v7349, %v7789
  %v7840 = vmul.f32 %v7351, %v7789
  %v7841 = vmul.f32 %v7355, %v7794
  %v7842 = vmul.f32 %v7357, %v7794
  %v7843 = vmul.f32 %v7361, %v7799
  %v7844 = vmul.f32 %v7363, %v7799
  %v7845 = vmul.f32 %v7367, %v7804
  %v7846 = vmul.f32 %v7369, %v7804
  %v7847 = vmul.f32 %v7373, %v7809
  %v7848 = vmul.f32 %v7375, %v7809
  %v7849 = vmul.f32 %v7379, %v7814
  %v7850 = vmul.f32 %v7381, %v7814
  %v7851 = vmul.f32 %v7385, %v7819
  %v7852 = vmul.f32 %v7387, %v7819
  %7854 = vset.pattern.permute.xlu0 0
  %7855 = vperm.xlu0 %7854, %v7725
  %v7856 = vpop.permute.xlu0 %7855
  %7859 = vset.pattern.permute.xlu0 0
  %7860 = vperm.xlu0 %7859, %v7726
  %v7861 = vpop.permute.xlu0 %7860
  %7864 = vset.pattern.permute.xlu0 0
  %7865 = vperm.xlu0 %7864, %v7727
  %v7866 = vpop.permute.xlu0 %7865
  %7869 = vset.pattern.permute.xlu0 0
  %7870 = vperm.xlu0 %7869, %v7728
  %v7871 = vpop.permute.xlu0 %7870
  %7874 = vset.pattern.permute.xlu0 0
  %7875 = vperm.xlu0 %7874, %v7729
  %v7876 = vpop.permute.xlu0 %7875
  %7879 = vset.pattern.permute.xlu0 0
  %7880 = vperm.xlu0 %7879, %v7730
  %v7881 = vpop.permute.xlu0 %7880
  %7884 = vset.pattern.permute.xlu0 0
  %7885 = vperm.xlu0 %7884, %v7731
  %v7886 = vpop.permute.xlu0 %7885
  %7889 = vset.pattern.permute.xlu0 0
  %7890 = vperm.xlu0 %7889, %v7732
  %v7891 = vpop.permute.xlu0 %7890
  %7894 = vset.pattern.permute.xlu0 0
  %7895 = vperm.xlu0 %7894, %v7733
  %v7896 = vpop.permute.xlu0 %7895
  %7899 = vset.pattern.permute.xlu0 0
  %7900 = vperm.xlu0 %7899, %v7734
  %v7901 = vpop.permute.xlu0 %7900
  %7904 = vset.pattern.permute.xlu0 0
  %7905 = vperm.xlu0 %7904, %v7735
  %v7906 = vpop.permute.xlu0 %7905
  %7909 = vset.pattern.permute.xlu0 0
  %7910 = vperm.xlu0 %7909, %v7736
  %v7911 = vpop.permute.xlu0 %7910
  %7914 = vset.pattern.permute.xlu0 0
  %7915 = vperm.xlu0 %7914, %v7737
  %v7916 = vpop.permute.xlu0 %7915
  %7919 = vset.pattern.permute.xlu0 0
  %7920 = vperm.xlu0 %7919, %v7738
  %v7921 = vpop.permute.xlu0 %7920
  %7924 = vset.pattern.permute.xlu0 0
  %7925 = vperm.xlu0 %7924, %v7739
  %v7926 = vpop.permute.xlu0 %7925
  %7929 = vset.pattern.permute.xlu0 0
  %7930 = vperm.xlu0 %7929, %v7740
  %v7931 = vpop.permute.xlu0 %7930
  %v7933 = vadd.f32 %v7821, %v7856
  %v7934 = vadd.f32 %v7822, %v7856
  %v7935 = vadd.f32 %v7823, %v7861
  %v7936 = vadd.f32 %v7824, %v7861
  %v7937 = vadd.f32 %v7825, %v7866
  %v7938 = vadd.f32 %v7826, %v7866
  %v7939 = vadd.f32 %v7827, %v7871
  %v7940 = vadd.f32 %v7828, %v7871
  %v7941 = vadd.f32 %v7829, %v7876
  %v7942 = vadd.f32 %v7830, %v7876
  %v7943 = vadd.f32 %v7831, %v7881
  %v7944 = vadd.f32 %v7832, %v7881
  %v7945 = vadd.f32 %v7833, %v7886
  %v7946 = vadd.f32 %v7834, %v7886
  %v7947 = vadd.f32 %v7835, %v7891
  %v7948 = vadd.f32 %v7836, %v7891
  %v7949 = vadd.f32 %v7837, %v7896
  %v7950 = vadd.f32 %v7838, %v7896
  %v7951 = vadd.f32 %v7839, %v7901
  %v7952 = vadd.f32 %v7840, %v7901
  %v7953 = vadd.f32 %v7841, %v7906
  %v7954 = vadd.f32 %v7842, %v7906
  %v7955 = vadd.f32 %v7843, %v7911
  %v7956 = vadd.f32 %v7844, %v7911
  %v7957 = vadd.f32 %v7845, %v7916
  %v7958 = vadd.f32 %v7846, %v7916
  %v7959 = vadd.f32 %v7847, %v7921
  %v7960 = vadd.f32 %v7848, %v7921
  %v7961 = vadd.f32 %v7849, %v7926
  %v7962 = vadd.f32 %v7850, %v7926
  %v7963 = vadd.f32 %v7851, %v7931
  %v7964 = vadd.f32 %v7852, %v7931
  %v7965 = vmax.f32 %v7933, 0.0
  %v7966 = vmax.f32 %v7934, 0.0
  %v7967 = vmax.f32 %v7935, 0.0
  %v7968 = vmax.f32 %v7936, 0.0
  %v7969 = vmax.f32 %v7937, 0.0
  %v7970 = vmax.f32 %v7938, 0.0
  %v7971 = vmax.f32 %v7939, 0.0
  %v7972 = vmax.f32 %v7940, 0.0
  %v7973 = vmax.f32 %v7941, 0.0
  %v7974 = vmax.f32 %v7942, 0.0
  %v7975 = vmax.f32 %v7943, 0.0
  %v7976 = vmax.f32 %v7944, 0.0
  %v7977 = vmax.f32 %v7945, 0.0
  %v7978 = vmax.f32 %v7946, 0.0
  %v7979 = vmax.f32 %v7947, 0.0
  %v7980 = vmax.f32 %v7948, 0.0
  %v7981 = vmax.f32 %v7949, 0.0
  %v7982 = vmax.f32 %v7950, 0.0
  %v7983 = vmax.f32 %v7951, 0.0
  %v7984 = vmax.f32 %v7952, 0.0
  %v7985 = vmax.f32 %v7953, 0.0
  %v7986 = vmax.f32 %v7954, 0.0
  %v7987 = vmax.f32 %v7955, 0.0
  %v7988 = vmax.f32 %v7956, 0.0
  %v7989 = vmax.f32 %v7957, 0.0
  %v7990 = vmax.f32 %v7958, 0.0
  %v7991 = vmax.f32 %v7959, 0.0
  %v7992 = vmax.f32 %v7960, 0.0
  %v7993 = vmax.f32 %v7961, 0.0
  %v7994 = vmax.f32 %v7962, 0.0
  %v7995 = vmax.f32 %v7963, 0.0
  %v7996 = vmax.f32 %v7964, 0.0
  %7997 = vst [vmem:[%s6] sm:$0xff] %v7965
  %7998 = vst.msk [vmem:[%s6 + $0x8] sm:$0xff] %vm343, %v7966
  %7999 = vst [vmem:[%s6 + $0x10] sm:$0xff] %v7967
  %8000 = vst.msk [vmem:[%s6 + $0x18] sm:$0xff] %vm343, %v7968
  %8001 = vst [vmem:[%s6 + $0x20] sm:$0xff] %v7969
  %8002 = vst.msk [vmem:[%s6 + $0x28] sm:$0xff] %vm343, %v7970
  %8003 = vst [vmem:[%s6 + $0x30] sm:$0xff] %v7971
  %8004 = vst.msk [vmem:[%s6 + $0x38] sm:$0xff] %vm343, %v7972
  %8005 = vst [vmem:[%s6 + $0x40] sm:$0xff] %v7973
  %8006 = vst.msk [vmem:[%s6 + $0x48] sm:$0xff] %vm343, %v7974
  %8007 = vst [vmem:[%s6 + $0x50] sm:$0xff] %v7975
  %8008 = vst.msk [vmem:[%s6 + $0x58] sm:$0xff] %vm343, %v7976
  %8009 = vst [vmem:[%s6 + $0x60] sm:$0xff] %v7977
  %8010 = vst.msk [vmem:[%s6 + $0x68] sm:$0xff] %vm343, %v7978
  %8011 = vst [vmem:[%s6 + $0x70] sm:$0xff] %v7979
  %8012 = vst.msk [vmem:[%s6 + $0x78] sm:$0xff] %vm343, %v7980
  %8013 = vst [vmem:[%s6 + $0x80] sm:$0xff] %v7981
  %8014 = vst.msk [vmem:[%s6 + $0x88] sm:$0xff] %vm343, %v7982
  %8015 = vst [vmem:[%s6 + $0x90] sm:$0xff] %v7983
  %8016 = vst.msk [vmem:[%s6 + $0x98] sm:$0xff] %vm343, %v7984
  %8017 = vst [vmem:[%s6 + $0xa0] sm:$0xff] %v7985
  %8018 = vst.msk [vmem:[%s6 + $0xa8] sm:$0xff] %vm343, %v7986
  %8019 = vst [vmem:[%s6 + $0xb0] sm:$0xff] %v7987
  %8020 = vst.msk [vmem:[%s6 + $0xb8] sm:$0xff] %vm343, %v7988
  %8021 = vst [vmem:[%s6 + $0xc0] sm:$0xff] %v7989
  %8022 = vst.msk [vmem:[%s6 + $0xc8] sm:$0xff] %vm343, %v7990
  %8023 = vst [vmem:[%s6 + $0xd0] sm:$0xff] %v7991
  %8024 = vst.msk [vmem:[%s6 + $0xd8] sm:$0xff] %vm343, %v7992
  %8025 = vst [vmem:[%s6 + $0xe0] sm:$0xff] %v7993
  %8026 = vst.msk [vmem:[%s6 + $0xe8] sm:$0xff] %vm343, %v7994
  %8027 = vst [vmem:[%s6 + $0xf0] sm:$0xff] %v7995
  %8028 = vst.msk [vmem:[%s6 + $0xf8] sm:$0xff] %vm343, %v7996
  // Predicated region
  $region26: #{tpu_custom_call.1} parent=0 // pred_check
    _
  $region27: #{tpu_custom_call.1} parent=0 // pred_check_branch
    %8030 = sbr.rel (0) target = $region29
  $region28: #{tpu_custom_call.1} parent=0 // pred_region
    _
  $region29: #{tpu_custom_call.1} parent=0 // pred_fallthru
    _
  // Predicated region
  $region30: #{tpu_custom_call.1} parent=0 // pred_check
    _
  $region31: #{tpu_custom_call.1} parent=0 // pred_check_branch
    %8032 = sbr.rel (0) target = $region33
  $region32: #{tpu_custom_call.1} parent=0 // pred_region
    _
  $region33: #{tpu_custom_call.1} parent=0 // pred_fallthru
    _

</llo_original>
